<compile_context>
chip_gen: v7x
topology: tpu7x:2x2x1
jax: 0.10.0
libtpu: 0.0.40
codegen_flags: <defaults>
</compile_context>

<pallas_src>
import jax
import jax.numpy as jnp
from jax.experimental import pallas as pl
from jax.experimental.pallas import tpu as pltpu

NATOMS = 16   # atoms per frame
NTYPES = 4    # number of atom types
TEBD = 32     # type-embedding width
HIDDEN = 32   # fitting-net hidden width
F_BLOCK = 64  # frames per grid step (F_BLOCK * NATOMS = 1024 -> GEMM M dimension)


# --------------------------------------------------------------------------------------
# Pallas kernel: F_BLOCK frames per grid step
# --------------------------------------------------------------------------------------
def _energy_kernel(ci_ref, cj_ref, at_ref, w1e_ref, b1_ref, w2_ref, b2_ref,
                   w3_ref, b3_ref, ae_ref):
    F, n, _ = ci_ref.shape                 # (F, natoms, 3)
    ntypes, hidden = w1e_ref.shape

    ci = ci_ref[...]                       # (F, n, 3)   atoms on sublanes
    cj = cj_ref[...]                       # (F, 3, n)   atoms on lanes
    at = at_ref[...]                       # (F, 1, n)   int32 atom types (lanes)

    # --- pairwise squared distances, component-unrolled (pure VPU on (F, n, n) tiles) ---
    dx = ci[:, :, 0:1] - cj[:, 0:1, :]     # (F, n, n)
    dy = ci[:, :, 1:2] - cj[:, 1:2, :]
    dz = ci[:, :, 2:3] - cj[:, 2:3, :]
    d2 = dx * dx + dy * dy + dz * dz       # (F, n, n)

    # diagonal mask: rsqrt computed unconditionally (rsqrt(1e-6) is finite), diag zeroed once.
    # Off-diagonal coincident atoms also give the finite value rsqrt(1e-6) -- matches the
    # reference model; zero-padded frames flow through finitely and are dropped outside.
    row = jax.lax.broadcasted_iota(jnp.int32, (n, n), 0)
    col = jax.lax.broadcasted_iota(jnp.int32, (n, n), 1)
    diag = (row == col)[None, :, :]                                   # (1, n, n)
    s = jnp.where(diag, 0.0, jax.lax.rsqrt(d2 + 1e-6))                # (F, n, n)

    # --- descriptor + layer-1, algebraically folded -------------------------------------
    #   h1_pre[f,i,:] = sum_t ( sum_{j: atype[f,j]==t} s[f,i,j] ) * W1eff[t,:]
    # NTYPES masked lane reductions (XLU) + NTYPES broadcast FMAs (VPU); no per-frame MXU.
    w1e = w1e_ref[...]                     # (ntypes, hidden)
    h1_pre = None
    for t in range(ntypes):                # static unroll, NTYPES is tiny
        coeff = jnp.sum(jnp.where(at == t, s, 0.0),
                        axis=-1, keepdims=True)                       # (F, n, 1)
        term = coeff * w1e[t:t + 1, :]                                # (F, n, hidden)
        h1_pre = term if h1_pre is None else h1_pre + term
    h1 = jnp.tanh(h1_pre + b1_ref[...])                               # (F, n, hidden)

    # --- layer-2: one big flattened GEMM over all atoms of all frames in the block -------
    h1_2d = h1.reshape(F * n, hidden)                                 # free leading flatten
    h2 = jnp.tanh(jnp.dot(h1_2d, w2_ref[...],
                          preferred_element_type=jnp.float32)
                  + b2_ref[...])                                      # (F*n, hidden)

    # --- output layer: lane reduction, emitted as a dense (F, n) slab --------------------
    h2_3d = h2.reshape(F, n, hidden)                                  # free leading split
    e_atom = jnp.sum(h2_3d * w3_ref[...], axis=-1) + b3_ref[0, 0]     # (F, n)
    ae_ref[...] = e_atom


def deepmd_energy_forward(coord, atype, type_embedding, params, f_block=F_BLOCK):
    """coord: (nf, natoms, 3) f32; atype: (nf, natoms) int; type_embedding: (ntypes, tebd)."""
    nf, natoms, _ = coord.shape
    w1, b1, w2, b2, w3, b3 = params
    ntypes = type_embedding.shape[0]
    hidden = w1.shape[1]

    coord = coord.astype(jnp.float32)
    # fold the descriptor weights once:  G @ W1 == (s @ onehot(atype)) @ (type_embedding @ W1)
    w1eff = jnp.dot(type_embedding.astype(jnp.float32), w1.astype(jnp.float32),
                    precision="highest")                               # (ntypes, hidden)

    f_block = int(max(1, min(f_block, nf)))
    if f_block < nf:
        f_block = max(8, (f_block // 8) * 8)    # keep the output block's sublane dim aligned
    nf_pad = ((nf + f_block - 1) // f_block) * f_block
    if nf_pad != nf:
        pad = nf_pad - nf
        coord = jnp.concatenate([coord, jnp.zeros((pad, natoms, 3), jnp.float32)], axis=0)
        atype = jnp.concatenate([atype, jnp.zeros((pad, natoms), atype.dtype)], axis=0)

    coord_i = coord                            # (nf_pad, natoms, 3)  atoms on sublanes
    coord_j = jnp.swapaxes(coord, 1, 2)        # (nf_pad, 3, natoms)  atoms on lanes
    atype3 = atype.astype(jnp.int32)[:, None, :]   # (nf_pad, 1, natoms)
    n_blocks = nf_pad // f_block

    b1f = b1.astype(jnp.float32)
    w2f = w2.astype(jnp.float32)
    b2f = b2.astype(jnp.float32)
    w3f = w3.astype(jnp.float32)
    b3f = b3.astype(jnp.float32)

    # advisory cost estimate so XLA can overlap surrounding ops with this latency-bound call
    flops = int(nf_pad) * natoms * (9 * natoms                # pairwise dx,dy,dz,d2
                                    + 2 * natoms * ntypes     # masked type reductions
                                    + 2 * ntypes * hidden     # folded descriptor + layer 1
                                    + 2 * hidden * hidden     # layer-2 GEMM
                                    + 2 * hidden)             # output layer
    transcendentals = int(nf_pad) * natoms * (natoms + 2 * hidden)   # rsqrt + 2x tanh
    bytes_accessed = 4 * int(coord_i.size + coord_j.size + atype3.size
                             + w1eff.size + b1f.size + w2f.size + b2f.size
                             + w3f.size + b3f.size + nf_pad * natoms)

    grid_spec = pltpu.PrefetchScalarGridSpec(
        num_scalar_prefetch=0,
        grid=(n_blocks,),
        in_specs=[
            pl.BlockSpec((f_block, natoms, 3), lambda b: (b, 0, 0)),     # coord (atom-major)
            pl.BlockSpec((f_block, 3, natoms), lambda b: (b, 0, 0)),     # coord (xyz-major)
            pl.BlockSpec((f_block, 1, natoms), lambda b: (b, 0, 0)),     # atom types (int32)
            pl.BlockSpec((ntypes, hidden), lambda b: (0, 0)),            # W1eff = tembd @ w1
            pl.BlockSpec((1, hidden), lambda b: (0, 0)),                 # b1
            pl.BlockSpec((hidden, hidden), lambda b: (0, 0)),            # w2
            pl.BlockSpec((1, hidden), lambda b: (0, 0)),                 # b2
            pl.BlockSpec((1, hidden), lambda b: (0, 0)),                 # w3
            pl.BlockSpec(memory_space=pltpu.MemorySpace.SMEM),           # b3 (scalar)
        ],
        out_specs=pl.BlockSpec((f_block, natoms), lambda b: (b, 0)),     # atom energies
    )

    atom_energy = pl.pallas_call(
        _energy_kernel,
        out_shape=jax.ShapeDtypeStruct((nf_pad, natoms), jnp.float32),
        grid_spec=grid_spec,
        compiler_params=pltpu.CompilerParams(
            dimension_semantics=("parallel",),
            vmem_limit_bytes=32 * 1024 * 1024,   # safe on v5e/v6e (128 MiB) and v7x (64 MiB)
        ),
        cost_estimate=pl.CostEstimate(flops=flops,
                                      transcendentals=transcendentals,
                                      bytes_accessed=bytes_accessed),
    )(coord_i, coord_j, atype3, w1eff, b1f, w2f, b2f, w3f, b3f)

    atom_energy = atom_energy[:nf]                 # drop padded frames
    energy = jnp.sum(atom_energy, axis=-1)         # trivial per-frame reduction in XLA
    return energy, atom_energy


# --------------------------------------------------------------------------------------
# Synthetic DeePMD-style energy model (the wrapped torch.nn.Module stand-in)
# --------------------------------------------------------------------------------------
class SyntheticEnergyModel:
    has_spin = False  # ModelWrapper checks this attribute

    def __init__(self, fit_params, type_embedding):
        self.fit_params = fit_params
        self.type_embedding = type_embedding  # (NTYPES, TEBD)

    def __call__(self, coord, atype, box=None, do_atomic_virial=False,
                 fparam=None, aparam=None):
        coord = coord.reshape(atype.shape[0], atype.shape[1], 3).astype(jnp.float32)
        energy, atom_energy = deepmd_energy_forward(
            coord, atype, self.type_embedding, self.fit_params)
        return {"energy": energy, "atom_energy": atom_energy}


# --------------------------------------------------------------------------------------
# ModelWrapper: mirrors the PyTorch forward semantics (inference-only branch)
# --------------------------------------------------------------------------------------
class ModelWrapper:
    def __init__(self, model, loss=None, model_params=None, shared_links=None):
        self.model_params = model_params if model_params is not None else {}
        self.train_infos = {"lr": 0, "step": 0}
        self.multi_task = isinstance(model, dict)
        self.model = dict(model) if self.multi_task else {"Default": model}
        self.loss = loss
        self.inference_only = loss is None

    def forward(self, coord, atype, spin=None, box=None, cur_lr=None, label=None,
                task_key=None, inference_only=False, do_atomic_virial=False,
                fparam=None, aparam=None):
        if not self.multi_task:
            task_key = "Default"
        else:
            assert task_key is not None, "Multitask model must specify the inference task!"
        input_dict = {"coord": coord, "atype": atype, "box": box,
                      "do_atomic_virial": do_atomic_virial,
                      "fparam": fparam, "aparam": aparam}
        has_spin = getattr(self.model[task_key], "has_spin", False)
        if callable(has_spin):
            has_spin = has_spin()
        if has_spin:
            input_dict["spin"] = spin
        if self.inference_only or inference_only:
            model_pred = self.model[task_key](**input_dict)
            return model_pred, None, None
        # TODO(synk): training/loss branch requires a loss module; this synthetic wrapper is inference-only.
        raise NotImplementedError("loss path not implemented in synthetic wrapper")

    __call__ = forward


# --------------------------------------------------------------------------------------
# pure-JAX reference for sanity checking (original, un-folded formulation)
# --------------------------------------------------------------------------------------
def _ref_forward(coord, tembd, params):
    w1, b1, w2, b2, w3, b3 = params

    def per_frame(c, t):
        diff = c[:, None, :] - c[None, :, :]
        d2 = jnp.sum(diff * diff, axis=-1)
        n = c.shape[0]
        diag = jnp.eye(n, dtype=bool)
        s = jnp.where(diag, 0.0, jax.lax.rsqrt(jnp.where(diag, 1.0, d2) + 1e-6))
        g = jnp.dot(s, t, precision="highest")
        h1 = jnp.tanh(jnp.dot(g, w1, precision="highest") + b1)
        h2 = jnp.tanh(jnp.dot(h1, w2, precision="highest") + b2)
        e_atom = jnp.sum(h2 * w3, axis=-1) + b3[0, 0]
        return jnp.sum(e_atom), e_atom

    return jax.vmap(per_frame)(coord, tembd)


if __name__ == "__main__":
    key = jax.random.PRNGKey(0)
    k1, k2, k3, k4, k5, k6 = jax.random.split(key, 6)

    nf = 128   # 2 grid steps of F_BLOCK=64 frames (>=2 parallel blocks for 2-TC chips)
    coord = jax.random.uniform(k1, (nf, NATOMS, 3), dtype=jnp.float32,
                               minval=0.0, maxval=3.0)
    atype = jax.random.randint(k2, (nf, NATOMS), 0, NTYPES, dtype=jnp.int32)
    box = jnp.tile(10.0 * jnp.eye(3, dtype=jnp.float32)[None], (nf, 1, 1))

    # deterministic parameter init
    type_embedding = 0.1 * jax.random.normal(k3, (NTYPES, TEBD), dtype=jnp.float32)
    w1 = jax.random.normal(k4, (TEBD, HIDDEN), dtype=jnp.float32) / jnp.sqrt(float(TEBD))
    b1 = 0.01 * jnp.ones((1, HIDDEN), jnp.float32)
    w2 = jax.random.normal(k5, (HIDDEN, HIDDEN), dtype=jnp.float32) / jnp.sqrt(float(HIDDEN))
    b2 = 0.01 * jnp.ones((1, HIDDEN), jnp.float32)
    w3 = jax.random.normal(k6, (1, HIDDEN), dtype=jnp.float32) / jnp.sqrt(float(HIDDEN))
    b3 = jnp.zeros((1, 1), jnp.float32)
    fit_params = (w1, b1, w2, b2, w3, b3)

    inner_model = SyntheticEnergyModel(fit_params, type_embedding)
    wrapper = ModelWrapper(inner_model, loss=None)

    model_pred, loss, more_loss = wrapper(coord, atype, box=box)
    jax.block_until_ready(model_pred["energy"])
    jax.block_until_ready(model_pred["atom_energy"])
    assert loss is None and more_loss is None

    # sanity check against pure-JAX reference
    ref_e, ref_ae = _ref_forward(coord, type_embedding[atype], fit_params)
    assert model_pred["energy"].shape == (nf,)
    assert model_pred["atom_energy"].shape == (nf, NATOMS)
    assert jnp.allclose(model_pred["atom_energy"], ref_ae, rtol=2e-3, atol=2e-3)
    assert jnp.allclose(model_pred["energy"], ref_e, rtol=2e-3, atol=5e-3)

    print("KERNEL_OK")
</pallas_src>

<mosaic_0001>
module attributes {stable_mosaic.version = 11 : i64} {
  func.func @_energy_kernel(%arg0: i32, %arg1: memref<64x16x3xf32, #tpu.memory_space<vmem>>, %arg2: memref<64x3x16xf32, #tpu.memory_space<vmem>>, %arg3: memref<64x1x16xi32, #tpu.memory_space<vmem>>, %arg4: memref<4x32xf32, #tpu.memory_space<vmem>>, %arg5: memref<1x32xf32, #tpu.memory_space<vmem>>, %arg6: memref<32x32xf32, #tpu.memory_space<vmem>>, %arg7: memref<1x32xf32, #tpu.memory_space<vmem>>, %arg8: memref<1x32xf32, #tpu.memory_space<vmem>>, %arg9: memref<1x1xf32, #tpu.memory_space<smem>>, %arg10: memref<64x16xf32, #tpu.memory_space<vmem>>) attributes {dimension_semantics = [#tpu.dimension_semantics<parallel>], iteration_bounds = array<i64: 2>, scalar_prefetch = 0 : i64, scratch_operands = 0 : i64, tpu.core_type = #tpu.core_type<tc>, window_params = [{transform_indices = @transform_0, window_bounds = array<i64: 64, 16, 3>}, {transform_indices = @transform_1, window_bounds = array<i64: 64, 3, 16>}, {transform_indices = @transform_2, window_bounds = array<i64: 64, 1, 16>}, {pipeline_mode = #tpu.pipeline_mode<synchronous>, transform_indices = @transform_3, window_bounds = array<i64: 4, 32>}, {pipeline_mode = #tpu.pipeline_mode<synchronous>, transform_indices = @transform_4, window_bounds = array<i64: 1, 32>}, {pipeline_mode = #tpu.pipeline_mode<synchronous>, transform_indices = @transform_5, window_bounds = array<i64: 32, 32>}, {pipeline_mode = #tpu.pipeline_mode<synchronous>, transform_indices = @transform_6, window_bounds = array<i64: 1, 32>}, {pipeline_mode = #tpu.pipeline_mode<synchronous>, transform_indices = @transform_7, window_bounds = array<i64: 1, 32>}, {transform_indices = @transform_8, window_bounds = array<i64: 1, 1>}, {transform_indices = @transform_9, window_bounds = array<i64: 64, 16>}]} {
    %c0 = arith.constant 0 : index
    %c0_0 = arith.constant 0 : index
    %c0_1 = arith.constant 0 : index
    %0 = vector.load %arg1[%c0, %c0_0, %c0_1] : memref<64x16x3xf32, #tpu.memory_space<vmem>>, vector<64x16x3xf32>
    %c0_2 = arith.constant 0 : index
    %c0_3 = arith.constant 0 : index
    %c0_4 = arith.constant 0 : index
    %1 = vector.load %arg2[%c0_2, %c0_3, %c0_4] : memref<64x3x16xf32, #tpu.memory_space<vmem>>, vector<64x3x16xf32>
    %c0_5 = arith.constant 0 : index
    %c0_6 = arith.constant 0 : index
    %c0_7 = arith.constant 0 : index
    %2 = vector.load %arg3[%c0_5, %c0_6, %c0_7] : memref<64x1x16xi32, #tpu.memory_space<vmem>>, vector<64x1x16xi32>
    %3 = vector.extract_strided_slice %0 {offsets = [0, 0, 0], sizes = [64, 16, 1], strides = [1, 1, 1]} : vector<64x16x3xf32> to vector<64x16x1xf32>
    %4 = vector.extract_strided_slice %1 {offsets = [0, 0, 0], sizes = [64, 1, 16], strides = [1, 1, 1]} : vector<64x3x16xf32> to vector<64x1x16xf32>
    %5 = vector.broadcast %3 : vector<64x16x1xf32> to vector<64x16x16xf32>
    %6 = vector.broadcast %4 : vector<64x1x16xf32> to vector<64x16x16xf32>
    %7 = arith.subf %5, %6 : vector<64x16x16xf32>
    %8 = vector.extract_strided_slice %0 {offsets = [0, 0, 1], sizes = [64, 16, 1], strides = [1, 1, 1]} : vector<64x16x3xf32> to vector<64x16x1xf32>
    %9 = vector.extract_strided_slice %1 {offsets = [0, 1, 0], sizes = [64, 1, 16], strides = [1, 1, 1]} : vector<64x3x16xf32> to vector<64x1x16xf32>
    %10 = vector.broadcast %8 : vector<64x16x1xf32> to vector<64x16x16xf32>
    %11 = vector.broadcast %9 : vector<64x1x16xf32> to vector<64x16x16xf32>
    %12 = arith.subf %10, %11 : vector<64x16x16xf32>
    %13 = vector.extract_strided_slice %0 {offsets = [0, 0, 2], sizes = [64, 16, 1], strides = [1, 1, 1]} : vector<64x16x3xf32> to vector<64x16x1xf32>
    %14 = vector.extract_strided_slice %1 {offsets = [0, 2, 0], sizes = [64, 1, 16], strides = [1, 1, 1]} : vector<64x3x16xf32> to vector<64x1x16xf32>
    %15 = vector.broadcast %13 : vector<64x16x1xf32> to vector<64x16x16xf32>
    %16 = vector.broadcast %14 : vector<64x1x16xf32> to vector<64x16x16xf32>
    %17 = arith.subf %15, %16 : vector<64x16x16xf32>
    %18 = arith.mulf %7, %7 : vector<64x16x16xf32>
    %19 = arith.mulf %12, %12 : vector<64x16x16xf32>
    %20 = arith.addf %18, %19 : vector<64x16x16xf32>
    %21 = arith.mulf %17, %17 : vector<64x16x16xf32>
    %22 = arith.addf %20, %21 : vector<64x16x16xf32>
    %23 = tpu.iota {dimensions = array<i32: 0>} : vector<16x16xi32>
    %24 = tpu.iota {dimensions = array<i32: 1>} : vector<16x16xi32>
    %25 = arith.cmpi eq, %23, %24 : vector<16x16xi32>
    %26 = vector.shape_cast %25 : vector<16x16xi1> to vector<1x16x16xi1>
    %cst = arith.constant 9.99999997E-7 : f32
    %27 = vector.broadcast %cst : f32 to vector<64x16x16xf32>
    %28 = arith.addf %22, %27 : vector<64x16x16xf32>
    %29 = math.rsqrt %28 : vector<64x16x16xf32>
    %cst_8 = arith.constant 0.000000e+00 : f32
    %30 = vector.shape_cast %26 : vector<1x16x16xi1> to vector<1x16x16xi1>
    %31 = vector.broadcast %30 : vector<1x16x16xi1> to vector<64x16x16xi1>
    %32 = vector.broadcast %cst_8 : f32 to vector<64x16x16xf32>
    %33 = arith.select %31, %32, %29 : vector<64x16x16xi1>, vector<64x16x16xf32>
    %c0_9 = arith.constant 0 : index
    %c0_10 = arith.constant 0 : index
    %34 = vector.load %arg4[%c0_9, %c0_10] : memref<4x32xf32, #tpu.memory_space<vmem>>, vector<4x32xf32>
    %c0_i32 = arith.constant 0 : i32
    %35 = vector.broadcast %c0_i32 : i32 to vector<64x1x16xi32>
    %36 = arith.cmpi eq, %2, %35 : vector<64x1x16xi32>
    %cst_11 = arith.constant 0.000000e+00 : f32
    %37 = vector.shape_cast %36 : vector<64x1x16xi1> to vector<64x1x16xi1>
    %38 = vector.broadcast %37 : vector<64x1x16xi1> to vector<64x16x16xi1>
    %39 = vector.broadcast %cst_11 : f32 to vector<64x16x16xf32>
    %40 = arith.select %38, %33, %39 : vector<64x16x16xi1>, vector<64x16x16xf32>
    %cst_12 = arith.constant dense<0.000000e+00> : vector<64x16xf32>
    %41 = vector.multi_reduction <add>, %40, %cst_12 [2] : vector<64x16x16xf32> to vector<64x16xf32>
    %42 = vector.shape_cast %41 : vector<64x16xf32> to vector<64x16x1xf32>
    %43 = vector.extract_strided_slice %34 {offsets = [0, 0], sizes = [1, 32], strides = [1, 1]} : vector<4x32xf32> to vector<1x32xf32>
    %44 = vector.shape_cast %43 : vector<1x32xf32> to vector<1x1x32xf32>
    %45 = vector.broadcast %42 : vector<64x16x1xf32> to vector<64x16x32xf32>
    %46 = vector.broadcast %44 : vector<1x1x32xf32> to vector<64x16x32xf32>
    %47 = arith.mulf %45, %46 : vector<64x16x32xf32>
    %c1_i32 = arith.constant 1 : i32
    %48 = vector.broadcast %c1_i32 : i32 to vector<64x1x16xi32>
    %49 = arith.cmpi eq, %2, %48 : vector<64x1x16xi32>
    %cst_13 = arith.constant 0.000000e+00 : f32
    %50 = vector.shape_cast %49 : vector<64x1x16xi1> to vector<64x1x16xi1>
    %51 = vector.broadcast %50 : vector<64x1x16xi1> to vector<64x16x16xi1>
    %52 = vector.broadcast %cst_13 : f32 to vector<64x16x16xf32>
    %53 = arith.select %51, %33, %52 : vector<64x16x16xi1>, vector<64x16x16xf32>
    %cst_14 = arith.constant dense<0.000000e+00> : vector<64x16xf32>
    %54 = vector.multi_reduction <add>, %53, %cst_14 [2] : vector<64x16x16xf32> to vector<64x16xf32>
    %55 = vector.shape_cast %54 : vector<64x16xf32> to vector<64x16x1xf32>
    %56 = vector.extract_strided_slice %34 {offsets = [1, 0], sizes = [1, 32], strides = [1, 1]} : vector<4x32xf32> to vector<1x32xf32>
    %57 = vector.shape_cast %56 : vector<1x32xf32> to vector<1x1x32xf32>
    %58 = vector.broadcast %55 : vector<64x16x1xf32> to vector<64x16x32xf32>
    %59 = vector.broadcast %57 : vector<1x1x32xf32> to vector<64x16x32xf32>
    %60 = arith.mulf %58, %59 : vector<64x16x32xf32>
    %61 = arith.addf %47, %60 : vector<64x16x32xf32>
    %c2_i32 = arith.constant 2 : i32
    %62 = vector.broadcast %c2_i32 : i32 to vector<64x1x16xi32>
    %63 = arith.cmpi eq, %2, %62 : vector<64x1x16xi32>
    %cst_15 = arith.constant 0.000000e+00 : f32
    %64 = vector.shape_cast %63 : vector<64x1x16xi1> to vector<64x1x16xi1>
    %65 = vector.broadcast %64 : vector<64x1x16xi1> to vector<64x16x16xi1>
    %66 = vector.broadcast %cst_15 : f32 to vector<64x16x16xf32>
    %67 = arith.select %65, %33, %66 : vector<64x16x16xi1>, vector<64x16x16xf32>
    %cst_16 = arith.constant dense<0.000000e+00> : vector<64x16xf32>
    %68 = vector.multi_reduction <add>, %67, %cst_16 [2] : vector<64x16x16xf32> to vector<64x16xf32>
    %69 = vector.shape_cast %68 : vector<64x16xf32> to vector<64x16x1xf32>
    %70 = vector.extract_strided_slice %34 {offsets = [2, 0], sizes = [1, 32], strides = [1, 1]} : vector<4x32xf32> to vector<1x32xf32>
    %71 = vector.shape_cast %70 : vector<1x32xf32> to vector<1x1x32xf32>
    %72 = vector.broadcast %69 : vector<64x16x1xf32> to vector<64x16x32xf32>
    %73 = vector.broadcast %71 : vector<1x1x32xf32> to vector<64x16x32xf32>
    %74 = arith.mulf %72, %73 : vector<64x16x32xf32>
    %75 = arith.addf %61, %74 : vector<64x16x32xf32>
    %c3_i32 = arith.constant 3 : i32
    %76 = vector.broadcast %c3_i32 : i32 to vector<64x1x16xi32>
    %77 = arith.cmpi eq, %2, %76 : vector<64x1x16xi32>
    %cst_17 = arith.constant 0.000000e+00 : f32
    %78 = vector.shape_cast %77 : vector<64x1x16xi1> to vector<64x1x16xi1>
    %79 = vector.broadcast %78 : vector<64x1x16xi1> to vector<64x16x16xi1>
    %80 = vector.broadcast %cst_17 : f32 to vector<64x16x16xf32>
    %81 = arith.select %79, %33, %80 : vector<64x16x16xi1>, vector<64x16x16xf32>
    %cst_18 = arith.constant dense<0.000000e+00> : vector<64x16xf32>
    %82 = vector.multi_reduction <add>, %81, %cst_18 [2] : vector<64x16x16xf32> to vector<64x16xf32>
    %83 = vector.shape_cast %82 : vector<64x16xf32> to vector<64x16x1xf32>
    %84 = vector.extract_strided_slice %34 {offsets = [3, 0], sizes = [1, 32], strides = [1, 1]} : vector<4x32xf32> to vector<1x32xf32>
    %85 = vector.shape_cast %84 : vector<1x32xf32> to vector<1x1x32xf32>
    %86 = vector.broadcast %83 : vector<64x16x1xf32> to vector<64x16x32xf32>
    %87 = vector.broadcast %85 : vector<1x1x32xf32> to vector<64x16x32xf32>
    %88 = arith.mulf %86, %87 : vector<64x16x32xf32>
    %89 = arith.addf %75, %88 : vector<64x16x32xf32>
    %c0_19 = arith.constant 0 : index
    %c0_20 = arith.constant 0 : index
    %90 = vector.load %arg5[%c0_19, %c0_20] : memref<1x32xf32, #tpu.memory_space<vmem>>, vector<1x32xf32>
    %91 = vector.shape_cast %90 : vector<1x32xf32> to vector<1x1x32xf32>
    %92 = vector.broadcast %91 : vector<1x1x32xf32> to vector<64x16x32xf32>
    %93 = arith.addf %89, %92 : vector<64x16x32xf32>
    %94 = math.tanh %93 : vector<64x16x32xf32>
    %95 = vector.shape_cast %94 : vector<64x16x32xf32> to vector<1024x32xf32>
    %c0_21 = arith.constant 0 : index
    %c0_22 = arith.constant 0 : index
    %96 = vector.load %arg6[%c0_21, %c0_22] : memref<32x32xf32, #tpu.memory_space<vmem>>, vector<32x32xf32>
    %cst_23 = arith.constant dense<0.000000e+00> : vector<1024x32xf32>
    %97 = tpu.matmul %95, %96, %cst_23 {dimension_numbers = #tpu.dot_dimension_numbers<[1], [0], [0], [1], [0, 0, 1, 1], [], []>} : vector<1024x32xf32>, vector<32x32xf32>, vector<1024x32xf32> -> vector<1024x32xf32>
    %c0_24 = arith.constant 0 : index
    %c0_25 = arith.constant 0 : index
    %98 = vector.load %arg7[%c0_24, %c0_25] : memref<1x32xf32, #tpu.memory_space<vmem>>, vector<1x32xf32>
    %99 = vector.broadcast %98 : vector<1x32xf32> to vector<1024x32xf32>
    %100 = arith.addf %97, %99 : vector<1024x32xf32>
    %101 = math.tanh %100 : vector<1024x32xf32>
    %102 = vector.shape_cast %101 : vector<1024x32xf32> to vector<64x16x32xf32>
    %c0_26 = arith.constant 0 : index
    %c0_27 = arith.constant 0 : index
    %103 = vector.load %arg8[%c0_26, %c0_27] : memref<1x32xf32, #tpu.memory_space<vmem>>, vector<1x32xf32>
    %104 = vector.shape_cast %103 : vector<1x32xf32> to vector<1x1x32xf32>
    %105 = vector.broadcast %104 : vector<1x1x32xf32> to vector<64x16x32xf32>
    %106 = arith.mulf %102, %105 : vector<64x16x32xf32>
    %cst_28 = arith.constant dense<0.000000e+00> : vector<64x16xf32>
    %107 = vector.multi_reduction <add>, %106, %cst_28 [2] : vector<64x16x32xf32> to vector<64x16xf32>
    %c0_29 = arith.constant 0 : index
    %c0_30 = arith.constant 0 : index
    %108 = memref.load %arg9[%c0_29, %c0_30] : memref<1x1xf32, #tpu.memory_space<smem>>
    %109 = vector.broadcast %108 : f32 to vector<64x16xf32>
    %110 = arith.addf %107, %109 : vector<64x16xf32>
    %c0_31 = arith.constant 0 : index
    %c0_32 = arith.constant 0 : index
    %111 = vector.load %arg10[%c0_31, %c0_32] : memref<64x16xf32, #tpu.memory_space<vmem>>, vector<64x16xf32>
    tpu.vector_store %arg10[%c0_31, %c0_32], %110 {strides = array<i32>} : memref<64x16xf32, #tpu.memory_space<vmem>>, vector<64x16xf32>,
    return
  }
  func.func @transform_0(%arg0: i32) -> (i32, i32, i32) {
    %c0_i32 = arith.constant 0 : i32
    %c0_i32_0 = arith.constant 0 : i32
    %c0_i32_1 = arith.constant 0 : i32
    return %arg0, %c0_i32, %c0_i32_0 : i32, i32, i32
  }
  func.func @transform_1(%arg0: i32) -> (i32, i32, i32) {
    %c0_i32 = arith.constant 0 : i32
    %c0_i32_0 = arith.constant 0 : i32
    %c0_i32_1 = arith.constant 0 : i32
    return %arg0, %c0_i32, %c0_i32_0 : i32, i32, i32
  }
  func.func @transform_2(%arg0: i32) -> (i32, i32, i32) {
    %c0_i32 = arith.constant 0 : i32
    %c0_i32_0 = arith.constant 0 : i32
    %c0_i32_1 = arith.constant 0 : i32
    return %arg0, %c0_i32, %c0_i32_0 : i32, i32, i32
  }
  func.func @transform_3(%arg0: i32) -> (i32, i32) {
    %c0_i32 = arith.constant 0 : i32
    %c0_i32_0 = arith.constant 0 : i32
    %c0_i32_1 = arith.constant 0 : i32
    return %c0_i32, %c0_i32_0 : i32, i32
  }
  func.func @transform_4(%arg0: i32) -> (i32, i32) {
    %c0_i32 = arith.constant 0 : i32
    %c0_i32_0 = arith.constant 0 : i32
    %c0_i32_1 = arith.constant 0 : i32
    return %c0_i32, %c0_i32_0 : i32, i32
  }
  func.func @transform_5(%arg0: i32) -> (i32, i32) {
    %c0_i32 = arith.constant 0 : i32
    %c0_i32_0 = arith.constant 0 : i32
    %c0_i32_1 = arith.constant 0 : i32
    return %c0_i32, %c0_i32_0 : i32, i32
  }
  func.func @transform_6(%arg0: i32) -> (i32, i32) {
    %c0_i32 = arith.constant 0 : i32
    %c0_i32_0 = arith.constant 0 : i32
    %c0_i32_1 = arith.constant 0 : i32
    return %c0_i32, %c0_i32_0 : i32, i32
  }
  func.func @transform_7(%arg0: i32) -> (i32, i32) {
    %c0_i32 = arith.constant 0 : i32
    %c0_i32_0 = arith.constant 0 : i32
    %c0_i32_1 = arith.constant 0 : i32
    return %c0_i32, %c0_i32_0 : i32, i32
  }
  func.func @transform_8(%arg0: i32) -> (i32, i32) {
    %c0_i32 = arith.constant 0 : i32
    %c0_i32_0 = arith.constant 0 : i32
    %c0_i32_1 = arith.constant 0 : i32
    return %c0_i32, %c0_i32_0 : i32, i32
  }
  func.func @transform_9(%arg0: i32) -> (i32, i32) {
    %c0_i32 = arith.constant 0 : i32
    %c0_i32_0 = arith.constant 0 : i32
    return %arg0, %c0_i32 : i32, i32
  }
}

</mosaic_0001>

<llo_original>
// kernel: tpu_custom_call.1
$region0: #{tpu_custom_call.1}
  #allocation0 [shape = 'u32[]', space=smem, size = 0x4, offset = 0x4, fixed_abs, tag = 'smem constant byte address 0x4 - core index']
  #allocation1 [shape = 'u32[144,128]{1,0:T(1,128)}', space=vmem, size = 0x12000, scoped, tag = 'internal scratch']
  #allocation2 [shape = 'f32[1,1]{1,0:T(1,128)S(6)}', space=smem, size = 0x200, scoped, tag = 'scoped memory for tpu_custom_call.1']
  %s0 = inlined_call_operand.vmem [shape: f32[128,16,3], index: 0, kind: input, shape index: {}]
  %s1 = inlined_call_operand.vmem [shape: f32[128,3,16], index: 1, kind: input, shape index: {}]
  %s2 = inlined_call_operand.vmem [shape: s32[128,1,16], index: 2, kind: input, shape index: {}]
  %s3 = inlined_call_operand.vmem [shape: f32[4,32], index: 3, kind: input, shape index: {}]
  %s4 = inlined_call_operand.vmem [shape: f32[1,32], index: 4, kind: input, shape index: {}]
  %s5 = inlined_call_operand.vmem [shape: f32[32,32], index: 5, kind: input, shape index: {}]
  %s6 = inlined_call_operand.vmem [shape: f32[1,32], index: 6, kind: input, shape index: {}]
  %s7 = inlined_call_operand.vmem [shape: f32[1,32], index: 7, kind: input, shape index: {}]
  %s8 = inlined_call_operand.<no memory space> [shape: f32[1,1], index: 8, kind: input, shape index: {}]
  %s9 = inlined_call_operand.vmem [shape: f32[128,16], index: 9, kind: output, shape index: {}]
  %s10 = sld [smem:[#allocation0]]
  $region69: #{tpu_custom_call.1} parent=0
    _
  %s12 = ssub.s32 1, %s10
  %s13 = scalar_select 0, %s12, %s10
  %14 = sst [smem:[#allocation2]] %s8
  loop: start=0, step=1, limit=4
  $region2: #{tpu_custom_call.1} parent=0 // loop_pre_header
    _
  $region3: #{tpu_custom_call.1} parent=0 // loop_header
    %s16 = sphi 0, %s20
    %p17 = scmp.ge.s32.totalorder %s16, 4
    %s26 = sphi 0, %s28
    %s29 = sphi 0, %s26
    %s30 = sphi 0, %s29
    %s46 = sphi 0, %s30
    %s52 = sphi 0, %s54
    %s55 = sphi 0, %s52
    %s56 = sphi 0, %s55
    %s72 = sphi 0, %s56
    %s78 = sphi 0, %s80
    %s81 = sphi 0, %s78
    %s82 = sphi 0, %s81
    %s98 = sphi 0, %s82
    %s102 = sphi 0, %s102
    %s104 = sphi 0, %s102
    %s105 = sphi 0, %s104
    %s119 = sphi 0, %s105
    %s123 = sphi 0, %s123
    %s125 = sphi 0, %s123
    %s126 = sphi 0, %s125
    %s140 = sphi 0, %s126
    %s144 = sphi 0, %s144
    %s146 = sphi 0, %s144
    %s147 = sphi 0, %s146
    %s161 = sphi 0, %s147
    %s165 = sphi 0, %s165
    %s167 = sphi 0, %s165
    %s168 = sphi 0, %s167
    %s182 = sphi 0, %s168
    %s186 = sphi 0, %s186
    %s188 = sphi 0, %s186
    %s189 = sphi 0, %s188
    %s203 = sphi 0, %s189
    %s207 = sphi 0, %s207
    %s209 = sphi 0, %s207
    %s210 = sphi 0, %s209
    %s224 = sphi 0, %s210
    %s230 = sphi 0, %s232
    %s233 = sphi 0, %s230
    %s234 = sphi 0, %s233
    %s250 = sphi 0, %s234
  $region4: #{tpu_custom_call.1} parent=0 // loop_header_branch
    %19 = sbr.rel (%p17) target = $region8
  $region5: #{tpu_custom_call.1} parent=0 // loop_body
    %s21 = ssub.s32 %s16, 1
    %s22 = ssub.s32 %s16, 2
    %s23 = sadd.s32 %s16, 1
    %s24 = ssub.s32 %s16, %s23
    %p25 = scmp.eq.s32.totalorder %s24, 0
    %s27 = sadd.s32 %s26, 1
    %s28 = scalar_select %p25, %s26, %s27
    %p31 = pneg %p25
    %p32 = scmp.eq.s32.totalorder %s16, 1
    %p33 = por %p31, %p32
    %p34 = scmp.ne.s32.totalorder %s26, %s29
    %p35 = scmp.eq.s32.totalorder %s16, 0
    %p36 = por %p34, %p35
    %p37 = scmp.ne.s32.totalorder %s26, %s29
    %p38 = scmp.eq.s32.totalorder %s21, 1
    %p39 = por %p37, %p38
    %p40 = scmp.ne.s32.totalorder %s29, %s30
    %p41 = scmp.eq.s32.totalorder %s21, 0
    %p42 = por %p40, %p41
    %p43 = scmp.ne.s32.totalorder %s29, %s30
    %p44 = scmp.eq.s32.totalorder %s22, 1
    %p45 = por %p43, %p44
    %p47 = scmp.ne.s32.totalorder %s30, %s46
    %p48 = scmp.eq.s32.totalorder %s22, 0
    %p49 = por %p47, %p48
    %s50 = ssub.s32 %s16, %s23
    %p51 = scmp.eq.s32.totalorder %s50, 0
    %s53 = sadd.s32 %s52, 1
    %s54 = scalar_select %p51, %s52, %s53
    %p57 = pneg %p51
    %p58 = scmp.eq.s32.totalorder %s16, 1
    %p59 = por %p57, %p58
    %p60 = scmp.ne.s32.totalorder %s52, %s55
    %p61 = scmp.eq.s32.totalorder %s16, 0
    %p62 = por %p60, %p61
    %p63 = scmp.ne.s32.totalorder %s52, %s55
    %p64 = scmp.eq.s32.totalorder %s21, 1
    %p65 = por %p63, %p64
    %p66 = scmp.ne.s32.totalorder %s55, %s56
    %p67 = scmp.eq.s32.totalorder %s21, 0
    %p68 = por %p66, %p67
    %p69 = scmp.ne.s32.totalorder %s55, %s56
    %p70 = scmp.eq.s32.totalorder %s22, 1
    %p71 = por %p69, %p70
    %p73 = scmp.ne.s32.totalorder %s56, %s72
    %p74 = scmp.eq.s32.totalorder %s22, 0
    %p75 = por %p73, %p74
    %s76 = ssub.s32 %s16, %s23
    %p77 = scmp.eq.s32.totalorder %s76, 0
    %s79 = sadd.s32 %s78, 1
    %s80 = scalar_select %p77, %s78, %s79
    %p83 = pneg %p77
    %p84 = scmp.eq.s32.totalorder %s16, 1
    %p85 = por %p83, %p84
    %p86 = scmp.ne.s32.totalorder %s78, %s81
    %p87 = scmp.eq.s32.totalorder %s16, 0
    %p88 = por %p86, %p87
    %p89 = scmp.ne.s32.totalorder %s78, %s81
    %p90 = scmp.eq.s32.totalorder %s21, 1
    %p91 = por %p89, %p90
    %p92 = scmp.ne.s32.totalorder %s81, %s82
    %p93 = scmp.eq.s32.totalorder %s21, 0
    %p94 = por %p92, %p93
    %p95 = scmp.ne.s32.totalorder %s81, %s82
    %p96 = scmp.eq.s32.totalorder %s22, 1
    %p97 = por %p95, %p96
    %p99 = scmp.ne.s32.totalorder %s82, %s98
    %p100 = scmp.eq.s32.totalorder %s22, 0
    %p101 = por %p99, %p100
    %s103 = sadd.s32 %s102, 1
    %p106 = scmp.eq.s32.totalorder %s16, 1
    %p107 = scmp.ne.s32.totalorder %s102, %s104
    %p108 = scmp.eq.s32.totalorder %s16, 0
    %p109 = por %p107, %p108
    %p110 = scmp.ne.s32.totalorder %s102, %s104
    %p111 = scmp.eq.s32.totalorder %s21, 1
    %p112 = por %p110, %p111
    %p113 = scmp.ne.s32.totalorder %s104, %s105
    %p114 = scmp.eq.s32.totalorder %s21, 0
    %p115 = por %p113, %p114
    %p116 = scmp.ne.s32.totalorder %s104, %s105
    %p117 = scmp.eq.s32.totalorder %s22, 1
    %p118 = por %p116, %p117
    %p120 = scmp.ne.s32.totalorder %s105, %s119
    %p121 = scmp.eq.s32.totalorder %s22, 0
    %p122 = por %p120, %p121
    %s124 = sadd.s32 %s123, 1
    %p127 = scmp.eq.s32.totalorder %s16, 1
    %p128 = scmp.ne.s32.totalorder %s123, %s125
    %p129 = scmp.eq.s32.totalorder %s16, 0
    %p130 = por %p128, %p129
    %p131 = scmp.ne.s32.totalorder %s123, %s125
    %p132 = scmp.eq.s32.totalorder %s21, 1
    %p133 = por %p131, %p132
    %p134 = scmp.ne.s32.totalorder %s125, %s126
    %p135 = scmp.eq.s32.totalorder %s21, 0
    %p136 = por %p134, %p135
    %p137 = scmp.ne.s32.totalorder %s125, %s126
    %p138 = scmp.eq.s32.totalorder %s22, 1
    %p139 = por %p137, %p138
    %p141 = scmp.ne.s32.totalorder %s126, %s140
    %p142 = scmp.eq.s32.totalorder %s22, 0
    %p143 = por %p141, %p142
    %s145 = sadd.s32 %s144, 1
    %p148 = scmp.eq.s32.totalorder %s16, 1
    %p149 = scmp.ne.s32.totalorder %s144, %s146
    %p150 = scmp.eq.s32.totalorder %s16, 0
    %p151 = por %p149, %p150
    %p152 = scmp.ne.s32.totalorder %s144, %s146
    %p153 = scmp.eq.s32.totalorder %s21, 1
    %p154 = por %p152, %p153
    %p155 = scmp.ne.s32.totalorder %s146, %s147
    %p156 = scmp.eq.s32.totalorder %s21, 0
    %p157 = por %p155, %p156
    %p158 = scmp.ne.s32.totalorder %s146, %s147
    %p159 = scmp.eq.s32.totalorder %s22, 1
    %p160 = por %p158, %p159
    %p162 = scmp.ne.s32.totalorder %s147, %s161
    %p163 = scmp.eq.s32.totalorder %s22, 0
    %p164 = por %p162, %p163
    %s166 = sadd.s32 %s165, 1
    %p169 = scmp.eq.s32.totalorder %s16, 1
    %p170 = scmp.ne.s32.totalorder %s165, %s167
    %p171 = scmp.eq.s32.totalorder %s16, 0
    %p172 = por %p170, %p171
    %p173 = scmp.ne.s32.totalorder %s165, %s167
    %p174 = scmp.eq.s32.totalorder %s21, 1
    %p175 = por %p173, %p174
    %p176 = scmp.ne.s32.totalorder %s167, %s168
    %p177 = scmp.eq.s32.totalorder %s21, 0
    %p178 = por %p176, %p177
    %p179 = scmp.ne.s32.totalorder %s167, %s168
    %p180 = scmp.eq.s32.totalorder %s22, 1
    %p181 = por %p179, %p180
    %p183 = scmp.ne.s32.totalorder %s168, %s182
    %p184 = scmp.eq.s32.totalorder %s22, 0
    %p185 = por %p183, %p184
    %s187 = sadd.s32 %s186, 1
    %p190 = scmp.eq.s32.totalorder %s16, 1
    %p191 = scmp.ne.s32.totalorder %s186, %s188
    %p192 = scmp.eq.s32.totalorder %s16, 0
    %p193 = por %p191, %p192
    %p194 = scmp.ne.s32.totalorder %s186, %s188
    %p195 = scmp.eq.s32.totalorder %s21, 1
    %p196 = por %p194, %p195
    %p197 = scmp.ne.s32.totalorder %s188, %s189
    %p198 = scmp.eq.s32.totalorder %s21, 0
    %p199 = por %p197, %p198
    %p200 = scmp.ne.s32.totalorder %s188, %s189
    %p201 = scmp.eq.s32.totalorder %s22, 1
    %p202 = por %p200, %p201
    %p204 = scmp.ne.s32.totalorder %s189, %s203
    %p205 = scmp.eq.s32.totalorder %s22, 0
    %p206 = por %p204, %p205
    %s208 = sadd.s32 %s207, 1
    %p211 = scmp.eq.s32.totalorder %s16, 1
    %p212 = scmp.ne.s32.totalorder %s207, %s209
    %p213 = scmp.eq.s32.totalorder %s16, 0
    %p214 = por %p212, %p213
    %p215 = scmp.ne.s32.totalorder %s207, %s209
    %p216 = scmp.eq.s32.totalorder %s21, 1
    %p217 = por %p215, %p216
    %p218 = scmp.ne.s32.totalorder %s209, %s210
    %p219 = scmp.eq.s32.totalorder %s21, 0
    %p220 = por %p218, %p219
    %p221 = scmp.ne.s32.totalorder %s209, %s210
    %p222 = scmp.eq.s32.totalorder %s22, 1
    %p223 = por %p221, %p222
    %p225 = scmp.ne.s32.totalorder %s210, %s224
    %p226 = scmp.eq.s32.totalorder %s22, 0
    %p227 = por %p225, %p226
    %s228 = ssub.s32 %s16, %s23
    %p229 = scmp.eq.s32.totalorder %s228, 0
    %s231 = sadd.s32 %s230, 1
    %s232 = scalar_select %p229, %s230, %s231
    %p235 = pneg %p229
    %p236 = scmp.eq.s32.totalorder %s16, 1
    %p237 = por %p235, %p236
    %p238 = scmp.ne.s32.totalorder %s230, %s233
    %p239 = scmp.eq.s32.totalorder %s16, 0
    %p240 = por %p238, %p239
    %p241 = scmp.ne.s32.totalorder %s230, %s233
    %p242 = scmp.eq.s32.totalorder %s21, 1
    %p243 = por %p241, %p242
    %p244 = scmp.ne.s32.totalorder %s233, %s234
    %p245 = scmp.eq.s32.totalorder %s21, 0
    %p246 = por %p244, %p245
    %p247 = scmp.ne.s32.totalorder %s233, %s234
    %p248 = scmp.eq.s32.totalorder %s22, 1
    %p249 = por %p247, %p248
    %p251 = scmp.ne.s32.totalorder %s234, %s250
    %p252 = scmp.eq.s32.totalorder %s22, 0
    %p253 = por %p251, %p252
    %p254 = scmp.le.s32.totalorder 1, %s16
    %p255 = scmp.lt.s32.totalorder %s16, 3
    %p256 = pnand %p254, %p255
    %p257 = pneg %p256
    // Predicated region
    $region9: #{tpu_custom_call.1} parent=5 // pred_check
      _
    $region10: #{tpu_custom_call.1} parent=5 // pred_check_branch
      %259 = sbr.rel (%p256) target = $region12
    $region11: #{tpu_custom_call.1} parent=5 // pred_region
      %s260 = ssub.s32 %s16, 1
      // Predicated region
      $region13: #{tpu_custom_call.1} parent=11 // pred_check
        %p261 = pneg %p115
      $region14: #{tpu_custom_call.1} parent=11 // pred_check_branch
        %263 = sbr.rel (%p261) target = $region16
      $region15: #{tpu_custom_call.1} parent=11 // pred_region
        _
      $region16: #{tpu_custom_call.1} parent=11 // pred_fallthru
        _
      // Predicated region
      $region17: #{tpu_custom_call.1} parent=11 // pred_check
        %p264 = pneg %p136
      $region18: #{tpu_custom_call.1} parent=11 // pred_check_branch
        %266 = sbr.rel (%p264) target = $region20
      $region19: #{tpu_custom_call.1} parent=11 // pred_region
        _
      $region20: #{tpu_custom_call.1} parent=11 // pred_fallthru
        _
      // Predicated region
      $region21: #{tpu_custom_call.1} parent=11 // pred_check
        %p267 = pneg %p157
      $region22: #{tpu_custom_call.1} parent=11 // pred_check_branch
        %269 = sbr.rel (%p267) target = $region24
      $region23: #{tpu_custom_call.1} parent=11 // pred_region
        _
      $region24: #{tpu_custom_call.1} parent=11 // pred_fallthru
        _
      // Predicated region
      $region25: #{tpu_custom_call.1} parent=11 // pred_check
        %p270 = pneg %p178
      $region26: #{tpu_custom_call.1} parent=11 // pred_check_branch
        %272 = sbr.rel (%p270) target = $region28
      $region27: #{tpu_custom_call.1} parent=11 // pred_region
        _
      $region28: #{tpu_custom_call.1} parent=11 // pred_fallthru
        _
      // Predicated region
      $region29: #{tpu_custom_call.1} parent=11 // pred_check
        %p273 = pneg %p199
      $region30: #{tpu_custom_call.1} parent=11 // pred_check_branch
        %275 = sbr.rel (%p273) target = $region32
      $region31: #{tpu_custom_call.1} parent=11 // pred_region
        _
      $region32: #{tpu_custom_call.1} parent=11 // pred_fallthru
        _
      // Predicated region
      $region33: #{tpu_custom_call.1} parent=11 // pred_check
        %p276 = pneg %p220
      $region34: #{tpu_custom_call.1} parent=11 // pred_check_branch
        %278 = sbr.rel (%p276) target = $region36
      $region35: #{tpu_custom_call.1} parent=11 // pred_region
        _
      $region36: #{tpu_custom_call.1} parent=11 // pred_fallthru
        _
    $region12: #{tpu_custom_call.1} parent=5 // pred_fallthru
      _
    %p279 = scmp.lt.s32.totalorder %s16, 2
    // Predicated region
    $region37: #{tpu_custom_call.1} parent=5 // pred_check
      %p280 = pneg %p279
    $region38: #{tpu_custom_call.1} parent=5 // pred_check_branch
      %282 = sbr.rel (%p280) target = $region40
    $region39: #{tpu_custom_call.1} parent=5 // pred_region
      // Predicated region
      $region41: #{tpu_custom_call.1} parent=39 // pred_check
        %p283 = pneg %p36
      $region42: #{tpu_custom_call.1} parent=39 // pred_check_branch
        %285 = sbr.rel (%p283) target = $region44
      $region43: #{tpu_custom_call.1} parent=39 // pred_region
        %s286 = smul.u32 64, %s16
        %p287 = scmp.lt.s32.totalorder %s286, 127
        %s288 = scalar_select %p287, %s286, 127
        %s289 = smul.addr %s288, 2
        %s290 = smul.addr %s289, 8
        %s291 = scalar_lea.vmem %s0, %s290
        %s292 = smul.u32 64, %s16
      $region44: #{tpu_custom_call.1} parent=39 // pred_fallthru
        _
      // Predicated region
      $region45: #{tpu_custom_call.1} parent=39 // pred_check
        %p293 = pneg %p62
      $region46: #{tpu_custom_call.1} parent=39 // pred_check_branch
        %295 = sbr.rel (%p293) target = $region48
      $region47: #{tpu_custom_call.1} parent=39 // pred_region
        %s296 = smul.u32 64, %s16
        %p297 = scmp.lt.s32.totalorder %s296, 127
        %s298 = scalar_select %p297, %s296, 127
        %s299 = smul.addr %s298, 4
        %s300 = scalar_lea.vmem %s1, %s299
        %s301 = smul.u32 64, %s16
      $region48: #{tpu_custom_call.1} parent=39 // pred_fallthru
        _
      // Predicated region
      $region49: #{tpu_custom_call.1} parent=39 // pred_check
        %p302 = pneg %p88
      $region50: #{tpu_custom_call.1} parent=39 // pred_check_branch
        %304 = sbr.rel (%p302) target = $region52
      $region51: #{tpu_custom_call.1} parent=39 // pred_region
        %s305 = smul.u32 64, %s16
        %p306 = scmp.lt.s32.totalorder %s305, 127
        %s307 = scalar_select %p306, %s305, 127
        %s308 = scalar_lea.vmem %s2, %s307
        %s309 = smul.u32 64, %s16
      $region52: #{tpu_custom_call.1} parent=39 // pred_fallthru
        _
    $region40: #{tpu_custom_call.1} parent=5 // pred_fallthru
      _
    %p310 = scmp.le.s32.totalorder 1, %s16
    %p311 = scmp.lt.s32.totalorder %s16, 3
    %p312 = pnand %p310, %p311
    %p313 = pneg %p312
    // Predicated region
    $region53: #{tpu_custom_call.1} parent=5 // pred_check
      _
    $region54: #{tpu_custom_call.1} parent=5 // pred_check_branch
      %315 = sbr.rel (%p312) target = $region56
    $region55: #{tpu_custom_call.1} parent=5 // pred_region
      %s316 = ssub.s32 %s16, 1
      %s317 = smul.u32 64, %s21
      %p318 = scmp.lt.s32.totalorder %s317, 127
      %s319 = scalar_select %p318, %s317, 127
      %s320 = smul.addr %s319, 2
      %s321 = smul.addr %s320, 8
      %s322 = scalar_lea.vmem %s0, %s321
      %p323 = pneg %p42
      %p324 = pneg %p39
      %s325 = smul.u32 64, %s21
      %p326 = scmp.lt.s32.totalorder %s325, 127
      %s327 = scalar_select %p326, %s325, 127
      %s328 = smul.addr %s327, 4
      %s329 = scalar_lea.vmem %s1, %s328
      %p330 = pneg %p68
      %p331 = pneg %p65
      %s332 = smul.u32 64, %s21
      %p333 = scmp.lt.s32.totalorder %s332, 127
      %s334 = scalar_select %p333, %s332, 127
      %s335 = scalar_lea.vmem %s2, %s334
      %p336 = pneg %p94
      %p337 = pneg %p91
      %p338 = pneg %p115
      %p339 = pneg %p112
      %p340 = pneg %p136
      %p341 = pneg %p133
      %p342 = pneg %p157
      %p343 = pneg %p154
      %p344 = pneg %p178
      %p345 = pneg %p175
      %p346 = pneg %p199
      %p347 = pneg %p196
      %p348 = pneg %p220
      %p349 = pneg %p217
      %p350 = pneg %p246
      %p351 = pneg %p243
      %s352 = smul.u32 8, %s21
      %p353 = scmp.lt.s32.totalorder %s352, 15
      %s354 = scalar_select %p353, %s352, 15
      %s355 = smul.addr %s354, 8
      %s356 = scalar_lea.vmem %s9, %s355
      %s357 = smul.u32 64, %s21
      %p358 = scmp.lt.s32.totalorder %s357, 127
      %s359 = scalar_select %p358, %s357, 127
      %s360 = smul.addr %s359, 2
      %s361 = smul.addr %s360, 8
      %s362 = scalar_lea.vmem %s0, %s361
      %s363 = smul.u32 64, %s21
      %s364 = smul.u32 64, %s21
      %p365 = scmp.lt.s32.totalorder %s364, 127
      %s366 = scalar_select %p365, %s364, 127
      %s367 = smul.addr %s366, 4
      %s368 = scalar_lea.vmem %s1, %s367
      %s369 = smul.u32 64, %s21
      %s370 = smul.u32 64, %s21
      %p371 = scmp.lt.s32.totalorder %s370, 127
      %s372 = scalar_select %p371, %s370, 127
      %s373 = scalar_lea.vmem %s2, %s372
      %s374 = smul.u32 64, %s21
      %s375 = smul.u32 8, %s21
      %p376 = scmp.lt.s32.totalorder %s375, 15
      %s377 = scalar_select %p376, %s375, 15
      %s378 = smul.addr %s377, 8
      %s379 = scalar_lea.vmem %s9, %s378
      %s380 = smul.u32 8, %s21
      %v381 = vld [vmem:[%s362] sm:$0xff]
      %v382 = vld [vmem:[%s362 + $0x8] sm:$0xff]
      %v383 = vld [vmem:[%s362 + $0x10] sm:$0xff]
      %v384 = vld [vmem:[%s362 + $0x18] sm:$0xff]
      %v385 = vld [vmem:[%s362 + $0x20] sm:$0xff]
      %v386 = vld [vmem:[%s362 + $0x28] sm:$0xff]
      %v387 = vld [vmem:[%s362 + $0x30] sm:$0xff]
      %v388 = vld [vmem:[%s362 + $0x38] sm:$0xff]
      %v389 = vld [vmem:[%s362 + $0x40] sm:$0xff]
      %v390 = vld [vmem:[%s362 + $0x48] sm:$0xff]
      %v391 = vld [vmem:[%s362 + $0x50] sm:$0xff]
      %v392 = vld [vmem:[%s362 + $0x58] sm:$0xff]
      %v393 = vld [vmem:[%s362 + $0x60] sm:$0xff]
      %v394 = vld [vmem:[%s362 + $0x68] sm:$0xff]
      %v395 = vld [vmem:[%s362 + $0x70] sm:$0xff]
      %v396 = vld [vmem:[%s362 + $0x78] sm:$0xff]
      %v397 = vld [vmem:[%s362 + $0x80] sm:$0xff]
      %v398 = vld [vmem:[%s362 + $0x88] sm:$0xff]
      %v399 = vld [vmem:[%s362 + $0x90] sm:$0xff]
      %v400 = vld [vmem:[%s362 + $0x98] sm:$0xff]
      %v401 = vld [vmem:[%s362 + $0xa0] sm:$0xff]
      %v402 = vld [vmem:[%s362 + $0xa8] sm:$0xff]
      %v403 = vld [vmem:[%s362 + $0xb0] sm:$0xff]
      %v404 = vld [vmem:[%s362 + $0xb8] sm:$0xff]
      %v405 = vld [vmem:[%s362 + $0xc0] sm:$0xff]
      %v406 = vld [vmem:[%s362 + $0xc8] sm:$0xff]
      %v407 = vld [vmem:[%s362 + $0xd0] sm:$0xff]
      %v408 = vld [vmem:[%s362 + $0xd8] sm:$0xff]
      %v409 = vld [vmem:[%s362 + $0xe0] sm:$0xff]
      %v410 = vld [vmem:[%s362 + $0xe8] sm:$0xff]
      %v411 = vld [vmem:[%s362 + $0xf0] sm:$0xff]
      %v412 = vld [vmem:[%s362 + $0xf8] sm:$0xff]
      %v413 = vld [vmem:[%s362 + $0x100] sm:$0xff]
      %v414 = vld [vmem:[%s362 + $0x108] sm:$0xff]
      %v415 = vld [vmem:[%s362 + $0x110] sm:$0xff]
      %v416 = vld [vmem:[%s362 + $0x118] sm:$0xff]
      %v417 = vld [vmem:[%s362 + $0x120] sm:$0xff]
      %v418 = vld [vmem:[%s362 + $0x128] sm:$0xff]
      %v419 = vld [vmem:[%s362 + $0x130] sm:$0xff]
      %v420 = vld [vmem:[%s362 + $0x138] sm:$0xff]
      %v421 = vld [vmem:[%s362 + $0x140] sm:$0xff]
      %v422 = vld [vmem:[%s362 + $0x148] sm:$0xff]
      %v423 = vld [vmem:[%s362 + $0x150] sm:$0xff]
      %v424 = vld [vmem:[%s362 + $0x158] sm:$0xff]
      %v425 = vld [vmem:[%s362 + $0x160] sm:$0xff]
      %v426 = vld [vmem:[%s362 + $0x168] sm:$0xff]
      %v427 = vld [vmem:[%s362 + $0x170] sm:$0xff]
      %v428 = vld [vmem:[%s362 + $0x178] sm:$0xff]
      %v429 = vld [vmem:[%s362 + $0x180] sm:$0xff]
      %v430 = vld [vmem:[%s362 + $0x188] sm:$0xff]
      %v431 = vld [vmem:[%s362 + $0x190] sm:$0xff]
      %v432 = vld [vmem:[%s362 + $0x198] sm:$0xff]
      %v433 = vld [vmem:[%s362 + $0x1a0] sm:$0xff]
      %v434 = vld [vmem:[%s362 + $0x1a8] sm:$0xff]
      %v435 = vld [vmem:[%s362 + $0x1b0] sm:$0xff]
      %v436 = vld [vmem:[%s362 + $0x1b8] sm:$0xff]
      %v437 = vld [vmem:[%s362 + $0x1c0] sm:$0xff]
      %v438 = vld [vmem:[%s362 + $0x1c8] sm:$0xff]
      %v439 = vld [vmem:[%s362 + $0x1d0] sm:$0xff]
      %v440 = vld [vmem:[%s362 + $0x1d8] sm:$0xff]
      %v441 = vld [vmem:[%s362 + $0x1e0] sm:$0xff]
      %v442 = vld [vmem:[%s362 + $0x1e8] sm:$0xff]
      %v443 = vld [vmem:[%s362 + $0x1f0] sm:$0xff]
      %v444 = vld [vmem:[%s362 + $0x1f8] sm:$0xff]
      %v445 = vld [vmem:[%s362 + $0x200] sm:$0xff]
      %v446 = vld [vmem:[%s362 + $0x208] sm:$0xff]
      %v447 = vld [vmem:[%s362 + $0x210] sm:$0xff]
      %v448 = vld [vmem:[%s362 + $0x218] sm:$0xff]
      %v449 = vld [vmem:[%s362 + $0x220] sm:$0xff]
      %v450 = vld [vmem:[%s362 + $0x228] sm:$0xff]
      %v451 = vld [vmem:[%s362 + $0x230] sm:$0xff]
      %v452 = vld [vmem:[%s362 + $0x238] sm:$0xff]
      %v453 = vld [vmem:[%s362 + $0x240] sm:$0xff]
      %v454 = vld [vmem:[%s362 + $0x248] sm:$0xff]
      %v455 = vld [vmem:[%s362 + $0x250] sm:$0xff]
      %v456 = vld [vmem:[%s362 + $0x258] sm:$0xff]
      %v457 = vld [vmem:[%s362 + $0x260] sm:$0xff]
      %v458 = vld [vmem:[%s362 + $0x268] sm:$0xff]
      %v459 = vld [vmem:[%s362 + $0x270] sm:$0xff]
      %v460 = vld [vmem:[%s362 + $0x278] sm:$0xff]
      %v461 = vld [vmem:[%s362 + $0x280] sm:$0xff]
      %v462 = vld [vmem:[%s362 + $0x288] sm:$0xff]
      %v463 = vld [vmem:[%s362 + $0x290] sm:$0xff]
      %v464 = vld [vmem:[%s362 + $0x298] sm:$0xff]
      %v465 = vld [vmem:[%s362 + $0x2a0] sm:$0xff]
      %v466 = vld [vmem:[%s362 + $0x2a8] sm:$0xff]
      %v467 = vld [vmem:[%s362 + $0x2b0] sm:$0xff]
      %v468 = vld [vmem:[%s362 + $0x2b8] sm:$0xff]
      %v469 = vld [vmem:[%s362 + $0x2c0] sm:$0xff]
      %v470 = vld [vmem:[%s362 + $0x2c8] sm:$0xff]
      %v471 = vld [vmem:[%s362 + $0x2d0] sm:$0xff]
      %v472 = vld [vmem:[%s362 + $0x2d8] sm:$0xff]
      %v473 = vld [vmem:[%s362 + $0x2e0] sm:$0xff]
      %v474 = vld [vmem:[%s362 + $0x2e8] sm:$0xff]
      %v475 = vld [vmem:[%s362 + $0x2f0] sm:$0xff]
      %v476 = vld [vmem:[%s362 + $0x2f8] sm:$0xff]
      %v477 = vld [vmem:[%s362 + $0x300] sm:$0xff]
      %v478 = vld [vmem:[%s362 + $0x308] sm:$0xff]
      %v479 = vld [vmem:[%s362 + $0x310] sm:$0xff]
      %v480 = vld [vmem:[%s362 + $0x318] sm:$0xff]
      %v481 = vld [vmem:[%s362 + $0x320] sm:$0xff]
      %v482 = vld [vmem:[%s362 + $0x328] sm:$0xff]
      %v483 = vld [vmem:[%s362 + $0x330] sm:$0xff]
      %v484 = vld [vmem:[%s362 + $0x338] sm:$0xff]
      %v485 = vld [vmem:[%s362 + $0x340] sm:$0xff]
      %v486 = vld [vmem:[%s362 + $0x348] sm:$0xff]
      %v487 = vld [vmem:[%s362 + $0x350] sm:$0xff]
      %v488 = vld [vmem:[%s362 + $0x358] sm:$0xff]
      %v489 = vld [vmem:[%s362 + $0x360] sm:$0xff]
      %v490 = vld [vmem:[%s362 + $0x368] sm:$0xff]
      %v491 = vld [vmem:[%s362 + $0x370] sm:$0xff]
      %v492 = vld [vmem:[%s362 + $0x378] sm:$0xff]
      %v493 = vld [vmem:[%s362 + $0x380] sm:$0xff]
      %v494 = vld [vmem:[%s362 + $0x388] sm:$0xff]
      %v495 = vld [vmem:[%s362 + $0x390] sm:$0xff]
      %v496 = vld [vmem:[%s362 + $0x398] sm:$0xff]
      %v497 = vld [vmem:[%s362 + $0x3a0] sm:$0xff]
      %v498 = vld [vmem:[%s362 + $0x3a8] sm:$0xff]
      %v499 = vld [vmem:[%s362 + $0x3b0] sm:$0xff]
      %v500 = vld [vmem:[%s362 + $0x3b8] sm:$0xff]
      %v501 = vld [vmem:[%s362 + $0x3c0] sm:$0xff]
      %v502 = vld [vmem:[%s362 + $0x3c8] sm:$0xff]
      %v503 = vld [vmem:[%s362 + $0x3d0] sm:$0xff]
      %v504 = vld [vmem:[%s362 + $0x3d8] sm:$0xff]
      %v505 = vld [vmem:[%s362 + $0x3e0] sm:$0xff]
      %v506 = vld [vmem:[%s362 + $0x3e8] sm:$0xff]
      %v507 = vld [vmem:[%s362 + $0x3f0] sm:$0xff]
      %v508 = vld [vmem:[%s362 + $0x3f8] sm:$0xff]
      %v509 = vld [vmem:[%s368] sm:$0x7]
      %v510 = vld [vmem:[%s368 + $0x4] sm:$0x7]
      %v511 = vld [vmem:[%s368 + $0x8] sm:$0x7]
      %v512 = vld [vmem:[%s368 + $0xc] sm:$0x7]
      %v513 = vld [vmem:[%s368 + $0x10] sm:$0x7]
      %v514 = vld [vmem:[%s368 + $0x14] sm:$0x7]
      %v515 = vld [vmem:[%s368 + $0x18] sm:$0x7]
      %v516 = vld [vmem:[%s368 + $0x1c] sm:$0x7]
      %v517 = vld [vmem:[%s368 + $0x20] sm:$0x7]
      %v518 = vld [vmem:[%s368 + $0x24] sm:$0x7]
      %v519 = vld [vmem:[%s368 + $0x28] sm:$0x7]
      %v520 = vld [vmem:[%s368 + $0x2c] sm:$0x7]
      %v521 = vld [vmem:[%s368 + $0x30] sm:$0x7]
      %v522 = vld [vmem:[%s368 + $0x34] sm:$0x7]
      %v523 = vld [vmem:[%s368 + $0x38] sm:$0x7]
      %v524 = vld [vmem:[%s368 + $0x3c] sm:$0x7]
      %v525 = vld [vmem:[%s368 + $0x40] sm:$0x7]
      %v526 = vld [vmem:[%s368 + $0x44] sm:$0x7]
      %v527 = vld [vmem:[%s368 + $0x48] sm:$0x7]
      %v528 = vld [vmem:[%s368 + $0x4c] sm:$0x7]
      %v529 = vld [vmem:[%s368 + $0x50] sm:$0x7]
      %v530 = vld [vmem:[%s368 + $0x54] sm:$0x7]
      %v531 = vld [vmem:[%s368 + $0x58] sm:$0x7]
      %v532 = vld [vmem:[%s368 + $0x5c] sm:$0x7]
      %v533 = vld [vmem:[%s368 + $0x60] sm:$0x7]
      %v534 = vld [vmem:[%s368 + $0x64] sm:$0x7]
      %v535 = vld [vmem:[%s368 + $0x68] sm:$0x7]
      %v536 = vld [vmem:[%s368 + $0x6c] sm:$0x7]
      %v537 = vld [vmem:[%s368 + $0x70] sm:$0x7]
      %v538 = vld [vmem:[%s368 + $0x74] sm:$0x7]
      %v539 = vld [vmem:[%s368 + $0x78] sm:$0x7]
      %v540 = vld [vmem:[%s368 + $0x7c] sm:$0x7]
      %v541 = vld [vmem:[%s368 + $0x80] sm:$0x7]
      %v542 = vld [vmem:[%s368 + $0x84] sm:$0x7]
      %v543 = vld [vmem:[%s368 + $0x88] sm:$0x7]
      %v544 = vld [vmem:[%s368 + $0x8c] sm:$0x7]
      %v545 = vld [vmem:[%s368 + $0x90] sm:$0x7]
      %v546 = vld [vmem:[%s368 + $0x94] sm:$0x7]
      %v547 = vld [vmem:[%s368 + $0x98] sm:$0x7]
      %v548 = vld [vmem:[%s368 + $0x9c] sm:$0x7]
      %v549 = vld [vmem:[%s368 + $0xa0] sm:$0x7]
      %v550 = vld [vmem:[%s368 + $0xa4] sm:$0x7]
      %v551 = vld [vmem:[%s368 + $0xa8] sm:$0x7]
      %v552 = vld [vmem:[%s368 + $0xac] sm:$0x7]
      %v553 = vld [vmem:[%s368 + $0xb0] sm:$0x7]
      %v554 = vld [vmem:[%s368 + $0xb4] sm:$0x7]
      %v555 = vld [vmem:[%s368 + $0xb8] sm:$0x7]
      %v556 = vld [vmem:[%s368 + $0xbc] sm:$0x7]
      %v557 = vld [vmem:[%s368 + $0xc0] sm:$0x7]
      %v558 = vld [vmem:[%s368 + $0xc4] sm:$0x7]
      %v559 = vld [vmem:[%s368 + $0xc8] sm:$0x7]
      %v560 = vld [vmem:[%s368 + $0xcc] sm:$0x7]
      %v561 = vld [vmem:[%s368 + $0xd0] sm:$0x7]
      %v562 = vld [vmem:[%s368 + $0xd4] sm:$0x7]
      %v563 = vld [vmem:[%s368 + $0xd8] sm:$0x7]
      %v564 = vld [vmem:[%s368 + $0xdc] sm:$0x7]
      %v565 = vld [vmem:[%s368 + $0xe0] sm:$0x7]
      %v566 = vld [vmem:[%s368 + $0xe4] sm:$0x7]
      %v567 = vld [vmem:[%s368 + $0xe8] sm:$0x7]
      %v568 = vld [vmem:[%s368 + $0xec] sm:$0x7]
      %v569 = vld [vmem:[%s368 + $0xf0] sm:$0x7]
      %v570 = vld [vmem:[%s368 + $0xf4] sm:$0x7]
      %v571 = vld [vmem:[%s368 + $0xf8] sm:$0x7]
      %v572 = vld [vmem:[%s368 + $0xfc] sm:$0x7]
      %v573 = vld [vmem:[%s373] sm:$0x1]
      %v574 = vld [vmem:[%s373 + $0x1] sm:$0x1]
      %v575 = vld [vmem:[%s373 + $0x2] sm:$0x1]
      %v576 = vld [vmem:[%s373 + $0x3] sm:$0x1]
      %v577 = vld [vmem:[%s373 + $0x4] sm:$0x1]
      %v578 = vld [vmem:[%s373 + $0x5] sm:$0x1]
      %v579 = vld [vmem:[%s373 + $0x6] sm:$0x1]
      %v580 = vld [vmem:[%s373 + $0x7] sm:$0x1]
      %v581 = vld [vmem:[%s373 + $0x8] sm:$0x1]
      %v582 = vld [vmem:[%s373 + $0x9] sm:$0x1]
      %v583 = vld [vmem:[%s373 + $0xa] sm:$0x1]
      %v584 = vld [vmem:[%s373 + $0xb] sm:$0x1]
      %v585 = vld [vmem:[%s373 + $0xc] sm:$0x1]
      %v586 = vld [vmem:[%s373 + $0xd] sm:$0x1]
      %v587 = vld [vmem:[%s373 + $0xe] sm:$0x1]
      %v588 = vld [vmem:[%s373 + $0xf] sm:$0x1]
      %v589 = vld [vmem:[%s373 + $0x10] sm:$0x1]
      %v590 = vld [vmem:[%s373 + $0x11] sm:$0x1]
      %v591 = vld [vmem:[%s373 + $0x12] sm:$0x1]
      %v592 = vld [vmem:[%s373 + $0x13] sm:$0x1]
      %v593 = vld [vmem:[%s373 + $0x14] sm:$0x1]
      %v594 = vld [vmem:[%s373 + $0x15] sm:$0x1]
      %v595 = vld [vmem:[%s373 + $0x16] sm:$0x1]
      %v596 = vld [vmem:[%s373 + $0x17] sm:$0x1]
      %v597 = vld [vmem:[%s373 + $0x18] sm:$0x1]
      %v598 = vld [vmem:[%s373 + $0x19] sm:$0x1]
      %v599 = vld [vmem:[%s373 + $0x1a] sm:$0x1]
      %v600 = vld [vmem:[%s373 + $0x1b] sm:$0x1]
      %v601 = vld [vmem:[%s373 + $0x1c] sm:$0x1]
      %v602 = vld [vmem:[%s373 + $0x1d] sm:$0x1]
      %v603 = vld [vmem:[%s373 + $0x1e] sm:$0x1]
      %v604 = vld [vmem:[%s373 + $0x1f] sm:$0x1]
      %v605 = vld [vmem:[%s373 + $0x20] sm:$0x1]
      %v606 = vld [vmem:[%s373 + $0x21] sm:$0x1]
      %v607 = vld [vmem:[%s373 + $0x22] sm:$0x1]
      %v608 = vld [vmem:[%s373 + $0x23] sm:$0x1]
      %v609 = vld [vmem:[%s373 + $0x24] sm:$0x1]
      %v610 = vld [vmem:[%s373 + $0x25] sm:$0x1]
      %v611 = vld [vmem:[%s373 + $0x26] sm:$0x1]
      %v612 = vld [vmem:[%s373 + $0x27] sm:$0x1]
      %v613 = vld [vmem:[%s373 + $0x28] sm:$0x1]
      %v614 = vld [vmem:[%s373 + $0x29] sm:$0x1]
      %v615 = vld [vmem:[%s373 + $0x2a] sm:$0x1]
      %v616 = vld [vmem:[%s373 + $0x2b] sm:$0x1]
      %v617 = vld [vmem:[%s373 + $0x2c] sm:$0x1]
      %v618 = vld [vmem:[%s373 + $0x2d] sm:$0x1]
      %v619 = vld [vmem:[%s373 + $0x2e] sm:$0x1]
      %v620 = vld [vmem:[%s373 + $0x2f] sm:$0x1]
      %v621 = vld [vmem:[%s373 + $0x30] sm:$0x1]
      %v622 = vld [vmem:[%s373 + $0x31] sm:$0x1]
      %v623 = vld [vmem:[%s373 + $0x32] sm:$0x1]
      %v624 = vld [vmem:[%s373 + $0x33] sm:$0x1]
      %v625 = vld [vmem:[%s373 + $0x34] sm:$0x1]
      %v626 = vld [vmem:[%s373 + $0x35] sm:$0x1]
      %v627 = vld [vmem:[%s373 + $0x36] sm:$0x1]
      %v628 = vld [vmem:[%s373 + $0x37] sm:$0x1]
      %v629 = vld [vmem:[%s373 + $0x38] sm:$0x1]
      %v630 = vld [vmem:[%s373 + $0x39] sm:$0x1]
      %v631 = vld [vmem:[%s373 + $0x3a] sm:$0x1]
      %v632 = vld [vmem:[%s373 + $0x3b] sm:$0x1]
      %v633 = vld [vmem:[%s373 + $0x3c] sm:$0x1]
      %v634 = vld [vmem:[%s373 + $0x3d] sm:$0x1]
      %v635 = vld [vmem:[%s373 + $0x3e] sm:$0x1]
      %v636 = vld [vmem:[%s373 + $0x3f] sm:$0x1]
      %638 = vset.pattern.permute.xlu0 0
      %639 = vperm.xlu0 %638, %v381
      %v640 = vpop.permute.xlu0 %639
      %643 = vset.pattern.permute.xlu0 0
      %644 = vperm.xlu0 %643, %v382
      %v645 = vpop.permute.xlu0 %644
      %648 = vset.pattern.permute.xlu0 0
      %649 = vperm.xlu0 %648, %v383
      %v650 = vpop.permute.xlu0 %649
      %653 = vset.pattern.permute.xlu0 0
      %654 = vperm.xlu0 %653, %v384
      %v655 = vpop.permute.xlu0 %654
      %658 = vset.pattern.permute.xlu0 0
      %659 = vperm.xlu0 %658, %v385
      %v660 = vpop.permute.xlu0 %659
      %663 = vset.pattern.permute.xlu0 0
      %664 = vperm.xlu0 %663, %v386
      %v665 = vpop.permute.xlu0 %664
      %668 = vset.pattern.permute.xlu0 0
      %669 = vperm.xlu0 %668, %v387
      %v670 = vpop.permute.xlu0 %669
      %673 = vset.pattern.permute.xlu0 0
      %674 = vperm.xlu0 %673, %v388
      %v675 = vpop.permute.xlu0 %674
      %678 = vset.pattern.permute.xlu0 0
      %679 = vperm.xlu0 %678, %v389
      %v680 = vpop.permute.xlu0 %679
      %683 = vset.pattern.permute.xlu0 0
      %684 = vperm.xlu0 %683, %v390
      %v685 = vpop.permute.xlu0 %684
      %688 = vset.pattern.permute.xlu0 0
      %689 = vperm.xlu0 %688, %v391
      %v690 = vpop.permute.xlu0 %689
      %693 = vset.pattern.permute.xlu0 0
      %694 = vperm.xlu0 %693, %v392
      %v695 = vpop.permute.xlu0 %694
      %698 = vset.pattern.permute.xlu0 0
      %699 = vperm.xlu0 %698, %v393
      %v700 = vpop.permute.xlu0 %699
      %703 = vset.pattern.permute.xlu0 0
      %704 = vperm.xlu0 %703, %v394
      %v705 = vpop.permute.xlu0 %704
      %708 = vset.pattern.permute.xlu0 0
      %709 = vperm.xlu0 %708, %v395
      %v710 = vpop.permute.xlu0 %709
      %713 = vset.pattern.permute.xlu0 0
      %714 = vperm.xlu0 %713, %v396
      %v715 = vpop.permute.xlu0 %714
      %718 = vset.pattern.permute.xlu0 0
      %719 = vperm.xlu0 %718, %v397
      %v720 = vpop.permute.xlu0 %719
      %723 = vset.pattern.permute.xlu0 0
      %724 = vperm.xlu0 %723, %v398
      %v725 = vpop.permute.xlu0 %724
      %728 = vset.pattern.permute.xlu0 0
      %729 = vperm.xlu0 %728, %v399
      %v730 = vpop.permute.xlu0 %729
      %733 = vset.pattern.permute.xlu0 0
      %734 = vperm.xlu0 %733, %v400
      %v735 = vpop.permute.xlu0 %734
      %738 = vset.pattern.permute.xlu0 0
      %739 = vperm.xlu0 %738, %v401
      %v740 = vpop.permute.xlu0 %739
      %743 = vset.pattern.permute.xlu0 0
      %744 = vperm.xlu0 %743, %v402
      %v745 = vpop.permute.xlu0 %744
      %748 = vset.pattern.permute.xlu0 0
      %749 = vperm.xlu0 %748, %v403
      %v750 = vpop.permute.xlu0 %749
      %753 = vset.pattern.permute.xlu0 0
      %754 = vperm.xlu0 %753, %v404
      %v755 = vpop.permute.xlu0 %754
      %758 = vset.pattern.permute.xlu0 0
      %759 = vperm.xlu0 %758, %v405
      %v760 = vpop.permute.xlu0 %759
      %763 = vset.pattern.permute.xlu0 0
      %764 = vperm.xlu0 %763, %v406
      %v765 = vpop.permute.xlu0 %764
      %768 = vset.pattern.permute.xlu0 0
      %769 = vperm.xlu0 %768, %v407
      %v770 = vpop.permute.xlu0 %769
      %773 = vset.pattern.permute.xlu0 0
      %774 = vperm.xlu0 %773, %v408
      %v775 = vpop.permute.xlu0 %774
      %778 = vset.pattern.permute.xlu0 0
      %779 = vperm.xlu0 %778, %v409
      %v780 = vpop.permute.xlu0 %779
      %783 = vset.pattern.permute.xlu0 0
      %784 = vperm.xlu0 %783, %v410
      %v785 = vpop.permute.xlu0 %784
      %788 = vset.pattern.permute.xlu0 0
      %789 = vperm.xlu0 %788, %v411
      %v790 = vpop.permute.xlu0 %789
      %793 = vset.pattern.permute.xlu0 0
      %794 = vperm.xlu0 %793, %v412
      %v795 = vpop.permute.xlu0 %794
      %798 = vset.pattern.permute.xlu0 0
      %799 = vperm.xlu0 %798, %v413
      %v800 = vpop.permute.xlu0 %799
      %803 = vset.pattern.permute.xlu0 0
      %804 = vperm.xlu0 %803, %v414
      %v805 = vpop.permute.xlu0 %804
      %808 = vset.pattern.permute.xlu0 0
      %809 = vperm.xlu0 %808, %v415
      %v810 = vpop.permute.xlu0 %809
      %813 = vset.pattern.permute.xlu0 0
      %814 = vperm.xlu0 %813, %v416
      %v815 = vpop.permute.xlu0 %814
      %818 = vset.pattern.permute.xlu0 0
      %819 = vperm.xlu0 %818, %v417
      %v820 = vpop.permute.xlu0 %819
      %823 = vset.pattern.permute.xlu0 0
      %824 = vperm.xlu0 %823, %v418
      %v825 = vpop.permute.xlu0 %824
      %828 = vset.pattern.permute.xlu0 0
      %829 = vperm.xlu0 %828, %v419
      %v830 = vpop.permute.xlu0 %829
      %833 = vset.pattern.permute.xlu0 0
      %834 = vperm.xlu0 %833, %v420
      %v835 = vpop.permute.xlu0 %834
      %838 = vset.pattern.permute.xlu0 0
      %839 = vperm.xlu0 %838, %v421
      %v840 = vpop.permute.xlu0 %839
      %843 = vset.pattern.permute.xlu0 0
      %844 = vperm.xlu0 %843, %v422
      %v845 = vpop.permute.xlu0 %844
      %848 = vset.pattern.permute.xlu0 0
      %849 = vperm.xlu0 %848, %v423
      %v850 = vpop.permute.xlu0 %849
      %853 = vset.pattern.permute.xlu0 0
      %854 = vperm.xlu0 %853, %v424
      %v855 = vpop.permute.xlu0 %854
      %858 = vset.pattern.permute.xlu0 0
      %859 = vperm.xlu0 %858, %v425
      %v860 = vpop.permute.xlu0 %859
      %863 = vset.pattern.permute.xlu0 0
      %864 = vperm.xlu0 %863, %v426
      %v865 = vpop.permute.xlu0 %864
      %868 = vset.pattern.permute.xlu0 0
      %869 = vperm.xlu0 %868, %v427
      %v870 = vpop.permute.xlu0 %869
      %873 = vset.pattern.permute.xlu0 0
      %874 = vperm.xlu0 %873, %v428
      %v875 = vpop.permute.xlu0 %874
      %878 = vset.pattern.permute.xlu0 0
      %879 = vperm.xlu0 %878, %v429
      %v880 = vpop.permute.xlu0 %879
      %883 = vset.pattern.permute.xlu0 0
      %884 = vperm.xlu0 %883, %v430
      %v885 = vpop.permute.xlu0 %884
      %888 = vset.pattern.permute.xlu0 0
      %889 = vperm.xlu0 %888, %v431
      %v890 = vpop.permute.xlu0 %889
      %893 = vset.pattern.permute.xlu0 0
      %894 = vperm.xlu0 %893, %v432
      %v895 = vpop.permute.xlu0 %894
      %898 = vset.pattern.permute.xlu0 0
      %899 = vperm.xlu0 %898, %v433
      %v900 = vpop.permute.xlu0 %899
      %903 = vset.pattern.permute.xlu0 0
      %904 = vperm.xlu0 %903, %v434
      %v905 = vpop.permute.xlu0 %904
      %908 = vset.pattern.permute.xlu0 0
      %909 = vperm.xlu0 %908, %v435
      %v910 = vpop.permute.xlu0 %909
      %913 = vset.pattern.permute.xlu0 0
      %914 = vperm.xlu0 %913, %v436
      %v915 = vpop.permute.xlu0 %914
      %918 = vset.pattern.permute.xlu0 0
      %919 = vperm.xlu0 %918, %v437
      %v920 = vpop.permute.xlu0 %919
      %923 = vset.pattern.permute.xlu0 0
      %924 = vperm.xlu0 %923, %v438
      %v925 = vpop.permute.xlu0 %924
      %928 = vset.pattern.permute.xlu0 0
      %929 = vperm.xlu0 %928, %v439
      %v930 = vpop.permute.xlu0 %929
      %933 = vset.pattern.permute.xlu0 0
      %934 = vperm.xlu0 %933, %v440
      %v935 = vpop.permute.xlu0 %934
      %938 = vset.pattern.permute.xlu0 0
      %939 = vperm.xlu0 %938, %v441
      %v940 = vpop.permute.xlu0 %939
      %943 = vset.pattern.permute.xlu0 0
      %944 = vperm.xlu0 %943, %v442
      %v945 = vpop.permute.xlu0 %944
      %948 = vset.pattern.permute.xlu0 0
      %949 = vperm.xlu0 %948, %v443
      %v950 = vpop.permute.xlu0 %949
      %953 = vset.pattern.permute.xlu0 0
      %954 = vperm.xlu0 %953, %v444
      %v955 = vpop.permute.xlu0 %954
      %958 = vset.pattern.permute.xlu0 0
      %959 = vperm.xlu0 %958, %v445
      %v960 = vpop.permute.xlu0 %959
      %963 = vset.pattern.permute.xlu0 0
      %964 = vperm.xlu0 %963, %v446
      %v965 = vpop.permute.xlu0 %964
      %968 = vset.pattern.permute.xlu0 0
      %969 = vperm.xlu0 %968, %v447
      %v970 = vpop.permute.xlu0 %969
      %973 = vset.pattern.permute.xlu0 0
      %974 = vperm.xlu0 %973, %v448
      %v975 = vpop.permute.xlu0 %974
      %978 = vset.pattern.permute.xlu0 0
      %979 = vperm.xlu0 %978, %v449
      %v980 = vpop.permute.xlu0 %979
      %983 = vset.pattern.permute.xlu0 0
      %984 = vperm.xlu0 %983, %v450
      %v985 = vpop.permute.xlu0 %984
      %988 = vset.pattern.permute.xlu0 0
      %989 = vperm.xlu0 %988, %v451
      %v990 = vpop.permute.xlu0 %989
      %993 = vset.pattern.permute.xlu0 0
      %994 = vperm.xlu0 %993, %v452
      %v995 = vpop.permute.xlu0 %994
      %998 = vset.pattern.permute.xlu0 0
      %999 = vperm.xlu0 %998, %v453
      %v1000 = vpop.permute.xlu0 %999
      %1003 = vset.pattern.permute.xlu0 0
      %1004 = vperm.xlu0 %1003, %v454
      %v1005 = vpop.permute.xlu0 %1004
      %1008 = vset.pattern.permute.xlu0 0
      %1009 = vperm.xlu0 %1008, %v455
      %v1010 = vpop.permute.xlu0 %1009
      %1013 = vset.pattern.permute.xlu0 0
      %1014 = vperm.xlu0 %1013, %v456
      %v1015 = vpop.permute.xlu0 %1014
      %1018 = vset.pattern.permute.xlu0 0
      %1019 = vperm.xlu0 %1018, %v457
      %v1020 = vpop.permute.xlu0 %1019
      %1023 = vset.pattern.permute.xlu0 0
      %1024 = vperm.xlu0 %1023, %v458
      %v1025 = vpop.permute.xlu0 %1024
      %1028 = vset.pattern.permute.xlu0 0
      %1029 = vperm.xlu0 %1028, %v459
      %v1030 = vpop.permute.xlu0 %1029
      %1033 = vset.pattern.permute.xlu0 0
      %1034 = vperm.xlu0 %1033, %v460
      %v1035 = vpop.permute.xlu0 %1034
      %1038 = vset.pattern.permute.xlu0 0
      %1039 = vperm.xlu0 %1038, %v461
      %v1040 = vpop.permute.xlu0 %1039
      %1043 = vset.pattern.permute.xlu0 0
      %1044 = vperm.xlu0 %1043, %v462
      %v1045 = vpop.permute.xlu0 %1044
      %1048 = vset.pattern.permute.xlu0 0
      %1049 = vperm.xlu0 %1048, %v463
      %v1050 = vpop.permute.xlu0 %1049
      %1053 = vset.pattern.permute.xlu0 0
      %1054 = vperm.xlu0 %1053, %v464
      %v1055 = vpop.permute.xlu0 %1054
      %1058 = vset.pattern.permute.xlu0 0
      %1059 = vperm.xlu0 %1058, %v465
      %v1060 = vpop.permute.xlu0 %1059
      %1063 = vset.pattern.permute.xlu0 0
      %1064 = vperm.xlu0 %1063, %v466
      %v1065 = vpop.permute.xlu0 %1064
      %1068 = vset.pattern.permute.xlu0 0
      %1069 = vperm.xlu0 %1068, %v467
      %v1070 = vpop.permute.xlu0 %1069
      %1073 = vset.pattern.permute.xlu0 0
      %1074 = vperm.xlu0 %1073, %v468
      %v1075 = vpop.permute.xlu0 %1074
      %1078 = vset.pattern.permute.xlu0 0
      %1079 = vperm.xlu0 %1078, %v469
      %v1080 = vpop.permute.xlu0 %1079
      %1083 = vset.pattern.permute.xlu0 0
      %1084 = vperm.xlu0 %1083, %v470
      %v1085 = vpop.permute.xlu0 %1084
      %1088 = vset.pattern.permute.xlu0 0
      %1089 = vperm.xlu0 %1088, %v471
      %v1090 = vpop.permute.xlu0 %1089
      %1093 = vset.pattern.permute.xlu0 0
      %1094 = vperm.xlu0 %1093, %v472
      %v1095 = vpop.permute.xlu0 %1094
      %1098 = vset.pattern.permute.xlu0 0
      %1099 = vperm.xlu0 %1098, %v473
      %v1100 = vpop.permute.xlu0 %1099
      %1103 = vset.pattern.permute.xlu0 0
      %1104 = vperm.xlu0 %1103, %v474
      %v1105 = vpop.permute.xlu0 %1104
      %1108 = vset.pattern.permute.xlu0 0
      %1109 = vperm.xlu0 %1108, %v475
      %v1110 = vpop.permute.xlu0 %1109
      %1113 = vset.pattern.permute.xlu0 0
      %1114 = vperm.xlu0 %1113, %v476
      %v1115 = vpop.permute.xlu0 %1114
      %1118 = vset.pattern.permute.xlu0 0
      %1119 = vperm.xlu0 %1118, %v477
      %v1120 = vpop.permute.xlu0 %1119
      %1123 = vset.pattern.permute.xlu0 0
      %1124 = vperm.xlu0 %1123, %v478
      %v1125 = vpop.permute.xlu0 %1124
      %1128 = vset.pattern.permute.xlu0 0
      %1129 = vperm.xlu0 %1128, %v479
      %v1130 = vpop.permute.xlu0 %1129
      %1133 = vset.pattern.permute.xlu0 0
      %1134 = vperm.xlu0 %1133, %v480
      %v1135 = vpop.permute.xlu0 %1134
      %1138 = vset.pattern.permute.xlu0 0
      %1139 = vperm.xlu0 %1138, %v481
      %v1140 = vpop.permute.xlu0 %1139
      %1143 = vset.pattern.permute.xlu0 0
      %1144 = vperm.xlu0 %1143, %v482
      %v1145 = vpop.permute.xlu0 %1144
      %1148 = vset.pattern.permute.xlu0 0
      %1149 = vperm.xlu0 %1148, %v483
      %v1150 = vpop.permute.xlu0 %1149
      %1153 = vset.pattern.permute.xlu0 0
      %1154 = vperm.xlu0 %1153, %v484
      %v1155 = vpop.permute.xlu0 %1154
      %1158 = vset.pattern.permute.xlu0 0
      %1159 = vperm.xlu0 %1158, %v485
      %v1160 = vpop.permute.xlu0 %1159
      %1163 = vset.pattern.permute.xlu0 0
      %1164 = vperm.xlu0 %1163, %v486
      %v1165 = vpop.permute.xlu0 %1164
      %1168 = vset.pattern.permute.xlu0 0
      %1169 = vperm.xlu0 %1168, %v487
      %v1170 = vpop.permute.xlu0 %1169
      %1173 = vset.pattern.permute.xlu0 0
      %1174 = vperm.xlu0 %1173, %v488
      %v1175 = vpop.permute.xlu0 %1174
      %1178 = vset.pattern.permute.xlu0 0
      %1179 = vperm.xlu0 %1178, %v489
      %v1180 = vpop.permute.xlu0 %1179
      %1183 = vset.pattern.permute.xlu0 0
      %1184 = vperm.xlu0 %1183, %v490
      %v1185 = vpop.permute.xlu0 %1184
      %1188 = vset.pattern.permute.xlu0 0
      %1189 = vperm.xlu0 %1188, %v491
      %v1190 = vpop.permute.xlu0 %1189
      %1193 = vset.pattern.permute.xlu0 0
      %1194 = vperm.xlu0 %1193, %v492
      %v1195 = vpop.permute.xlu0 %1194
      %1198 = vset.pattern.permute.xlu0 0
      %1199 = vperm.xlu0 %1198, %v493
      %v1200 = vpop.permute.xlu0 %1199
      %1203 = vset.pattern.permute.xlu0 0
      %1204 = vperm.xlu0 %1203, %v494
      %v1205 = vpop.permute.xlu0 %1204
      %1208 = vset.pattern.permute.xlu0 0
      %1209 = vperm.xlu0 %1208, %v495
      %v1210 = vpop.permute.xlu0 %1209
      %1213 = vset.pattern.permute.xlu0 0
      %1214 = vperm.xlu0 %1213, %v496
      %v1215 = vpop.permute.xlu0 %1214
      %1218 = vset.pattern.permute.xlu0 0
      %1219 = vperm.xlu0 %1218, %v497
      %v1220 = vpop.permute.xlu0 %1219
      %1223 = vset.pattern.permute.xlu0 0
      %1224 = vperm.xlu0 %1223, %v498
      %v1225 = vpop.permute.xlu0 %1224
      %1228 = vset.pattern.permute.xlu0 0
      %1229 = vperm.xlu0 %1228, %v499
      %v1230 = vpop.permute.xlu0 %1229
      %1233 = vset.pattern.permute.xlu0 0
      %1234 = vperm.xlu0 %1233, %v500
      %v1235 = vpop.permute.xlu0 %1234
      %1238 = vset.pattern.permute.xlu0 0
      %1239 = vperm.xlu0 %1238, %v501
      %v1240 = vpop.permute.xlu0 %1239
      %1243 = vset.pattern.permute.xlu0 0
      %1244 = vperm.xlu0 %1243, %v502
      %v1245 = vpop.permute.xlu0 %1244
      %1248 = vset.pattern.permute.xlu0 0
      %1249 = vperm.xlu0 %1248, %v503
      %v1250 = vpop.permute.xlu0 %1249
      %1253 = vset.pattern.permute.xlu0 0
      %1254 = vperm.xlu0 %1253, %v504
      %v1255 = vpop.permute.xlu0 %1254
      %1258 = vset.pattern.permute.xlu0 0
      %1259 = vperm.xlu0 %1258, %v505
      %v1260 = vpop.permute.xlu0 %1259
      %1263 = vset.pattern.permute.xlu0 0
      %1264 = vperm.xlu0 %1263, %v506
      %v1265 = vpop.permute.xlu0 %1264
      %1268 = vset.pattern.permute.xlu0 0
      %1269 = vperm.xlu0 %1268, %v507
      %v1270 = vpop.permute.xlu0 %1269
      %1273 = vset.pattern.permute.xlu0 0
      %1274 = vperm.xlu0 %1273, %v508
      %v1275 = vpop.permute.xlu0 %1274
      %v1277 = vlaneseq
      %v1278 = vshrl.u32 %v1277, 7
      %v1279 = vsub.s32 0, %v1278
      %v1280 = vrot.slane %v509, %v1279
      %v1281 = vlaneseq
      %v1282 = vshrl.u32 %v1281, 7
      %v1283 = vsub.s32 0, %v1282
      %v1284 = vrot.slane %v510, %v1283
      %v1285 = vlaneseq
      %v1286 = vshrl.u32 %v1285, 7
      %v1287 = vsub.s32 0, %v1286
      %v1288 = vrot.slane %v511, %v1287
      %v1289 = vlaneseq
      %v1290 = vshrl.u32 %v1289, 7
      %v1291 = vsub.s32 0, %v1290
      %v1292 = vrot.slane %v512, %v1291
      %v1293 = vlaneseq
      %v1294 = vshrl.u32 %v1293, 7
      %v1295 = vsub.s32 0, %v1294
      %v1296 = vrot.slane %v513, %v1295
      %v1297 = vlaneseq
      %v1298 = vshrl.u32 %v1297, 7
      %v1299 = vsub.s32 0, %v1298
      %v1300 = vrot.slane %v514, %v1299
      %v1301 = vlaneseq
      %v1302 = vshrl.u32 %v1301, 7
      %v1303 = vsub.s32 0, %v1302
      %v1304 = vrot.slane %v515, %v1303
      %v1305 = vlaneseq
      %v1306 = vshrl.u32 %v1305, 7
      %v1307 = vsub.s32 0, %v1306
      %v1308 = vrot.slane %v516, %v1307
      %v1309 = vlaneseq
      %v1310 = vshrl.u32 %v1309, 7
      %v1311 = vsub.s32 0, %v1310
      %v1312 = vrot.slane %v517, %v1311
      %v1313 = vlaneseq
      %v1314 = vshrl.u32 %v1313, 7
      %v1315 = vsub.s32 0, %v1314
      %v1316 = vrot.slane %v518, %v1315
      %v1317 = vlaneseq
      %v1318 = vshrl.u32 %v1317, 7
      %v1319 = vsub.s32 0, %v1318
      %v1320 = vrot.slane %v519, %v1319
      %v1321 = vlaneseq
      %v1322 = vshrl.u32 %v1321, 7
      %v1323 = vsub.s32 0, %v1322
      %v1324 = vrot.slane %v520, %v1323
      %v1325 = vlaneseq
      %v1326 = vshrl.u32 %v1325, 7
      %v1327 = vsub.s32 0, %v1326
      %v1328 = vrot.slane %v521, %v1327
      %v1329 = vlaneseq
      %v1330 = vshrl.u32 %v1329, 7
      %v1331 = vsub.s32 0, %v1330
      %v1332 = vrot.slane %v522, %v1331
      %v1333 = vlaneseq
      %v1334 = vshrl.u32 %v1333, 7
      %v1335 = vsub.s32 0, %v1334
      %v1336 = vrot.slane %v523, %v1335
      %v1337 = vlaneseq
      %v1338 = vshrl.u32 %v1337, 7
      %v1339 = vsub.s32 0, %v1338
      %v1340 = vrot.slane %v524, %v1339
      %v1341 = vlaneseq
      %v1342 = vshrl.u32 %v1341, 7
      %v1343 = vsub.s32 0, %v1342
      %v1344 = vrot.slane %v525, %v1343
      %v1345 = vlaneseq
      %v1346 = vshrl.u32 %v1345, 7
      %v1347 = vsub.s32 0, %v1346
      %v1348 = vrot.slane %v526, %v1347
      %v1349 = vlaneseq
      %v1350 = vshrl.u32 %v1349, 7
      %v1351 = vsub.s32 0, %v1350
      %v1352 = vrot.slane %v527, %v1351
      %v1353 = vlaneseq
      %v1354 = vshrl.u32 %v1353, 7
      %v1355 = vsub.s32 0, %v1354
      %v1356 = vrot.slane %v528, %v1355
      %v1357 = vlaneseq
      %v1358 = vshrl.u32 %v1357, 7
      %v1359 = vsub.s32 0, %v1358
      %v1360 = vrot.slane %v529, %v1359
      %v1361 = vlaneseq
      %v1362 = vshrl.u32 %v1361, 7
      %v1363 = vsub.s32 0, %v1362
      %v1364 = vrot.slane %v530, %v1363
      %v1365 = vlaneseq
      %v1366 = vshrl.u32 %v1365, 7
      %v1367 = vsub.s32 0, %v1366
      %v1368 = vrot.slane %v531, %v1367
      %v1369 = vlaneseq
      %v1370 = vshrl.u32 %v1369, 7
      %v1371 = vsub.s32 0, %v1370
      %v1372 = vrot.slane %v532, %v1371
      %v1373 = vlaneseq
      %v1374 = vshrl.u32 %v1373, 7
      %v1375 = vsub.s32 0, %v1374
      %v1376 = vrot.slane %v533, %v1375
      %v1377 = vlaneseq
      %v1378 = vshrl.u32 %v1377, 7
      %v1379 = vsub.s32 0, %v1378
      %v1380 = vrot.slane %v534, %v1379
      %v1381 = vlaneseq
      %v1382 = vshrl.u32 %v1381, 7
      %v1383 = vsub.s32 0, %v1382
      %v1384 = vrot.slane %v535, %v1383
      %v1385 = vlaneseq
      %v1386 = vshrl.u32 %v1385, 7
      %v1387 = vsub.s32 0, %v1386
      %v1388 = vrot.slane %v536, %v1387
      %v1389 = vlaneseq
      %v1390 = vshrl.u32 %v1389, 7
      %v1391 = vsub.s32 0, %v1390
      %v1392 = vrot.slane %v537, %v1391
      %v1393 = vlaneseq
      %v1394 = vshrl.u32 %v1393, 7
      %v1395 = vsub.s32 0, %v1394
      %v1396 = vrot.slane %v538, %v1395
      %v1397 = vlaneseq
      %v1398 = vshrl.u32 %v1397, 7
      %v1399 = vsub.s32 0, %v1398
      %v1400 = vrot.slane %v539, %v1399
      %v1401 = vlaneseq
      %v1402 = vshrl.u32 %v1401, 7
      %v1403 = vsub.s32 0, %v1402
      %v1404 = vrot.slane %v540, %v1403
      %v1405 = vlaneseq
      %v1406 = vshrl.u32 %v1405, 7
      %v1407 = vsub.s32 0, %v1406
      %v1408 = vrot.slane %v541, %v1407
      %v1409 = vlaneseq
      %v1410 = vshrl.u32 %v1409, 7
      %v1411 = vsub.s32 0, %v1410
      %v1412 = vrot.slane %v542, %v1411
      %v1413 = vlaneseq
      %v1414 = vshrl.u32 %v1413, 7
      %v1415 = vsub.s32 0, %v1414
      %v1416 = vrot.slane %v543, %v1415
      %v1417 = vlaneseq
      %v1418 = vshrl.u32 %v1417, 7
      %v1419 = vsub.s32 0, %v1418
      %v1420 = vrot.slane %v544, %v1419
      %v1421 = vlaneseq
      %v1422 = vshrl.u32 %v1421, 7
      %v1423 = vsub.s32 0, %v1422
      %v1424 = vrot.slane %v545, %v1423
      %v1425 = vlaneseq
      %v1426 = vshrl.u32 %v1425, 7
      %v1427 = vsub.s32 0, %v1426
      %v1428 = vrot.slane %v546, %v1427
      %v1429 = vlaneseq
      %v1430 = vshrl.u32 %v1429, 7
      %v1431 = vsub.s32 0, %v1430
      %v1432 = vrot.slane %v547, %v1431
      %v1433 = vlaneseq
      %v1434 = vshrl.u32 %v1433, 7
      %v1435 = vsub.s32 0, %v1434
      %v1436 = vrot.slane %v548, %v1435
      %v1437 = vlaneseq
      %v1438 = vshrl.u32 %v1437, 7
      %v1439 = vsub.s32 0, %v1438
      %v1440 = vrot.slane %v549, %v1439
      %v1441 = vlaneseq
      %v1442 = vshrl.u32 %v1441, 7
      %v1443 = vsub.s32 0, %v1442
      %v1444 = vrot.slane %v550, %v1443
      %v1445 = vlaneseq
      %v1446 = vshrl.u32 %v1445, 7
      %v1447 = vsub.s32 0, %v1446
      %v1448 = vrot.slane %v551, %v1447
      %v1449 = vlaneseq
      %v1450 = vshrl.u32 %v1449, 7
      %v1451 = vsub.s32 0, %v1450
      %v1452 = vrot.slane %v552, %v1451
      %v1453 = vlaneseq
      %v1454 = vshrl.u32 %v1453, 7
      %v1455 = vsub.s32 0, %v1454
      %v1456 = vrot.slane %v553, %v1455
      %v1457 = vlaneseq
      %v1458 = vshrl.u32 %v1457, 7
      %v1459 = vsub.s32 0, %v1458
      %v1460 = vrot.slane %v554, %v1459
      %v1461 = vlaneseq
      %v1462 = vshrl.u32 %v1461, 7
      %v1463 = vsub.s32 0, %v1462
      %v1464 = vrot.slane %v555, %v1463
      %v1465 = vlaneseq
      %v1466 = vshrl.u32 %v1465, 7
      %v1467 = vsub.s32 0, %v1466
      %v1468 = vrot.slane %v556, %v1467
      %v1469 = vlaneseq
      %v1470 = vshrl.u32 %v1469, 7
      %v1471 = vsub.s32 0, %v1470
      %v1472 = vrot.slane %v557, %v1471
      %v1473 = vlaneseq
      %v1474 = vshrl.u32 %v1473, 7
      %v1475 = vsub.s32 0, %v1474
      %v1476 = vrot.slane %v558, %v1475
      %v1477 = vlaneseq
      %v1478 = vshrl.u32 %v1477, 7
      %v1479 = vsub.s32 0, %v1478
      %v1480 = vrot.slane %v559, %v1479
      %v1481 = vlaneseq
      %v1482 = vshrl.u32 %v1481, 7
      %v1483 = vsub.s32 0, %v1482
      %v1484 = vrot.slane %v560, %v1483
      %v1485 = vlaneseq
      %v1486 = vshrl.u32 %v1485, 7
      %v1487 = vsub.s32 0, %v1486
      %v1488 = vrot.slane %v561, %v1487
      %v1489 = vlaneseq
      %v1490 = vshrl.u32 %v1489, 7
      %v1491 = vsub.s32 0, %v1490
      %v1492 = vrot.slane %v562, %v1491
      %v1493 = vlaneseq
      %v1494 = vshrl.u32 %v1493, 7
      %v1495 = vsub.s32 0, %v1494
      %v1496 = vrot.slane %v563, %v1495
      %v1497 = vlaneseq
      %v1498 = vshrl.u32 %v1497, 7
      %v1499 = vsub.s32 0, %v1498
      %v1500 = vrot.slane %v564, %v1499
      %v1501 = vlaneseq
      %v1502 = vshrl.u32 %v1501, 7
      %v1503 = vsub.s32 0, %v1502
      %v1504 = vrot.slane %v565, %v1503
      %v1505 = vlaneseq
      %v1506 = vshrl.u32 %v1505, 7
      %v1507 = vsub.s32 0, %v1506
      %v1508 = vrot.slane %v566, %v1507
      %v1509 = vlaneseq
      %v1510 = vshrl.u32 %v1509, 7
      %v1511 = vsub.s32 0, %v1510
      %v1512 = vrot.slane %v567, %v1511
      %v1513 = vlaneseq
      %v1514 = vshrl.u32 %v1513, 7
      %v1515 = vsub.s32 0, %v1514
      %v1516 = vrot.slane %v568, %v1515
      %v1517 = vlaneseq
      %v1518 = vshrl.u32 %v1517, 7
      %v1519 = vsub.s32 0, %v1518
      %v1520 = vrot.slane %v569, %v1519
      %v1521 = vlaneseq
      %v1522 = vshrl.u32 %v1521, 7
      %v1523 = vsub.s32 0, %v1522
      %v1524 = vrot.slane %v570, %v1523
      %v1525 = vlaneseq
      %v1526 = vshrl.u32 %v1525, 7
      %v1527 = vsub.s32 0, %v1526
      %v1528 = vrot.slane %v571, %v1527
      %v1529 = vlaneseq
      %v1530 = vshrl.u32 %v1529, 7
      %v1531 = vsub.s32 0, %v1530
      %v1532 = vrot.slane %v572, %v1531
      %v1533 = vsub.f32 %v640, %v1280
      %v1534 = vsub.f32 %v645, %v1280
      %v1535 = vsub.f32 %v650, %v1284
      %v1536 = vsub.f32 %v655, %v1284
      %v1537 = vsub.f32 %v660, %v1288
      %v1538 = vsub.f32 %v665, %v1288
      %v1539 = vsub.f32 %v670, %v1292
      %v1540 = vsub.f32 %v675, %v1292
      %v1541 = vsub.f32 %v680, %v1296
      %v1542 = vsub.f32 %v685, %v1296
      %v1543 = vsub.f32 %v690, %v1300
      %v1544 = vsub.f32 %v695, %v1300
      %v1545 = vsub.f32 %v700, %v1304
      %v1546 = vsub.f32 %v705, %v1304
      %v1547 = vsub.f32 %v710, %v1308
      %v1548 = vsub.f32 %v715, %v1308
      %v1549 = vsub.f32 %v720, %v1312
      %v1550 = vsub.f32 %v725, %v1312
      %v1551 = vsub.f32 %v730, %v1316
      %v1552 = vsub.f32 %v735, %v1316
      %v1553 = vsub.f32 %v740, %v1320
      %v1554 = vsub.f32 %v745, %v1320
      %v1555 = vsub.f32 %v750, %v1324
      %v1556 = vsub.f32 %v755, %v1324
      %v1557 = vsub.f32 %v760, %v1328
      %v1558 = vsub.f32 %v765, %v1328
      %v1559 = vsub.f32 %v770, %v1332
      %v1560 = vsub.f32 %v775, %v1332
      %v1561 = vsub.f32 %v780, %v1336
      %v1562 = vsub.f32 %v785, %v1336
      %v1563 = vsub.f32 %v790, %v1340
      %v1564 = vsub.f32 %v795, %v1340
      %v1565 = vsub.f32 %v800, %v1344
      %v1566 = vsub.f32 %v805, %v1344
      %v1567 = vsub.f32 %v810, %v1348
      %v1568 = vsub.f32 %v815, %v1348
      %v1569 = vsub.f32 %v820, %v1352
      %v1570 = vsub.f32 %v825, %v1352
      %v1571 = vsub.f32 %v830, %v1356
      %v1572 = vsub.f32 %v835, %v1356
      %v1573 = vsub.f32 %v840, %v1360
      %v1574 = vsub.f32 %v845, %v1360
      %v1575 = vsub.f32 %v850, %v1364
      %v1576 = vsub.f32 %v855, %v1364
      %v1577 = vsub.f32 %v860, %v1368
      %v1578 = vsub.f32 %v865, %v1368
      %v1579 = vsub.f32 %v870, %v1372
      %v1580 = vsub.f32 %v875, %v1372
      %v1581 = vsub.f32 %v880, %v1376
      %v1582 = vsub.f32 %v885, %v1376
      %v1583 = vsub.f32 %v890, %v1380
      %v1584 = vsub.f32 %v895, %v1380
      %v1585 = vsub.f32 %v900, %v1384
      %v1586 = vsub.f32 %v905, %v1384
      %v1587 = vsub.f32 %v910, %v1388
      %v1588 = vsub.f32 %v915, %v1388
      %v1589 = vsub.f32 %v920, %v1392
      %v1590 = vsub.f32 %v925, %v1392
      %v1591 = vsub.f32 %v930, %v1396
      %v1592 = vsub.f32 %v935, %v1396
      %v1593 = vsub.f32 %v940, %v1400
      %v1594 = vsub.f32 %v945, %v1400
      %v1595 = vsub.f32 %v950, %v1404
      %v1596 = vsub.f32 %v955, %v1404
      %v1597 = vsub.f32 %v960, %v1408
      %v1598 = vsub.f32 %v965, %v1408
      %v1599 = vsub.f32 %v970, %v1412
      %v1600 = vsub.f32 %v975, %v1412
      %v1601 = vsub.f32 %v980, %v1416
      %v1602 = vsub.f32 %v985, %v1416
      %v1603 = vsub.f32 %v990, %v1420
      %v1604 = vsub.f32 %v995, %v1420
      %v1605 = vsub.f32 %v1000, %v1424
      %v1606 = vsub.f32 %v1005, %v1424
      %v1607 = vsub.f32 %v1010, %v1428
      %v1608 = vsub.f32 %v1015, %v1428
      %v1609 = vsub.f32 %v1020, %v1432
      %v1610 = vsub.f32 %v1025, %v1432
      %v1611 = vsub.f32 %v1030, %v1436
      %v1612 = vsub.f32 %v1035, %v1436
      %v1613 = vsub.f32 %v1040, %v1440
      %v1614 = vsub.f32 %v1045, %v1440
      %v1615 = vsub.f32 %v1050, %v1444
      %v1616 = vsub.f32 %v1055, %v1444
      %v1617 = vsub.f32 %v1060, %v1448
      %v1618 = vsub.f32 %v1065, %v1448
      %v1619 = vsub.f32 %v1070, %v1452
      %v1620 = vsub.f32 %v1075, %v1452
      %v1621 = vsub.f32 %v1080, %v1456
      %v1622 = vsub.f32 %v1085, %v1456
      %v1623 = vsub.f32 %v1090, %v1460
      %v1624 = vsub.f32 %v1095, %v1460
      %v1625 = vsub.f32 %v1100, %v1464
      %v1626 = vsub.f32 %v1105, %v1464
      %v1627 = vsub.f32 %v1110, %v1468
      %v1628 = vsub.f32 %v1115, %v1468
      %v1629 = vsub.f32 %v1120, %v1472
      %v1630 = vsub.f32 %v1125, %v1472
      %v1631 = vsub.f32 %v1130, %v1476
      %v1632 = vsub.f32 %v1135, %v1476
      %v1633 = vsub.f32 %v1140, %v1480
      %v1634 = vsub.f32 %v1145, %v1480
      %v1635 = vsub.f32 %v1150, %v1484
      %v1636 = vsub.f32 %v1155, %v1484
      %v1637 = vsub.f32 %v1160, %v1488
      %v1638 = vsub.f32 %v1165, %v1488
      %v1639 = vsub.f32 %v1170, %v1492
      %v1640 = vsub.f32 %v1175, %v1492
      %v1641 = vsub.f32 %v1180, %v1496
      %v1642 = vsub.f32 %v1185, %v1496
      %v1643 = vsub.f32 %v1190, %v1500
      %v1644 = vsub.f32 %v1195, %v1500
      %v1645 = vsub.f32 %v1200, %v1504
      %v1646 = vsub.f32 %v1205, %v1504
      %v1647 = vsub.f32 %v1210, %v1508
      %v1648 = vsub.f32 %v1215, %v1508
      %v1649 = vsub.f32 %v1220, %v1512
      %v1650 = vsub.f32 %v1225, %v1512
      %v1651 = vsub.f32 %v1230, %v1516
      %v1652 = vsub.f32 %v1235, %v1516
      %v1653 = vsub.f32 %v1240, %v1520
      %v1654 = vsub.f32 %v1245, %v1520
      %v1655 = vsub.f32 %v1250, %v1524
      %v1656 = vsub.f32 %v1255, %v1524
      %v1657 = vsub.f32 %v1260, %v1528
      %v1658 = vsub.f32 %v1265, %v1528
      %v1659 = vsub.f32 %v1270, %v1532
      %v1660 = vsub.f32 %v1275, %v1532
      %1661 = vset.pattern.permute.xlu0 1
      %1662 = vperm.xlu0 %1661, %v381
      %v1663 = vpop.permute.xlu0 %1662
      %1665 = vset.pattern.permute.xlu0 1
      %1666 = vperm.xlu0 %1665, %v382
      %v1667 = vpop.permute.xlu0 %1666
      %1669 = vset.pattern.permute.xlu0 1
      %1670 = vperm.xlu0 %1669, %v383
      %v1671 = vpop.permute.xlu0 %1670
      %1673 = vset.pattern.permute.xlu0 1
      %1674 = vperm.xlu0 %1673, %v384
      %v1675 = vpop.permute.xlu0 %1674
      %1677 = vset.pattern.permute.xlu0 1
      %1678 = vperm.xlu0 %1677, %v385
      %v1679 = vpop.permute.xlu0 %1678
      %1681 = vset.pattern.permute.xlu0 1
      %1682 = vperm.xlu0 %1681, %v386
      %v1683 = vpop.permute.xlu0 %1682
      %1685 = vset.pattern.permute.xlu0 1
      %1686 = vperm.xlu0 %1685, %v387
      %v1687 = vpop.permute.xlu0 %1686
      %1689 = vset.pattern.permute.xlu0 1
      %1690 = vperm.xlu0 %1689, %v388
      %v1691 = vpop.permute.xlu0 %1690
      %1693 = vset.pattern.permute.xlu0 1
      %1694 = vperm.xlu0 %1693, %v389
      %v1695 = vpop.permute.xlu0 %1694
      %1697 = vset.pattern.permute.xlu0 1
      %1698 = vperm.xlu0 %1697, %v390
      %v1699 = vpop.permute.xlu0 %1698
      %1701 = vset.pattern.permute.xlu0 1
      %1702 = vperm.xlu0 %1701, %v391
      %v1703 = vpop.permute.xlu0 %1702
      %1705 = vset.pattern.permute.xlu0 1
      %1706 = vperm.xlu0 %1705, %v392
      %v1707 = vpop.permute.xlu0 %1706
      %1709 = vset.pattern.permute.xlu0 1
      %1710 = vperm.xlu0 %1709, %v393
      %v1711 = vpop.permute.xlu0 %1710
      %1713 = vset.pattern.permute.xlu0 1
      %1714 = vperm.xlu0 %1713, %v394
      %v1715 = vpop.permute.xlu0 %1714
      %1717 = vset.pattern.permute.xlu0 1
      %1718 = vperm.xlu0 %1717, %v395
      %v1719 = vpop.permute.xlu0 %1718
      %1721 = vset.pattern.permute.xlu0 1
      %1722 = vperm.xlu0 %1721, %v396
      %v1723 = vpop.permute.xlu0 %1722
      %1725 = vset.pattern.permute.xlu0 1
      %1726 = vperm.xlu0 %1725, %v397
      %v1727 = vpop.permute.xlu0 %1726
      %1729 = vset.pattern.permute.xlu0 1
      %1730 = vperm.xlu0 %1729, %v398
      %v1731 = vpop.permute.xlu0 %1730
      %1733 = vset.pattern.permute.xlu0 1
      %1734 = vperm.xlu0 %1733, %v399
      %v1735 = vpop.permute.xlu0 %1734
      %1737 = vset.pattern.permute.xlu0 1
      %1738 = vperm.xlu0 %1737, %v400
      %v1739 = vpop.permute.xlu0 %1738
      %1741 = vset.pattern.permute.xlu0 1
      %1742 = vperm.xlu0 %1741, %v401
      %v1743 = vpop.permute.xlu0 %1742
      %1745 = vset.pattern.permute.xlu0 1
      %1746 = vperm.xlu0 %1745, %v402
      %v1747 = vpop.permute.xlu0 %1746
      %1749 = vset.pattern.permute.xlu0 1
      %1750 = vperm.xlu0 %1749, %v403
      %v1751 = vpop.permute.xlu0 %1750
      %1753 = vset.pattern.permute.xlu0 1
      %1754 = vperm.xlu0 %1753, %v404
      %v1755 = vpop.permute.xlu0 %1754
      %1757 = vset.pattern.permute.xlu0 1
      %1758 = vperm.xlu0 %1757, %v405
      %v1759 = vpop.permute.xlu0 %1758
      %1761 = vset.pattern.permute.xlu0 1
      %1762 = vperm.xlu0 %1761, %v406
      %v1763 = vpop.permute.xlu0 %1762
      %1765 = vset.pattern.permute.xlu0 1
      %1766 = vperm.xlu0 %1765, %v407
      %v1767 = vpop.permute.xlu0 %1766
      %1769 = vset.pattern.permute.xlu0 1
      %1770 = vperm.xlu0 %1769, %v408
      %v1771 = vpop.permute.xlu0 %1770
      %1773 = vset.pattern.permute.xlu0 1
      %1774 = vperm.xlu0 %1773, %v409
      %v1775 = vpop.permute.xlu0 %1774
      %1777 = vset.pattern.permute.xlu0 1
      %1778 = vperm.xlu0 %1777, %v410
      %v1779 = vpop.permute.xlu0 %1778
      %1781 = vset.pattern.permute.xlu0 1
      %1782 = vperm.xlu0 %1781, %v411
      %v1783 = vpop.permute.xlu0 %1782
      %1785 = vset.pattern.permute.xlu0 1
      %1786 = vperm.xlu0 %1785, %v412
      %v1787 = vpop.permute.xlu0 %1786
      %1789 = vset.pattern.permute.xlu0 1
      %1790 = vperm.xlu0 %1789, %v413
      %v1791 = vpop.permute.xlu0 %1790
      %1793 = vset.pattern.permute.xlu0 1
      %1794 = vperm.xlu0 %1793, %v414
      %v1795 = vpop.permute.xlu0 %1794
      %1797 = vset.pattern.permute.xlu0 1
      %1798 = vperm.xlu0 %1797, %v415
      %v1799 = vpop.permute.xlu0 %1798
      %1801 = vset.pattern.permute.xlu0 1
      %1802 = vperm.xlu0 %1801, %v416
      %v1803 = vpop.permute.xlu0 %1802
      %1805 = vset.pattern.permute.xlu0 1
      %1806 = vperm.xlu0 %1805, %v417
      %v1807 = vpop.permute.xlu0 %1806
      %1809 = vset.pattern.permute.xlu0 1
      %1810 = vperm.xlu0 %1809, %v418
      %v1811 = vpop.permute.xlu0 %1810
      %1813 = vset.pattern.permute.xlu0 1
      %1814 = vperm.xlu0 %1813, %v419
      %v1815 = vpop.permute.xlu0 %1814
      %1817 = vset.pattern.permute.xlu0 1
      %1818 = vperm.xlu0 %1817, %v420
      %v1819 = vpop.permute.xlu0 %1818
      %1821 = vset.pattern.permute.xlu0 1
      %1822 = vperm.xlu0 %1821, %v421
      %v1823 = vpop.permute.xlu0 %1822
      %1825 = vset.pattern.permute.xlu0 1
      %1826 = vperm.xlu0 %1825, %v422
      %v1827 = vpop.permute.xlu0 %1826
      %1829 = vset.pattern.permute.xlu0 1
      %1830 = vperm.xlu0 %1829, %v423
      %v1831 = vpop.permute.xlu0 %1830
      %1833 = vset.pattern.permute.xlu0 1
      %1834 = vperm.xlu0 %1833, %v424
      %v1835 = vpop.permute.xlu0 %1834
      %1837 = vset.pattern.permute.xlu0 1
      %1838 = vperm.xlu0 %1837, %v425
      %v1839 = vpop.permute.xlu0 %1838
      %1841 = vset.pattern.permute.xlu0 1
      %1842 = vperm.xlu0 %1841, %v426
      %v1843 = vpop.permute.xlu0 %1842
      %1845 = vset.pattern.permute.xlu0 1
      %1846 = vperm.xlu0 %1845, %v427
      %v1847 = vpop.permute.xlu0 %1846
      %1849 = vset.pattern.permute.xlu0 1
      %1850 = vperm.xlu0 %1849, %v428
      %v1851 = vpop.permute.xlu0 %1850
      %1853 = vset.pattern.permute.xlu0 1
      %1854 = vperm.xlu0 %1853, %v429
      %v1855 = vpop.permute.xlu0 %1854
      %1857 = vset.pattern.permute.xlu0 1
      %1858 = vperm.xlu0 %1857, %v430
      %v1859 = vpop.permute.xlu0 %1858
      %1861 = vset.pattern.permute.xlu0 1
      %1862 = vperm.xlu0 %1861, %v431
      %v1863 = vpop.permute.xlu0 %1862
      %1865 = vset.pattern.permute.xlu0 1
      %1866 = vperm.xlu0 %1865, %v432
      %v1867 = vpop.permute.xlu0 %1866
      %1869 = vset.pattern.permute.xlu0 1
      %1870 = vperm.xlu0 %1869, %v433
      %v1871 = vpop.permute.xlu0 %1870
      %1873 = vset.pattern.permute.xlu0 1
      %1874 = vperm.xlu0 %1873, %v434
      %v1875 = vpop.permute.xlu0 %1874
      %1877 = vset.pattern.permute.xlu0 1
      %1878 = vperm.xlu0 %1877, %v435
      %v1879 = vpop.permute.xlu0 %1878
      %1881 = vset.pattern.permute.xlu0 1
      %1882 = vperm.xlu0 %1881, %v436
      %v1883 = vpop.permute.xlu0 %1882
      %1885 = vset.pattern.permute.xlu0 1
      %1886 = vperm.xlu0 %1885, %v437
      %v1887 = vpop.permute.xlu0 %1886
      %1889 = vset.pattern.permute.xlu0 1
      %1890 = vperm.xlu0 %1889, %v438
      %v1891 = vpop.permute.xlu0 %1890
      %1893 = vset.pattern.permute.xlu0 1
      %1894 = vperm.xlu0 %1893, %v439
      %v1895 = vpop.permute.xlu0 %1894
      %1897 = vset.pattern.permute.xlu0 1
      %1898 = vperm.xlu0 %1897, %v440
      %v1899 = vpop.permute.xlu0 %1898
      %1901 = vset.pattern.permute.xlu0 1
      %1902 = vperm.xlu0 %1901, %v441
      %v1903 = vpop.permute.xlu0 %1902
      %1905 = vset.pattern.permute.xlu0 1
      %1906 = vperm.xlu0 %1905, %v442
      %v1907 = vpop.permute.xlu0 %1906
      %1909 = vset.pattern.permute.xlu0 1
      %1910 = vperm.xlu0 %1909, %v443
      %v1911 = vpop.permute.xlu0 %1910
      %1913 = vset.pattern.permute.xlu0 1
      %1914 = vperm.xlu0 %1913, %v444
      %v1915 = vpop.permute.xlu0 %1914
      %1917 = vset.pattern.permute.xlu0 1
      %1918 = vperm.xlu0 %1917, %v445
      %v1919 = vpop.permute.xlu0 %1918
      %1921 = vset.pattern.permute.xlu0 1
      %1922 = vperm.xlu0 %1921, %v446
      %v1923 = vpop.permute.xlu0 %1922
      %1925 = vset.pattern.permute.xlu0 1
      %1926 = vperm.xlu0 %1925, %v447
      %v1927 = vpop.permute.xlu0 %1926
      %1929 = vset.pattern.permute.xlu0 1
      %1930 = vperm.xlu0 %1929, %v448
      %v1931 = vpop.permute.xlu0 %1930
      %1933 = vset.pattern.permute.xlu0 1
      %1934 = vperm.xlu0 %1933, %v449
      %v1935 = vpop.permute.xlu0 %1934
      %1937 = vset.pattern.permute.xlu0 1
      %1938 = vperm.xlu0 %1937, %v450
      %v1939 = vpop.permute.xlu0 %1938
      %1941 = vset.pattern.permute.xlu0 1
      %1942 = vperm.xlu0 %1941, %v451
      %v1943 = vpop.permute.xlu0 %1942
      %1945 = vset.pattern.permute.xlu0 1
      %1946 = vperm.xlu0 %1945, %v452
      %v1947 = vpop.permute.xlu0 %1946
      %1949 = vset.pattern.permute.xlu0 1
      %1950 = vperm.xlu0 %1949, %v453
      %v1951 = vpop.permute.xlu0 %1950
      %1953 = vset.pattern.permute.xlu0 1
      %1954 = vperm.xlu0 %1953, %v454
      %v1955 = vpop.permute.xlu0 %1954
      %1957 = vset.pattern.permute.xlu0 1
      %1958 = vperm.xlu0 %1957, %v455
      %v1959 = vpop.permute.xlu0 %1958
      %1961 = vset.pattern.permute.xlu0 1
      %1962 = vperm.xlu0 %1961, %v456
      %v1963 = vpop.permute.xlu0 %1962
      %1965 = vset.pattern.permute.xlu0 1
      %1966 = vperm.xlu0 %1965, %v457
      %v1967 = vpop.permute.xlu0 %1966
      %1969 = vset.pattern.permute.xlu0 1
      %1970 = vperm.xlu0 %1969, %v458
      %v1971 = vpop.permute.xlu0 %1970
      %1973 = vset.pattern.permute.xlu0 1
      %1974 = vperm.xlu0 %1973, %v459
      %v1975 = vpop.permute.xlu0 %1974
      %1977 = vset.pattern.permute.xlu0 1
      %1978 = vperm.xlu0 %1977, %v460
      %v1979 = vpop.permute.xlu0 %1978
      %1981 = vset.pattern.permute.xlu0 1
      %1982 = vperm.xlu0 %1981, %v461
      %v1983 = vpop.permute.xlu0 %1982
      %1985 = vset.pattern.permute.xlu0 1
      %1986 = vperm.xlu0 %1985, %v462
      %v1987 = vpop.permute.xlu0 %1986
      %1989 = vset.pattern.permute.xlu0 1
      %1990 = vperm.xlu0 %1989, %v463
      %v1991 = vpop.permute.xlu0 %1990
      %1993 = vset.pattern.permute.xlu0 1
      %1994 = vperm.xlu0 %1993, %v464
      %v1995 = vpop.permute.xlu0 %1994
      %1997 = vset.pattern.permute.xlu0 1
      %1998 = vperm.xlu0 %1997, %v465
      %v1999 = vpop.permute.xlu0 %1998
      %2001 = vset.pattern.permute.xlu0 1
      %2002 = vperm.xlu0 %2001, %v466
      %v2003 = vpop.permute.xlu0 %2002
      %2005 = vset.pattern.permute.xlu0 1
      %2006 = vperm.xlu0 %2005, %v467
      %v2007 = vpop.permute.xlu0 %2006
      %2009 = vset.pattern.permute.xlu0 1
      %2010 = vperm.xlu0 %2009, %v468
      %v2011 = vpop.permute.xlu0 %2010
      %2013 = vset.pattern.permute.xlu0 1
      %2014 = vperm.xlu0 %2013, %v469
      %v2015 = vpop.permute.xlu0 %2014
      %2017 = vset.pattern.permute.xlu0 1
      %2018 = vperm.xlu0 %2017, %v470
      %v2019 = vpop.permute.xlu0 %2018
      %2021 = vset.pattern.permute.xlu0 1
      %2022 = vperm.xlu0 %2021, %v471
      %v2023 = vpop.permute.xlu0 %2022
      %2025 = vset.pattern.permute.xlu0 1
      %2026 = vperm.xlu0 %2025, %v472
      %v2027 = vpop.permute.xlu0 %2026
      %2029 = vset.pattern.permute.xlu0 1
      %2030 = vperm.xlu0 %2029, %v473
      %v2031 = vpop.permute.xlu0 %2030
      %2033 = vset.pattern.permute.xlu0 1
      %2034 = vperm.xlu0 %2033, %v474
      %v2035 = vpop.permute.xlu0 %2034
      %2037 = vset.pattern.permute.xlu0 1
      %2038 = vperm.xlu0 %2037, %v475
      %v2039 = vpop.permute.xlu0 %2038
      %2041 = vset.pattern.permute.xlu0 1
      %2042 = vperm.xlu0 %2041, %v476
      %v2043 = vpop.permute.xlu0 %2042
      %2045 = vset.pattern.permute.xlu0 1
      %2046 = vperm.xlu0 %2045, %v477
      %v2047 = vpop.permute.xlu0 %2046
      %2049 = vset.pattern.permute.xlu0 1
      %2050 = vperm.xlu0 %2049, %v478
      %v2051 = vpop.permute.xlu0 %2050
      %2053 = vset.pattern.permute.xlu0 1
      %2054 = vperm.xlu0 %2053, %v479
      %v2055 = vpop.permute.xlu0 %2054
      %2057 = vset.pattern.permute.xlu0 1
      %2058 = vperm.xlu0 %2057, %v480
      %v2059 = vpop.permute.xlu0 %2058
      %2061 = vset.pattern.permute.xlu0 1
      %2062 = vperm.xlu0 %2061, %v481
      %v2063 = vpop.permute.xlu0 %2062
      %2065 = vset.pattern.permute.xlu0 1
      %2066 = vperm.xlu0 %2065, %v482
      %v2067 = vpop.permute.xlu0 %2066
      %2069 = vset.pattern.permute.xlu0 1
      %2070 = vperm.xlu0 %2069, %v483
      %v2071 = vpop.permute.xlu0 %2070
      %2073 = vset.pattern.permute.xlu0 1
      %2074 = vperm.xlu0 %2073, %v484
      %v2075 = vpop.permute.xlu0 %2074
      %2077 = vset.pattern.permute.xlu0 1
      %2078 = vperm.xlu0 %2077, %v485
      %v2079 = vpop.permute.xlu0 %2078
      %2081 = vset.pattern.permute.xlu0 1
      %2082 = vperm.xlu0 %2081, %v486
      %v2083 = vpop.permute.xlu0 %2082
      %2085 = vset.pattern.permute.xlu0 1
      %2086 = vperm.xlu0 %2085, %v487
      %v2087 = vpop.permute.xlu0 %2086
      %2089 = vset.pattern.permute.xlu0 1
      %2090 = vperm.xlu0 %2089, %v488
      %v2091 = vpop.permute.xlu0 %2090
      %2093 = vset.pattern.permute.xlu0 1
      %2094 = vperm.xlu0 %2093, %v489
      %v2095 = vpop.permute.xlu0 %2094
      %2097 = vset.pattern.permute.xlu0 1
      %2098 = vperm.xlu0 %2097, %v490
      %v2099 = vpop.permute.xlu0 %2098
      %2101 = vset.pattern.permute.xlu0 1
      %2102 = vperm.xlu0 %2101, %v491
      %v2103 = vpop.permute.xlu0 %2102
      %2105 = vset.pattern.permute.xlu0 1
      %2106 = vperm.xlu0 %2105, %v492
      %v2107 = vpop.permute.xlu0 %2106
      %2109 = vset.pattern.permute.xlu0 1
      %2110 = vperm.xlu0 %2109, %v493
      %v2111 = vpop.permute.xlu0 %2110
      %2113 = vset.pattern.permute.xlu0 1
      %2114 = vperm.xlu0 %2113, %v494
      %v2115 = vpop.permute.xlu0 %2114
      %2117 = vset.pattern.permute.xlu0 1
      %2118 = vperm.xlu0 %2117, %v495
      %v2119 = vpop.permute.xlu0 %2118
      %2121 = vset.pattern.permute.xlu0 1
      %2122 = vperm.xlu0 %2121, %v496
      %v2123 = vpop.permute.xlu0 %2122
      %2125 = vset.pattern.permute.xlu0 1
      %2126 = vperm.xlu0 %2125, %v497
      %v2127 = vpop.permute.xlu0 %2126
      %2129 = vset.pattern.permute.xlu0 1
      %2130 = vperm.xlu0 %2129, %v498
      %v2131 = vpop.permute.xlu0 %2130
      %2133 = vset.pattern.permute.xlu0 1
      %2134 = vperm.xlu0 %2133, %v499
      %v2135 = vpop.permute.xlu0 %2134
      %2137 = vset.pattern.permute.xlu0 1
      %2138 = vperm.xlu0 %2137, %v500
      %v2139 = vpop.permute.xlu0 %2138
      %2141 = vset.pattern.permute.xlu0 1
      %2142 = vperm.xlu0 %2141, %v501
      %v2143 = vpop.permute.xlu0 %2142
      %2145 = vset.pattern.permute.xlu0 1
      %2146 = vperm.xlu0 %2145, %v502
      %v2147 = vpop.permute.xlu0 %2146
      %2149 = vset.pattern.permute.xlu0 1
      %2150 = vperm.xlu0 %2149, %v503
      %v2151 = vpop.permute.xlu0 %2150
      %2153 = vset.pattern.permute.xlu0 1
      %2154 = vperm.xlu0 %2153, %v504
      %v2155 = vpop.permute.xlu0 %2154
      %2157 = vset.pattern.permute.xlu0 1
      %2158 = vperm.xlu0 %2157, %v505
      %v2159 = vpop.permute.xlu0 %2158
      %2161 = vset.pattern.permute.xlu0 1
      %2162 = vperm.xlu0 %2161, %v506
      %v2163 = vpop.permute.xlu0 %2162
      %2165 = vset.pattern.permute.xlu0 1
      %2166 = vperm.xlu0 %2165, %v507
      %v2167 = vpop.permute.xlu0 %2166
      %2169 = vset.pattern.permute.xlu0 1
      %2170 = vperm.xlu0 %2169, %v508
      %v2171 = vpop.permute.xlu0 %2170
      %v2173 = vlaneseq
      %v2174 = vshrl.u32 %v2173, 7
      %v2175 = vsub.s32 1, %v2174
      %v2176 = vrot.slane %v509, %v2175
      %v2177 = vlaneseq
      %v2178 = vshrl.u32 %v2177, 7
      %v2179 = vsub.s32 1, %v2178
      %v2180 = vrot.slane %v510, %v2179
      %v2181 = vlaneseq
      %v2182 = vshrl.u32 %v2181, 7
      %v2183 = vsub.s32 1, %v2182
      %v2184 = vrot.slane %v511, %v2183
      %v2185 = vlaneseq
      %v2186 = vshrl.u32 %v2185, 7
      %v2187 = vsub.s32 1, %v2186
      %v2188 = vrot.slane %v512, %v2187
      %v2189 = vlaneseq
      %v2190 = vshrl.u32 %v2189, 7
      %v2191 = vsub.s32 1, %v2190
      %v2192 = vrot.slane %v513, %v2191
      %v2193 = vlaneseq
      %v2194 = vshrl.u32 %v2193, 7
      %v2195 = vsub.s32 1, %v2194
      %v2196 = vrot.slane %v514, %v2195
      %v2197 = vlaneseq
      %v2198 = vshrl.u32 %v2197, 7
      %v2199 = vsub.s32 1, %v2198
      %v2200 = vrot.slane %v515, %v2199
      %v2201 = vlaneseq
      %v2202 = vshrl.u32 %v2201, 7
      %v2203 = vsub.s32 1, %v2202
      %v2204 = vrot.slane %v516, %v2203
      %v2205 = vlaneseq
      %v2206 = vshrl.u32 %v2205, 7
      %v2207 = vsub.s32 1, %v2206
      %v2208 = vrot.slane %v517, %v2207
      %v2209 = vlaneseq
      %v2210 = vshrl.u32 %v2209, 7
      %v2211 = vsub.s32 1, %v2210
      %v2212 = vrot.slane %v518, %v2211
      %v2213 = vlaneseq
      %v2214 = vshrl.u32 %v2213, 7
      %v2215 = vsub.s32 1, %v2214
      %v2216 = vrot.slane %v519, %v2215
      %v2217 = vlaneseq
      %v2218 = vshrl.u32 %v2217, 7
      %v2219 = vsub.s32 1, %v2218
      %v2220 = vrot.slane %v520, %v2219
      %v2221 = vlaneseq
      %v2222 = vshrl.u32 %v2221, 7
      %v2223 = vsub.s32 1, %v2222
      %v2224 = vrot.slane %v521, %v2223
      %v2225 = vlaneseq
      %v2226 = vshrl.u32 %v2225, 7
      %v2227 = vsub.s32 1, %v2226
      %v2228 = vrot.slane %v522, %v2227
      %v2229 = vlaneseq
      %v2230 = vshrl.u32 %v2229, 7
      %v2231 = vsub.s32 1, %v2230
      %v2232 = vrot.slane %v523, %v2231
      %v2233 = vlaneseq
      %v2234 = vshrl.u32 %v2233, 7
      %v2235 = vsub.s32 1, %v2234
      %v2236 = vrot.slane %v524, %v2235
      %v2237 = vlaneseq
      %v2238 = vshrl.u32 %v2237, 7
      %v2239 = vsub.s32 1, %v2238
      %v2240 = vrot.slane %v525, %v2239
      %v2241 = vlaneseq
      %v2242 = vshrl.u32 %v2241, 7
      %v2243 = vsub.s32 1, %v2242
      %v2244 = vrot.slane %v526, %v2243
      %v2245 = vlaneseq
      %v2246 = vshrl.u32 %v2245, 7
      %v2247 = vsub.s32 1, %v2246
      %v2248 = vrot.slane %v527, %v2247
      %v2249 = vlaneseq
      %v2250 = vshrl.u32 %v2249, 7
      %v2251 = vsub.s32 1, %v2250
      %v2252 = vrot.slane %v528, %v2251
      %v2253 = vlaneseq
      %v2254 = vshrl.u32 %v2253, 7
      %v2255 = vsub.s32 1, %v2254
      %v2256 = vrot.slane %v529, %v2255
      %v2257 = vlaneseq
      %v2258 = vshrl.u32 %v2257, 7
      %v2259 = vsub.s32 1, %v2258
      %v2260 = vrot.slane %v530, %v2259
      %v2261 = vlaneseq
      %v2262 = vshrl.u32 %v2261, 7
      %v2263 = vsub.s32 1, %v2262
      %v2264 = vrot.slane %v531, %v2263
      %v2265 = vlaneseq
      %v2266 = vshrl.u32 %v2265, 7
      %v2267 = vsub.s32 1, %v2266
      %v2268 = vrot.slane %v532, %v2267
      %v2269 = vlaneseq
      %v2270 = vshrl.u32 %v2269, 7
      %v2271 = vsub.s32 1, %v2270
      %v2272 = vrot.slane %v533, %v2271
      %v2273 = vlaneseq
      %v2274 = vshrl.u32 %v2273, 7
      %v2275 = vsub.s32 1, %v2274
      %v2276 = vrot.slane %v534, %v2275
      %v2277 = vlaneseq
      %v2278 = vshrl.u32 %v2277, 7
      %v2279 = vsub.s32 1, %v2278
      %v2280 = vrot.slane %v535, %v2279
      %v2281 = vlaneseq
      %v2282 = vshrl.u32 %v2281, 7
      %v2283 = vsub.s32 1, %v2282
      %v2284 = vrot.slane %v536, %v2283
      %v2285 = vlaneseq
      %v2286 = vshrl.u32 %v2285, 7
      %v2287 = vsub.s32 1, %v2286
      %v2288 = vrot.slane %v537, %v2287
      %v2289 = vlaneseq
      %v2290 = vshrl.u32 %v2289, 7
      %v2291 = vsub.s32 1, %v2290
      %v2292 = vrot.slane %v538, %v2291
      %v2293 = vlaneseq
      %v2294 = vshrl.u32 %v2293, 7
      %v2295 = vsub.s32 1, %v2294
      %v2296 = vrot.slane %v539, %v2295
      %v2297 = vlaneseq
      %v2298 = vshrl.u32 %v2297, 7
      %v2299 = vsub.s32 1, %v2298
      %v2300 = vrot.slane %v540, %v2299
      %v2301 = vlaneseq
      %v2302 = vshrl.u32 %v2301, 7
      %v2303 = vsub.s32 1, %v2302
      %v2304 = vrot.slane %v541, %v2303
      %v2305 = vlaneseq
      %v2306 = vshrl.u32 %v2305, 7
      %v2307 = vsub.s32 1, %v2306
      %v2308 = vrot.slane %v542, %v2307
      %v2309 = vlaneseq
      %v2310 = vshrl.u32 %v2309, 7
      %v2311 = vsub.s32 1, %v2310
      %v2312 = vrot.slane %v543, %v2311
      %v2313 = vlaneseq
      %v2314 = vshrl.u32 %v2313, 7
      %v2315 = vsub.s32 1, %v2314
      %v2316 = vrot.slane %v544, %v2315
      %v2317 = vlaneseq
      %v2318 = vshrl.u32 %v2317, 7
      %v2319 = vsub.s32 1, %v2318
      %v2320 = vrot.slane %v545, %v2319
      %v2321 = vlaneseq
      %v2322 = vshrl.u32 %v2321, 7
      %v2323 = vsub.s32 1, %v2322
      %v2324 = vrot.slane %v546, %v2323
      %v2325 = vlaneseq
      %v2326 = vshrl.u32 %v2325, 7
      %v2327 = vsub.s32 1, %v2326
      %v2328 = vrot.slane %v547, %v2327
      %v2329 = vlaneseq
      %v2330 = vshrl.u32 %v2329, 7
      %v2331 = vsub.s32 1, %v2330
      %v2332 = vrot.slane %v548, %v2331
      %v2333 = vlaneseq
      %v2334 = vshrl.u32 %v2333, 7
      %v2335 = vsub.s32 1, %v2334
      %v2336 = vrot.slane %v549, %v2335
      %v2337 = vlaneseq
      %v2338 = vshrl.u32 %v2337, 7
      %v2339 = vsub.s32 1, %v2338
      %v2340 = vrot.slane %v550, %v2339
      %v2341 = vlaneseq
      %v2342 = vshrl.u32 %v2341, 7
      %v2343 = vsub.s32 1, %v2342
      %v2344 = vrot.slane %v551, %v2343
      %v2345 = vlaneseq
      %v2346 = vshrl.u32 %v2345, 7
      %v2347 = vsub.s32 1, %v2346
      %v2348 = vrot.slane %v552, %v2347
      %v2349 = vlaneseq
      %v2350 = vshrl.u32 %v2349, 7
      %v2351 = vsub.s32 1, %v2350
      %v2352 = vrot.slane %v553, %v2351
      %v2353 = vlaneseq
      %v2354 = vshrl.u32 %v2353, 7
      %v2355 = vsub.s32 1, %v2354
      %v2356 = vrot.slane %v554, %v2355
      %v2357 = vlaneseq
      %v2358 = vshrl.u32 %v2357, 7
      %v2359 = vsub.s32 1, %v2358
      %v2360 = vrot.slane %v555, %v2359
      %v2361 = vlaneseq
      %v2362 = vshrl.u32 %v2361, 7
      %v2363 = vsub.s32 1, %v2362
      %v2364 = vrot.slane %v556, %v2363
      %v2365 = vlaneseq
      %v2366 = vshrl.u32 %v2365, 7
      %v2367 = vsub.s32 1, %v2366
      %v2368 = vrot.slane %v557, %v2367
      %v2369 = vlaneseq
      %v2370 = vshrl.u32 %v2369, 7
      %v2371 = vsub.s32 1, %v2370
      %v2372 = vrot.slane %v558, %v2371
      %v2373 = vlaneseq
      %v2374 = vshrl.u32 %v2373, 7
      %v2375 = vsub.s32 1, %v2374
      %v2376 = vrot.slane %v559, %v2375
      %v2377 = vlaneseq
      %v2378 = vshrl.u32 %v2377, 7
      %v2379 = vsub.s32 1, %v2378
      %v2380 = vrot.slane %v560, %v2379
      %v2381 = vlaneseq
      %v2382 = vshrl.u32 %v2381, 7
      %v2383 = vsub.s32 1, %v2382
      %v2384 = vrot.slane %v561, %v2383
      %v2385 = vlaneseq
      %v2386 = vshrl.u32 %v2385, 7
      %v2387 = vsub.s32 1, %v2386
      %v2388 = vrot.slane %v562, %v2387
      %v2389 = vlaneseq
      %v2390 = vshrl.u32 %v2389, 7
      %v2391 = vsub.s32 1, %v2390
      %v2392 = vrot.slane %v563, %v2391
      %v2393 = vlaneseq
      %v2394 = vshrl.u32 %v2393, 7
      %v2395 = vsub.s32 1, %v2394
      %v2396 = vrot.slane %v564, %v2395
      %v2397 = vlaneseq
      %v2398 = vshrl.u32 %v2397, 7
      %v2399 = vsub.s32 1, %v2398
      %v2400 = vrot.slane %v565, %v2399
      %v2401 = vlaneseq
      %v2402 = vshrl.u32 %v2401, 7
      %v2403 = vsub.s32 1, %v2402
      %v2404 = vrot.slane %v566, %v2403
      %v2405 = vlaneseq
      %v2406 = vshrl.u32 %v2405, 7
      %v2407 = vsub.s32 1, %v2406
      %v2408 = vrot.slane %v567, %v2407
      %v2409 = vlaneseq
      %v2410 = vshrl.u32 %v2409, 7
      %v2411 = vsub.s32 1, %v2410
      %v2412 = vrot.slane %v568, %v2411
      %v2413 = vlaneseq
      %v2414 = vshrl.u32 %v2413, 7
      %v2415 = vsub.s32 1, %v2414
      %v2416 = vrot.slane %v569, %v2415
      %v2417 = vlaneseq
      %v2418 = vshrl.u32 %v2417, 7
      %v2419 = vsub.s32 1, %v2418
      %v2420 = vrot.slane %v570, %v2419
      %v2421 = vlaneseq
      %v2422 = vshrl.u32 %v2421, 7
      %v2423 = vsub.s32 1, %v2422
      %v2424 = vrot.slane %v571, %v2423
      %v2425 = vlaneseq
      %v2426 = vshrl.u32 %v2425, 7
      %v2427 = vsub.s32 1, %v2426
      %v2428 = vrot.slane %v572, %v2427
      %v2429 = vsub.f32 %v1663, %v2176
      %v2430 = vsub.f32 %v1667, %v2176
      %v2431 = vsub.f32 %v1671, %v2180
      %v2432 = vsub.f32 %v1675, %v2180
      %v2433 = vsub.f32 %v1679, %v2184
      %v2434 = vsub.f32 %v1683, %v2184
      %v2435 = vsub.f32 %v1687, %v2188
      %v2436 = vsub.f32 %v1691, %v2188
      %v2437 = vsub.f32 %v1695, %v2192
      %v2438 = vsub.f32 %v1699, %v2192
      %v2439 = vsub.f32 %v1703, %v2196
      %v2440 = vsub.f32 %v1707, %v2196
      %v2441 = vsub.f32 %v1711, %v2200
      %v2442 = vsub.f32 %v1715, %v2200
      %v2443 = vsub.f32 %v1719, %v2204
      %v2444 = vsub.f32 %v1723, %v2204
      %v2445 = vsub.f32 %v1727, %v2208
      %v2446 = vsub.f32 %v1731, %v2208
      %v2447 = vsub.f32 %v1735, %v2212
      %v2448 = vsub.f32 %v1739, %v2212
      %v2449 = vsub.f32 %v1743, %v2216
      %v2450 = vsub.f32 %v1747, %v2216
      %v2451 = vsub.f32 %v1751, %v2220
      %v2452 = vsub.f32 %v1755, %v2220
      %v2453 = vsub.f32 %v1759, %v2224
      %v2454 = vsub.f32 %v1763, %v2224
      %v2455 = vsub.f32 %v1767, %v2228
      %v2456 = vsub.f32 %v1771, %v2228
      %v2457 = vsub.f32 %v1775, %v2232
      %v2458 = vsub.f32 %v1779, %v2232
      %v2459 = vsub.f32 %v1783, %v2236
      %v2460 = vsub.f32 %v1787, %v2236
      %v2461 = vsub.f32 %v1791, %v2240
      %v2462 = vsub.f32 %v1795, %v2240
      %v2463 = vsub.f32 %v1799, %v2244
      %v2464 = vsub.f32 %v1803, %v2244
      %v2465 = vsub.f32 %v1807, %v2248
      %v2466 = vsub.f32 %v1811, %v2248
      %v2467 = vsub.f32 %v1815, %v2252
      %v2468 = vsub.f32 %v1819, %v2252
      %v2469 = vsub.f32 %v1823, %v2256
      %v2470 = vsub.f32 %v1827, %v2256
      %v2471 = vsub.f32 %v1831, %v2260
      %v2472 = vsub.f32 %v1835, %v2260
      %v2473 = vsub.f32 %v1839, %v2264
      %v2474 = vsub.f32 %v1843, %v2264
      %v2475 = vsub.f32 %v1847, %v2268
      %v2476 = vsub.f32 %v1851, %v2268
      %v2477 = vsub.f32 %v1855, %v2272
      %v2478 = vsub.f32 %v1859, %v2272
      %v2479 = vsub.f32 %v1863, %v2276
      %v2480 = vsub.f32 %v1867, %v2276
      %v2481 = vsub.f32 %v1871, %v2280
      %v2482 = vsub.f32 %v1875, %v2280
      %v2483 = vsub.f32 %v1879, %v2284
      %v2484 = vsub.f32 %v1883, %v2284
      %v2485 = vsub.f32 %v1887, %v2288
      %v2486 = vsub.f32 %v1891, %v2288
      %v2487 = vsub.f32 %v1895, %v2292
      %v2488 = vsub.f32 %v1899, %v2292
      %v2489 = vsub.f32 %v1903, %v2296
      %v2490 = vsub.f32 %v1907, %v2296
      %v2491 = vsub.f32 %v1911, %v2300
      %v2492 = vsub.f32 %v1915, %v2300
      %v2493 = vsub.f32 %v1919, %v2304
      %v2494 = vsub.f32 %v1923, %v2304
      %v2495 = vsub.f32 %v1927, %v2308
      %v2496 = vsub.f32 %v1931, %v2308
      %v2497 = vsub.f32 %v1935, %v2312
      %v2498 = vsub.f32 %v1939, %v2312
      %v2499 = vsub.f32 %v1943, %v2316
      %v2500 = vsub.f32 %v1947, %v2316
      %v2501 = vsub.f32 %v1951, %v2320
      %v2502 = vsub.f32 %v1955, %v2320
      %v2503 = vsub.f32 %v1959, %v2324
      %v2504 = vsub.f32 %v1963, %v2324
      %v2505 = vsub.f32 %v1967, %v2328
      %v2506 = vsub.f32 %v1971, %v2328
      %v2507 = vsub.f32 %v1975, %v2332
      %v2508 = vsub.f32 %v1979, %v2332
      %v2509 = vsub.f32 %v1983, %v2336
      %v2510 = vsub.f32 %v1987, %v2336
      %v2511 = vsub.f32 %v1991, %v2340
      %v2512 = vsub.f32 %v1995, %v2340
      %v2513 = vsub.f32 %v1999, %v2344
      %v2514 = vsub.f32 %v2003, %v2344
      %v2515 = vsub.f32 %v2007, %v2348
      %v2516 = vsub.f32 %v2011, %v2348
      %v2517 = vsub.f32 %v2015, %v2352
      %v2518 = vsub.f32 %v2019, %v2352
      %v2519 = vsub.f32 %v2023, %v2356
      %v2520 = vsub.f32 %v2027, %v2356
      %v2521 = vsub.f32 %v2031, %v2360
      %v2522 = vsub.f32 %v2035, %v2360
      %v2523 = vsub.f32 %v2039, %v2364
      %v2524 = vsub.f32 %v2043, %v2364
      %v2525 = vsub.f32 %v2047, %v2368
      %v2526 = vsub.f32 %v2051, %v2368
      %v2527 = vsub.f32 %v2055, %v2372
      %v2528 = vsub.f32 %v2059, %v2372
      %v2529 = vsub.f32 %v2063, %v2376
      %v2530 = vsub.f32 %v2067, %v2376
      %v2531 = vsub.f32 %v2071, %v2380
      %v2532 = vsub.f32 %v2075, %v2380
      %v2533 = vsub.f32 %v2079, %v2384
      %v2534 = vsub.f32 %v2083, %v2384
      %v2535 = vsub.f32 %v2087, %v2388
      %v2536 = vsub.f32 %v2091, %v2388
      %v2537 = vsub.f32 %v2095, %v2392
      %v2538 = vsub.f32 %v2099, %v2392
      %v2539 = vsub.f32 %v2103, %v2396
      %v2540 = vsub.f32 %v2107, %v2396
      %v2541 = vsub.f32 %v2111, %v2400
      %v2542 = vsub.f32 %v2115, %v2400
      %v2543 = vsub.f32 %v2119, %v2404
      %v2544 = vsub.f32 %v2123, %v2404
      %v2545 = vsub.f32 %v2127, %v2408
      %v2546 = vsub.f32 %v2131, %v2408
      %v2547 = vsub.f32 %v2135, %v2412
      %v2548 = vsub.f32 %v2139, %v2412
      %v2549 = vsub.f32 %v2143, %v2416
      %v2550 = vsub.f32 %v2147, %v2416
      %v2551 = vsub.f32 %v2151, %v2420
      %v2552 = vsub.f32 %v2155, %v2420
      %v2553 = vsub.f32 %v2159, %v2424
      %v2554 = vsub.f32 %v2163, %v2424
      %v2555 = vsub.f32 %v2167, %v2428
      %v2556 = vsub.f32 %v2171, %v2428
      %2557 = vset.pattern.permute.xlu0 2
      %2558 = vperm.xlu0 %2557, %v381
      %v2559 = vpop.permute.xlu0 %2558
      %2561 = vset.pattern.permute.xlu0 2
      %2562 = vperm.xlu0 %2561, %v382
      %v2563 = vpop.permute.xlu0 %2562
      %2565 = vset.pattern.permute.xlu0 2
      %2566 = vperm.xlu0 %2565, %v383
      %v2567 = vpop.permute.xlu0 %2566
      %2569 = vset.pattern.permute.xlu0 2
      %2570 = vperm.xlu0 %2569, %v384
      %v2571 = vpop.permute.xlu0 %2570
      %2573 = vset.pattern.permute.xlu0 2
      %2574 = vperm.xlu0 %2573, %v385
      %v2575 = vpop.permute.xlu0 %2574
      %2577 = vset.pattern.permute.xlu0 2
      %2578 = vperm.xlu0 %2577, %v386
      %v2579 = vpop.permute.xlu0 %2578
      %2581 = vset.pattern.permute.xlu0 2
      %2582 = vperm.xlu0 %2581, %v387
      %v2583 = vpop.permute.xlu0 %2582
      %2585 = vset.pattern.permute.xlu0 2
      %2586 = vperm.xlu0 %2585, %v388
      %v2587 = vpop.permute.xlu0 %2586
      %2589 = vset.pattern.permute.xlu0 2
      %2590 = vperm.xlu0 %2589, %v389
      %v2591 = vpop.permute.xlu0 %2590
      %2593 = vset.pattern.permute.xlu0 2
      %2594 = vperm.xlu0 %2593, %v390
      %v2595 = vpop.permute.xlu0 %2594
      %2597 = vset.pattern.permute.xlu0 2
      %2598 = vperm.xlu0 %2597, %v391
      %v2599 = vpop.permute.xlu0 %2598
      %2601 = vset.pattern.permute.xlu0 2
      %2602 = vperm.xlu0 %2601, %v392
      %v2603 = vpop.permute.xlu0 %2602
      %2605 = vset.pattern.permute.xlu0 2
      %2606 = vperm.xlu0 %2605, %v393
      %v2607 = vpop.permute.xlu0 %2606
      %2609 = vset.pattern.permute.xlu0 2
      %2610 = vperm.xlu0 %2609, %v394
      %v2611 = vpop.permute.xlu0 %2610
      %2613 = vset.pattern.permute.xlu0 2
      %2614 = vperm.xlu0 %2613, %v395
      %v2615 = vpop.permute.xlu0 %2614
      %2617 = vset.pattern.permute.xlu0 2
      %2618 = vperm.xlu0 %2617, %v396
      %v2619 = vpop.permute.xlu0 %2618
      %2621 = vset.pattern.permute.xlu0 2
      %2622 = vperm.xlu0 %2621, %v397
      %v2623 = vpop.permute.xlu0 %2622
      %2625 = vset.pattern.permute.xlu0 2
      %2626 = vperm.xlu0 %2625, %v398
      %v2627 = vpop.permute.xlu0 %2626
      %2629 = vset.pattern.permute.xlu0 2
      %2630 = vperm.xlu0 %2629, %v399
      %v2631 = vpop.permute.xlu0 %2630
      %2633 = vset.pattern.permute.xlu0 2
      %2634 = vperm.xlu0 %2633, %v400
      %v2635 = vpop.permute.xlu0 %2634
      %2637 = vset.pattern.permute.xlu0 2
      %2638 = vperm.xlu0 %2637, %v401
      %v2639 = vpop.permute.xlu0 %2638
      %2641 = vset.pattern.permute.xlu0 2
      %2642 = vperm.xlu0 %2641, %v402
      %v2643 = vpop.permute.xlu0 %2642
      %2645 = vset.pattern.permute.xlu0 2
      %2646 = vperm.xlu0 %2645, %v403
      %v2647 = vpop.permute.xlu0 %2646
      %2649 = vset.pattern.permute.xlu0 2
      %2650 = vperm.xlu0 %2649, %v404
      %v2651 = vpop.permute.xlu0 %2650
      %2653 = vset.pattern.permute.xlu0 2
      %2654 = vperm.xlu0 %2653, %v405
      %v2655 = vpop.permute.xlu0 %2654
      %2657 = vset.pattern.permute.xlu0 2
      %2658 = vperm.xlu0 %2657, %v406
      %v2659 = vpop.permute.xlu0 %2658
      %2661 = vset.pattern.permute.xlu0 2
      %2662 = vperm.xlu0 %2661, %v407
      %v2663 = vpop.permute.xlu0 %2662
      %2665 = vset.pattern.permute.xlu0 2
      %2666 = vperm.xlu0 %2665, %v408
      %v2667 = vpop.permute.xlu0 %2666
      %2669 = vset.pattern.permute.xlu0 2
      %2670 = vperm.xlu0 %2669, %v409
      %v2671 = vpop.permute.xlu0 %2670
      %2673 = vset.pattern.permute.xlu0 2
      %2674 = vperm.xlu0 %2673, %v410
      %v2675 = vpop.permute.xlu0 %2674
      %2677 = vset.pattern.permute.xlu0 2
      %2678 = vperm.xlu0 %2677, %v411
      %v2679 = vpop.permute.xlu0 %2678
      %2681 = vset.pattern.permute.xlu0 2
      %2682 = vperm.xlu0 %2681, %v412
      %v2683 = vpop.permute.xlu0 %2682
      %2685 = vset.pattern.permute.xlu0 2
      %2686 = vperm.xlu0 %2685, %v413
      %v2687 = vpop.permute.xlu0 %2686
      %2689 = vset.pattern.permute.xlu0 2
      %2690 = vperm.xlu0 %2689, %v414
      %v2691 = vpop.permute.xlu0 %2690
      %2693 = vset.pattern.permute.xlu0 2
      %2694 = vperm.xlu0 %2693, %v415
      %v2695 = vpop.permute.xlu0 %2694
      %2697 = vset.pattern.permute.xlu0 2
      %2698 = vperm.xlu0 %2697, %v416
      %v2699 = vpop.permute.xlu0 %2698
      %2701 = vset.pattern.permute.xlu0 2
      %2702 = vperm.xlu0 %2701, %v417
      %v2703 = vpop.permute.xlu0 %2702
      %2705 = vset.pattern.permute.xlu0 2
      %2706 = vperm.xlu0 %2705, %v418
      %v2707 = vpop.permute.xlu0 %2706
      %2709 = vset.pattern.permute.xlu0 2
      %2710 = vperm.xlu0 %2709, %v419
      %v2711 = vpop.permute.xlu0 %2710
      %2713 = vset.pattern.permute.xlu0 2
      %2714 = vperm.xlu0 %2713, %v420
      %v2715 = vpop.permute.xlu0 %2714
      %2717 = vset.pattern.permute.xlu0 2
      %2718 = vperm.xlu0 %2717, %v421
      %v2719 = vpop.permute.xlu0 %2718
      %2721 = vset.pattern.permute.xlu0 2
      %2722 = vperm.xlu0 %2721, %v422
      %v2723 = vpop.permute.xlu0 %2722
      %2725 = vset.pattern.permute.xlu0 2
      %2726 = vperm.xlu0 %2725, %v423
      %v2727 = vpop.permute.xlu0 %2726
      %2729 = vset.pattern.permute.xlu0 2
      %2730 = vperm.xlu0 %2729, %v424
      %v2731 = vpop.permute.xlu0 %2730
      %2733 = vset.pattern.permute.xlu0 2
      %2734 = vperm.xlu0 %2733, %v425
      %v2735 = vpop.permute.xlu0 %2734
      %2737 = vset.pattern.permute.xlu0 2
      %2738 = vperm.xlu0 %2737, %v426
      %v2739 = vpop.permute.xlu0 %2738
      %2741 = vset.pattern.permute.xlu0 2
      %2742 = vperm.xlu0 %2741, %v427
      %v2743 = vpop.permute.xlu0 %2742
      %2745 = vset.pattern.permute.xlu0 2
      %2746 = vperm.xlu0 %2745, %v428
      %v2747 = vpop.permute.xlu0 %2746
      %2749 = vset.pattern.permute.xlu0 2
      %2750 = vperm.xlu0 %2749, %v429
      %v2751 = vpop.permute.xlu0 %2750
      %2753 = vset.pattern.permute.xlu0 2
      %2754 = vperm.xlu0 %2753, %v430
      %v2755 = vpop.permute.xlu0 %2754
      %2757 = vset.pattern.permute.xlu0 2
      %2758 = vperm.xlu0 %2757, %v431
      %v2759 = vpop.permute.xlu0 %2758
      %2761 = vset.pattern.permute.xlu0 2
      %2762 = vperm.xlu0 %2761, %v432
      %v2763 = vpop.permute.xlu0 %2762
      %2765 = vset.pattern.permute.xlu0 2
      %2766 = vperm.xlu0 %2765, %v433
      %v2767 = vpop.permute.xlu0 %2766
      %2769 = vset.pattern.permute.xlu0 2
      %2770 = vperm.xlu0 %2769, %v434
      %v2771 = vpop.permute.xlu0 %2770
      %2773 = vset.pattern.permute.xlu0 2
      %2774 = vperm.xlu0 %2773, %v435
      %v2775 = vpop.permute.xlu0 %2774
      %2777 = vset.pattern.permute.xlu0 2
      %2778 = vperm.xlu0 %2777, %v436
      %v2779 = vpop.permute.xlu0 %2778
      %2781 = vset.pattern.permute.xlu0 2
      %2782 = vperm.xlu0 %2781, %v437
      %v2783 = vpop.permute.xlu0 %2782
      %2785 = vset.pattern.permute.xlu0 2
      %2786 = vperm.xlu0 %2785, %v438
      %v2787 = vpop.permute.xlu0 %2786
      %2789 = vset.pattern.permute.xlu0 2
      %2790 = vperm.xlu0 %2789, %v439
      %v2791 = vpop.permute.xlu0 %2790
      %2793 = vset.pattern.permute.xlu0 2
      %2794 = vperm.xlu0 %2793, %v440
      %v2795 = vpop.permute.xlu0 %2794
      %2797 = vset.pattern.permute.xlu0 2
      %2798 = vperm.xlu0 %2797, %v441
      %v2799 = vpop.permute.xlu0 %2798
      %2801 = vset.pattern.permute.xlu0 2
      %2802 = vperm.xlu0 %2801, %v442
      %v2803 = vpop.permute.xlu0 %2802
      %2805 = vset.pattern.permute.xlu0 2
      %2806 = vperm.xlu0 %2805, %v443
      %v2807 = vpop.permute.xlu0 %2806
      %2809 = vset.pattern.permute.xlu0 2
      %2810 = vperm.xlu0 %2809, %v444
      %v2811 = vpop.permute.xlu0 %2810
      %2813 = vset.pattern.permute.xlu0 2
      %2814 = vperm.xlu0 %2813, %v445
      %v2815 = vpop.permute.xlu0 %2814
      %2817 = vset.pattern.permute.xlu0 2
      %2818 = vperm.xlu0 %2817, %v446
      %v2819 = vpop.permute.xlu0 %2818
      %2821 = vset.pattern.permute.xlu0 2
      %2822 = vperm.xlu0 %2821, %v447
      %v2823 = vpop.permute.xlu0 %2822
      %2825 = vset.pattern.permute.xlu0 2
      %2826 = vperm.xlu0 %2825, %v448
      %v2827 = vpop.permute.xlu0 %2826
      %2829 = vset.pattern.permute.xlu0 2
      %2830 = vperm.xlu0 %2829, %v449
      %v2831 = vpop.permute.xlu0 %2830
      %2833 = vset.pattern.permute.xlu0 2
      %2834 = vperm.xlu0 %2833, %v450
      %v2835 = vpop.permute.xlu0 %2834
      %2837 = vset.pattern.permute.xlu0 2
      %2838 = vperm.xlu0 %2837, %v451
      %v2839 = vpop.permute.xlu0 %2838
      %2841 = vset.pattern.permute.xlu0 2
      %2842 = vperm.xlu0 %2841, %v452
      %v2843 = vpop.permute.xlu0 %2842
      %2845 = vset.pattern.permute.xlu0 2
      %2846 = vperm.xlu0 %2845, %v453
      %v2847 = vpop.permute.xlu0 %2846
      %2849 = vset.pattern.permute.xlu0 2
      %2850 = vperm.xlu0 %2849, %v454
      %v2851 = vpop.permute.xlu0 %2850
      %2853 = vset.pattern.permute.xlu0 2
      %2854 = vperm.xlu0 %2853, %v455
      %v2855 = vpop.permute.xlu0 %2854
      %2857 = vset.pattern.permute.xlu0 2
      %2858 = vperm.xlu0 %2857, %v456
      %v2859 = vpop.permute.xlu0 %2858
      %2861 = vset.pattern.permute.xlu0 2
      %2862 = vperm.xlu0 %2861, %v457
      %v2863 = vpop.permute.xlu0 %2862
      %2865 = vset.pattern.permute.xlu0 2
      %2866 = vperm.xlu0 %2865, %v458
      %v2867 = vpop.permute.xlu0 %2866
      %2869 = vset.pattern.permute.xlu0 2
      %2870 = vperm.xlu0 %2869, %v459
      %v2871 = vpop.permute.xlu0 %2870
      %2873 = vset.pattern.permute.xlu0 2
      %2874 = vperm.xlu0 %2873, %v460
      %v2875 = vpop.permute.xlu0 %2874
      %2877 = vset.pattern.permute.xlu0 2
      %2878 = vperm.xlu0 %2877, %v461
      %v2879 = vpop.permute.xlu0 %2878
      %2881 = vset.pattern.permute.xlu0 2
      %2882 = vperm.xlu0 %2881, %v462
      %v2883 = vpop.permute.xlu0 %2882
      %2885 = vset.pattern.permute.xlu0 2
      %2886 = vperm.xlu0 %2885, %v463
      %v2887 = vpop.permute.xlu0 %2886
      %2889 = vset.pattern.permute.xlu0 2
      %2890 = vperm.xlu0 %2889, %v464
      %v2891 = vpop.permute.xlu0 %2890
      %2893 = vset.pattern.permute.xlu0 2
      %2894 = vperm.xlu0 %2893, %v465
      %v2895 = vpop.permute.xlu0 %2894
      %2897 = vset.pattern.permute.xlu0 2
      %2898 = vperm.xlu0 %2897, %v466
      %v2899 = vpop.permute.xlu0 %2898
      %2901 = vset.pattern.permute.xlu0 2
      %2902 = vperm.xlu0 %2901, %v467
      %v2903 = vpop.permute.xlu0 %2902
      %2905 = vset.pattern.permute.xlu0 2
      %2906 = vperm.xlu0 %2905, %v468
      %v2907 = vpop.permute.xlu0 %2906
      %2909 = vset.pattern.permute.xlu0 2
      %2910 = vperm.xlu0 %2909, %v469
      %v2911 = vpop.permute.xlu0 %2910
      %2913 = vset.pattern.permute.xlu0 2
      %2914 = vperm.xlu0 %2913, %v470
      %v2915 = vpop.permute.xlu0 %2914
      %2917 = vset.pattern.permute.xlu0 2
      %2918 = vperm.xlu0 %2917, %v471
      %v2919 = vpop.permute.xlu0 %2918
      %2921 = vset.pattern.permute.xlu0 2
      %2922 = vperm.xlu0 %2921, %v472
      %v2923 = vpop.permute.xlu0 %2922
      %2925 = vset.pattern.permute.xlu0 2
      %2926 = vperm.xlu0 %2925, %v473
      %v2927 = vpop.permute.xlu0 %2926
      %2929 = vset.pattern.permute.xlu0 2
      %2930 = vperm.xlu0 %2929, %v474
      %v2931 = vpop.permute.xlu0 %2930
      %2933 = vset.pattern.permute.xlu0 2
      %2934 = vperm.xlu0 %2933, %v475
      %v2935 = vpop.permute.xlu0 %2934
      %2937 = vset.pattern.permute.xlu0 2
      %2938 = vperm.xlu0 %2937, %v476
      %v2939 = vpop.permute.xlu0 %2938
      %2941 = vset.pattern.permute.xlu0 2
      %2942 = vperm.xlu0 %2941, %v477
      %v2943 = vpop.permute.xlu0 %2942
      %2945 = vset.pattern.permute.xlu0 2
      %2946 = vperm.xlu0 %2945, %v478
      %v2947 = vpop.permute.xlu0 %2946
      %2949 = vset.pattern.permute.xlu0 2
      %2950 = vperm.xlu0 %2949, %v479
      %v2951 = vpop.permute.xlu0 %2950
      %2953 = vset.pattern.permute.xlu0 2
      %2954 = vperm.xlu0 %2953, %v480
      %v2955 = vpop.permute.xlu0 %2954
      %2957 = vset.pattern.permute.xlu0 2
      %2958 = vperm.xlu0 %2957, %v481
      %v2959 = vpop.permute.xlu0 %2958
      %2961 = vset.pattern.permute.xlu0 2
      %2962 = vperm.xlu0 %2961, %v482
      %v2963 = vpop.permute.xlu0 %2962
      %2965 = vset.pattern.permute.xlu0 2
      %2966 = vperm.xlu0 %2965, %v483
      %v2967 = vpop.permute.xlu0 %2966
      %2969 = vset.pattern.permute.xlu0 2
      %2970 = vperm.xlu0 %2969, %v484
      %v2971 = vpop.permute.xlu0 %2970
      %2973 = vset.pattern.permute.xlu0 2
      %2974 = vperm.xlu0 %2973, %v485
      %v2975 = vpop.permute.xlu0 %2974
      %2977 = vset.pattern.permute.xlu0 2
      %2978 = vperm.xlu0 %2977, %v486
      %v2979 = vpop.permute.xlu0 %2978
      %2981 = vset.pattern.permute.xlu0 2
      %2982 = vperm.xlu0 %2981, %v487
      %v2983 = vpop.permute.xlu0 %2982
      %2985 = vset.pattern.permute.xlu0 2
      %2986 = vperm.xlu0 %2985, %v488
      %v2987 = vpop.permute.xlu0 %2986
      %2989 = vset.pattern.permute.xlu0 2
      %2990 = vperm.xlu0 %2989, %v489
      %v2991 = vpop.permute.xlu0 %2990
      %2993 = vset.pattern.permute.xlu0 2
      %2994 = vperm.xlu0 %2993, %v490
      %v2995 = vpop.permute.xlu0 %2994
      %2997 = vset.pattern.permute.xlu0 2
      %2998 = vperm.xlu0 %2997, %v491
      %v2999 = vpop.permute.xlu0 %2998
      %3001 = vset.pattern.permute.xlu0 2
      %3002 = vperm.xlu0 %3001, %v492
      %v3003 = vpop.permute.xlu0 %3002
      %3005 = vset.pattern.permute.xlu0 2
      %3006 = vperm.xlu0 %3005, %v493
      %v3007 = vpop.permute.xlu0 %3006
      %3009 = vset.pattern.permute.xlu0 2
      %3010 = vperm.xlu0 %3009, %v494
      %v3011 = vpop.permute.xlu0 %3010
      %3013 = vset.pattern.permute.xlu0 2
      %3014 = vperm.xlu0 %3013, %v495
      %v3015 = vpop.permute.xlu0 %3014
      %3017 = vset.pattern.permute.xlu0 2
      %3018 = vperm.xlu0 %3017, %v496
      %v3019 = vpop.permute.xlu0 %3018
      %3021 = vset.pattern.permute.xlu0 2
      %3022 = vperm.xlu0 %3021, %v497
      %v3023 = vpop.permute.xlu0 %3022
      %3025 = vset.pattern.permute.xlu0 2
      %3026 = vperm.xlu0 %3025, %v498
      %v3027 = vpop.permute.xlu0 %3026
      %3029 = vset.pattern.permute.xlu0 2
      %3030 = vperm.xlu0 %3029, %v499
      %v3031 = vpop.permute.xlu0 %3030
      %3033 = vset.pattern.permute.xlu0 2
      %3034 = vperm.xlu0 %3033, %v500
      %v3035 = vpop.permute.xlu0 %3034
      %3037 = vset.pattern.permute.xlu0 2
      %3038 = vperm.xlu0 %3037, %v501
      %v3039 = vpop.permute.xlu0 %3038
      %3041 = vset.pattern.permute.xlu0 2
      %3042 = vperm.xlu0 %3041, %v502
      %v3043 = vpop.permute.xlu0 %3042
      %3045 = vset.pattern.permute.xlu0 2
      %3046 = vperm.xlu0 %3045, %v503
      %v3047 = vpop.permute.xlu0 %3046
      %3049 = vset.pattern.permute.xlu0 2
      %3050 = vperm.xlu0 %3049, %v504
      %v3051 = vpop.permute.xlu0 %3050
      %3053 = vset.pattern.permute.xlu0 2
      %3054 = vperm.xlu0 %3053, %v505
      %v3055 = vpop.permute.xlu0 %3054
      %3057 = vset.pattern.permute.xlu0 2
      %3058 = vperm.xlu0 %3057, %v506
      %v3059 = vpop.permute.xlu0 %3058
      %3061 = vset.pattern.permute.xlu0 2
      %3062 = vperm.xlu0 %3061, %v507
      %v3063 = vpop.permute.xlu0 %3062
      %3065 = vset.pattern.permute.xlu0 2
      %3066 = vperm.xlu0 %3065, %v508
      %v3067 = vpop.permute.xlu0 %3066
      %v3069 = vlaneseq
      %v3070 = vshrl.u32 %v3069, 7
      %v3071 = vsub.s32 2, %v3070
      %v3072 = vrot.slane %v509, %v3071
      %v3073 = vlaneseq
      %v3074 = vshrl.u32 %v3073, 7
      %v3075 = vsub.s32 2, %v3074
      %v3076 = vrot.slane %v510, %v3075
      %v3077 = vlaneseq
      %v3078 = vshrl.u32 %v3077, 7
      %v3079 = vsub.s32 2, %v3078
      %v3080 = vrot.slane %v511, %v3079
      %v3081 = vlaneseq
      %v3082 = vshrl.u32 %v3081, 7
      %v3083 = vsub.s32 2, %v3082
      %v3084 = vrot.slane %v512, %v3083
      %v3085 = vlaneseq
      %v3086 = vshrl.u32 %v3085, 7
      %v3087 = vsub.s32 2, %v3086
      %v3088 = vrot.slane %v513, %v3087
      %v3089 = vlaneseq
      %v3090 = vshrl.u32 %v3089, 7
      %v3091 = vsub.s32 2, %v3090
      %v3092 = vrot.slane %v514, %v3091
      %v3093 = vlaneseq
      %v3094 = vshrl.u32 %v3093, 7
      %v3095 = vsub.s32 2, %v3094
      %v3096 = vrot.slane %v515, %v3095
      %v3097 = vlaneseq
      %v3098 = vshrl.u32 %v3097, 7
      %v3099 = vsub.s32 2, %v3098
      %v3100 = vrot.slane %v516, %v3099
      %v3101 = vlaneseq
      %v3102 = vshrl.u32 %v3101, 7
      %v3103 = vsub.s32 2, %v3102
      %v3104 = vrot.slane %v517, %v3103
      %v3105 = vlaneseq
      %v3106 = vshrl.u32 %v3105, 7
      %v3107 = vsub.s32 2, %v3106
      %v3108 = vrot.slane %v518, %v3107
      %v3109 = vlaneseq
      %v3110 = vshrl.u32 %v3109, 7
      %v3111 = vsub.s32 2, %v3110
      %v3112 = vrot.slane %v519, %v3111
      %v3113 = vlaneseq
      %v3114 = vshrl.u32 %v3113, 7
      %v3115 = vsub.s32 2, %v3114
      %v3116 = vrot.slane %v520, %v3115
      %v3117 = vlaneseq
      %v3118 = vshrl.u32 %v3117, 7
      %v3119 = vsub.s32 2, %v3118
      %v3120 = vrot.slane %v521, %v3119
      %v3121 = vlaneseq
      %v3122 = vshrl.u32 %v3121, 7
      %v3123 = vsub.s32 2, %v3122
      %v3124 = vrot.slane %v522, %v3123
      %v3125 = vlaneseq
      %v3126 = vshrl.u32 %v3125, 7
      %v3127 = vsub.s32 2, %v3126
      %v3128 = vrot.slane %v523, %v3127
      %v3129 = vlaneseq
      %v3130 = vshrl.u32 %v3129, 7
      %v3131 = vsub.s32 2, %v3130
      %v3132 = vrot.slane %v524, %v3131
      %v3133 = vlaneseq
      %v3134 = vshrl.u32 %v3133, 7
      %v3135 = vsub.s32 2, %v3134
      %v3136 = vrot.slane %v525, %v3135
      %v3137 = vlaneseq
      %v3138 = vshrl.u32 %v3137, 7
      %v3139 = vsub.s32 2, %v3138
      %v3140 = vrot.slane %v526, %v3139
      %v3141 = vlaneseq
      %v3142 = vshrl.u32 %v3141, 7
      %v3143 = vsub.s32 2, %v3142
      %v3144 = vrot.slane %v527, %v3143
      %v3145 = vlaneseq
      %v3146 = vshrl.u32 %v3145, 7
      %v3147 = vsub.s32 2, %v3146
      %v3148 = vrot.slane %v528, %v3147
      %v3149 = vlaneseq
      %v3150 = vshrl.u32 %v3149, 7
      %v3151 = vsub.s32 2, %v3150
      %v3152 = vrot.slane %v529, %v3151
      %v3153 = vlaneseq
      %v3154 = vshrl.u32 %v3153, 7
      %v3155 = vsub.s32 2, %v3154
      %v3156 = vrot.slane %v530, %v3155
      %v3157 = vlaneseq
      %v3158 = vshrl.u32 %v3157, 7
      %v3159 = vsub.s32 2, %v3158
      %v3160 = vrot.slane %v531, %v3159
      %v3161 = vlaneseq
      %v3162 = vshrl.u32 %v3161, 7
      %v3163 = vsub.s32 2, %v3162
      %v3164 = vrot.slane %v532, %v3163
      %v3165 = vlaneseq
      %v3166 = vshrl.u32 %v3165, 7
      %v3167 = vsub.s32 2, %v3166
      %v3168 = vrot.slane %v533, %v3167
      %v3169 = vlaneseq
      %v3170 = vshrl.u32 %v3169, 7
      %v3171 = vsub.s32 2, %v3170
      %v3172 = vrot.slane %v534, %v3171
      %v3173 = vlaneseq
      %v3174 = vshrl.u32 %v3173, 7
      %v3175 = vsub.s32 2, %v3174
      %v3176 = vrot.slane %v535, %v3175
      %v3177 = vlaneseq
      %v3178 = vshrl.u32 %v3177, 7
      %v3179 = vsub.s32 2, %v3178
      %v3180 = vrot.slane %v536, %v3179
      %v3181 = vlaneseq
      %v3182 = vshrl.u32 %v3181, 7
      %v3183 = vsub.s32 2, %v3182
      %v3184 = vrot.slane %v537, %v3183
      %v3185 = vlaneseq
      %v3186 = vshrl.u32 %v3185, 7
      %v3187 = vsub.s32 2, %v3186
      %v3188 = vrot.slane %v538, %v3187
      %v3189 = vlaneseq
      %v3190 = vshrl.u32 %v3189, 7
      %v3191 = vsub.s32 2, %v3190
      %v3192 = vrot.slane %v539, %v3191
      %v3193 = vlaneseq
      %v3194 = vshrl.u32 %v3193, 7
      %v3195 = vsub.s32 2, %v3194
      %v3196 = vrot.slane %v540, %v3195
      %v3197 = vlaneseq
      %v3198 = vshrl.u32 %v3197, 7
      %v3199 = vsub.s32 2, %v3198
      %v3200 = vrot.slane %v541, %v3199
      %v3201 = vlaneseq
      %v3202 = vshrl.u32 %v3201, 7
      %v3203 = vsub.s32 2, %v3202
      %v3204 = vrot.slane %v542, %v3203
      %v3205 = vlaneseq
      %v3206 = vshrl.u32 %v3205, 7
      %v3207 = vsub.s32 2, %v3206
      %v3208 = vrot.slane %v543, %v3207
      %v3209 = vlaneseq
      %v3210 = vshrl.u32 %v3209, 7
      %v3211 = vsub.s32 2, %v3210
      %v3212 = vrot.slane %v544, %v3211
      %v3213 = vlaneseq
      %v3214 = vshrl.u32 %v3213, 7
      %v3215 = vsub.s32 2, %v3214
      %v3216 = vrot.slane %v545, %v3215
      %v3217 = vlaneseq
      %v3218 = vshrl.u32 %v3217, 7
      %v3219 = vsub.s32 2, %v3218
      %v3220 = vrot.slane %v546, %v3219
      %v3221 = vlaneseq
      %v3222 = vshrl.u32 %v3221, 7
      %v3223 = vsub.s32 2, %v3222
      %v3224 = vrot.slane %v547, %v3223
      %v3225 = vlaneseq
      %v3226 = vshrl.u32 %v3225, 7
      %v3227 = vsub.s32 2, %v3226
      %v3228 = vrot.slane %v548, %v3227
      %v3229 = vlaneseq
      %v3230 = vshrl.u32 %v3229, 7
      %v3231 = vsub.s32 2, %v3230
      %v3232 = vrot.slane %v549, %v3231
      %v3233 = vlaneseq
      %v3234 = vshrl.u32 %v3233, 7
      %v3235 = vsub.s32 2, %v3234
      %v3236 = vrot.slane %v550, %v3235
      %v3237 = vlaneseq
      %v3238 = vshrl.u32 %v3237, 7
      %v3239 = vsub.s32 2, %v3238
      %v3240 = vrot.slane %v551, %v3239
      %v3241 = vlaneseq
      %v3242 = vshrl.u32 %v3241, 7
      %v3243 = vsub.s32 2, %v3242
      %v3244 = vrot.slane %v552, %v3243
      %v3245 = vlaneseq
      %v3246 = vshrl.u32 %v3245, 7
      %v3247 = vsub.s32 2, %v3246
      %v3248 = vrot.slane %v553, %v3247
      %v3249 = vlaneseq
      %v3250 = vshrl.u32 %v3249, 7
      %v3251 = vsub.s32 2, %v3250
      %v3252 = vrot.slane %v554, %v3251
      %v3253 = vlaneseq
      %v3254 = vshrl.u32 %v3253, 7
      %v3255 = vsub.s32 2, %v3254
      %v3256 = vrot.slane %v555, %v3255
      %v3257 = vlaneseq
      %v3258 = vshrl.u32 %v3257, 7
      %v3259 = vsub.s32 2, %v3258
      %v3260 = vrot.slane %v556, %v3259
      %v3261 = vlaneseq
      %v3262 = vshrl.u32 %v3261, 7
      %v3263 = vsub.s32 2, %v3262
      %v3264 = vrot.slane %v557, %v3263
      %v3265 = vlaneseq
      %v3266 = vshrl.u32 %v3265, 7
      %v3267 = vsub.s32 2, %v3266
      %v3268 = vrot.slane %v558, %v3267
      %v3269 = vlaneseq
      %v3270 = vshrl.u32 %v3269, 7
      %v3271 = vsub.s32 2, %v3270
      %v3272 = vrot.slane %v559, %v3271
      %v3273 = vlaneseq
      %v3274 = vshrl.u32 %v3273, 7
      %v3275 = vsub.s32 2, %v3274
      %v3276 = vrot.slane %v560, %v3275
      %v3277 = vlaneseq
      %v3278 = vshrl.u32 %v3277, 7
      %v3279 = vsub.s32 2, %v3278
      %v3280 = vrot.slane %v561, %v3279
      %v3281 = vlaneseq
      %v3282 = vshrl.u32 %v3281, 7
      %v3283 = vsub.s32 2, %v3282
      %v3284 = vrot.slane %v562, %v3283
      %v3285 = vlaneseq
      %v3286 = vshrl.u32 %v3285, 7
      %v3287 = vsub.s32 2, %v3286
      %v3288 = vrot.slane %v563, %v3287
      %v3289 = vlaneseq
      %v3290 = vshrl.u32 %v3289, 7
      %v3291 = vsub.s32 2, %v3290
      %v3292 = vrot.slane %v564, %v3291
      %v3293 = vlaneseq
      %v3294 = vshrl.u32 %v3293, 7
      %v3295 = vsub.s32 2, %v3294
      %v3296 = vrot.slane %v565, %v3295
      %v3297 = vlaneseq
      %v3298 = vshrl.u32 %v3297, 7
      %v3299 = vsub.s32 2, %v3298
      %v3300 = vrot.slane %v566, %v3299
      %v3301 = vlaneseq
      %v3302 = vshrl.u32 %v3301, 7
      %v3303 = vsub.s32 2, %v3302
      %v3304 = vrot.slane %v567, %v3303
      %v3305 = vlaneseq
      %v3306 = vshrl.u32 %v3305, 7
      %v3307 = vsub.s32 2, %v3306
      %v3308 = vrot.slane %v568, %v3307
      %v3309 = vlaneseq
      %v3310 = vshrl.u32 %v3309, 7
      %v3311 = vsub.s32 2, %v3310
      %v3312 = vrot.slane %v569, %v3311
      %v3313 = vlaneseq
      %v3314 = vshrl.u32 %v3313, 7
      %v3315 = vsub.s32 2, %v3314
      %v3316 = vrot.slane %v570, %v3315
      %v3317 = vlaneseq
      %v3318 = vshrl.u32 %v3317, 7
      %v3319 = vsub.s32 2, %v3318
      %v3320 = vrot.slane %v571, %v3319
      %v3321 = vlaneseq
      %v3322 = vshrl.u32 %v3321, 7
      %v3323 = vsub.s32 2, %v3322
      %v3324 = vrot.slane %v572, %v3323
      %v3325 = vsub.f32 %v2559, %v3072
      %v3326 = vsub.f32 %v2563, %v3072
      %v3327 = vsub.f32 %v2567, %v3076
      %v3328 = vsub.f32 %v2571, %v3076
      %v3329 = vsub.f32 %v2575, %v3080
      %v3330 = vsub.f32 %v2579, %v3080
      %v3331 = vsub.f32 %v2583, %v3084
      %v3332 = vsub.f32 %v2587, %v3084
      %v3333 = vsub.f32 %v2591, %v3088
      %v3334 = vsub.f32 %v2595, %v3088
      %v3335 = vsub.f32 %v2599, %v3092
      %v3336 = vsub.f32 %v2603, %v3092
      %v3337 = vsub.f32 %v2607, %v3096
      %v3338 = vsub.f32 %v2611, %v3096
      %v3339 = vsub.f32 %v2615, %v3100
      %v3340 = vsub.f32 %v2619, %v3100
      %v3341 = vsub.f32 %v2623, %v3104
      %v3342 = vsub.f32 %v2627, %v3104
      %v3343 = vsub.f32 %v2631, %v3108
      %v3344 = vsub.f32 %v2635, %v3108
      %v3345 = vsub.f32 %v2639, %v3112
      %v3346 = vsub.f32 %v2643, %v3112
      %v3347 = vsub.f32 %v2647, %v3116
      %v3348 = vsub.f32 %v2651, %v3116
      %v3349 = vsub.f32 %v2655, %v3120
      %v3350 = vsub.f32 %v2659, %v3120
      %v3351 = vsub.f32 %v2663, %v3124
      %v3352 = vsub.f32 %v2667, %v3124
      %v3353 = vsub.f32 %v2671, %v3128
      %v3354 = vsub.f32 %v2675, %v3128
      %v3355 = vsub.f32 %v2679, %v3132
      %v3356 = vsub.f32 %v2683, %v3132
      %v3357 = vsub.f32 %v2687, %v3136
      %v3358 = vsub.f32 %v2691, %v3136
      %v3359 = vsub.f32 %v2695, %v3140
      %v3360 = vsub.f32 %v2699, %v3140
      %v3361 = vsub.f32 %v2703, %v3144
      %v3362 = vsub.f32 %v2707, %v3144
      %v3363 = vsub.f32 %v2711, %v3148
      %v3364 = vsub.f32 %v2715, %v3148
      %v3365 = vsub.f32 %v2719, %v3152
      %v3366 = vsub.f32 %v2723, %v3152
      %v3367 = vsub.f32 %v2727, %v3156
      %v3368 = vsub.f32 %v2731, %v3156
      %v3369 = vsub.f32 %v2735, %v3160
      %v3370 = vsub.f32 %v2739, %v3160
      %v3371 = vsub.f32 %v2743, %v3164
      %v3372 = vsub.f32 %v2747, %v3164
      %v3373 = vsub.f32 %v2751, %v3168
      %v3374 = vsub.f32 %v2755, %v3168
      %v3375 = vsub.f32 %v2759, %v3172
      %v3376 = vsub.f32 %v2763, %v3172
      %v3377 = vsub.f32 %v2767, %v3176
      %v3378 = vsub.f32 %v2771, %v3176
      %v3379 = vsub.f32 %v2775, %v3180
      %v3380 = vsub.f32 %v2779, %v3180
      %v3381 = vsub.f32 %v2783, %v3184
      %v3382 = vsub.f32 %v2787, %v3184
      %v3383 = vsub.f32 %v2791, %v3188
      %v3384 = vsub.f32 %v2795, %v3188
      %v3385 = vsub.f32 %v2799, %v3192
      %v3386 = vsub.f32 %v2803, %v3192
      %v3387 = vsub.f32 %v2807, %v3196
      %v3388 = vsub.f32 %v2811, %v3196
      %v3389 = vsub.f32 %v2815, %v3200
      %v3390 = vsub.f32 %v2819, %v3200
      %v3391 = vsub.f32 %v2823, %v3204
      %v3392 = vsub.f32 %v2827, %v3204
      %v3393 = vsub.f32 %v2831, %v3208
      %v3394 = vsub.f32 %v2835, %v3208
      %v3395 = vsub.f32 %v2839, %v3212
      %v3396 = vsub.f32 %v2843, %v3212
      %v3397 = vsub.f32 %v2847, %v3216
      %v3398 = vsub.f32 %v2851, %v3216
      %v3399 = vsub.f32 %v2855, %v3220
      %v3400 = vsub.f32 %v2859, %v3220
      %v3401 = vsub.f32 %v2863, %v3224
      %v3402 = vsub.f32 %v2867, %v3224
      %v3403 = vsub.f32 %v2871, %v3228
      %v3404 = vsub.f32 %v2875, %v3228
      %v3405 = vsub.f32 %v2879, %v3232
      %v3406 = vsub.f32 %v2883, %v3232
      %v3407 = vsub.f32 %v2887, %v3236
      %v3408 = vsub.f32 %v2891, %v3236
      %v3409 = vsub.f32 %v2895, %v3240
      %v3410 = vsub.f32 %v2899, %v3240
      %v3411 = vsub.f32 %v2903, %v3244
      %v3412 = vsub.f32 %v2907, %v3244
      %v3413 = vsub.f32 %v2911, %v3248
      %v3414 = vsub.f32 %v2915, %v3248
      %v3415 = vsub.f32 %v2919, %v3252
      %v3416 = vsub.f32 %v2923, %v3252
      %v3417 = vsub.f32 %v2927, %v3256
      %v3418 = vsub.f32 %v2931, %v3256
      %v3419 = vsub.f32 %v2935, %v3260
      %v3420 = vsub.f32 %v2939, %v3260
      %v3421 = vsub.f32 %v2943, %v3264
      %v3422 = vsub.f32 %v2947, %v3264
      %v3423 = vsub.f32 %v2951, %v3268
      %v3424 = vsub.f32 %v2955, %v3268
      %v3425 = vsub.f32 %v2959, %v3272
      %v3426 = vsub.f32 %v2963, %v3272
      %v3427 = vsub.f32 %v2967, %v3276
      %v3428 = vsub.f32 %v2971, %v3276
      %v3429 = vsub.f32 %v2975, %v3280
      %v3430 = vsub.f32 %v2979, %v3280
      %v3431 = vsub.f32 %v2983, %v3284
      %v3432 = vsub.f32 %v2987, %v3284
      %v3433 = vsub.f32 %v2991, %v3288
      %v3434 = vsub.f32 %v2995, %v3288
      %v3435 = vsub.f32 %v2999, %v3292
      %v3436 = vsub.f32 %v3003, %v3292
      %v3437 = vsub.f32 %v3007, %v3296
      %v3438 = vsub.f32 %v3011, %v3296
      %v3439 = vsub.f32 %v3015, %v3300
      %v3440 = vsub.f32 %v3019, %v3300
      %v3441 = vsub.f32 %v3023, %v3304
      %v3442 = vsub.f32 %v3027, %v3304
      %v3443 = vsub.f32 %v3031, %v3308
      %v3444 = vsub.f32 %v3035, %v3308
      %v3445 = vsub.f32 %v3039, %v3312
      %v3446 = vsub.f32 %v3043, %v3312
      %v3447 = vsub.f32 %v3047, %v3316
      %v3448 = vsub.f32 %v3051, %v3316
      %v3449 = vsub.f32 %v3055, %v3320
      %v3450 = vsub.f32 %v3059, %v3320
      %v3451 = vsub.f32 %v3063, %v3324
      %v3452 = vsub.f32 %v3067, %v3324
      %v3453 = vmul.f32 %v1533, %v1533
      %v3454 = vmul.f32 %v1534, %v1534
      %v3455 = vmul.f32 %v1535, %v1535
      %v3456 = vmul.f32 %v1536, %v1536
      %v3457 = vmul.f32 %v1537, %v1537
      %v3458 = vmul.f32 %v1538, %v1538
      %v3459 = vmul.f32 %v1539, %v1539
      %v3460 = vmul.f32 %v1540, %v1540
      %v3461 = vmul.f32 %v1541, %v1541
      %v3462 = vmul.f32 %v1542, %v1542
      %v3463 = vmul.f32 %v1543, %v1543
      %v3464 = vmul.f32 %v1544, %v1544
      %v3465 = vmul.f32 %v1545, %v1545
      %v3466 = vmul.f32 %v1546, %v1546
      %v3467 = vmul.f32 %v1547, %v1547
      %v3468 = vmul.f32 %v1548, %v1548
      %v3469 = vmul.f32 %v1549, %v1549
      %v3470 = vmul.f32 %v1550, %v1550
      %v3471 = vmul.f32 %v1551, %v1551
      %v3472 = vmul.f32 %v1552, %v1552
      %v3473 = vmul.f32 %v1553, %v1553
      %v3474 = vmul.f32 %v1554, %v1554
      %v3475 = vmul.f32 %v1555, %v1555
      %v3476 = vmul.f32 %v1556, %v1556
      %v3477 = vmul.f32 %v1557, %v1557
      %v3478 = vmul.f32 %v1558, %v1558
      %v3479 = vmul.f32 %v1559, %v1559
      %v3480 = vmul.f32 %v1560, %v1560
      %v3481 = vmul.f32 %v1561, %v1561
      %v3482 = vmul.f32 %v1562, %v1562
      %v3483 = vmul.f32 %v1563, %v1563
      %v3484 = vmul.f32 %v1564, %v1564
      %v3485 = vmul.f32 %v1565, %v1565
      %v3486 = vmul.f32 %v1566, %v1566
      %v3487 = vmul.f32 %v1567, %v1567
      %v3488 = vmul.f32 %v1568, %v1568
      %v3489 = vmul.f32 %v1569, %v1569
      %v3490 = vmul.f32 %v1570, %v1570
      %v3491 = vmul.f32 %v1571, %v1571
      %v3492 = vmul.f32 %v1572, %v1572
      %v3493 = vmul.f32 %v1573, %v1573
      %v3494 = vmul.f32 %v1574, %v1574
      %v3495 = vmul.f32 %v1575, %v1575
      %v3496 = vmul.f32 %v1576, %v1576
      %v3497 = vmul.f32 %v1577, %v1577
      %v3498 = vmul.f32 %v1578, %v1578
      %v3499 = vmul.f32 %v1579, %v1579
      %v3500 = vmul.f32 %v1580, %v1580
      %v3501 = vmul.f32 %v1581, %v1581
      %v3502 = vmul.f32 %v1582, %v1582
      %v3503 = vmul.f32 %v1583, %v1583
      %v3504 = vmul.f32 %v1584, %v1584
      %v3505 = vmul.f32 %v1585, %v1585
      %v3506 = vmul.f32 %v1586, %v1586
      %v3507 = vmul.f32 %v1587, %v1587
      %v3508 = vmul.f32 %v1588, %v1588
      %v3509 = vmul.f32 %v1589, %v1589
      %v3510 = vmul.f32 %v1590, %v1590
      %v3511 = vmul.f32 %v1591, %v1591
      %v3512 = vmul.f32 %v1592, %v1592
      %v3513 = vmul.f32 %v1593, %v1593
      %v3514 = vmul.f32 %v1594, %v1594
      %v3515 = vmul.f32 %v1595, %v1595
      %v3516 = vmul.f32 %v1596, %v1596
      %v3517 = vmul.f32 %v1597, %v1597
      %v3518 = vmul.f32 %v1598, %v1598
      %v3519 = vmul.f32 %v1599, %v1599
      %v3520 = vmul.f32 %v1600, %v1600
      %v3521 = vmul.f32 %v1601, %v1601
      %v3522 = vmul.f32 %v1602, %v1602
      %v3523 = vmul.f32 %v1603, %v1603
      %v3524 = vmul.f32 %v1604, %v1604
      %v3525 = vmul.f32 %v1605, %v1605
      %v3526 = vmul.f32 %v1606, %v1606
      %v3527 = vmul.f32 %v1607, %v1607
      %v3528 = vmul.f32 %v1608, %v1608
      %v3529 = vmul.f32 %v1609, %v1609
      %v3530 = vmul.f32 %v1610, %v1610
      %v3531 = vmul.f32 %v1611, %v1611
      %v3532 = vmul.f32 %v1612, %v1612
      %v3533 = vmul.f32 %v1613, %v1613
      %v3534 = vmul.f32 %v1614, %v1614
      %v3535 = vmul.f32 %v1615, %v1615
      %v3536 = vmul.f32 %v1616, %v1616
      %v3537 = vmul.f32 %v1617, %v1617
      %v3538 = vmul.f32 %v1618, %v1618
      %v3539 = vmul.f32 %v1619, %v1619
      %v3540 = vmul.f32 %v1620, %v1620
      %v3541 = vmul.f32 %v1621, %v1621
      %v3542 = vmul.f32 %v1622, %v1622
      %v3543 = vmul.f32 %v1623, %v1623
      %v3544 = vmul.f32 %v1624, %v1624
      %v3545 = vmul.f32 %v1625, %v1625
      %v3546 = vmul.f32 %v1626, %v1626
      %v3547 = vmul.f32 %v1627, %v1627
      %v3548 = vmul.f32 %v1628, %v1628
      %v3549 = vmul.f32 %v1629, %v1629
      %v3550 = vmul.f32 %v1630, %v1630
      %v3551 = vmul.f32 %v1631, %v1631
      %v3552 = vmul.f32 %v1632, %v1632
      %v3553 = vmul.f32 %v1633, %v1633
      %v3554 = vmul.f32 %v1634, %v1634
      %v3555 = vmul.f32 %v1635, %v1635
      %v3556 = vmul.f32 %v1636, %v1636
      %v3557 = vmul.f32 %v1637, %v1637
      %v3558 = vmul.f32 %v1638, %v1638
      %v3559 = vmul.f32 %v1639, %v1639
      %v3560 = vmul.f32 %v1640, %v1640
      %v3561 = vmul.f32 %v1641, %v1641
      %v3562 = vmul.f32 %v1642, %v1642
      %v3563 = vmul.f32 %v1643, %v1643
      %v3564 = vmul.f32 %v1644, %v1644
      %v3565 = vmul.f32 %v1645, %v1645
      %v3566 = vmul.f32 %v1646, %v1646
      %v3567 = vmul.f32 %v1647, %v1647
      %v3568 = vmul.f32 %v1648, %v1648
      %v3569 = vmul.f32 %v1649, %v1649
      %v3570 = vmul.f32 %v1650, %v1650
      %v3571 = vmul.f32 %v1651, %v1651
      %v3572 = vmul.f32 %v1652, %v1652
      %v3573 = vmul.f32 %v1653, %v1653
      %v3574 = vmul.f32 %v1654, %v1654
      %v3575 = vmul.f32 %v1655, %v1655
      %v3576 = vmul.f32 %v1656, %v1656
      %v3577 = vmul.f32 %v1657, %v1657
      %v3578 = vmul.f32 %v1658, %v1658
      %v3579 = vmul.f32 %v1659, %v1659
      %v3580 = vmul.f32 %v1660, %v1660
      %v3581 = vmul.f32 %v2429, %v2429
      %v3582 = vmul.f32 %v2430, %v2430
      %v3583 = vmul.f32 %v2431, %v2431
      %v3584 = vmul.f32 %v2432, %v2432
      %v3585 = vmul.f32 %v2433, %v2433
      %v3586 = vmul.f32 %v2434, %v2434
      %v3587 = vmul.f32 %v2435, %v2435
      %v3588 = vmul.f32 %v2436, %v2436
      %v3589 = vmul.f32 %v2437, %v2437
      %v3590 = vmul.f32 %v2438, %v2438
      %v3591 = vmul.f32 %v2439, %v2439
      %v3592 = vmul.f32 %v2440, %v2440
      %v3593 = vmul.f32 %v2441, %v2441
      %v3594 = vmul.f32 %v2442, %v2442
      %v3595 = vmul.f32 %v2443, %v2443
      %v3596 = vmul.f32 %v2444, %v2444
      %v3597 = vmul.f32 %v2445, %v2445
      %v3598 = vmul.f32 %v2446, %v2446
      %v3599 = vmul.f32 %v2447, %v2447
      %v3600 = vmul.f32 %v2448, %v2448
      %v3601 = vmul.f32 %v2449, %v2449
      %v3602 = vmul.f32 %v2450, %v2450
      %v3603 = vmul.f32 %v2451, %v2451
      %v3604 = vmul.f32 %v2452, %v2452
      %v3605 = vmul.f32 %v2453, %v2453
      %v3606 = vmul.f32 %v2454, %v2454
      %v3607 = vmul.f32 %v2455, %v2455
      %v3608 = vmul.f32 %v2456, %v2456
      %v3609 = vmul.f32 %v2457, %v2457
      %v3610 = vmul.f32 %v2458, %v2458
      %v3611 = vmul.f32 %v2459, %v2459
      %v3612 = vmul.f32 %v2460, %v2460
      %v3613 = vmul.f32 %v2461, %v2461
      %v3614 = vmul.f32 %v2462, %v2462
      %v3615 = vmul.f32 %v2463, %v2463
      %v3616 = vmul.f32 %v2464, %v2464
      %v3617 = vmul.f32 %v2465, %v2465
      %v3618 = vmul.f32 %v2466, %v2466
      %v3619 = vmul.f32 %v2467, %v2467
      %v3620 = vmul.f32 %v2468, %v2468
      %v3621 = vmul.f32 %v2469, %v2469
      %v3622 = vmul.f32 %v2470, %v2470
      %v3623 = vmul.f32 %v2471, %v2471
      %v3624 = vmul.f32 %v2472, %v2472
      %v3625 = vmul.f32 %v2473, %v2473
      %v3626 = vmul.f32 %v2474, %v2474
      %v3627 = vmul.f32 %v2475, %v2475
      %v3628 = vmul.f32 %v2476, %v2476
      %v3629 = vmul.f32 %v2477, %v2477
      %v3630 = vmul.f32 %v2478, %v2478
      %v3631 = vmul.f32 %v2479, %v2479
      %v3632 = vmul.f32 %v2480, %v2480
      %v3633 = vmul.f32 %v2481, %v2481
      %v3634 = vmul.f32 %v2482, %v2482
      %v3635 = vmul.f32 %v2483, %v2483
      %v3636 = vmul.f32 %v2484, %v2484
      %v3637 = vmul.f32 %v2485, %v2485
      %v3638 = vmul.f32 %v2486, %v2486
      %v3639 = vmul.f32 %v2487, %v2487
      %v3640 = vmul.f32 %v2488, %v2488
      %v3641 = vmul.f32 %v2489, %v2489
      %v3642 = vmul.f32 %v2490, %v2490
      %v3643 = vmul.f32 %v2491, %v2491
      %v3644 = vmul.f32 %v2492, %v2492
      %v3645 = vmul.f32 %v2493, %v2493
      %v3646 = vmul.f32 %v2494, %v2494
      %v3647 = vmul.f32 %v2495, %v2495
      %v3648 = vmul.f32 %v2496, %v2496
      %v3649 = vmul.f32 %v2497, %v2497
      %v3650 = vmul.f32 %v2498, %v2498
      %v3651 = vmul.f32 %v2499, %v2499
      %v3652 = vmul.f32 %v2500, %v2500
      %v3653 = vmul.f32 %v2501, %v2501
      %v3654 = vmul.f32 %v2502, %v2502
      %v3655 = vmul.f32 %v2503, %v2503
      %v3656 = vmul.f32 %v2504, %v2504
      %v3657 = vmul.f32 %v2505, %v2505
      %v3658 = vmul.f32 %v2506, %v2506
      %v3659 = vmul.f32 %v2507, %v2507
      %v3660 = vmul.f32 %v2508, %v2508
      %v3661 = vmul.f32 %v2509, %v2509
      %v3662 = vmul.f32 %v2510, %v2510
      %v3663 = vmul.f32 %v2511, %v2511
      %v3664 = vmul.f32 %v2512, %v2512
      %v3665 = vmul.f32 %v2513, %v2513
      %v3666 = vmul.f32 %v2514, %v2514
      %v3667 = vmul.f32 %v2515, %v2515
      %v3668 = vmul.f32 %v2516, %v2516
      %v3669 = vmul.f32 %v2517, %v2517
      %v3670 = vmul.f32 %v2518, %v2518
      %v3671 = vmul.f32 %v2519, %v2519
      %v3672 = vmul.f32 %v2520, %v2520
      %v3673 = vmul.f32 %v2521, %v2521
      %v3674 = vmul.f32 %v2522, %v2522
      %v3675 = vmul.f32 %v2523, %v2523
      %v3676 = vmul.f32 %v2524, %v2524
      %v3677 = vmul.f32 %v2525, %v2525
      %v3678 = vmul.f32 %v2526, %v2526
      %v3679 = vmul.f32 %v2527, %v2527
      %v3680 = vmul.f32 %v2528, %v2528
      %v3681 = vmul.f32 %v2529, %v2529
      %v3682 = vmul.f32 %v2530, %v2530
      %v3683 = vmul.f32 %v2531, %v2531
      %v3684 = vmul.f32 %v2532, %v2532
      %v3685 = vmul.f32 %v2533, %v2533
      %v3686 = vmul.f32 %v2534, %v2534
      %v3687 = vmul.f32 %v2535, %v2535
      %v3688 = vmul.f32 %v2536, %v2536
      %v3689 = vmul.f32 %v2537, %v2537
      %v3690 = vmul.f32 %v2538, %v2538
      %v3691 = vmul.f32 %v2539, %v2539
      %v3692 = vmul.f32 %v2540, %v2540
      %v3693 = vmul.f32 %v2541, %v2541
      %v3694 = vmul.f32 %v2542, %v2542
      %v3695 = vmul.f32 %v2543, %v2543
      %v3696 = vmul.f32 %v2544, %v2544
      %v3697 = vmul.f32 %v2545, %v2545
      %v3698 = vmul.f32 %v2546, %v2546
      %v3699 = vmul.f32 %v2547, %v2547
      %v3700 = vmul.f32 %v2548, %v2548
      %v3701 = vmul.f32 %v2549, %v2549
      %v3702 = vmul.f32 %v2550, %v2550
      %v3703 = vmul.f32 %v2551, %v2551
      %v3704 = vmul.f32 %v2552, %v2552
      %v3705 = vmul.f32 %v2553, %v2553
      %v3706 = vmul.f32 %v2554, %v2554
      %v3707 = vmul.f32 %v2555, %v2555
      %v3708 = vmul.f32 %v2556, %v2556
      %v3709 = vadd.f32 %v3453, %v3581
      %v3710 = vadd.f32 %v3454, %v3582
      %v3711 = vadd.f32 %v3455, %v3583
      %v3712 = vadd.f32 %v3456, %v3584
      %v3713 = vadd.f32 %v3457, %v3585
      %v3714 = vadd.f32 %v3458, %v3586
      %v3715 = vadd.f32 %v3459, %v3587
      %v3716 = vadd.f32 %v3460, %v3588
      %v3717 = vadd.f32 %v3461, %v3589
      %v3718 = vadd.f32 %v3462, %v3590
      %v3719 = vadd.f32 %v3463, %v3591
      %v3720 = vadd.f32 %v3464, %v3592
      %v3721 = vadd.f32 %v3465, %v3593
      %v3722 = vadd.f32 %v3466, %v3594
      %v3723 = vadd.f32 %v3467, %v3595
      %v3724 = vadd.f32 %v3468, %v3596
      %v3725 = vadd.f32 %v3469, %v3597
      %v3726 = vadd.f32 %v3470, %v3598
      %v3727 = vadd.f32 %v3471, %v3599
      %v3728 = vadd.f32 %v3472, %v3600
      %v3729 = vadd.f32 %v3473, %v3601
      %v3730 = vadd.f32 %v3474, %v3602
      %v3731 = vadd.f32 %v3475, %v3603
      %v3732 = vadd.f32 %v3476, %v3604
      %v3733 = vadd.f32 %v3477, %v3605
      %v3734 = vadd.f32 %v3478, %v3606
      %v3735 = vadd.f32 %v3479, %v3607
      %v3736 = vadd.f32 %v3480, %v3608
      %v3737 = vadd.f32 %v3481, %v3609
      %v3738 = vadd.f32 %v3482, %v3610
      %v3739 = vadd.f32 %v3483, %v3611
      %v3740 = vadd.f32 %v3484, %v3612
      %v3741 = vadd.f32 %v3485, %v3613
      %v3742 = vadd.f32 %v3486, %v3614
      %v3743 = vadd.f32 %v3487, %v3615
      %v3744 = vadd.f32 %v3488, %v3616
      %v3745 = vadd.f32 %v3489, %v3617
      %v3746 = vadd.f32 %v3490, %v3618
      %v3747 = vadd.f32 %v3491, %v3619
      %v3748 = vadd.f32 %v3492, %v3620
      %v3749 = vadd.f32 %v3493, %v3621
      %v3750 = vadd.f32 %v3494, %v3622
      %v3751 = vadd.f32 %v3495, %v3623
      %v3752 = vadd.f32 %v3496, %v3624
      %v3753 = vadd.f32 %v3497, %v3625
      %v3754 = vadd.f32 %v3498, %v3626
      %v3755 = vadd.f32 %v3499, %v3627
      %v3756 = vadd.f32 %v3500, %v3628
      %v3757 = vadd.f32 %v3501, %v3629
      %v3758 = vadd.f32 %v3502, %v3630
      %v3759 = vadd.f32 %v3503, %v3631
      %v3760 = vadd.f32 %v3504, %v3632
      %v3761 = vadd.f32 %v3505, %v3633
      %v3762 = vadd.f32 %v3506, %v3634
      %v3763 = vadd.f32 %v3507, %v3635
      %v3764 = vadd.f32 %v3508, %v3636
      %v3765 = vadd.f32 %v3509, %v3637
      %v3766 = vadd.f32 %v3510, %v3638
      %v3767 = vadd.f32 %v3511, %v3639
      %v3768 = vadd.f32 %v3512, %v3640
      %v3769 = vadd.f32 %v3513, %v3641
      %v3770 = vadd.f32 %v3514, %v3642
      %v3771 = vadd.f32 %v3515, %v3643
      %v3772 = vadd.f32 %v3516, %v3644
      %v3773 = vadd.f32 %v3517, %v3645
      %v3774 = vadd.f32 %v3518, %v3646
      %v3775 = vadd.f32 %v3519, %v3647
      %v3776 = vadd.f32 %v3520, %v3648
      %v3777 = vadd.f32 %v3521, %v3649
      %v3778 = vadd.f32 %v3522, %v3650
      %v3779 = vadd.f32 %v3523, %v3651
      %v3780 = vadd.f32 %v3524, %v3652
      %v3781 = vadd.f32 %v3525, %v3653
      %v3782 = vadd.f32 %v3526, %v3654
      %v3783 = vadd.f32 %v3527, %v3655
      %v3784 = vadd.f32 %v3528, %v3656
      %v3785 = vadd.f32 %v3529, %v3657
      %v3786 = vadd.f32 %v3530, %v3658
      %v3787 = vadd.f32 %v3531, %v3659
      %v3788 = vadd.f32 %v3532, %v3660
      %v3789 = vadd.f32 %v3533, %v3661
      %v3790 = vadd.f32 %v3534, %v3662
      %v3791 = vadd.f32 %v3535, %v3663
      %v3792 = vadd.f32 %v3536, %v3664
      %v3793 = vadd.f32 %v3537, %v3665
      %v3794 = vadd.f32 %v3538, %v3666
      %v3795 = vadd.f32 %v3539, %v3667
      %v3796 = vadd.f32 %v3540, %v3668
      %v3797 = vadd.f32 %v3541, %v3669
      %v3798 = vadd.f32 %v3542, %v3670
      %v3799 = vadd.f32 %v3543, %v3671
      %v3800 = vadd.f32 %v3544, %v3672
      %v3801 = vadd.f32 %v3545, %v3673
      %v3802 = vadd.f32 %v3546, %v3674
      %v3803 = vadd.f32 %v3547, %v3675
      %v3804 = vadd.f32 %v3548, %v3676
      %v3805 = vadd.f32 %v3549, %v3677
      %v3806 = vadd.f32 %v3550, %v3678
      %v3807 = vadd.f32 %v3551, %v3679
      %v3808 = vadd.f32 %v3552, %v3680
      %v3809 = vadd.f32 %v3553, %v3681
      %v3810 = vadd.f32 %v3554, %v3682
      %v3811 = vadd.f32 %v3555, %v3683
      %v3812 = vadd.f32 %v3556, %v3684
      %v3813 = vadd.f32 %v3557, %v3685
      %v3814 = vadd.f32 %v3558, %v3686
      %v3815 = vadd.f32 %v3559, %v3687
      %v3816 = vadd.f32 %v3560, %v3688
      %v3817 = vadd.f32 %v3561, %v3689
      %v3818 = vadd.f32 %v3562, %v3690
      %v3819 = vadd.f32 %v3563, %v3691
      %v3820 = vadd.f32 %v3564, %v3692
      %v3821 = vadd.f32 %v3565, %v3693
      %v3822 = vadd.f32 %v3566, %v3694
      %v3823 = vadd.f32 %v3567, %v3695
      %v3824 = vadd.f32 %v3568, %v3696
      %v3825 = vadd.f32 %v3569, %v3697
      %v3826 = vadd.f32 %v3570, %v3698
      %v3827 = vadd.f32 %v3571, %v3699
      %v3828 = vadd.f32 %v3572, %v3700
      %v3829 = vadd.f32 %v3573, %v3701
      %v3830 = vadd.f32 %v3574, %v3702
      %v3831 = vadd.f32 %v3575, %v3703
      %v3832 = vadd.f32 %v3576, %v3704
      %v3833 = vadd.f32 %v3577, %v3705
      %v3834 = vadd.f32 %v3578, %v3706
      %v3835 = vadd.f32 %v3579, %v3707
      %v3836 = vadd.f32 %v3580, %v3708
      %v3837 = vmul.f32 %v3325, %v3325
      %v3838 = vmul.f32 %v3326, %v3326
      %v3839 = vmul.f32 %v3327, %v3327
      %v3840 = vmul.f32 %v3328, %v3328
      %v3841 = vmul.f32 %v3329, %v3329
      %v3842 = vmul.f32 %v3330, %v3330
      %v3843 = vmul.f32 %v3331, %v3331
      %v3844 = vmul.f32 %v3332, %v3332
      %v3845 = vmul.f32 %v3333, %v3333
      %v3846 = vmul.f32 %v3334, %v3334
      %v3847 = vmul.f32 %v3335, %v3335
      %v3848 = vmul.f32 %v3336, %v3336
      %v3849 = vmul.f32 %v3337, %v3337
      %v3850 = vmul.f32 %v3338, %v3338
      %v3851 = vmul.f32 %v3339, %v3339
      %v3852 = vmul.f32 %v3340, %v3340
      %v3853 = vmul.f32 %v3341, %v3341
      %v3854 = vmul.f32 %v3342, %v3342
      %v3855 = vmul.f32 %v3343, %v3343
      %v3856 = vmul.f32 %v3344, %v3344
      %v3857 = vmul.f32 %v3345, %v3345
      %v3858 = vmul.f32 %v3346, %v3346
      %v3859 = vmul.f32 %v3347, %v3347
      %v3860 = vmul.f32 %v3348, %v3348
      %v3861 = vmul.f32 %v3349, %v3349
      %v3862 = vmul.f32 %v3350, %v3350
      %v3863 = vmul.f32 %v3351, %v3351
      %v3864 = vmul.f32 %v3352, %v3352
      %v3865 = vmul.f32 %v3353, %v3353
      %v3866 = vmul.f32 %v3354, %v3354
      %v3867 = vmul.f32 %v3355, %v3355
      %v3868 = vmul.f32 %v3356, %v3356
      %v3869 = vmul.f32 %v3357, %v3357
      %v3870 = vmul.f32 %v3358, %v3358
      %v3871 = vmul.f32 %v3359, %v3359
      %v3872 = vmul.f32 %v3360, %v3360
      %v3873 = vmul.f32 %v3361, %v3361
      %v3874 = vmul.f32 %v3362, %v3362
      %v3875 = vmul.f32 %v3363, %v3363
      %v3876 = vmul.f32 %v3364, %v3364
      %v3877 = vmul.f32 %v3365, %v3365
      %v3878 = vmul.f32 %v3366, %v3366
      %v3879 = vmul.f32 %v3367, %v3367
      %v3880 = vmul.f32 %v3368, %v3368
      %v3881 = vmul.f32 %v3369, %v3369
      %v3882 = vmul.f32 %v3370, %v3370
      %v3883 = vmul.f32 %v3371, %v3371
      %v3884 = vmul.f32 %v3372, %v3372
      %v3885 = vmul.f32 %v3373, %v3373
      %v3886 = vmul.f32 %v3374, %v3374
      %v3887 = vmul.f32 %v3375, %v3375
      %v3888 = vmul.f32 %v3376, %v3376
      %v3889 = vmul.f32 %v3377, %v3377
      %v3890 = vmul.f32 %v3378, %v3378
      %v3891 = vmul.f32 %v3379, %v3379
      %v3892 = vmul.f32 %v3380, %v3380
      %v3893 = vmul.f32 %v3381, %v3381
      %v3894 = vmul.f32 %v3382, %v3382
      %v3895 = vmul.f32 %v3383, %v3383
      %v3896 = vmul.f32 %v3384, %v3384
      %v3897 = vmul.f32 %v3385, %v3385
      %v3898 = vmul.f32 %v3386, %v3386
      %v3899 = vmul.f32 %v3387, %v3387
      %v3900 = vmul.f32 %v3388, %v3388
      %v3901 = vmul.f32 %v3389, %v3389
      %v3902 = vmul.f32 %v3390, %v3390
      %v3903 = vmul.f32 %v3391, %v3391
      %v3904 = vmul.f32 %v3392, %v3392
      %v3905 = vmul.f32 %v3393, %v3393
      %v3906 = vmul.f32 %v3394, %v3394
      %v3907 = vmul.f32 %v3395, %v3395
      %v3908 = vmul.f32 %v3396, %v3396
      %v3909 = vmul.f32 %v3397, %v3397
      %v3910 = vmul.f32 %v3398, %v3398
      %v3911 = vmul.f32 %v3399, %v3399
      %v3912 = vmul.f32 %v3400, %v3400
      %v3913 = vmul.f32 %v3401, %v3401
      %v3914 = vmul.f32 %v3402, %v3402
      %v3915 = vmul.f32 %v3403, %v3403
      %v3916 = vmul.f32 %v3404, %v3404
      %v3917 = vmul.f32 %v3405, %v3405
      %v3918 = vmul.f32 %v3406, %v3406
      %v3919 = vmul.f32 %v3407, %v3407
      %v3920 = vmul.f32 %v3408, %v3408
      %v3921 = vmul.f32 %v3409, %v3409
      %v3922 = vmul.f32 %v3410, %v3410
      %v3923 = vmul.f32 %v3411, %v3411
      %v3924 = vmul.f32 %v3412, %v3412
      %v3925 = vmul.f32 %v3413, %v3413
      %v3926 = vmul.f32 %v3414, %v3414
      %v3927 = vmul.f32 %v3415, %v3415
      %v3928 = vmul.f32 %v3416, %v3416
      %v3929 = vmul.f32 %v3417, %v3417
      %v3930 = vmul.f32 %v3418, %v3418
      %v3931 = vmul.f32 %v3419, %v3419
      %v3932 = vmul.f32 %v3420, %v3420
      %v3933 = vmul.f32 %v3421, %v3421
      %v3934 = vmul.f32 %v3422, %v3422
      %v3935 = vmul.f32 %v3423, %v3423
      %v3936 = vmul.f32 %v3424, %v3424
      %v3937 = vmul.f32 %v3425, %v3425
      %v3938 = vmul.f32 %v3426, %v3426
      %v3939 = vmul.f32 %v3427, %v3427
      %v3940 = vmul.f32 %v3428, %v3428
      %v3941 = vmul.f32 %v3429, %v3429
      %v3942 = vmul.f32 %v3430, %v3430
      %v3943 = vmul.f32 %v3431, %v3431
      %v3944 = vmul.f32 %v3432, %v3432
      %v3945 = vmul.f32 %v3433, %v3433
      %v3946 = vmul.f32 %v3434, %v3434
      %v3947 = vmul.f32 %v3435, %v3435
      %v3948 = vmul.f32 %v3436, %v3436
      %v3949 = vmul.f32 %v3437, %v3437
      %v3950 = vmul.f32 %v3438, %v3438
      %v3951 = vmul.f32 %v3439, %v3439
      %v3952 = vmul.f32 %v3440, %v3440
      %v3953 = vmul.f32 %v3441, %v3441
      %v3954 = vmul.f32 %v3442, %v3442
      %v3955 = vmul.f32 %v3443, %v3443
      %v3956 = vmul.f32 %v3444, %v3444
      %v3957 = vmul.f32 %v3445, %v3445
      %v3958 = vmul.f32 %v3446, %v3446
      %v3959 = vmul.f32 %v3447, %v3447
      %v3960 = vmul.f32 %v3448, %v3448
      %v3961 = vmul.f32 %v3449, %v3449
      %v3962 = vmul.f32 %v3450, %v3450
      %v3963 = vmul.f32 %v3451, %v3451
      %v3964 = vmul.f32 %v3452, %v3452
      %v3965 = vadd.f32 %v3709, %v3837
      %v3966 = vadd.f32 %v3710, %v3838
      %v3967 = vadd.f32 %v3711, %v3839
      %v3968 = vadd.f32 %v3712, %v3840
      %v3969 = vadd.f32 %v3713, %v3841
      %v3970 = vadd.f32 %v3714, %v3842
      %v3971 = vadd.f32 %v3715, %v3843
      %v3972 = vadd.f32 %v3716, %v3844
      %v3973 = vadd.f32 %v3717, %v3845
      %v3974 = vadd.f32 %v3718, %v3846
      %v3975 = vadd.f32 %v3719, %v3847
      %v3976 = vadd.f32 %v3720, %v3848
      %v3977 = vadd.f32 %v3721, %v3849
      %v3978 = vadd.f32 %v3722, %v3850
      %v3979 = vadd.f32 %v3723, %v3851
      %v3980 = vadd.f32 %v3724, %v3852
      %v3981 = vadd.f32 %v3725, %v3853
      %v3982 = vadd.f32 %v3726, %v3854
      %v3983 = vadd.f32 %v3727, %v3855
      %v3984 = vadd.f32 %v3728, %v3856
      %v3985 = vadd.f32 %v3729, %v3857
      %v3986 = vadd.f32 %v3730, %v3858
      %v3987 = vadd.f32 %v3731, %v3859
      %v3988 = vadd.f32 %v3732, %v3860
      %v3989 = vadd.f32 %v3733, %v3861
      %v3990 = vadd.f32 %v3734, %v3862
      %v3991 = vadd.f32 %v3735, %v3863
      %v3992 = vadd.f32 %v3736, %v3864
      %v3993 = vadd.f32 %v3737, %v3865
      %v3994 = vadd.f32 %v3738, %v3866
      %v3995 = vadd.f32 %v3739, %v3867
      %v3996 = vadd.f32 %v3740, %v3868
      %v3997 = vadd.f32 %v3741, %v3869
      %v3998 = vadd.f32 %v3742, %v3870
      %v3999 = vadd.f32 %v3743, %v3871
      %v4000 = vadd.f32 %v3744, %v3872
      %v4001 = vadd.f32 %v3745, %v3873
      %v4002 = vadd.f32 %v3746, %v3874
      %v4003 = vadd.f32 %v3747, %v3875
      %v4004 = vadd.f32 %v3748, %v3876
      %v4005 = vadd.f32 %v3749, %v3877
      %v4006 = vadd.f32 %v3750, %v3878
      %v4007 = vadd.f32 %v3751, %v3879
      %v4008 = vadd.f32 %v3752, %v3880
      %v4009 = vadd.f32 %v3753, %v3881
      %v4010 = vadd.f32 %v3754, %v3882
      %v4011 = vadd.f32 %v3755, %v3883
      %v4012 = vadd.f32 %v3756, %v3884
      %v4013 = vadd.f32 %v3757, %v3885
      %v4014 = vadd.f32 %v3758, %v3886
      %v4015 = vadd.f32 %v3759, %v3887
      %v4016 = vadd.f32 %v3760, %v3888
      %v4017 = vadd.f32 %v3761, %v3889
      %v4018 = vadd.f32 %v3762, %v3890
      %v4019 = vadd.f32 %v3763, %v3891
      %v4020 = vadd.f32 %v3764, %v3892
      %v4021 = vadd.f32 %v3765, %v3893
      %v4022 = vadd.f32 %v3766, %v3894
      %v4023 = vadd.f32 %v3767, %v3895
      %v4024 = vadd.f32 %v3768, %v3896
      %v4025 = vadd.f32 %v3769, %v3897
      %v4026 = vadd.f32 %v3770, %v3898
      %v4027 = vadd.f32 %v3771, %v3899
      %v4028 = vadd.f32 %v3772, %v3900
      %v4029 = vadd.f32 %v3773, %v3901
      %v4030 = vadd.f32 %v3774, %v3902
      %v4031 = vadd.f32 %v3775, %v3903
      %v4032 = vadd.f32 %v3776, %v3904
      %v4033 = vadd.f32 %v3777, %v3905
      %v4034 = vadd.f32 %v3778, %v3906
      %v4035 = vadd.f32 %v3779, %v3907
      %v4036 = vadd.f32 %v3780, %v3908
      %v4037 = vadd.f32 %v3781, %v3909
      %v4038 = vadd.f32 %v3782, %v3910
      %v4039 = vadd.f32 %v3783, %v3911
      %v4040 = vadd.f32 %v3784, %v3912
      %v4041 = vadd.f32 %v3785, %v3913
      %v4042 = vadd.f32 %v3786, %v3914
      %v4043 = vadd.f32 %v3787, %v3915
      %v4044 = vadd.f32 %v3788, %v3916
      %v4045 = vadd.f32 %v3789, %v3917
      %v4046 = vadd.f32 %v3790, %v3918
      %v4047 = vadd.f32 %v3791, %v3919
      %v4048 = vadd.f32 %v3792, %v3920
      %v4049 = vadd.f32 %v3793, %v3921
      %v4050 = vadd.f32 %v3794, %v3922
      %v4051 = vadd.f32 %v3795, %v3923
      %v4052 = vadd.f32 %v3796, %v3924
      %v4053 = vadd.f32 %v3797, %v3925
      %v4054 = vadd.f32 %v3798, %v3926
      %v4055 = vadd.f32 %v3799, %v3927
      %v4056 = vadd.f32 %v3800, %v3928
      %v4057 = vadd.f32 %v3801, %v3929
      %v4058 = vadd.f32 %v3802, %v3930
      %v4059 = vadd.f32 %v3803, %v3931
      %v4060 = vadd.f32 %v3804, %v3932
      %v4061 = vadd.f32 %v3805, %v3933
      %v4062 = vadd.f32 %v3806, %v3934
      %v4063 = vadd.f32 %v3807, %v3935
      %v4064 = vadd.f32 %v3808, %v3936
      %v4065 = vadd.f32 %v3809, %v3937
      %v4066 = vadd.f32 %v3810, %v3938
      %v4067 = vadd.f32 %v3811, %v3939
      %v4068 = vadd.f32 %v3812, %v3940
      %v4069 = vadd.f32 %v3813, %v3941
      %v4070 = vadd.f32 %v3814, %v3942
      %v4071 = vadd.f32 %v3815, %v3943
      %v4072 = vadd.f32 %v3816, %v3944
      %v4073 = vadd.f32 %v3817, %v3945
      %v4074 = vadd.f32 %v3818, %v3946
      %v4075 = vadd.f32 %v3819, %v3947
      %v4076 = vadd.f32 %v3820, %v3948
      %v4077 = vadd.f32 %v3821, %v3949
      %v4078 = vadd.f32 %v3822, %v3950
      %v4079 = vadd.f32 %v3823, %v3951
      %v4080 = vadd.f32 %v3824, %v3952
      %v4081 = vadd.f32 %v3825, %v3953
      %v4082 = vadd.f32 %v3826, %v3954
      %v4083 = vadd.f32 %v3827, %v3955
      %v4084 = vadd.f32 %v3828, %v3956
      %v4085 = vadd.f32 %v3829, %v3957
      %v4086 = vadd.f32 %v3830, %v3958
      %v4087 = vadd.f32 %v3831, %v3959
      %v4088 = vadd.f32 %v3832, %v3960
      %v4089 = vadd.f32 %v3833, %v3961
      %v4090 = vadd.f32 %v3834, %v3962
      %v4091 = vadd.f32 %v3835, %v3963
      %v4092 = vadd.f32 %v3836, %v3964
      %v4093 = vlaneseq
      %v4094 = vshrl.u32 %v4093, 7
      %v4095 = vadd.s32 %v4094, 8
      %v4096 = vlaneseq
      %v4097 = vand.u32 %v4096, 127
      %vm4098 = vcmp.eq.s32.totalorder %v4094, %v4097
      %vm4099 = vcmp.eq.s32.totalorder %v4095, %v4097
      %v4100 = vadd.f32 %v3965, 1e-06
      %v4101 = vadd.f32 %v3966, 1e-06
      %v4102 = vadd.f32 %v3967, 1e-06
      %v4103 = vadd.f32 %v3968, 1e-06
      %v4104 = vadd.f32 %v3969, 1e-06
      %v4105 = vadd.f32 %v3970, 1e-06
      %v4106 = vadd.f32 %v3971, 1e-06
      %v4107 = vadd.f32 %v3972, 1e-06
      %v4108 = vadd.f32 %v3973, 1e-06
      %v4109 = vadd.f32 %v3974, 1e-06
      %v4110 = vadd.f32 %v3975, 1e-06
      %v4111 = vadd.f32 %v3976, 1e-06
      %v4112 = vadd.f32 %v3977, 1e-06
      %v4113 = vadd.f32 %v3978, 1e-06
      %v4114 = vadd.f32 %v3979, 1e-06
      %v4115 = vadd.f32 %v3980, 1e-06
      %v4116 = vadd.f32 %v3981, 1e-06
      %v4117 = vadd.f32 %v3982, 1e-06
      %v4118 = vadd.f32 %v3983, 1e-06
      %v4119 = vadd.f32 %v3984, 1e-06
      %v4120 = vadd.f32 %v3985, 1e-06
      %v4121 = vadd.f32 %v3986, 1e-06
      %v4122 = vadd.f32 %v3987, 1e-06
      %v4123 = vadd.f32 %v3988, 1e-06
      %v4124 = vadd.f32 %v3989, 1e-06
      %v4125 = vadd.f32 %v3990, 1e-06
      %v4126 = vadd.f32 %v3991, 1e-06
      %v4127 = vadd.f32 %v3992, 1e-06
      %v4128 = vadd.f32 %v3993, 1e-06
      %v4129 = vadd.f32 %v3994, 1e-06
      %v4130 = vadd.f32 %v3995, 1e-06
      %v4131 = vadd.f32 %v3996, 1e-06
      %v4132 = vadd.f32 %v3997, 1e-06
      %v4133 = vadd.f32 %v3998, 1e-06
      %v4134 = vadd.f32 %v3999, 1e-06
      %v4135 = vadd.f32 %v4000, 1e-06
      %v4136 = vadd.f32 %v4001, 1e-06
      %v4137 = vadd.f32 %v4002, 1e-06
      %v4138 = vadd.f32 %v4003, 1e-06
      %v4139 = vadd.f32 %v4004, 1e-06
      %v4140 = vadd.f32 %v4005, 1e-06
      %v4141 = vadd.f32 %v4006, 1e-06
      %v4142 = vadd.f32 %v4007, 1e-06
      %v4143 = vadd.f32 %v4008, 1e-06
      %v4144 = vadd.f32 %v4009, 1e-06
      %v4145 = vadd.f32 %v4010, 1e-06
      %v4146 = vadd.f32 %v4011, 1e-06
      %v4147 = vadd.f32 %v4012, 1e-06
      %v4148 = vadd.f32 %v4013, 1e-06
      %v4149 = vadd.f32 %v4014, 1e-06
      %v4150 = vadd.f32 %v4015, 1e-06
      %v4151 = vadd.f32 %v4016, 1e-06
      %v4152 = vadd.f32 %v4017, 1e-06
      %v4153 = vadd.f32 %v4018, 1e-06
      %v4154 = vadd.f32 %v4019, 1e-06
      %v4155 = vadd.f32 %v4020, 1e-06
      %v4156 = vadd.f32 %v4021, 1e-06
      %v4157 = vadd.f32 %v4022, 1e-06
      %v4158 = vadd.f32 %v4023, 1e-06
      %v4159 = vadd.f32 %v4024, 1e-06
      %v4160 = vadd.f32 %v4025, 1e-06
      %v4161 = vadd.f32 %v4026, 1e-06
      %v4162 = vadd.f32 %v4027, 1e-06
      %v4163 = vadd.f32 %v4028, 1e-06
      %v4164 = vadd.f32 %v4029, 1e-06
      %v4165 = vadd.f32 %v4030, 1e-06
      %v4166 = vadd.f32 %v4031, 1e-06
      %v4167 = vadd.f32 %v4032, 1e-06
      %v4168 = vadd.f32 %v4033, 1e-06
      %v4169 = vadd.f32 %v4034, 1e-06
      %v4170 = vadd.f32 %v4035, 1e-06
      %v4171 = vadd.f32 %v4036, 1e-06
      %v4172 = vadd.f32 %v4037, 1e-06
      %v4173 = vadd.f32 %v4038, 1e-06
      %v4174 = vadd.f32 %v4039, 1e-06
      %v4175 = vadd.f32 %v4040, 1e-06
      %v4176 = vadd.f32 %v4041, 1e-06
      %v4177 = vadd.f32 %v4042, 1e-06
      %v4178 = vadd.f32 %v4043, 1e-06
      %v4179 = vadd.f32 %v4044, 1e-06
      %v4180 = vadd.f32 %v4045, 1e-06
      %v4181 = vadd.f32 %v4046, 1e-06
      %v4182 = vadd.f32 %v4047, 1e-06
      %v4183 = vadd.f32 %v4048, 1e-06
      %v4184 = vadd.f32 %v4049, 1e-06
      %v4185 = vadd.f32 %v4050, 1e-06
      %v4186 = vadd.f32 %v4051, 1e-06
      %v4187 = vadd.f32 %v4052, 1e-06
      %v4188 = vadd.f32 %v4053, 1e-06
      %v4189 = vadd.f32 %v4054, 1e-06
      %v4190 = vadd.f32 %v4055, 1e-06
      %v4191 = vadd.f32 %v4056, 1e-06
      %v4192 = vadd.f32 %v4057, 1e-06
      %v4193 = vadd.f32 %v4058, 1e-06
      %v4194 = vadd.f32 %v4059, 1e-06
      %v4195 = vadd.f32 %v4060, 1e-06
      %v4196 = vadd.f32 %v4061, 1e-06
      %v4197 = vadd.f32 %v4062, 1e-06
      %v4198 = vadd.f32 %v4063, 1e-06
      %v4199 = vadd.f32 %v4064, 1e-06
      %v4200 = vadd.f32 %v4065, 1e-06
      %v4201 = vadd.f32 %v4066, 1e-06
      %v4202 = vadd.f32 %v4067, 1e-06
      %v4203 = vadd.f32 %v4068, 1e-06
      %v4204 = vadd.f32 %v4069, 1e-06
      %v4205 = vadd.f32 %v4070, 1e-06
      %v4206 = vadd.f32 %v4071, 1e-06
      %v4207 = vadd.f32 %v4072, 1e-06
      %v4208 = vadd.f32 %v4073, 1e-06
      %v4209 = vadd.f32 %v4074, 1e-06
      %v4210 = vadd.f32 %v4075, 1e-06
      %v4211 = vadd.f32 %v4076, 1e-06
      %v4212 = vadd.f32 %v4077, 1e-06
      %v4213 = vadd.f32 %v4078, 1e-06
      %v4214 = vadd.f32 %v4079, 1e-06
      %v4215 = vadd.f32 %v4080, 1e-06
      %v4216 = vadd.f32 %v4081, 1e-06
      %v4217 = vadd.f32 %v4082, 1e-06
      %v4218 = vadd.f32 %v4083, 1e-06
      %v4219 = vadd.f32 %v4084, 1e-06
      %v4220 = vadd.f32 %v4085, 1e-06
      %v4221 = vadd.f32 %v4086, 1e-06
      %v4222 = vadd.f32 %v4087, 1e-06
      %v4223 = vadd.f32 %v4088, 1e-06
      %v4224 = vadd.f32 %v4089, 1e-06
      %v4225 = vadd.f32 %v4090, 1e-06
      %v4226 = vadd.f32 %v4091, 1e-06
      %v4227 = vadd.f32 %v4092, 1e-06
      %v4228 = vrsqrt.pop %v4100
      %v4229 = vrsqrt.pop %v4101
      %v4230 = vrsqrt.pop %v4102
      %v4231 = vrsqrt.pop %v4103
      %v4232 = vrsqrt.pop %v4104
      %v4233 = vrsqrt.pop %v4105
      %v4234 = vrsqrt.pop %v4106
      %v4235 = vrsqrt.pop %v4107
      %v4236 = vrsqrt.pop %v4108
      %v4237 = vrsqrt.pop %v4109
      %v4238 = vrsqrt.pop %v4110
      %v4239 = vrsqrt.pop %v4111
      %v4240 = vrsqrt.pop %v4112
      %v4241 = vrsqrt.pop %v4113
      %v4242 = vrsqrt.pop %v4114
      %v4243 = vrsqrt.pop %v4115
      %v4244 = vrsqrt.pop %v4116
      %v4245 = vrsqrt.pop %v4117
      %v4246 = vrsqrt.pop %v4118
      %v4247 = vrsqrt.pop %v4119
      %v4248 = vrsqrt.pop %v4120
      %v4249 = vrsqrt.pop %v4121
      %v4250 = vrsqrt.pop %v4122
      %v4251 = vrsqrt.pop %v4123
      %v4252 = vrsqrt.pop %v4124
      %v4253 = vrsqrt.pop %v4125
      %v4254 = vrsqrt.pop %v4126
      %v4255 = vrsqrt.pop %v4127
      %v4256 = vrsqrt.pop %v4128
      %v4257 = vrsqrt.pop %v4129
      %v4258 = vrsqrt.pop %v4130
      %v4259 = vrsqrt.pop %v4131
      %v4260 = vrsqrt.pop %v4132
      %v4261 = vrsqrt.pop %v4133
      %v4262 = vrsqrt.pop %v4134
      %v4263 = vrsqrt.pop %v4135
      %v4264 = vrsqrt.pop %v4136
      %v4265 = vrsqrt.pop %v4137
      %v4266 = vrsqrt.pop %v4138
      %v4267 = vrsqrt.pop %v4139
      %v4268 = vrsqrt.pop %v4140
      %v4269 = vrsqrt.pop %v4141
      %v4270 = vrsqrt.pop %v4142
      %v4271 = vrsqrt.pop %v4143
      %v4272 = vrsqrt.pop %v4144
      %v4273 = vrsqrt.pop %v4145
      %v4274 = vrsqrt.pop %v4146
      %v4275 = vrsqrt.pop %v4147
      %v4276 = vrsqrt.pop %v4148
      %v4277 = vrsqrt.pop %v4149
      %v4278 = vrsqrt.pop %v4150
      %v4279 = vrsqrt.pop %v4151
      %v4280 = vrsqrt.pop %v4152
      %v4281 = vrsqrt.pop %v4153
      %v4282 = vrsqrt.pop %v4154
      %v4283 = vrsqrt.pop %v4155
      %v4284 = vrsqrt.pop %v4156
      %v4285 = vrsqrt.pop %v4157
      %v4286 = vrsqrt.pop %v4158
      %v4287 = vrsqrt.pop %v4159
      %v4288 = vrsqrt.pop %v4160
      %v4289 = vrsqrt.pop %v4161
      %v4290 = vrsqrt.pop %v4162
      %v4291 = vrsqrt.pop %v4163
      %v4292 = vrsqrt.pop %v4164
      %v4293 = vrsqrt.pop %v4165
      %v4294 = vrsqrt.pop %v4166
      %v4295 = vrsqrt.pop %v4167
      %v4296 = vrsqrt.pop %v4168
      %v4297 = vrsqrt.pop %v4169
      %v4298 = vrsqrt.pop %v4170
      %v4299 = vrsqrt.pop %v4171
      %v4300 = vrsqrt.pop %v4172
      %v4301 = vrsqrt.pop %v4173
      %v4302 = vrsqrt.pop %v4174
      %v4303 = vrsqrt.pop %v4175
      %v4304 = vrsqrt.pop %v4176
      %v4305 = vrsqrt.pop %v4177
      %v4306 = vrsqrt.pop %v4178
      %v4307 = vrsqrt.pop %v4179
      %v4308 = vrsqrt.pop %v4180
      %v4309 = vrsqrt.pop %v4181
      %v4310 = vrsqrt.pop %v4182
      %v4311 = vrsqrt.pop %v4183
      %v4312 = vrsqrt.pop %v4184
      %v4313 = vrsqrt.pop %v4185
      %v4314 = vrsqrt.pop %v4186
      %v4315 = vrsqrt.pop %v4187
      %v4316 = vrsqrt.pop %v4188
      %v4317 = vrsqrt.pop %v4189
      %v4318 = vrsqrt.pop %v4190
      %v4319 = vrsqrt.pop %v4191
      %v4320 = vrsqrt.pop %v4192
      %v4321 = vrsqrt.pop %v4193
      %v4322 = vrsqrt.pop %v4194
      %v4323 = vrsqrt.pop %v4195
      %v4324 = vrsqrt.pop %v4196
      %v4325 = vrsqrt.pop %v4197
      %v4326 = vrsqrt.pop %v4198
      %v4327 = vrsqrt.pop %v4199
      %v4328 = vrsqrt.pop %v4200
      %v4329 = vrsqrt.pop %v4201
      %v4330 = vrsqrt.pop %v4202
      %v4331 = vrsqrt.pop %v4203
      %v4332 = vrsqrt.pop %v4204
      %v4333 = vrsqrt.pop %v4205
      %v4334 = vrsqrt.pop %v4206
      %v4335 = vrsqrt.pop %v4207
      %v4336 = vrsqrt.pop %v4208
      %v4337 = vrsqrt.pop %v4209
      %v4338 = vrsqrt.pop %v4210
      %v4339 = vrsqrt.pop %v4211
      %v4340 = vrsqrt.pop %v4212
      %v4341 = vrsqrt.pop %v4213
      %v4342 = vrsqrt.pop %v4214
      %v4343 = vrsqrt.pop %v4215
      %v4344 = vrsqrt.pop %v4216
      %v4345 = vrsqrt.pop %v4217
      %v4346 = vrsqrt.pop %v4218
      %v4347 = vrsqrt.pop %v4219
      %v4348 = vrsqrt.pop %v4220
      %v4349 = vrsqrt.pop %v4221
      %v4350 = vrsqrt.pop %v4222
      %v4351 = vrsqrt.pop %v4223
      %v4352 = vrsqrt.pop %v4224
      %v4353 = vrsqrt.pop %v4225
      %v4354 = vrsqrt.pop %v4226
      %v4355 = vrsqrt.pop %v4227
      %v4356 = vsel %vm4098, 1, 0
      %v4357 = vsel %vm4099, 1, 0
      %vm4358 = vcmp.eq.s32.totalorder %v4356, 1
      %vm4359 = vcmp.eq.s32.totalorder %v4357, 1
      %v4360 = vsel %vm4358, 0.0, %v4228
      %v4361 = vsel %vm4359, 0.0, %v4229
      %v4362 = vsel %vm4358, 0.0, %v4230
      %v4363 = vsel %vm4359, 0.0, %v4231
      %v4364 = vsel %vm4358, 0.0, %v4232
      %v4365 = vsel %vm4359, 0.0, %v4233
      %v4366 = vsel %vm4358, 0.0, %v4234
      %v4367 = vsel %vm4359, 0.0, %v4235
      %v4368 = vsel %vm4358, 0.0, %v4236
      %v4369 = vsel %vm4359, 0.0, %v4237
      %v4370 = vsel %vm4358, 0.0, %v4238
      %v4371 = vsel %vm4359, 0.0, %v4239
      %v4372 = vsel %vm4358, 0.0, %v4240
      %v4373 = vsel %vm4359, 0.0, %v4241
      %v4374 = vsel %vm4358, 0.0, %v4242
      %v4375 = vsel %vm4359, 0.0, %v4243
      %v4376 = vsel %vm4358, 0.0, %v4244
      %v4377 = vsel %vm4359, 0.0, %v4245
      %v4378 = vsel %vm4358, 0.0, %v4246
      %v4379 = vsel %vm4359, 0.0, %v4247
      %v4380 = vsel %vm4358, 0.0, %v4248
      %v4381 = vsel %vm4359, 0.0, %v4249
      %v4382 = vsel %vm4358, 0.0, %v4250
      %v4383 = vsel %vm4359, 0.0, %v4251
      %v4384 = vsel %vm4358, 0.0, %v4252
      %v4385 = vsel %vm4359, 0.0, %v4253
      %v4386 = vsel %vm4358, 0.0, %v4254
      %v4387 = vsel %vm4359, 0.0, %v4255
      %v4388 = vsel %vm4358, 0.0, %v4256
      %v4389 = vsel %vm4359, 0.0, %v4257
      %v4390 = vsel %vm4358, 0.0, %v4258
      %v4391 = vsel %vm4359, 0.0, %v4259
      %v4392 = vsel %vm4358, 0.0, %v4260
      %v4393 = vsel %vm4359, 0.0, %v4261
      %v4394 = vsel %vm4358, 0.0, %v4262
      %v4395 = vsel %vm4359, 0.0, %v4263
      %v4396 = vsel %vm4358, 0.0, %v4264
      %v4397 = vsel %vm4359, 0.0, %v4265
      %v4398 = vsel %vm4358, 0.0, %v4266
      %v4399 = vsel %vm4359, 0.0, %v4267
      %v4400 = vsel %vm4358, 0.0, %v4268
      %v4401 = vsel %vm4359, 0.0, %v4269
      %v4402 = vsel %vm4358, 0.0, %v4270
      %v4403 = vsel %vm4359, 0.0, %v4271
      %v4404 = vsel %vm4358, 0.0, %v4272
      %v4405 = vsel %vm4359, 0.0, %v4273
      %v4406 = vsel %vm4358, 0.0, %v4274
      %v4407 = vsel %vm4359, 0.0, %v4275
      %v4408 = vsel %vm4358, 0.0, %v4276
      %v4409 = vsel %vm4359, 0.0, %v4277
      %v4410 = vsel %vm4358, 0.0, %v4278
      %v4411 = vsel %vm4359, 0.0, %v4279
      %v4412 = vsel %vm4358, 0.0, %v4280
      %v4413 = vsel %vm4359, 0.0, %v4281
      %v4414 = vsel %vm4358, 0.0, %v4282
      %v4415 = vsel %vm4359, 0.0, %v4283
      %v4416 = vsel %vm4358, 0.0, %v4284
      %v4417 = vsel %vm4359, 0.0, %v4285
      %v4418 = vsel %vm4358, 0.0, %v4286
      %v4419 = vsel %vm4359, 0.0, %v4287
      %v4420 = vsel %vm4358, 0.0, %v4288
      %v4421 = vsel %vm4359, 0.0, %v4289
      %v4422 = vsel %vm4358, 0.0, %v4290
      %v4423 = vsel %vm4359, 0.0, %v4291
      %v4424 = vsel %vm4358, 0.0, %v4292
      %v4425 = vsel %vm4359, 0.0, %v4293
      %v4426 = vsel %vm4358, 0.0, %v4294
      %v4427 = vsel %vm4359, 0.0, %v4295
      %v4428 = vsel %vm4358, 0.0, %v4296
      %v4429 = vsel %vm4359, 0.0, %v4297
      %v4430 = vsel %vm4358, 0.0, %v4298
      %v4431 = vsel %vm4359, 0.0, %v4299
      %v4432 = vsel %vm4358, 0.0, %v4300
      %v4433 = vsel %vm4359, 0.0, %v4301
      %v4434 = vsel %vm4358, 0.0, %v4302
      %v4435 = vsel %vm4359, 0.0, %v4303
      %v4436 = vsel %vm4358, 0.0, %v4304
      %v4437 = vsel %vm4359, 0.0, %v4305
      %v4438 = vsel %vm4358, 0.0, %v4306
      %v4439 = vsel %vm4359, 0.0, %v4307
      %v4440 = vsel %vm4358, 0.0, %v4308
      %v4441 = vsel %vm4359, 0.0, %v4309
      %v4442 = vsel %vm4358, 0.0, %v4310
      %v4443 = vsel %vm4359, 0.0, %v4311
      %v4444 = vsel %vm4358, 0.0, %v4312
      %v4445 = vsel %vm4359, 0.0, %v4313
      %v4446 = vsel %vm4358, 0.0, %v4314
      %v4447 = vsel %vm4359, 0.0, %v4315
      %v4448 = vsel %vm4358, 0.0, %v4316
      %v4449 = vsel %vm4359, 0.0, %v4317
      %v4450 = vsel %vm4358, 0.0, %v4318
      %v4451 = vsel %vm4359, 0.0, %v4319
      %v4452 = vsel %vm4358, 0.0, %v4320
      %v4453 = vsel %vm4359, 0.0, %v4321
      %v4454 = vsel %vm4358, 0.0, %v4322
      %v4455 = vsel %vm4359, 0.0, %v4323
      %v4456 = vsel %vm4358, 0.0, %v4324
      %v4457 = vsel %vm4359, 0.0, %v4325
      %v4458 = vsel %vm4358, 0.0, %v4326
      %v4459 = vsel %vm4359, 0.0, %v4327
      %v4460 = vsel %vm4358, 0.0, %v4328
      %v4461 = vsel %vm4359, 0.0, %v4329
      %v4462 = vsel %vm4358, 0.0, %v4330
      %v4463 = vsel %vm4359, 0.0, %v4331
      %v4464 = vsel %vm4358, 0.0, %v4332
      %v4465 = vsel %vm4359, 0.0, %v4333
      %v4466 = vsel %vm4358, 0.0, %v4334
      %v4467 = vsel %vm4359, 0.0, %v4335
      %v4468 = vsel %vm4358, 0.0, %v4336
      %v4469 = vsel %vm4359, 0.0, %v4337
      %v4470 = vsel %vm4358, 0.0, %v4338
      %v4471 = vsel %vm4359, 0.0, %v4339
      %v4472 = vsel %vm4358, 0.0, %v4340
      %v4473 = vsel %vm4359, 0.0, %v4341
      %v4474 = vsel %vm4358, 0.0, %v4342
      %v4475 = vsel %vm4359, 0.0, %v4343
      %v4476 = vsel %vm4358, 0.0, %v4344
      %v4477 = vsel %vm4359, 0.0, %v4345
      %v4478 = vsel %vm4358, 0.0, %v4346
      %v4479 = vsel %vm4359, 0.0, %v4347
      %v4480 = vsel %vm4358, 0.0, %v4348
      %v4481 = vsel %vm4359, 0.0, %v4349
      %v4482 = vsel %vm4358, 0.0, %v4350
      %v4483 = vsel %vm4359, 0.0, %v4351
      %v4484 = vsel %vm4358, 0.0, %v4352
      %v4485 = vsel %vm4359, 0.0, %v4353
      %v4486 = vsel %vm4358, 0.0, %v4354
      %v4487 = vsel %vm4359, 0.0, %v4355
      %v4488 = vld [vmem:[%s3] sm:$0xf]
      %vm4489 = vcmp.eq.s32.totalorder %v573, 0
      %vm4490 = vcmp.eq.s32.totalorder %v574, 0
      %vm4491 = vcmp.eq.s32.totalorder %v575, 0
      %vm4492 = vcmp.eq.s32.totalorder %v576, 0
      %vm4493 = vcmp.eq.s32.totalorder %v577, 0
      %vm4494 = vcmp.eq.s32.totalorder %v578, 0
      %vm4495 = vcmp.eq.s32.totalorder %v579, 0
      %vm4496 = vcmp.eq.s32.totalorder %v580, 0
      %vm4497 = vcmp.eq.s32.totalorder %v581, 0
      %vm4498 = vcmp.eq.s32.totalorder %v582, 0
      %vm4499 = vcmp.eq.s32.totalorder %v583, 0
      %vm4500 = vcmp.eq.s32.totalorder %v584, 0
      %vm4501 = vcmp.eq.s32.totalorder %v585, 0
      %vm4502 = vcmp.eq.s32.totalorder %v586, 0
      %vm4503 = vcmp.eq.s32.totalorder %v587, 0
      %vm4504 = vcmp.eq.s32.totalorder %v588, 0
      %vm4505 = vcmp.eq.s32.totalorder %v589, 0
      %vm4506 = vcmp.eq.s32.totalorder %v590, 0
      %vm4507 = vcmp.eq.s32.totalorder %v591, 0
      %vm4508 = vcmp.eq.s32.totalorder %v592, 0
      %vm4509 = vcmp.eq.s32.totalorder %v593, 0
      %vm4510 = vcmp.eq.s32.totalorder %v594, 0
      %vm4511 = vcmp.eq.s32.totalorder %v595, 0
      %vm4512 = vcmp.eq.s32.totalorder %v596, 0
      %vm4513 = vcmp.eq.s32.totalorder %v597, 0
      %vm4514 = vcmp.eq.s32.totalorder %v598, 0
      %vm4515 = vcmp.eq.s32.totalorder %v599, 0
      %vm4516 = vcmp.eq.s32.totalorder %v600, 0
      %vm4517 = vcmp.eq.s32.totalorder %v601, 0
      %vm4518 = vcmp.eq.s32.totalorder %v602, 0
      %vm4519 = vcmp.eq.s32.totalorder %v603, 0
      %vm4520 = vcmp.eq.s32.totalorder %v604, 0
      %vm4521 = vcmp.eq.s32.totalorder %v605, 0
      %vm4522 = vcmp.eq.s32.totalorder %v606, 0
      %vm4523 = vcmp.eq.s32.totalorder %v607, 0
      %vm4524 = vcmp.eq.s32.totalorder %v608, 0
      %vm4525 = vcmp.eq.s32.totalorder %v609, 0
      %vm4526 = vcmp.eq.s32.totalorder %v610, 0
      %vm4527 = vcmp.eq.s32.totalorder %v611, 0
      %vm4528 = vcmp.eq.s32.totalorder %v612, 0
      %vm4529 = vcmp.eq.s32.totalorder %v613, 0
      %vm4530 = vcmp.eq.s32.totalorder %v614, 0
      %vm4531 = vcmp.eq.s32.totalorder %v615, 0
      %vm4532 = vcmp.eq.s32.totalorder %v616, 0
      %vm4533 = vcmp.eq.s32.totalorder %v617, 0
      %vm4534 = vcmp.eq.s32.totalorder %v618, 0
      %vm4535 = vcmp.eq.s32.totalorder %v619, 0
      %vm4536 = vcmp.eq.s32.totalorder %v620, 0
      %vm4537 = vcmp.eq.s32.totalorder %v621, 0
      %vm4538 = vcmp.eq.s32.totalorder %v622, 0
      %vm4539 = vcmp.eq.s32.totalorder %v623, 0
      %vm4540 = vcmp.eq.s32.totalorder %v624, 0
      %vm4541 = vcmp.eq.s32.totalorder %v625, 0
      %vm4542 = vcmp.eq.s32.totalorder %v626, 0
      %vm4543 = vcmp.eq.s32.totalorder %v627, 0
      %vm4544 = vcmp.eq.s32.totalorder %v628, 0
      %vm4545 = vcmp.eq.s32.totalorder %v629, 0
      %vm4546 = vcmp.eq.s32.totalorder %v630, 0
      %vm4547 = vcmp.eq.s32.totalorder %v631, 0
      %vm4548 = vcmp.eq.s32.totalorder %v632, 0
      %vm4549 = vcmp.eq.s32.totalorder %v633, 0
      %vm4550 = vcmp.eq.s32.totalorder %v634, 0
      %vm4551 = vcmp.eq.s32.totalorder %v635, 0
      %vm4552 = vcmp.eq.s32.totalorder %v636, 0
      %v4553 = vsel %vm4489, 1, 0
      %v4554 = vsel %vm4490, 1, 0
      %v4555 = vsel %vm4491, 1, 0
      %v4556 = vsel %vm4492, 1, 0
      %v4557 = vsel %vm4493, 1, 0
      %v4558 = vsel %vm4494, 1, 0
      %v4559 = vsel %vm4495, 1, 0
      %v4560 = vsel %vm4496, 1, 0
      %v4561 = vsel %vm4497, 1, 0
      %v4562 = vsel %vm4498, 1, 0
      %v4563 = vsel %vm4499, 1, 0
      %v4564 = vsel %vm4500, 1, 0
      %v4565 = vsel %vm4501, 1, 0
      %v4566 = vsel %vm4502, 1, 0
      %v4567 = vsel %vm4503, 1, 0
      %v4568 = vsel %vm4504, 1, 0
      %v4569 = vsel %vm4505, 1, 0
      %v4570 = vsel %vm4506, 1, 0
      %v4571 = vsel %vm4507, 1, 0
      %v4572 = vsel %vm4508, 1, 0
      %v4573 = vsel %vm4509, 1, 0
      %v4574 = vsel %vm4510, 1, 0
      %v4575 = vsel %vm4511, 1, 0
      %v4576 = vsel %vm4512, 1, 0
      %v4577 = vsel %vm4513, 1, 0
      %v4578 = vsel %vm4514, 1, 0
      %v4579 = vsel %vm4515, 1, 0
      %v4580 = vsel %vm4516, 1, 0
      %v4581 = vsel %vm4517, 1, 0
      %v4582 = vsel %vm4518, 1, 0
      %v4583 = vsel %vm4519, 1, 0
      %v4584 = vsel %vm4520, 1, 0
      %v4585 = vsel %vm4521, 1, 0
      %v4586 = vsel %vm4522, 1, 0
      %v4587 = vsel %vm4523, 1, 0
      %v4588 = vsel %vm4524, 1, 0
      %v4589 = vsel %vm4525, 1, 0
      %v4590 = vsel %vm4526, 1, 0
      %v4591 = vsel %vm4527, 1, 0
      %v4592 = vsel %vm4528, 1, 0
      %v4593 = vsel %vm4529, 1, 0
      %v4594 = vsel %vm4530, 1, 0
      %v4595 = vsel %vm4531, 1, 0
      %v4596 = vsel %vm4532, 1, 0
      %v4597 = vsel %vm4533, 1, 0
      %v4598 = vsel %vm4534, 1, 0
      %v4599 = vsel %vm4535, 1, 0
      %v4600 = vsel %vm4536, 1, 0
      %v4601 = vsel %vm4537, 1, 0
      %v4602 = vsel %vm4538, 1, 0
      %v4603 = vsel %vm4539, 1, 0
      %v4604 = vsel %vm4540, 1, 0
      %v4605 = vsel %vm4541, 1, 0
      %v4606 = vsel %vm4542, 1, 0
      %v4607 = vsel %vm4543, 1, 0
      %v4608 = vsel %vm4544, 1, 0
      %v4609 = vsel %vm4545, 1, 0
      %v4610 = vsel %vm4546, 1, 0
      %v4611 = vsel %vm4547, 1, 0
      %v4612 = vsel %vm4548, 1, 0
      %v4613 = vsel %vm4549, 1, 0
      %v4614 = vsel %vm4550, 1, 0
      %v4615 = vsel %vm4551, 1, 0
      %v4616 = vsel %vm4552, 1, 0
      %v4617 = vlaneseq
      %v4618 = vshrl.u32 %v4617, 7
      %v4619 = vsub.s32 0, %v4618
      %v4620 = vrot.slane %v4553, %v4619
      %v4621 = vlaneseq
      %v4622 = vshrl.u32 %v4621, 7
      %v4623 = vsub.s32 0, %v4622
      %v4624 = vrot.slane %v4554, %v4623
      %v4625 = vlaneseq
      %v4626 = vshrl.u32 %v4625, 7
      %v4627 = vsub.s32 0, %v4626
      %v4628 = vrot.slane %v4555, %v4627
      %v4629 = vlaneseq
      %v4630 = vshrl.u32 %v4629, 7
      %v4631 = vsub.s32 0, %v4630
      %v4632 = vrot.slane %v4556, %v4631
      %v4633 = vlaneseq
      %v4634 = vshrl.u32 %v4633, 7
      %v4635 = vsub.s32 0, %v4634
      %v4636 = vrot.slane %v4557, %v4635
      %v4637 = vlaneseq
      %v4638 = vshrl.u32 %v4637, 7
      %v4639 = vsub.s32 0, %v4638
      %v4640 = vrot.slane %v4558, %v4639
      %v4641 = vlaneseq
      %v4642 = vshrl.u32 %v4641, 7
      %v4643 = vsub.s32 0, %v4642
      %v4644 = vrot.slane %v4559, %v4643
      %v4645 = vlaneseq
      %v4646 = vshrl.u32 %v4645, 7
      %v4647 = vsub.s32 0, %v4646
      %v4648 = vrot.slane %v4560, %v4647
      %v4649 = vlaneseq
      %v4650 = vshrl.u32 %v4649, 7
      %v4651 = vsub.s32 0, %v4650
      %v4652 = vrot.slane %v4561, %v4651
      %v4653 = vlaneseq
      %v4654 = vshrl.u32 %v4653, 7
      %v4655 = vsub.s32 0, %v4654
      %v4656 = vrot.slane %v4562, %v4655
      %v4657 = vlaneseq
      %v4658 = vshrl.u32 %v4657, 7
      %v4659 = vsub.s32 0, %v4658
      %v4660 = vrot.slane %v4563, %v4659
      %v4661 = vlaneseq
      %v4662 = vshrl.u32 %v4661, 7
      %v4663 = vsub.s32 0, %v4662
      %v4664 = vrot.slane %v4564, %v4663
      %v4665 = vlaneseq
      %v4666 = vshrl.u32 %v4665, 7
      %v4667 = vsub.s32 0, %v4666
      %v4668 = vrot.slane %v4565, %v4667
      %v4669 = vlaneseq
      %v4670 = vshrl.u32 %v4669, 7
      %v4671 = vsub.s32 0, %v4670
      %v4672 = vrot.slane %v4566, %v4671
      %v4673 = vlaneseq
      %v4674 = vshrl.u32 %v4673, 7
      %v4675 = vsub.s32 0, %v4674
      %v4676 = vrot.slane %v4567, %v4675
      %v4677 = vlaneseq
      %v4678 = vshrl.u32 %v4677, 7
      %v4679 = vsub.s32 0, %v4678
      %v4680 = vrot.slane %v4568, %v4679
      %v4681 = vlaneseq
      %v4682 = vshrl.u32 %v4681, 7
      %v4683 = vsub.s32 0, %v4682
      %v4684 = vrot.slane %v4569, %v4683
      %v4685 = vlaneseq
      %v4686 = vshrl.u32 %v4685, 7
      %v4687 = vsub.s32 0, %v4686
      %v4688 = vrot.slane %v4570, %v4687
      %v4689 = vlaneseq
      %v4690 = vshrl.u32 %v4689, 7
      %v4691 = vsub.s32 0, %v4690
      %v4692 = vrot.slane %v4571, %v4691
      %v4693 = vlaneseq
      %v4694 = vshrl.u32 %v4693, 7
      %v4695 = vsub.s32 0, %v4694
      %v4696 = vrot.slane %v4572, %v4695
      %v4697 = vlaneseq
      %v4698 = vshrl.u32 %v4697, 7
      %v4699 = vsub.s32 0, %v4698
      %v4700 = vrot.slane %v4573, %v4699
      %v4701 = vlaneseq
      %v4702 = vshrl.u32 %v4701, 7
      %v4703 = vsub.s32 0, %v4702
      %v4704 = vrot.slane %v4574, %v4703
      %v4705 = vlaneseq
      %v4706 = vshrl.u32 %v4705, 7
      %v4707 = vsub.s32 0, %v4706
      %v4708 = vrot.slane %v4575, %v4707
      %v4709 = vlaneseq
      %v4710 = vshrl.u32 %v4709, 7
      %v4711 = vsub.s32 0, %v4710
      %v4712 = vrot.slane %v4576, %v4711
      %v4713 = vlaneseq
      %v4714 = vshrl.u32 %v4713, 7
      %v4715 = vsub.s32 0, %v4714
      %v4716 = vrot.slane %v4577, %v4715
      %v4717 = vlaneseq
      %v4718 = vshrl.u32 %v4717, 7
      %v4719 = vsub.s32 0, %v4718
      %v4720 = vrot.slane %v4578, %v4719
      %v4721 = vlaneseq
      %v4722 = vshrl.u32 %v4721, 7
      %v4723 = vsub.s32 0, %v4722
      %v4724 = vrot.slane %v4579, %v4723
      %v4725 = vlaneseq
      %v4726 = vshrl.u32 %v4725, 7
      %v4727 = vsub.s32 0, %v4726
      %v4728 = vrot.slane %v4580, %v4727
      %v4729 = vlaneseq
      %v4730 = vshrl.u32 %v4729, 7
      %v4731 = vsub.s32 0, %v4730
      %v4732 = vrot.slane %v4581, %v4731
      %v4733 = vlaneseq
      %v4734 = vshrl.u32 %v4733, 7
      %v4735 = vsub.s32 0, %v4734
      %v4736 = vrot.slane %v4582, %v4735
      %v4737 = vlaneseq
      %v4738 = vshrl.u32 %v4737, 7
      %v4739 = vsub.s32 0, %v4738
      %v4740 = vrot.slane %v4583, %v4739
      %v4741 = vlaneseq
      %v4742 = vshrl.u32 %v4741, 7
      %v4743 = vsub.s32 0, %v4742
      %v4744 = vrot.slane %v4584, %v4743
      %v4745 = vlaneseq
      %v4746 = vshrl.u32 %v4745, 7
      %v4747 = vsub.s32 0, %v4746
      %v4748 = vrot.slane %v4585, %v4747
      %v4749 = vlaneseq
      %v4750 = vshrl.u32 %v4749, 7
      %v4751 = vsub.s32 0, %v4750
      %v4752 = vrot.slane %v4586, %v4751
      %v4753 = vlaneseq
      %v4754 = vshrl.u32 %v4753, 7
      %v4755 = vsub.s32 0, %v4754
      %v4756 = vrot.slane %v4587, %v4755
      %v4757 = vlaneseq
      %v4758 = vshrl.u32 %v4757, 7
      %v4759 = vsub.s32 0, %v4758
      %v4760 = vrot.slane %v4588, %v4759
      %v4761 = vlaneseq
      %v4762 = vshrl.u32 %v4761, 7
      %v4763 = vsub.s32 0, %v4762
      %v4764 = vrot.slane %v4589, %v4763
      %v4765 = vlaneseq
      %v4766 = vshrl.u32 %v4765, 7
      %v4767 = vsub.s32 0, %v4766
      %v4768 = vrot.slane %v4590, %v4767
      %v4769 = vlaneseq
      %v4770 = vshrl.u32 %v4769, 7
      %v4771 = vsub.s32 0, %v4770
      %v4772 = vrot.slane %v4591, %v4771
      %v4773 = vlaneseq
      %v4774 = vshrl.u32 %v4773, 7
      %v4775 = vsub.s32 0, %v4774
      %v4776 = vrot.slane %v4592, %v4775
      %v4777 = vlaneseq
      %v4778 = vshrl.u32 %v4777, 7
      %v4779 = vsub.s32 0, %v4778
      %v4780 = vrot.slane %v4593, %v4779
      %v4781 = vlaneseq
      %v4782 = vshrl.u32 %v4781, 7
      %v4783 = vsub.s32 0, %v4782
      %v4784 = vrot.slane %v4594, %v4783
      %v4785 = vlaneseq
      %v4786 = vshrl.u32 %v4785, 7
      %v4787 = vsub.s32 0, %v4786
      %v4788 = vrot.slane %v4595, %v4787
      %v4789 = vlaneseq
      %v4790 = vshrl.u32 %v4789, 7
      %v4791 = vsub.s32 0, %v4790
      %v4792 = vrot.slane %v4596, %v4791
      %v4793 = vlaneseq
      %v4794 = vshrl.u32 %v4793, 7
      %v4795 = vsub.s32 0, %v4794
      %v4796 = vrot.slane %v4597, %v4795
      %v4797 = vlaneseq
      %v4798 = vshrl.u32 %v4797, 7
      %v4799 = vsub.s32 0, %v4798
      %v4800 = vrot.slane %v4598, %v4799
      %v4801 = vlaneseq
      %v4802 = vshrl.u32 %v4801, 7
      %v4803 = vsub.s32 0, %v4802
      %v4804 = vrot.slane %v4599, %v4803
      %v4805 = vlaneseq
      %v4806 = vshrl.u32 %v4805, 7
      %v4807 = vsub.s32 0, %v4806
      %v4808 = vrot.slane %v4600, %v4807
      %v4809 = vlaneseq
      %v4810 = vshrl.u32 %v4809, 7
      %v4811 = vsub.s32 0, %v4810
      %v4812 = vrot.slane %v4601, %v4811
      %v4813 = vlaneseq
      %v4814 = vshrl.u32 %v4813, 7
      %v4815 = vsub.s32 0, %v4814
      %v4816 = vrot.slane %v4602, %v4815
      %v4817 = vlaneseq
      %v4818 = vshrl.u32 %v4817, 7
      %v4819 = vsub.s32 0, %v4818
      %v4820 = vrot.slane %v4603, %v4819
      %v4821 = vlaneseq
      %v4822 = vshrl.u32 %v4821, 7
      %v4823 = vsub.s32 0, %v4822
      %v4824 = vrot.slane %v4604, %v4823
      %v4825 = vlaneseq
      %v4826 = vshrl.u32 %v4825, 7
      %v4827 = vsub.s32 0, %v4826
      %v4828 = vrot.slane %v4605, %v4827
      %v4829 = vlaneseq
      %v4830 = vshrl.u32 %v4829, 7
      %v4831 = vsub.s32 0, %v4830
      %v4832 = vrot.slane %v4606, %v4831
      %v4833 = vlaneseq
      %v4834 = vshrl.u32 %v4833, 7
      %v4835 = vsub.s32 0, %v4834
      %v4836 = vrot.slane %v4607, %v4835
      %v4837 = vlaneseq
      %v4838 = vshrl.u32 %v4837, 7
      %v4839 = vsub.s32 0, %v4838
      %v4840 = vrot.slane %v4608, %v4839
      %v4841 = vlaneseq
      %v4842 = vshrl.u32 %v4841, 7
      %v4843 = vsub.s32 0, %v4842
      %v4844 = vrot.slane %v4609, %v4843
      %v4845 = vlaneseq
      %v4846 = vshrl.u32 %v4845, 7
      %v4847 = vsub.s32 0, %v4846
      %v4848 = vrot.slane %v4610, %v4847
      %v4849 = vlaneseq
      %v4850 = vshrl.u32 %v4849, 7
      %v4851 = vsub.s32 0, %v4850
      %v4852 = vrot.slane %v4611, %v4851
      %v4853 = vlaneseq
      %v4854 = vshrl.u32 %v4853, 7
      %v4855 = vsub.s32 0, %v4854
      %v4856 = vrot.slane %v4612, %v4855
      %v4857 = vlaneseq
      %v4858 = vshrl.u32 %v4857, 7
      %v4859 = vsub.s32 0, %v4858
      %v4860 = vrot.slane %v4613, %v4859
      %v4861 = vlaneseq
      %v4862 = vshrl.u32 %v4861, 7
      %v4863 = vsub.s32 0, %v4862
      %v4864 = vrot.slane %v4614, %v4863
      %v4865 = vlaneseq
      %v4866 = vshrl.u32 %v4865, 7
      %v4867 = vsub.s32 0, %v4866
      %v4868 = vrot.slane %v4615, %v4867
      %v4869 = vlaneseq
      %v4870 = vshrl.u32 %v4869, 7
      %v4871 = vsub.s32 0, %v4870
      %v4872 = vrot.slane %v4616, %v4871
      %vm4873 = vcmp.eq.s32.totalorder %v4620, 1
      %vm4874 = vcmp.eq.s32.totalorder %v4624, 1
      %vm4875 = vcmp.eq.s32.totalorder %v4628, 1
      %vm4876 = vcmp.eq.s32.totalorder %v4632, 1
      %vm4877 = vcmp.eq.s32.totalorder %v4636, 1
      %vm4878 = vcmp.eq.s32.totalorder %v4640, 1
      %vm4879 = vcmp.eq.s32.totalorder %v4644, 1
      %vm4880 = vcmp.eq.s32.totalorder %v4648, 1
      %vm4881 = vcmp.eq.s32.totalorder %v4652, 1
      %vm4882 = vcmp.eq.s32.totalorder %v4656, 1
      %vm4883 = vcmp.eq.s32.totalorder %v4660, 1
      %vm4884 = vcmp.eq.s32.totalorder %v4664, 1
      %vm4885 = vcmp.eq.s32.totalorder %v4668, 1
      %vm4886 = vcmp.eq.s32.totalorder %v4672, 1
      %vm4887 = vcmp.eq.s32.totalorder %v4676, 1
      %vm4888 = vcmp.eq.s32.totalorder %v4680, 1
      %vm4889 = vcmp.eq.s32.totalorder %v4684, 1
      %vm4890 = vcmp.eq.s32.totalorder %v4688, 1
      %vm4891 = vcmp.eq.s32.totalorder %v4692, 1
      %vm4892 = vcmp.eq.s32.totalorder %v4696, 1
      %vm4893 = vcmp.eq.s32.totalorder %v4700, 1
      %vm4894 = vcmp.eq.s32.totalorder %v4704, 1
      %vm4895 = vcmp.eq.s32.totalorder %v4708, 1
      %vm4896 = vcmp.eq.s32.totalorder %v4712, 1
      %vm4897 = vcmp.eq.s32.totalorder %v4716, 1
      %vm4898 = vcmp.eq.s32.totalorder %v4720, 1
      %vm4899 = vcmp.eq.s32.totalorder %v4724, 1
      %vm4900 = vcmp.eq.s32.totalorder %v4728, 1
      %vm4901 = vcmp.eq.s32.totalorder %v4732, 1
      %vm4902 = vcmp.eq.s32.totalorder %v4736, 1
      %vm4903 = vcmp.eq.s32.totalorder %v4740, 1
      %vm4904 = vcmp.eq.s32.totalorder %v4744, 1
      %vm4905 = vcmp.eq.s32.totalorder %v4748, 1
      %vm4906 = vcmp.eq.s32.totalorder %v4752, 1
      %vm4907 = vcmp.eq.s32.totalorder %v4756, 1
      %vm4908 = vcmp.eq.s32.totalorder %v4760, 1
      %vm4909 = vcmp.eq.s32.totalorder %v4764, 1
      %vm4910 = vcmp.eq.s32.totalorder %v4768, 1
      %vm4911 = vcmp.eq.s32.totalorder %v4772, 1
      %vm4912 = vcmp.eq.s32.totalorder %v4776, 1
      %vm4913 = vcmp.eq.s32.totalorder %v4780, 1
      %vm4914 = vcmp.eq.s32.totalorder %v4784, 1
      %vm4915 = vcmp.eq.s32.totalorder %v4788, 1
      %vm4916 = vcmp.eq.s32.totalorder %v4792, 1
      %vm4917 = vcmp.eq.s32.totalorder %v4796, 1
      %vm4918 = vcmp.eq.s32.totalorder %v4800, 1
      %vm4919 = vcmp.eq.s32.totalorder %v4804, 1
      %vm4920 = vcmp.eq.s32.totalorder %v4808, 1
      %vm4921 = vcmp.eq.s32.totalorder %v4812, 1
      %vm4922 = vcmp.eq.s32.totalorder %v4816, 1
      %vm4923 = vcmp.eq.s32.totalorder %v4820, 1
      %vm4924 = vcmp.eq.s32.totalorder %v4824, 1
      %vm4925 = vcmp.eq.s32.totalorder %v4828, 1
      %vm4926 = vcmp.eq.s32.totalorder %v4832, 1
      %vm4927 = vcmp.eq.s32.totalorder %v4836, 1
      %vm4928 = vcmp.eq.s32.totalorder %v4840, 1
      %vm4929 = vcmp.eq.s32.totalorder %v4844, 1
      %vm4930 = vcmp.eq.s32.totalorder %v4848, 1
      %vm4931 = vcmp.eq.s32.totalorder %v4852, 1
      %vm4932 = vcmp.eq.s32.totalorder %v4856, 1
      %vm4933 = vcmp.eq.s32.totalorder %v4860, 1
      %vm4934 = vcmp.eq.s32.totalorder %v4864, 1
      %vm4935 = vcmp.eq.s32.totalorder %v4868, 1
      %vm4936 = vcmp.eq.s32.totalorder %v4872, 1
      %v4937 = vsel %vm4873, %v4360, 0.0
      %v4938 = vsel %vm4873, %v4361, 0.0
      %v4939 = vsel %vm4874, %v4362, 0.0
      %v4940 = vsel %vm4874, %v4363, 0.0
      %v4941 = vsel %vm4875, %v4364, 0.0
      %v4942 = vsel %vm4875, %v4365, 0.0
      %v4943 = vsel %vm4876, %v4366, 0.0
      %v4944 = vsel %vm4876, %v4367, 0.0
      %v4945 = vsel %vm4877, %v4368, 0.0
      %v4946 = vsel %vm4877, %v4369, 0.0
      %v4947 = vsel %vm4878, %v4370, 0.0
      %v4948 = vsel %vm4878, %v4371, 0.0
      %v4949 = vsel %vm4879, %v4372, 0.0
      %v4950 = vsel %vm4879, %v4373, 0.0
      %v4951 = vsel %vm4880, %v4374, 0.0
      %v4952 = vsel %vm4880, %v4375, 0.0
      %v4953 = vsel %vm4881, %v4376, 0.0
      %v4954 = vsel %vm4881, %v4377, 0.0
      %v4955 = vsel %vm4882, %v4378, 0.0
      %v4956 = vsel %vm4882, %v4379, 0.0
      %v4957 = vsel %vm4883, %v4380, 0.0
      %v4958 = vsel %vm4883, %v4381, 0.0
      %v4959 = vsel %vm4884, %v4382, 0.0
      %v4960 = vsel %vm4884, %v4383, 0.0
      %v4961 = vsel %vm4885, %v4384, 0.0
      %v4962 = vsel %vm4885, %v4385, 0.0
      %v4963 = vsel %vm4886, %v4386, 0.0
      %v4964 = vsel %vm4886, %v4387, 0.0
      %v4965 = vsel %vm4887, %v4388, 0.0
      %v4966 = vsel %vm4887, %v4389, 0.0
      %v4967 = vsel %vm4888, %v4390, 0.0
      %v4968 = vsel %vm4888, %v4391, 0.0
      %v4969 = vsel %vm4889, %v4392, 0.0
      %v4970 = vsel %vm4889, %v4393, 0.0
      %v4971 = vsel %vm4890, %v4394, 0.0
      %v4972 = vsel %vm4890, %v4395, 0.0
      %v4973 = vsel %vm4891, %v4396, 0.0
      %v4974 = vsel %vm4891, %v4397, 0.0
      %v4975 = vsel %vm4892, %v4398, 0.0
      %v4976 = vsel %vm4892, %v4399, 0.0
      %v4977 = vsel %vm4893, %v4400, 0.0
      %v4978 = vsel %vm4893, %v4401, 0.0
      %v4979 = vsel %vm4894, %v4402, 0.0
      %v4980 = vsel %vm4894, %v4403, 0.0
      %v4981 = vsel %vm4895, %v4404, 0.0
      %v4982 = vsel %vm4895, %v4405, 0.0
      %v4983 = vsel %vm4896, %v4406, 0.0
      %v4984 = vsel %vm4896, %v4407, 0.0
      %v4985 = vsel %vm4897, %v4408, 0.0
      %v4986 = vsel %vm4897, %v4409, 0.0
      %v4987 = vsel %vm4898, %v4410, 0.0
      %v4988 = vsel %vm4898, %v4411, 0.0
      %v4989 = vsel %vm4899, %v4412, 0.0
      %v4990 = vsel %vm4899, %v4413, 0.0
      %v4991 = vsel %vm4900, %v4414, 0.0
      %v4992 = vsel %vm4900, %v4415, 0.0
      %v4993 = vsel %vm4901, %v4416, 0.0
      %v4994 = vsel %vm4901, %v4417, 0.0
      %v4995 = vsel %vm4902, %v4418, 0.0
      %v4996 = vsel %vm4902, %v4419, 0.0
      %v4997 = vsel %vm4903, %v4420, 0.0
      %v4998 = vsel %vm4903, %v4421, 0.0
      %v4999 = vsel %vm4904, %v4422, 0.0
      %v5000 = vsel %vm4904, %v4423, 0.0
      %v5001 = vsel %vm4905, %v4424, 0.0
      %v5002 = vsel %vm4905, %v4425, 0.0
      %v5003 = vsel %vm4906, %v4426, 0.0
      %v5004 = vsel %vm4906, %v4427, 0.0
      %v5005 = vsel %vm4907, %v4428, 0.0
      %v5006 = vsel %vm4907, %v4429, 0.0
      %v5007 = vsel %vm4908, %v4430, 0.0
      %v5008 = vsel %vm4908, %v4431, 0.0
      %v5009 = vsel %vm4909, %v4432, 0.0
      %v5010 = vsel %vm4909, %v4433, 0.0
      %v5011 = vsel %vm4910, %v4434, 0.0
      %v5012 = vsel %vm4910, %v4435, 0.0
      %v5013 = vsel %vm4911, %v4436, 0.0
      %v5014 = vsel %vm4911, %v4437, 0.0
      %v5015 = vsel %vm4912, %v4438, 0.0
      %v5016 = vsel %vm4912, %v4439, 0.0
      %v5017 = vsel %vm4913, %v4440, 0.0
      %v5018 = vsel %vm4913, %v4441, 0.0
      %v5019 = vsel %vm4914, %v4442, 0.0
      %v5020 = vsel %vm4914, %v4443, 0.0
      %v5021 = vsel %vm4915, %v4444, 0.0
      %v5022 = vsel %vm4915, %v4445, 0.0
      %v5023 = vsel %vm4916, %v4446, 0.0
      %v5024 = vsel %vm4916, %v4447, 0.0
      %v5025 = vsel %vm4917, %v4448, 0.0
      %v5026 = vsel %vm4917, %v4449, 0.0
      %v5027 = vsel %vm4918, %v4450, 0.0
      %v5028 = vsel %vm4918, %v4451, 0.0
      %v5029 = vsel %vm4919, %v4452, 0.0
      %v5030 = vsel %vm4919, %v4453, 0.0
      %v5031 = vsel %vm4920, %v4454, 0.0
      %v5032 = vsel %vm4920, %v4455, 0.0
      %v5033 = vsel %vm4921, %v4456, 0.0
      %v5034 = vsel %vm4921, %v4457, 0.0
      %v5035 = vsel %vm4922, %v4458, 0.0
      %v5036 = vsel %vm4922, %v4459, 0.0
      %v5037 = vsel %vm4923, %v4460, 0.0
      %v5038 = vsel %vm4923, %v4461, 0.0
      %v5039 = vsel %vm4924, %v4462, 0.0
      %v5040 = vsel %vm4924, %v4463, 0.0
      %v5041 = vsel %vm4925, %v4464, 0.0
      %v5042 = vsel %vm4925, %v4465, 0.0
      %v5043 = vsel %vm4926, %v4466, 0.0
      %v5044 = vsel %vm4926, %v4467, 0.0
      %v5045 = vsel %vm4927, %v4468, 0.0
      %v5046 = vsel %vm4927, %v4469, 0.0
      %v5047 = vsel %vm4928, %v4470, 0.0
      %v5048 = vsel %vm4928, %v4471, 0.0
      %v5049 = vsel %vm4929, %v4472, 0.0
      %v5050 = vsel %vm4929, %v4473, 0.0
      %v5051 = vsel %vm4930, %v4474, 0.0
      %v5052 = vsel %vm4930, %v4475, 0.0
      %v5053 = vsel %vm4931, %v4476, 0.0
      %v5054 = vsel %vm4931, %v4477, 0.0
      %v5055 = vsel %vm4932, %v4478, 0.0
      %v5056 = vsel %vm4932, %v4479, 0.0
      %v5057 = vsel %vm4933, %v4480, 0.0
      %v5058 = vsel %vm4933, %v4481, 0.0
      %v5059 = vsel %vm4934, %v4482, 0.0
      %v5060 = vsel %vm4934, %v4483, 0.0
      %v5061 = vsel %vm4935, %v4484, 0.0
      %v5062 = vsel %vm4935, %v4485, 0.0
      %v5063 = vsel %vm4936, %v4486, 0.0
      %v5064 = vsel %vm4936, %v4487, 0.0
      %vm5065 = vcmask 130048
      %v5066 = vsel %vm5065, %v4937, 0.0
      %5067 = vadd.xlane.f32.xlu0 %v5066
      %v5068 = vpop.xlane.xlu0 %5067
      %v5069 = vsel %vm5065, %v4938, 0.0
      %5070 = vadd.xlane.f32.xlu0 %v5069
      %v5071 = vpop.xlane.xlu0 %5070
      %v5072 = vsel %vm5065, %v4939, 0.0
      %5073 = vadd.xlane.f32.xlu0 %v5072
      %v5074 = vpop.xlane.xlu0 %5073
      %v5075 = vsel %vm5065, %v4940, 0.0
      %5076 = vadd.xlane.f32.xlu0 %v5075
      %v5077 = vpop.xlane.xlu0 %5076
      %v5078 = vsel %vm5065, %v4941, 0.0
      %5079 = vadd.xlane.f32.xlu0 %v5078
      %v5080 = vpop.xlane.xlu0 %5079
      %v5081 = vsel %vm5065, %v4942, 0.0
      %5082 = vadd.xlane.f32.xlu0 %v5081
      %v5083 = vpop.xlane.xlu0 %5082
      %v5084 = vsel %vm5065, %v4943, 0.0
      %5085 = vadd.xlane.f32.xlu0 %v5084
      %v5086 = vpop.xlane.xlu0 %5085
      %v5087 = vsel %vm5065, %v4944, 0.0
      %5088 = vadd.xlane.f32.xlu0 %v5087
      %v5089 = vpop.xlane.xlu0 %5088
      %v5090 = vsel %vm5065, %v4945, 0.0
      %5091 = vadd.xlane.f32.xlu0 %v5090
      %v5092 = vpop.xlane.xlu0 %5091
      %v5093 = vsel %vm5065, %v4946, 0.0
      %5094 = vadd.xlane.f32.xlu0 %v5093
      %v5095 = vpop.xlane.xlu0 %5094
      %v5096 = vsel %vm5065, %v4947, 0.0
      %5097 = vadd.xlane.f32.xlu0 %v5096
      %v5098 = vpop.xlane.xlu0 %5097
      %v5099 = vsel %vm5065, %v4948, 0.0
      %5100 = vadd.xlane.f32.xlu0 %v5099
      %v5101 = vpop.xlane.xlu0 %5100
      %v5102 = vsel %vm5065, %v4949, 0.0
      %5103 = vadd.xlane.f32.xlu0 %v5102
      %v5104 = vpop.xlane.xlu0 %5103
      %v5105 = vsel %vm5065, %v4950, 0.0
      %5106 = vadd.xlane.f32.xlu0 %v5105
      %v5107 = vpop.xlane.xlu0 %5106
      %v5108 = vsel %vm5065, %v4951, 0.0
      %5109 = vadd.xlane.f32.xlu0 %v5108
      %v5110 = vpop.xlane.xlu0 %5109
      %v5111 = vsel %vm5065, %v4952, 0.0
      %5112 = vadd.xlane.f32.xlu0 %v5111
      %v5113 = vpop.xlane.xlu0 %5112
      %v5114 = vsel %vm5065, %v4953, 0.0
      %5115 = vadd.xlane.f32.xlu0 %v5114
      %v5116 = vpop.xlane.xlu0 %5115
      %v5117 = vsel %vm5065, %v4954, 0.0
      %5118 = vadd.xlane.f32.xlu0 %v5117
      %v5119 = vpop.xlane.xlu0 %5118
      %v5120 = vsel %vm5065, %v4955, 0.0
      %5121 = vadd.xlane.f32.xlu0 %v5120
      %v5122 = vpop.xlane.xlu0 %5121
      %v5123 = vsel %vm5065, %v4956, 0.0
      %5124 = vadd.xlane.f32.xlu0 %v5123
      %v5125 = vpop.xlane.xlu0 %5124
      %v5126 = vsel %vm5065, %v4957, 0.0
      %5127 = vadd.xlane.f32.xlu0 %v5126
      %v5128 = vpop.xlane.xlu0 %5127
      %v5129 = vsel %vm5065, %v4958, 0.0
      %5130 = vadd.xlane.f32.xlu0 %v5129
      %v5131 = vpop.xlane.xlu0 %5130
      %v5132 = vsel %vm5065, %v4959, 0.0
      %5133 = vadd.xlane.f32.xlu0 %v5132
      %v5134 = vpop.xlane.xlu0 %5133
      %v5135 = vsel %vm5065, %v4960, 0.0
      %5136 = vadd.xlane.f32.xlu0 %v5135
      %v5137 = vpop.xlane.xlu0 %5136
      %v5138 = vsel %vm5065, %v4961, 0.0
      %5139 = vadd.xlane.f32.xlu0 %v5138
      %v5140 = vpop.xlane.xlu0 %5139
      %v5141 = vsel %vm5065, %v4962, 0.0
      %5142 = vadd.xlane.f32.xlu0 %v5141
      %v5143 = vpop.xlane.xlu0 %5142
      %v5144 = vsel %vm5065, %v4963, 0.0
      %5145 = vadd.xlane.f32.xlu0 %v5144
      %v5146 = vpop.xlane.xlu0 %5145
      %v5147 = vsel %vm5065, %v4964, 0.0
      %5148 = vadd.xlane.f32.xlu0 %v5147
      %v5149 = vpop.xlane.xlu0 %5148
      %v5150 = vsel %vm5065, %v4965, 0.0
      %5151 = vadd.xlane.f32.xlu0 %v5150
      %v5152 = vpop.xlane.xlu0 %5151
      %v5153 = vsel %vm5065, %v4966, 0.0
      %5154 = vadd.xlane.f32.xlu0 %v5153
      %v5155 = vpop.xlane.xlu0 %5154
      %v5156 = vsel %vm5065, %v4967, 0.0
      %5157 = vadd.xlane.f32.xlu0 %v5156
      %v5158 = vpop.xlane.xlu0 %5157
      %v5159 = vsel %vm5065, %v4968, 0.0
      %5160 = vadd.xlane.f32.xlu0 %v5159
      %v5161 = vpop.xlane.xlu0 %5160
      %v5162 = vsel %vm5065, %v4969, 0.0
      %5163 = vadd.xlane.f32.xlu0 %v5162
      %v5164 = vpop.xlane.xlu0 %5163
      %v5165 = vsel %vm5065, %v4970, 0.0
      %5166 = vadd.xlane.f32.xlu0 %v5165
      %v5167 = vpop.xlane.xlu0 %5166
      %v5168 = vsel %vm5065, %v4971, 0.0
      %5169 = vadd.xlane.f32.xlu0 %v5168
      %v5170 = vpop.xlane.xlu0 %5169
      %v5171 = vsel %vm5065, %v4972, 0.0
      %5172 = vadd.xlane.f32.xlu0 %v5171
      %v5173 = vpop.xlane.xlu0 %5172
      %v5174 = vsel %vm5065, %v4973, 0.0
      %5175 = vadd.xlane.f32.xlu0 %v5174
      %v5176 = vpop.xlane.xlu0 %5175
      %v5177 = vsel %vm5065, %v4974, 0.0
      %5178 = vadd.xlane.f32.xlu0 %v5177
      %v5179 = vpop.xlane.xlu0 %5178
      %v5180 = vsel %vm5065, %v4975, 0.0
      %5181 = vadd.xlane.f32.xlu0 %v5180
      %v5182 = vpop.xlane.xlu0 %5181
      %v5183 = vsel %vm5065, %v4976, 0.0
      %5184 = vadd.xlane.f32.xlu0 %v5183
      %v5185 = vpop.xlane.xlu0 %5184
      %v5186 = vsel %vm5065, %v4977, 0.0
      %5187 = vadd.xlane.f32.xlu0 %v5186
      %v5188 = vpop.xlane.xlu0 %5187
      %v5189 = vsel %vm5065, %v4978, 0.0
      %5190 = vadd.xlane.f32.xlu0 %v5189
      %v5191 = vpop.xlane.xlu0 %5190
      %v5192 = vsel %vm5065, %v4979, 0.0
      %5193 = vadd.xlane.f32.xlu0 %v5192
      %v5194 = vpop.xlane.xlu0 %5193
      %v5195 = vsel %vm5065, %v4980, 0.0
      %5196 = vadd.xlane.f32.xlu0 %v5195
      %v5197 = vpop.xlane.xlu0 %5196
      %v5198 = vsel %vm5065, %v4981, 0.0
      %5199 = vadd.xlane.f32.xlu0 %v5198
      %v5200 = vpop.xlane.xlu0 %5199
      %v5201 = vsel %vm5065, %v4982, 0.0
      %5202 = vadd.xlane.f32.xlu0 %v5201
      %v5203 = vpop.xlane.xlu0 %5202
      %v5204 = vsel %vm5065, %v4983, 0.0
      %5205 = vadd.xlane.f32.xlu0 %v5204
      %v5206 = vpop.xlane.xlu0 %5205
      %v5207 = vsel %vm5065, %v4984, 0.0
      %5208 = vadd.xlane.f32.xlu0 %v5207
      %v5209 = vpop.xlane.xlu0 %5208
      %v5210 = vsel %vm5065, %v4985, 0.0
      %5211 = vadd.xlane.f32.xlu0 %v5210
      %v5212 = vpop.xlane.xlu0 %5211
      %v5213 = vsel %vm5065, %v4986, 0.0
      %5214 = vadd.xlane.f32.xlu0 %v5213
      %v5215 = vpop.xlane.xlu0 %5214
      %v5216 = vsel %vm5065, %v4987, 0.0
      %5217 = vadd.xlane.f32.xlu0 %v5216
      %v5218 = vpop.xlane.xlu0 %5217
      %v5219 = vsel %vm5065, %v4988, 0.0
      %5220 = vadd.xlane.f32.xlu0 %v5219
      %v5221 = vpop.xlane.xlu0 %5220
      %v5222 = vsel %vm5065, %v4989, 0.0
      %5223 = vadd.xlane.f32.xlu0 %v5222
      %v5224 = vpop.xlane.xlu0 %5223
      %v5225 = vsel %vm5065, %v4990, 0.0
      %5226 = vadd.xlane.f32.xlu0 %v5225
      %v5227 = vpop.xlane.xlu0 %5226
      %v5228 = vsel %vm5065, %v4991, 0.0
      %5229 = vadd.xlane.f32.xlu0 %v5228
      %v5230 = vpop.xlane.xlu0 %5229
      %v5231 = vsel %vm5065, %v4992, 0.0
      %5232 = vadd.xlane.f32.xlu0 %v5231
      %v5233 = vpop.xlane.xlu0 %5232
      %v5234 = vsel %vm5065, %v4993, 0.0
      %5235 = vadd.xlane.f32.xlu0 %v5234
      %v5236 = vpop.xlane.xlu0 %5235
      %v5237 = vsel %vm5065, %v4994, 0.0
      %5238 = vadd.xlane.f32.xlu0 %v5237
      %v5239 = vpop.xlane.xlu0 %5238
      %v5240 = vsel %vm5065, %v4995, 0.0
      %5241 = vadd.xlane.f32.xlu0 %v5240
      %v5242 = vpop.xlane.xlu0 %5241
      %v5243 = vsel %vm5065, %v4996, 0.0
      %5244 = vadd.xlane.f32.xlu0 %v5243
      %v5245 = vpop.xlane.xlu0 %5244
      %v5246 = vsel %vm5065, %v4997, 0.0
      %5247 = vadd.xlane.f32.xlu0 %v5246
      %v5248 = vpop.xlane.xlu0 %5247
      %v5249 = vsel %vm5065, %v4998, 0.0
      %5250 = vadd.xlane.f32.xlu0 %v5249
      %v5251 = vpop.xlane.xlu0 %5250
      %v5252 = vsel %vm5065, %v4999, 0.0
      %5253 = vadd.xlane.f32.xlu0 %v5252
      %v5254 = vpop.xlane.xlu0 %5253
      %v5255 = vsel %vm5065, %v5000, 0.0
      %5256 = vadd.xlane.f32.xlu0 %v5255
      %v5257 = vpop.xlane.xlu0 %5256
      %v5258 = vsel %vm5065, %v5001, 0.0
      %5259 = vadd.xlane.f32.xlu0 %v5258
      %v5260 = vpop.xlane.xlu0 %5259
      %v5261 = vsel %vm5065, %v5002, 0.0
      %5262 = vadd.xlane.f32.xlu0 %v5261
      %v5263 = vpop.xlane.xlu0 %5262
      %v5264 = vsel %vm5065, %v5003, 0.0
      %5265 = vadd.xlane.f32.xlu0 %v5264
      %v5266 = vpop.xlane.xlu0 %5265
      %v5267 = vsel %vm5065, %v5004, 0.0
      %5268 = vadd.xlane.f32.xlu0 %v5267
      %v5269 = vpop.xlane.xlu0 %5268
      %v5270 = vsel %vm5065, %v5005, 0.0
      %5271 = vadd.xlane.f32.xlu0 %v5270
      %v5272 = vpop.xlane.xlu0 %5271
      %v5273 = vsel %vm5065, %v5006, 0.0
      %5274 = vadd.xlane.f32.xlu0 %v5273
      %v5275 = vpop.xlane.xlu0 %5274
      %v5276 = vsel %vm5065, %v5007, 0.0
      %5277 = vadd.xlane.f32.xlu0 %v5276
      %v5278 = vpop.xlane.xlu0 %5277
      %v5279 = vsel %vm5065, %v5008, 0.0
      %5280 = vadd.xlane.f32.xlu0 %v5279
      %v5281 = vpop.xlane.xlu0 %5280
      %v5282 = vsel %vm5065, %v5009, 0.0
      %5283 = vadd.xlane.f32.xlu0 %v5282
      %v5284 = vpop.xlane.xlu0 %5283
      %v5285 = vsel %vm5065, %v5010, 0.0
      %5286 = vadd.xlane.f32.xlu0 %v5285
      %v5287 = vpop.xlane.xlu0 %5286
      %v5288 = vsel %vm5065, %v5011, 0.0
      %5289 = vadd.xlane.f32.xlu0 %v5288
      %v5290 = vpop.xlane.xlu0 %5289
      %v5291 = vsel %vm5065, %v5012, 0.0
      %5292 = vadd.xlane.f32.xlu0 %v5291
      %v5293 = vpop.xlane.xlu0 %5292
      %v5294 = vsel %vm5065, %v5013, 0.0
      %5295 = vadd.xlane.f32.xlu0 %v5294
      %v5296 = vpop.xlane.xlu0 %5295
      %v5297 = vsel %vm5065, %v5014, 0.0
      %5298 = vadd.xlane.f32.xlu0 %v5297
      %v5299 = vpop.xlane.xlu0 %5298
      %v5300 = vsel %vm5065, %v5015, 0.0
      %5301 = vadd.xlane.f32.xlu0 %v5300
      %v5302 = vpop.xlane.xlu0 %5301
      %v5303 = vsel %vm5065, %v5016, 0.0
      %5304 = vadd.xlane.f32.xlu0 %v5303
      %v5305 = vpop.xlane.xlu0 %5304
      %v5306 = vsel %vm5065, %v5017, 0.0
      %5307 = vadd.xlane.f32.xlu0 %v5306
      %v5308 = vpop.xlane.xlu0 %5307
      %v5309 = vsel %vm5065, %v5018, 0.0
      %5310 = vadd.xlane.f32.xlu0 %v5309
      %v5311 = vpop.xlane.xlu0 %5310
      %v5312 = vsel %vm5065, %v5019, 0.0
      %5313 = vadd.xlane.f32.xlu0 %v5312
      %v5314 = vpop.xlane.xlu0 %5313
      %v5315 = vsel %vm5065, %v5020, 0.0
      %5316 = vadd.xlane.f32.xlu0 %v5315
      %v5317 = vpop.xlane.xlu0 %5316
      %v5318 = vsel %vm5065, %v5021, 0.0
      %5319 = vadd.xlane.f32.xlu0 %v5318
      %v5320 = vpop.xlane.xlu0 %5319
      %v5321 = vsel %vm5065, %v5022, 0.0
      %5322 = vadd.xlane.f32.xlu0 %v5321
      %v5323 = vpop.xlane.xlu0 %5322
      %v5324 = vsel %vm5065, %v5023, 0.0
      %5325 = vadd.xlane.f32.xlu0 %v5324
      %v5326 = vpop.xlane.xlu0 %5325
      %v5327 = vsel %vm5065, %v5024, 0.0
      %5328 = vadd.xlane.f32.xlu0 %v5327
      %v5329 = vpop.xlane.xlu0 %5328
      %v5330 = vsel %vm5065, %v5025, 0.0
      %5331 = vadd.xlane.f32.xlu0 %v5330
      %v5332 = vpop.xlane.xlu0 %5331
      %v5333 = vsel %vm5065, %v5026, 0.0
      %5334 = vadd.xlane.f32.xlu0 %v5333
      %v5335 = vpop.xlane.xlu0 %5334
      %v5336 = vsel %vm5065, %v5027, 0.0
      %5337 = vadd.xlane.f32.xlu0 %v5336
      %v5338 = vpop.xlane.xlu0 %5337
      %v5339 = vsel %vm5065, %v5028, 0.0
      %5340 = vadd.xlane.f32.xlu0 %v5339
      %v5341 = vpop.xlane.xlu0 %5340
      %v5342 = vsel %vm5065, %v5029, 0.0
      %5343 = vadd.xlane.f32.xlu0 %v5342
      %v5344 = vpop.xlane.xlu0 %5343
      %v5345 = vsel %vm5065, %v5030, 0.0
      %5346 = vadd.xlane.f32.xlu0 %v5345
      %v5347 = vpop.xlane.xlu0 %5346
      %v5348 = vsel %vm5065, %v5031, 0.0
      %5349 = vadd.xlane.f32.xlu0 %v5348
      %v5350 = vpop.xlane.xlu0 %5349
      %v5351 = vsel %vm5065, %v5032, 0.0
      %5352 = vadd.xlane.f32.xlu0 %v5351
      %v5353 = vpop.xlane.xlu0 %5352
      %v5354 = vsel %vm5065, %v5033, 0.0
      %5355 = vadd.xlane.f32.xlu0 %v5354
      %v5356 = vpop.xlane.xlu0 %5355
      %v5357 = vsel %vm5065, %v5034, 0.0
      %5358 = vadd.xlane.f32.xlu0 %v5357
      %v5359 = vpop.xlane.xlu0 %5358
      %v5360 = vsel %vm5065, %v5035, 0.0
      %5361 = vadd.xlane.f32.xlu0 %v5360
      %v5362 = vpop.xlane.xlu0 %5361
      %v5363 = vsel %vm5065, %v5036, 0.0
      %5364 = vadd.xlane.f32.xlu0 %v5363
      %v5365 = vpop.xlane.xlu0 %5364
      %v5366 = vsel %vm5065, %v5037, 0.0
      %5367 = vadd.xlane.f32.xlu0 %v5366
      %v5368 = vpop.xlane.xlu0 %5367
      %v5369 = vsel %vm5065, %v5038, 0.0
      %5370 = vadd.xlane.f32.xlu0 %v5369
      %v5371 = vpop.xlane.xlu0 %5370
      %v5372 = vsel %vm5065, %v5039, 0.0
      %5373 = vadd.xlane.f32.xlu0 %v5372
      %v5374 = vpop.xlane.xlu0 %5373
      %v5375 = vsel %vm5065, %v5040, 0.0
      %5376 = vadd.xlane.f32.xlu0 %v5375
      %v5377 = vpop.xlane.xlu0 %5376
      %v5378 = vsel %vm5065, %v5041, 0.0
      %5379 = vadd.xlane.f32.xlu0 %v5378
      %v5380 = vpop.xlane.xlu0 %5379
      %v5381 = vsel %vm5065, %v5042, 0.0
      %5382 = vadd.xlane.f32.xlu0 %v5381
      %v5383 = vpop.xlane.xlu0 %5382
      %v5384 = vsel %vm5065, %v5043, 0.0
      %5385 = vadd.xlane.f32.xlu0 %v5384
      %v5386 = vpop.xlane.xlu0 %5385
      %v5387 = vsel %vm5065, %v5044, 0.0
      %5388 = vadd.xlane.f32.xlu0 %v5387
      %v5389 = vpop.xlane.xlu0 %5388
      %v5390 = vsel %vm5065, %v5045, 0.0
      %5391 = vadd.xlane.f32.xlu0 %v5390
      %v5392 = vpop.xlane.xlu0 %5391
      %v5393 = vsel %vm5065, %v5046, 0.0
      %5394 = vadd.xlane.f32.xlu0 %v5393
      %v5395 = vpop.xlane.xlu0 %5394
      %v5396 = vsel %vm5065, %v5047, 0.0
      %5397 = vadd.xlane.f32.xlu0 %v5396
      %v5398 = vpop.xlane.xlu0 %5397
      %v5399 = vsel %vm5065, %v5048, 0.0
      %5400 = vadd.xlane.f32.xlu0 %v5399
      %v5401 = vpop.xlane.xlu0 %5400
      %v5402 = vsel %vm5065, %v5049, 0.0
      %5403 = vadd.xlane.f32.xlu0 %v5402
      %v5404 = vpop.xlane.xlu0 %5403
      %v5405 = vsel %vm5065, %v5050, 0.0
      %5406 = vadd.xlane.f32.xlu0 %v5405
      %v5407 = vpop.xlane.xlu0 %5406
      %v5408 = vsel %vm5065, %v5051, 0.0
      %5409 = vadd.xlane.f32.xlu0 %v5408
      %v5410 = vpop.xlane.xlu0 %5409
      %v5411 = vsel %vm5065, %v5052, 0.0
      %5412 = vadd.xlane.f32.xlu0 %v5411
      %v5413 = vpop.xlane.xlu0 %5412
      %v5414 = vsel %vm5065, %v5053, 0.0
      %5415 = vadd.xlane.f32.xlu0 %v5414
      %v5416 = vpop.xlane.xlu0 %5415
      %v5417 = vsel %vm5065, %v5054, 0.0
      %5418 = vadd.xlane.f32.xlu0 %v5417
      %v5419 = vpop.xlane.xlu0 %5418
      %v5420 = vsel %vm5065, %v5055, 0.0
      %5421 = vadd.xlane.f32.xlu0 %v5420
      %v5422 = vpop.xlane.xlu0 %5421
      %v5423 = vsel %vm5065, %v5056, 0.0
      %5424 = vadd.xlane.f32.xlu0 %v5423
      %v5425 = vpop.xlane.xlu0 %5424
      %v5426 = vsel %vm5065, %v5057, 0.0
      %5427 = vadd.xlane.f32.xlu0 %v5426
      %v5428 = vpop.xlane.xlu0 %5427
      %v5429 = vsel %vm5065, %v5058, 0.0
      %5430 = vadd.xlane.f32.xlu0 %v5429
      %v5431 = vpop.xlane.xlu0 %5430
      %v5432 = vsel %vm5065, %v5059, 0.0
      %5433 = vadd.xlane.f32.xlu0 %v5432
      %v5434 = vpop.xlane.xlu0 %5433
      %v5435 = vsel %vm5065, %v5060, 0.0
      %5436 = vadd.xlane.f32.xlu0 %v5435
      %v5437 = vpop.xlane.xlu0 %5436
      %v5438 = vsel %vm5065, %v5061, 0.0
      %5439 = vadd.xlane.f32.xlu0 %v5438
      %v5440 = vpop.xlane.xlu0 %5439
      %v5441 = vsel %vm5065, %v5062, 0.0
      %5442 = vadd.xlane.f32.xlu0 %v5441
      %v5443 = vpop.xlane.xlu0 %5442
      %v5444 = vsel %vm5065, %v5063, 0.0
      %5445 = vadd.xlane.f32.xlu0 %v5444
      %v5446 = vpop.xlane.xlu0 %5445
      %v5447 = vsel %vm5065, %v5064, 0.0
      %5448 = vadd.xlane.f32.xlu0 %v5447
      %v5449 = vpop.xlane.xlu0 %5448
      %v5450 = vlaneseq
      %v5451 = vshrl.u32 %v5450, 7
      %v5452 = vsub.s32 0, %v5451
      %v5453 = vrot.slane %v4488, %v5452
      %v5454 = vmul.f32 %v5068, %v5453
      %v5455 = vmul.f32 %v5071, %v5453
      %v5456 = vmul.f32 %v5074, %v5453
      %v5457 = vmul.f32 %v5077, %v5453
      %v5458 = vmul.f32 %v5080, %v5453
      %v5459 = vmul.f32 %v5083, %v5453
      %v5460 = vmul.f32 %v5086, %v5453
      %v5461 = vmul.f32 %v5089, %v5453
      %v5462 = vmul.f32 %v5092, %v5453
      %v5463 = vmul.f32 %v5095, %v5453
      %v5464 = vmul.f32 %v5098, %v5453
      %v5465 = vmul.f32 %v5101, %v5453
      %v5466 = vmul.f32 %v5104, %v5453
      %v5467 = vmul.f32 %v5107, %v5453
      %v5468 = vmul.f32 %v5110, %v5453
      %v5469 = vmul.f32 %v5113, %v5453
      %v5470 = vmul.f32 %v5116, %v5453
      %v5471 = vmul.f32 %v5119, %v5453
      %v5472 = vmul.f32 %v5122, %v5453
      %v5473 = vmul.f32 %v5125, %v5453
      %v5474 = vmul.f32 %v5128, %v5453
      %v5475 = vmul.f32 %v5131, %v5453
      %v5476 = vmul.f32 %v5134, %v5453
      %v5477 = vmul.f32 %v5137, %v5453
      %v5478 = vmul.f32 %v5140, %v5453
      %v5479 = vmul.f32 %v5143, %v5453
      %v5480 = vmul.f32 %v5146, %v5453
      %v5481 = vmul.f32 %v5149, %v5453
      %v5482 = vmul.f32 %v5152, %v5453
      %v5483 = vmul.f32 %v5155, %v5453
      %v5484 = vmul.f32 %v5158, %v5453
      %v5485 = vmul.f32 %v5161, %v5453
      %v5486 = vmul.f32 %v5164, %v5453
      %v5487 = vmul.f32 %v5167, %v5453
      %v5488 = vmul.f32 %v5170, %v5453
      %v5489 = vmul.f32 %v5173, %v5453
      %v5490 = vmul.f32 %v5176, %v5453
      %v5491 = vmul.f32 %v5179, %v5453
      %v5492 = vmul.f32 %v5182, %v5453
      %v5493 = vmul.f32 %v5185, %v5453
      %v5494 = vmul.f32 %v5188, %v5453
      %v5495 = vmul.f32 %v5191, %v5453
      %v5496 = vmul.f32 %v5194, %v5453
      %v5497 = vmul.f32 %v5197, %v5453
      %v5498 = vmul.f32 %v5200, %v5453
      %v5499 = vmul.f32 %v5203, %v5453
      %v5500 = vmul.f32 %v5206, %v5453
      %v5501 = vmul.f32 %v5209, %v5453
      %v5502 = vmul.f32 %v5212, %v5453
      %v5503 = vmul.f32 %v5215, %v5453
      %v5504 = vmul.f32 %v5218, %v5453
      %v5505 = vmul.f32 %v5221, %v5453
      %v5506 = vmul.f32 %v5224, %v5453
      %v5507 = vmul.f32 %v5227, %v5453
      %v5508 = vmul.f32 %v5230, %v5453
      %v5509 = vmul.f32 %v5233, %v5453
      %v5510 = vmul.f32 %v5236, %v5453
      %v5511 = vmul.f32 %v5239, %v5453
      %v5512 = vmul.f32 %v5242, %v5453
      %v5513 = vmul.f32 %v5245, %v5453
      %v5514 = vmul.f32 %v5248, %v5453
      %v5515 = vmul.f32 %v5251, %v5453
      %v5516 = vmul.f32 %v5254, %v5453
      %v5517 = vmul.f32 %v5257, %v5453
      %v5518 = vmul.f32 %v5260, %v5453
      %v5519 = vmul.f32 %v5263, %v5453
      %v5520 = vmul.f32 %v5266, %v5453
      %v5521 = vmul.f32 %v5269, %v5453
      %v5522 = vmul.f32 %v5272, %v5453
      %v5523 = vmul.f32 %v5275, %v5453
      %v5524 = vmul.f32 %v5278, %v5453
      %v5525 = vmul.f32 %v5281, %v5453
      %v5526 = vmul.f32 %v5284, %v5453
      %v5527 = vmul.f32 %v5287, %v5453
      %v5528 = vmul.f32 %v5290, %v5453
      %v5529 = vmul.f32 %v5293, %v5453
      %v5530 = vmul.f32 %v5296, %v5453
      %v5531 = vmul.f32 %v5299, %v5453
      %v5532 = vmul.f32 %v5302, %v5453
      %v5533 = vmul.f32 %v5305, %v5453
      %v5534 = vmul.f32 %v5308, %v5453
      %v5535 = vmul.f32 %v5311, %v5453
      %v5536 = vmul.f32 %v5314, %v5453
      %v5537 = vmul.f32 %v5317, %v5453
      %v5538 = vmul.f32 %v5320, %v5453
      %v5539 = vmul.f32 %v5323, %v5453
      %v5540 = vmul.f32 %v5326, %v5453
      %v5541 = vmul.f32 %v5329, %v5453
      %v5542 = vmul.f32 %v5332, %v5453
      %v5543 = vmul.f32 %v5335, %v5453
      %v5544 = vmul.f32 %v5338, %v5453
      %v5545 = vmul.f32 %v5341, %v5453
      %v5546 = vmul.f32 %v5344, %v5453
      %v5547 = vmul.f32 %v5347, %v5453
      %v5548 = vmul.f32 %v5350, %v5453
      %v5549 = vmul.f32 %v5353, %v5453
      %v5550 = vmul.f32 %v5356, %v5453
      %v5551 = vmul.f32 %v5359, %v5453
      %v5552 = vmul.f32 %v5362, %v5453
      %v5553 = vmul.f32 %v5365, %v5453
      %v5554 = vmul.f32 %v5368, %v5453
      %v5555 = vmul.f32 %v5371, %v5453
      %v5556 = vmul.f32 %v5374, %v5453
      %v5557 = vmul.f32 %v5377, %v5453
      %v5558 = vmul.f32 %v5380, %v5453
      %v5559 = vmul.f32 %v5383, %v5453
      %v5560 = vmul.f32 %v5386, %v5453
      %v5561 = vmul.f32 %v5389, %v5453
      %v5562 = vmul.f32 %v5392, %v5453
      %v5563 = vmul.f32 %v5395, %v5453
      %v5564 = vmul.f32 %v5398, %v5453
      %v5565 = vmul.f32 %v5401, %v5453
      %v5566 = vmul.f32 %v5404, %v5453
      %v5567 = vmul.f32 %v5407, %v5453
      %v5568 = vmul.f32 %v5410, %v5453
      %v5569 = vmul.f32 %v5413, %v5453
      %v5570 = vmul.f32 %v5416, %v5453
      %v5571 = vmul.f32 %v5419, %v5453
      %v5572 = vmul.f32 %v5422, %v5453
      %v5573 = vmul.f32 %v5425, %v5453
      %v5574 = vmul.f32 %v5428, %v5453
      %v5575 = vmul.f32 %v5431, %v5453
      %v5576 = vmul.f32 %v5434, %v5453
      %v5577 = vmul.f32 %v5437, %v5453
      %v5578 = vmul.f32 %v5440, %v5453
      %v5579 = vmul.f32 %v5443, %v5453
      %v5580 = vmul.f32 %v5446, %v5453
      %v5581 = vmul.f32 %v5449, %v5453
      %vm5582 = vcmp.eq.s32.totalorder %v573, 1
      %vm5583 = vcmp.eq.s32.totalorder %v574, 1
      %vm5584 = vcmp.eq.s32.totalorder %v575, 1
      %vm5585 = vcmp.eq.s32.totalorder %v576, 1
      %vm5586 = vcmp.eq.s32.totalorder %v577, 1
      %vm5587 = vcmp.eq.s32.totalorder %v578, 1
      %vm5588 = vcmp.eq.s32.totalorder %v579, 1
      %vm5589 = vcmp.eq.s32.totalorder %v580, 1
      %vm5590 = vcmp.eq.s32.totalorder %v581, 1
      %vm5591 = vcmp.eq.s32.totalorder %v582, 1
      %vm5592 = vcmp.eq.s32.totalorder %v583, 1
      %vm5593 = vcmp.eq.s32.totalorder %v584, 1
      %vm5594 = vcmp.eq.s32.totalorder %v585, 1
      %vm5595 = vcmp.eq.s32.totalorder %v586, 1
      %vm5596 = vcmp.eq.s32.totalorder %v587, 1
      %vm5597 = vcmp.eq.s32.totalorder %v588, 1
      %vm5598 = vcmp.eq.s32.totalorder %v589, 1
      %vm5599 = vcmp.eq.s32.totalorder %v590, 1
      %vm5600 = vcmp.eq.s32.totalorder %v591, 1
      %vm5601 = vcmp.eq.s32.totalorder %v592, 1
      %vm5602 = vcmp.eq.s32.totalorder %v593, 1
      %vm5603 = vcmp.eq.s32.totalorder %v594, 1
      %vm5604 = vcmp.eq.s32.totalorder %v595, 1
      %vm5605 = vcmp.eq.s32.totalorder %v596, 1
      %vm5606 = vcmp.eq.s32.totalorder %v597, 1
      %vm5607 = vcmp.eq.s32.totalorder %v598, 1
      %vm5608 = vcmp.eq.s32.totalorder %v599, 1
      %vm5609 = vcmp.eq.s32.totalorder %v600, 1
      %vm5610 = vcmp.eq.s32.totalorder %v601, 1
      %vm5611 = vcmp.eq.s32.totalorder %v602, 1
      %vm5612 = vcmp.eq.s32.totalorder %v603, 1
      %vm5613 = vcmp.eq.s32.totalorder %v604, 1
      %vm5614 = vcmp.eq.s32.totalorder %v605, 1
      %vm5615 = vcmp.eq.s32.totalorder %v606, 1
      %vm5616 = vcmp.eq.s32.totalorder %v607, 1
      %vm5617 = vcmp.eq.s32.totalorder %v608, 1
      %vm5618 = vcmp.eq.s32.totalorder %v609, 1
      %vm5619 = vcmp.eq.s32.totalorder %v610, 1
      %vm5620 = vcmp.eq.s32.totalorder %v611, 1
      %vm5621 = vcmp.eq.s32.totalorder %v612, 1
      %vm5622 = vcmp.eq.s32.totalorder %v613, 1
      %vm5623 = vcmp.eq.s32.totalorder %v614, 1
      %vm5624 = vcmp.eq.s32.totalorder %v615, 1
      %vm5625 = vcmp.eq.s32.totalorder %v616, 1
      %vm5626 = vcmp.eq.s32.totalorder %v617, 1
      %vm5627 = vcmp.eq.s32.totalorder %v618, 1
      %vm5628 = vcmp.eq.s32.totalorder %v619, 1
      %vm5629 = vcmp.eq.s32.totalorder %v620, 1
      %vm5630 = vcmp.eq.s32.totalorder %v621, 1
      %vm5631 = vcmp.eq.s32.totalorder %v622, 1
      %vm5632 = vcmp.eq.s32.totalorder %v623, 1
      %vm5633 = vcmp.eq.s32.totalorder %v624, 1
      %vm5634 = vcmp.eq.s32.totalorder %v625, 1
      %vm5635 = vcmp.eq.s32.totalorder %v626, 1
      %vm5636 = vcmp.eq.s32.totalorder %v627, 1
      %vm5637 = vcmp.eq.s32.totalorder %v628, 1
      %vm5638 = vcmp.eq.s32.totalorder %v629, 1
      %vm5639 = vcmp.eq.s32.totalorder %v630, 1
      %vm5640 = vcmp.eq.s32.totalorder %v631, 1
      %vm5641 = vcmp.eq.s32.totalorder %v632, 1
      %vm5642 = vcmp.eq.s32.totalorder %v633, 1
      %vm5643 = vcmp.eq.s32.totalorder %v634, 1
      %vm5644 = vcmp.eq.s32.totalorder %v635, 1
      %vm5645 = vcmp.eq.s32.totalorder %v636, 1
      %v5646 = vsel %vm5582, 1, 0
      %v5647 = vsel %vm5583, 1, 0
      %v5648 = vsel %vm5584, 1, 0
      %v5649 = vsel %vm5585, 1, 0
      %v5650 = vsel %vm5586, 1, 0
      %v5651 = vsel %vm5587, 1, 0
      %v5652 = vsel %vm5588, 1, 0
      %v5653 = vsel %vm5589, 1, 0
      %v5654 = vsel %vm5590, 1, 0
      %v5655 = vsel %vm5591, 1, 0
      %v5656 = vsel %vm5592, 1, 0
      %v5657 = vsel %vm5593, 1, 0
      %v5658 = vsel %vm5594, 1, 0
      %v5659 = vsel %vm5595, 1, 0
      %v5660 = vsel %vm5596, 1, 0
      %v5661 = vsel %vm5597, 1, 0
      %v5662 = vsel %vm5598, 1, 0
      %v5663 = vsel %vm5599, 1, 0
      %v5664 = vsel %vm5600, 1, 0
      %v5665 = vsel %vm5601, 1, 0
      %v5666 = vsel %vm5602, 1, 0
      %v5667 = vsel %vm5603, 1, 0
      %v5668 = vsel %vm5604, 1, 0
      %v5669 = vsel %vm5605, 1, 0
      %v5670 = vsel %vm5606, 1, 0
      %v5671 = vsel %vm5607, 1, 0
      %v5672 = vsel %vm5608, 1, 0
      %v5673 = vsel %vm5609, 1, 0
      %v5674 = vsel %vm5610, 1, 0
      %v5675 = vsel %vm5611, 1, 0
      %v5676 = vsel %vm5612, 1, 0
      %v5677 = vsel %vm5613, 1, 0
      %v5678 = vsel %vm5614, 1, 0
      %v5679 = vsel %vm5615, 1, 0
      %v5680 = vsel %vm5616, 1, 0
      %v5681 = vsel %vm5617, 1, 0
      %v5682 = vsel %vm5618, 1, 0
      %v5683 = vsel %vm5619, 1, 0
      %v5684 = vsel %vm5620, 1, 0
      %v5685 = vsel %vm5621, 1, 0
      %v5686 = vsel %vm5622, 1, 0
      %v5687 = vsel %vm5623, 1, 0
      %v5688 = vsel %vm5624, 1, 0
      %v5689 = vsel %vm5625, 1, 0
      %v5690 = vsel %vm5626, 1, 0
      %v5691 = vsel %vm5627, 1, 0
      %v5692 = vsel %vm5628, 1, 0
      %v5693 = vsel %vm5629, 1, 0
      %v5694 = vsel %vm5630, 1, 0
      %v5695 = vsel %vm5631, 1, 0
      %v5696 = vsel %vm5632, 1, 0
      %v5697 = vsel %vm5633, 1, 0
      %v5698 = vsel %vm5634, 1, 0
      %v5699 = vsel %vm5635, 1, 0
      %v5700 = vsel %vm5636, 1, 0
      %v5701 = vsel %vm5637, 1, 0
      %v5702 = vsel %vm5638, 1, 0
      %v5703 = vsel %vm5639, 1, 0
      %v5704 = vsel %vm5640, 1, 0
      %v5705 = vsel %vm5641, 1, 0
      %v5706 = vsel %vm5642, 1, 0
      %v5707 = vsel %vm5643, 1, 0
      %v5708 = vsel %vm5644, 1, 0
      %v5709 = vsel %vm5645, 1, 0
      %v5710 = vlaneseq
      %v5711 = vshrl.u32 %v5710, 7
      %v5712 = vsub.s32 0, %v5711
      %v5713 = vrot.slane %v5646, %v5712
      %v5714 = vlaneseq
      %v5715 = vshrl.u32 %v5714, 7
      %v5716 = vsub.s32 0, %v5715
      %v5717 = vrot.slane %v5647, %v5716
      %v5718 = vlaneseq
      %v5719 = vshrl.u32 %v5718, 7
      %v5720 = vsub.s32 0, %v5719
      %v5721 = vrot.slane %v5648, %v5720
      %v5722 = vlaneseq
      %v5723 = vshrl.u32 %v5722, 7
      %v5724 = vsub.s32 0, %v5723
      %v5725 = vrot.slane %v5649, %v5724
      %v5726 = vlaneseq
      %v5727 = vshrl.u32 %v5726, 7
      %v5728 = vsub.s32 0, %v5727
      %v5729 = vrot.slane %v5650, %v5728
      %v5730 = vlaneseq
      %v5731 = vshrl.u32 %v5730, 7
      %v5732 = vsub.s32 0, %v5731
      %v5733 = vrot.slane %v5651, %v5732
      %v5734 = vlaneseq
      %v5735 = vshrl.u32 %v5734, 7
      %v5736 = vsub.s32 0, %v5735
      %v5737 = vrot.slane %v5652, %v5736
      %v5738 = vlaneseq
      %v5739 = vshrl.u32 %v5738, 7
      %v5740 = vsub.s32 0, %v5739
      %v5741 = vrot.slane %v5653, %v5740
      %v5742 = vlaneseq
      %v5743 = vshrl.u32 %v5742, 7
      %v5744 = vsub.s32 0, %v5743
      %v5745 = vrot.slane %v5654, %v5744
      %v5746 = vlaneseq
      %v5747 = vshrl.u32 %v5746, 7
      %v5748 = vsub.s32 0, %v5747
      %v5749 = vrot.slane %v5655, %v5748
      %v5750 = vlaneseq
      %v5751 = vshrl.u32 %v5750, 7
      %v5752 = vsub.s32 0, %v5751
      %v5753 = vrot.slane %v5656, %v5752
      %v5754 = vlaneseq
      %v5755 = vshrl.u32 %v5754, 7
      %v5756 = vsub.s32 0, %v5755
      %v5757 = vrot.slane %v5657, %v5756
      %v5758 = vlaneseq
      %v5759 = vshrl.u32 %v5758, 7
      %v5760 = vsub.s32 0, %v5759
      %v5761 = vrot.slane %v5658, %v5760
      %v5762 = vlaneseq
      %v5763 = vshrl.u32 %v5762, 7
      %v5764 = vsub.s32 0, %v5763
      %v5765 = vrot.slane %v5659, %v5764
      %v5766 = vlaneseq
      %v5767 = vshrl.u32 %v5766, 7
      %v5768 = vsub.s32 0, %v5767
      %v5769 = vrot.slane %v5660, %v5768
      %v5770 = vlaneseq
      %v5771 = vshrl.u32 %v5770, 7
      %v5772 = vsub.s32 0, %v5771
      %v5773 = vrot.slane %v5661, %v5772
      %v5774 = vlaneseq
      %v5775 = vshrl.u32 %v5774, 7
      %v5776 = vsub.s32 0, %v5775
      %v5777 = vrot.slane %v5662, %v5776
      %v5778 = vlaneseq
      %v5779 = vshrl.u32 %v5778, 7
      %v5780 = vsub.s32 0, %v5779
      %v5781 = vrot.slane %v5663, %v5780
      %v5782 = vlaneseq
      %v5783 = vshrl.u32 %v5782, 7
      %v5784 = vsub.s32 0, %v5783
      %v5785 = vrot.slane %v5664, %v5784
      %v5786 = vlaneseq
      %v5787 = vshrl.u32 %v5786, 7
      %v5788 = vsub.s32 0, %v5787
      %v5789 = vrot.slane %v5665, %v5788
      %v5790 = vlaneseq
      %v5791 = vshrl.u32 %v5790, 7
      %v5792 = vsub.s32 0, %v5791
      %v5793 = vrot.slane %v5666, %v5792
      %v5794 = vlaneseq
      %v5795 = vshrl.u32 %v5794, 7
      %v5796 = vsub.s32 0, %v5795
      %v5797 = vrot.slane %v5667, %v5796
      %v5798 = vlaneseq
      %v5799 = vshrl.u32 %v5798, 7
      %v5800 = vsub.s32 0, %v5799
      %v5801 = vrot.slane %v5668, %v5800
      %v5802 = vlaneseq
      %v5803 = vshrl.u32 %v5802, 7
      %v5804 = vsub.s32 0, %v5803
      %v5805 = vrot.slane %v5669, %v5804
      %v5806 = vlaneseq
      %v5807 = vshrl.u32 %v5806, 7
      %v5808 = vsub.s32 0, %v5807
      %v5809 = vrot.slane %v5670, %v5808
      %v5810 = vlaneseq
      %v5811 = vshrl.u32 %v5810, 7
      %v5812 = vsub.s32 0, %v5811
      %v5813 = vrot.slane %v5671, %v5812
      %v5814 = vlaneseq
      %v5815 = vshrl.u32 %v5814, 7
      %v5816 = vsub.s32 0, %v5815
      %v5817 = vrot.slane %v5672, %v5816
      %v5818 = vlaneseq
      %v5819 = vshrl.u32 %v5818, 7
      %v5820 = vsub.s32 0, %v5819
      %v5821 = vrot.slane %v5673, %v5820
      %v5822 = vlaneseq
      %v5823 = vshrl.u32 %v5822, 7
      %v5824 = vsub.s32 0, %v5823
      %v5825 = vrot.slane %v5674, %v5824
      %v5826 = vlaneseq
      %v5827 = vshrl.u32 %v5826, 7
      %v5828 = vsub.s32 0, %v5827
      %v5829 = vrot.slane %v5675, %v5828
      %v5830 = vlaneseq
      %v5831 = vshrl.u32 %v5830, 7
      %v5832 = vsub.s32 0, %v5831
      %v5833 = vrot.slane %v5676, %v5832
      %v5834 = vlaneseq
      %v5835 = vshrl.u32 %v5834, 7
      %v5836 = vsub.s32 0, %v5835
      %v5837 = vrot.slane %v5677, %v5836
      %v5838 = vlaneseq
      %v5839 = vshrl.u32 %v5838, 7
      %v5840 = vsub.s32 0, %v5839
      %v5841 = vrot.slane %v5678, %v5840
      %v5842 = vlaneseq
      %v5843 = vshrl.u32 %v5842, 7
      %v5844 = vsub.s32 0, %v5843
      %v5845 = vrot.slane %v5679, %v5844
      %v5846 = vlaneseq
      %v5847 = vshrl.u32 %v5846, 7
      %v5848 = vsub.s32 0, %v5847
      %v5849 = vrot.slane %v5680, %v5848
      %v5850 = vlaneseq
      %v5851 = vshrl.u32 %v5850, 7
      %v5852 = vsub.s32 0, %v5851
      %v5853 = vrot.slane %v5681, %v5852
      %v5854 = vlaneseq
      %v5855 = vshrl.u32 %v5854, 7
      %v5856 = vsub.s32 0, %v5855
      %v5857 = vrot.slane %v5682, %v5856
      %v5858 = vlaneseq
      %v5859 = vshrl.u32 %v5858, 7
      %v5860 = vsub.s32 0, %v5859
      %v5861 = vrot.slane %v5683, %v5860
      %v5862 = vlaneseq
      %v5863 = vshrl.u32 %v5862, 7
      %v5864 = vsub.s32 0, %v5863
      %v5865 = vrot.slane %v5684, %v5864
      %v5866 = vlaneseq
      %v5867 = vshrl.u32 %v5866, 7
      %v5868 = vsub.s32 0, %v5867
      %v5869 = vrot.slane %v5685, %v5868
      %v5870 = vlaneseq
      %v5871 = vshrl.u32 %v5870, 7
      %v5872 = vsub.s32 0, %v5871
      %v5873 = vrot.slane %v5686, %v5872
      %v5874 = vlaneseq
      %v5875 = vshrl.u32 %v5874, 7
      %v5876 = vsub.s32 0, %v5875
      %v5877 = vrot.slane %v5687, %v5876
      %v5878 = vlaneseq
      %v5879 = vshrl.u32 %v5878, 7
      %v5880 = vsub.s32 0, %v5879
      %v5881 = vrot.slane %v5688, %v5880
      %v5882 = vlaneseq
      %v5883 = vshrl.u32 %v5882, 7
      %v5884 = vsub.s32 0, %v5883
      %v5885 = vrot.slane %v5689, %v5884
      %v5886 = vlaneseq
      %v5887 = vshrl.u32 %v5886, 7
      %v5888 = vsub.s32 0, %v5887
      %v5889 = vrot.slane %v5690, %v5888
      %v5890 = vlaneseq
      %v5891 = vshrl.u32 %v5890, 7
      %v5892 = vsub.s32 0, %v5891
      %v5893 = vrot.slane %v5691, %v5892
      %v5894 = vlaneseq
      %v5895 = vshrl.u32 %v5894, 7
      %v5896 = vsub.s32 0, %v5895
      %v5897 = vrot.slane %v5692, %v5896
      %v5898 = vlaneseq
      %v5899 = vshrl.u32 %v5898, 7
      %v5900 = vsub.s32 0, %v5899
      %v5901 = vrot.slane %v5693, %v5900
      %v5902 = vlaneseq
      %v5903 = vshrl.u32 %v5902, 7
      %v5904 = vsub.s32 0, %v5903
      %v5905 = vrot.slane %v5694, %v5904
      %v5906 = vlaneseq
      %v5907 = vshrl.u32 %v5906, 7
      %v5908 = vsub.s32 0, %v5907
      %v5909 = vrot.slane %v5695, %v5908
      %v5910 = vlaneseq
      %v5911 = vshrl.u32 %v5910, 7
      %v5912 = vsub.s32 0, %v5911
      %v5913 = vrot.slane %v5696, %v5912
      %v5914 = vlaneseq
      %v5915 = vshrl.u32 %v5914, 7
      %v5916 = vsub.s32 0, %v5915
      %v5917 = vrot.slane %v5697, %v5916
      %v5918 = vlaneseq
      %v5919 = vshrl.u32 %v5918, 7
      %v5920 = vsub.s32 0, %v5919
      %v5921 = vrot.slane %v5698, %v5920
      %v5922 = vlaneseq
      %v5923 = vshrl.u32 %v5922, 7
      %v5924 = vsub.s32 0, %v5923
      %v5925 = vrot.slane %v5699, %v5924
      %v5926 = vlaneseq
      %v5927 = vshrl.u32 %v5926, 7
      %v5928 = vsub.s32 0, %v5927
      %v5929 = vrot.slane %v5700, %v5928
      %v5930 = vlaneseq
      %v5931 = vshrl.u32 %v5930, 7
      %v5932 = vsub.s32 0, %v5931
      %v5933 = vrot.slane %v5701, %v5932
      %v5934 = vlaneseq
      %v5935 = vshrl.u32 %v5934, 7
      %v5936 = vsub.s32 0, %v5935
      %v5937 = vrot.slane %v5702, %v5936
      %v5938 = vlaneseq
      %v5939 = vshrl.u32 %v5938, 7
      %v5940 = vsub.s32 0, %v5939
      %v5941 = vrot.slane %v5703, %v5940
      %v5942 = vlaneseq
      %v5943 = vshrl.u32 %v5942, 7
      %v5944 = vsub.s32 0, %v5943
      %v5945 = vrot.slane %v5704, %v5944
      %v5946 = vlaneseq
      %v5947 = vshrl.u32 %v5946, 7
      %v5948 = vsub.s32 0, %v5947
      %v5949 = vrot.slane %v5705, %v5948
      %v5950 = vlaneseq
      %v5951 = vshrl.u32 %v5950, 7
      %v5952 = vsub.s32 0, %v5951
      %v5953 = vrot.slane %v5706, %v5952
      %v5954 = vlaneseq
      %v5955 = vshrl.u32 %v5954, 7
      %v5956 = vsub.s32 0, %v5955
      %v5957 = vrot.slane %v5707, %v5956
      %v5958 = vlaneseq
      %v5959 = vshrl.u32 %v5958, 7
      %v5960 = vsub.s32 0, %v5959
      %v5961 = vrot.slane %v5708, %v5960
      %v5962 = vlaneseq
      %v5963 = vshrl.u32 %v5962, 7
      %v5964 = vsub.s32 0, %v5963
      %v5965 = vrot.slane %v5709, %v5964
      %vm5966 = vcmp.eq.s32.totalorder %v5713, 1
      %vm5967 = vcmp.eq.s32.totalorder %v5717, 1
      %vm5968 = vcmp.eq.s32.totalorder %v5721, 1
      %vm5969 = vcmp.eq.s32.totalorder %v5725, 1
      %vm5970 = vcmp.eq.s32.totalorder %v5729, 1
      %vm5971 = vcmp.eq.s32.totalorder %v5733, 1
      %vm5972 = vcmp.eq.s32.totalorder %v5737, 1
      %vm5973 = vcmp.eq.s32.totalorder %v5741, 1
      %vm5974 = vcmp.eq.s32.totalorder %v5745, 1
      %vm5975 = vcmp.eq.s32.totalorder %v5749, 1
      %vm5976 = vcmp.eq.s32.totalorder %v5753, 1
      %vm5977 = vcmp.eq.s32.totalorder %v5757, 1
      %vm5978 = vcmp.eq.s32.totalorder %v5761, 1
      %vm5979 = vcmp.eq.s32.totalorder %v5765, 1
      %vm5980 = vcmp.eq.s32.totalorder %v5769, 1
      %vm5981 = vcmp.eq.s32.totalorder %v5773, 1
      %vm5982 = vcmp.eq.s32.totalorder %v5777, 1
      %vm5983 = vcmp.eq.s32.totalorder %v5781, 1
      %vm5984 = vcmp.eq.s32.totalorder %v5785, 1
      %vm5985 = vcmp.eq.s32.totalorder %v5789, 1
      %vm5986 = vcmp.eq.s32.totalorder %v5793, 1
      %vm5987 = vcmp.eq.s32.totalorder %v5797, 1
      %vm5988 = vcmp.eq.s32.totalorder %v5801, 1
      %vm5989 = vcmp.eq.s32.totalorder %v5805, 1
      %vm5990 = vcmp.eq.s32.totalorder %v5809, 1
      %vm5991 = vcmp.eq.s32.totalorder %v5813, 1
      %vm5992 = vcmp.eq.s32.totalorder %v5817, 1
      %vm5993 = vcmp.eq.s32.totalorder %v5821, 1
      %vm5994 = vcmp.eq.s32.totalorder %v5825, 1
      %vm5995 = vcmp.eq.s32.totalorder %v5829, 1
      %vm5996 = vcmp.eq.s32.totalorder %v5833, 1
      %vm5997 = vcmp.eq.s32.totalorder %v5837, 1
      %vm5998 = vcmp.eq.s32.totalorder %v5841, 1
      %vm5999 = vcmp.eq.s32.totalorder %v5845, 1
      %vm6000 = vcmp.eq.s32.totalorder %v5849, 1
      %vm6001 = vcmp.eq.s32.totalorder %v5853, 1
      %vm6002 = vcmp.eq.s32.totalorder %v5857, 1
      %vm6003 = vcmp.eq.s32.totalorder %v5861, 1
      %vm6004 = vcmp.eq.s32.totalorder %v5865, 1
      %vm6005 = vcmp.eq.s32.totalorder %v5869, 1
      %vm6006 = vcmp.eq.s32.totalorder %v5873, 1
      %vm6007 = vcmp.eq.s32.totalorder %v5877, 1
      %vm6008 = vcmp.eq.s32.totalorder %v5881, 1
      %vm6009 = vcmp.eq.s32.totalorder %v5885, 1
      %vm6010 = vcmp.eq.s32.totalorder %v5889, 1
      %vm6011 = vcmp.eq.s32.totalorder %v5893, 1
      %vm6012 = vcmp.eq.s32.totalorder %v5897, 1
      %vm6013 = vcmp.eq.s32.totalorder %v5901, 1
      %vm6014 = vcmp.eq.s32.totalorder %v5905, 1
      %vm6015 = vcmp.eq.s32.totalorder %v5909, 1
      %vm6016 = vcmp.eq.s32.totalorder %v5913, 1
      %vm6017 = vcmp.eq.s32.totalorder %v5917, 1
      %vm6018 = vcmp.eq.s32.totalorder %v5921, 1
      %vm6019 = vcmp.eq.s32.totalorder %v5925, 1
      %vm6020 = vcmp.eq.s32.totalorder %v5929, 1
      %vm6021 = vcmp.eq.s32.totalorder %v5933, 1
      %vm6022 = vcmp.eq.s32.totalorder %v5937, 1
      %vm6023 = vcmp.eq.s32.totalorder %v5941, 1
      %vm6024 = vcmp.eq.s32.totalorder %v5945, 1
      %vm6025 = vcmp.eq.s32.totalorder %v5949, 1
      %vm6026 = vcmp.eq.s32.totalorder %v5953, 1
      %vm6027 = vcmp.eq.s32.totalorder %v5957, 1
      %vm6028 = vcmp.eq.s32.totalorder %v5961, 1
      %vm6029 = vcmp.eq.s32.totalorder %v5965, 1
      %v6030 = vsel %vm5966, %v4360, 0.0
      %v6031 = vsel %vm5966, %v4361, 0.0
      %v6032 = vsel %vm5967, %v4362, 0.0
      %v6033 = vsel %vm5967, %v4363, 0.0
      %v6034 = vsel %vm5968, %v4364, 0.0
      %v6035 = vsel %vm5968, %v4365, 0.0
      %v6036 = vsel %vm5969, %v4366, 0.0
      %v6037 = vsel %vm5969, %v4367, 0.0
      %v6038 = vsel %vm5970, %v4368, 0.0
      %v6039 = vsel %vm5970, %v4369, 0.0
      %v6040 = vsel %vm5971, %v4370, 0.0
      %v6041 = vsel %vm5971, %v4371, 0.0
      %v6042 = vsel %vm5972, %v4372, 0.0
      %v6043 = vsel %vm5972, %v4373, 0.0
      %v6044 = vsel %vm5973, %v4374, 0.0
      %v6045 = vsel %vm5973, %v4375, 0.0
      %v6046 = vsel %vm5974, %v4376, 0.0
      %v6047 = vsel %vm5974, %v4377, 0.0
      %v6048 = vsel %vm5975, %v4378, 0.0
      %v6049 = vsel %vm5975, %v4379, 0.0
      %v6050 = vsel %vm5976, %v4380, 0.0
      %v6051 = vsel %vm5976, %v4381, 0.0
      %v6052 = vsel %vm5977, %v4382, 0.0
      %v6053 = vsel %vm5977, %v4383, 0.0
      %v6054 = vsel %vm5978, %v4384, 0.0
      %v6055 = vsel %vm5978, %v4385, 0.0
      %v6056 = vsel %vm5979, %v4386, 0.0
      %v6057 = vsel %vm5979, %v4387, 0.0
      %v6058 = vsel %vm5980, %v4388, 0.0
      %v6059 = vsel %vm5980, %v4389, 0.0
      %v6060 = vsel %vm5981, %v4390, 0.0
      %v6061 = vsel %vm5981, %v4391, 0.0
      %v6062 = vsel %vm5982, %v4392, 0.0
      %v6063 = vsel %vm5982, %v4393, 0.0
      %v6064 = vsel %vm5983, %v4394, 0.0
      %v6065 = vsel %vm5983, %v4395, 0.0
      %v6066 = vsel %vm5984, %v4396, 0.0
      %v6067 = vsel %vm5984, %v4397, 0.0
      %v6068 = vsel %vm5985, %v4398, 0.0
      %v6069 = vsel %vm5985, %v4399, 0.0
      %v6070 = vsel %vm5986, %v4400, 0.0
      %v6071 = vsel %vm5986, %v4401, 0.0
      %v6072 = vsel %vm5987, %v4402, 0.0
      %v6073 = vsel %vm5987, %v4403, 0.0
      %v6074 = vsel %vm5988, %v4404, 0.0
      %v6075 = vsel %vm5988, %v4405, 0.0
      %v6076 = vsel %vm5989, %v4406, 0.0
      %v6077 = vsel %vm5989, %v4407, 0.0
      %v6078 = vsel %vm5990, %v4408, 0.0
      %v6079 = vsel %vm5990, %v4409, 0.0
      %v6080 = vsel %vm5991, %v4410, 0.0
      %v6081 = vsel %vm5991, %v4411, 0.0
      %v6082 = vsel %vm5992, %v4412, 0.0
      %v6083 = vsel %vm5992, %v4413, 0.0
      %v6084 = vsel %vm5993, %v4414, 0.0
      %v6085 = vsel %vm5993, %v4415, 0.0
      %v6086 = vsel %vm5994, %v4416, 0.0
      %v6087 = vsel %vm5994, %v4417, 0.0
      %v6088 = vsel %vm5995, %v4418, 0.0
      %v6089 = vsel %vm5995, %v4419, 0.0
      %v6090 = vsel %vm5996, %v4420, 0.0
      %v6091 = vsel %vm5996, %v4421, 0.0
      %v6092 = vsel %vm5997, %v4422, 0.0
      %v6093 = vsel %vm5997, %v4423, 0.0
      %v6094 = vsel %vm5998, %v4424, 0.0
      %v6095 = vsel %vm5998, %v4425, 0.0
      %v6096 = vsel %vm5999, %v4426, 0.0
      %v6097 = vsel %vm5999, %v4427, 0.0
      %v6098 = vsel %vm6000, %v4428, 0.0
      %v6099 = vsel %vm6000, %v4429, 0.0
      %v6100 = vsel %vm6001, %v4430, 0.0
      %v6101 = vsel %vm6001, %v4431, 0.0
      %v6102 = vsel %vm6002, %v4432, 0.0
      %v6103 = vsel %vm6002, %v4433, 0.0
      %v6104 = vsel %vm6003, %v4434, 0.0
      %v6105 = vsel %vm6003, %v4435, 0.0
      %v6106 = vsel %vm6004, %v4436, 0.0
      %v6107 = vsel %vm6004, %v4437, 0.0
      %v6108 = vsel %vm6005, %v4438, 0.0
      %v6109 = vsel %vm6005, %v4439, 0.0
      %v6110 = vsel %vm6006, %v4440, 0.0
      %v6111 = vsel %vm6006, %v4441, 0.0
      %v6112 = vsel %vm6007, %v4442, 0.0
      %v6113 = vsel %vm6007, %v4443, 0.0
      %v6114 = vsel %vm6008, %v4444, 0.0
      %v6115 = vsel %vm6008, %v4445, 0.0
      %v6116 = vsel %vm6009, %v4446, 0.0
      %v6117 = vsel %vm6009, %v4447, 0.0
      %v6118 = vsel %vm6010, %v4448, 0.0
      %v6119 = vsel %vm6010, %v4449, 0.0
      %v6120 = vsel %vm6011, %v4450, 0.0
      %v6121 = vsel %vm6011, %v4451, 0.0
      %v6122 = vsel %vm6012, %v4452, 0.0
      %v6123 = vsel %vm6012, %v4453, 0.0
      %v6124 = vsel %vm6013, %v4454, 0.0
      %v6125 = vsel %vm6013, %v4455, 0.0
      %v6126 = vsel %vm6014, %v4456, 0.0
      %v6127 = vsel %vm6014, %v4457, 0.0
      %v6128 = vsel %vm6015, %v4458, 0.0
      %v6129 = vsel %vm6015, %v4459, 0.0
      %v6130 = vsel %vm6016, %v4460, 0.0
      %v6131 = vsel %vm6016, %v4461, 0.0
      %v6132 = vsel %vm6017, %v4462, 0.0
      %v6133 = vsel %vm6017, %v4463, 0.0
      %v6134 = vsel %vm6018, %v4464, 0.0
      %v6135 = vsel %vm6018, %v4465, 0.0
      %v6136 = vsel %vm6019, %v4466, 0.0
      %v6137 = vsel %vm6019, %v4467, 0.0
      %v6138 = vsel %vm6020, %v4468, 0.0
      %v6139 = vsel %vm6020, %v4469, 0.0
      %v6140 = vsel %vm6021, %v4470, 0.0
      %v6141 = vsel %vm6021, %v4471, 0.0
      %v6142 = vsel %vm6022, %v4472, 0.0
      %v6143 = vsel %vm6022, %v4473, 0.0
      %v6144 = vsel %vm6023, %v4474, 0.0
      %v6145 = vsel %vm6023, %v4475, 0.0
      %v6146 = vsel %vm6024, %v4476, 0.0
      %v6147 = vsel %vm6024, %v4477, 0.0
      %v6148 = vsel %vm6025, %v4478, 0.0
      %v6149 = vsel %vm6025, %v4479, 0.0
      %v6150 = vsel %vm6026, %v4480, 0.0
      %v6151 = vsel %vm6026, %v4481, 0.0
      %v6152 = vsel %vm6027, %v4482, 0.0
      %v6153 = vsel %vm6027, %v4483, 0.0
      %v6154 = vsel %vm6028, %v4484, 0.0
      %v6155 = vsel %vm6028, %v4485, 0.0
      %v6156 = vsel %vm6029, %v4486, 0.0
      %v6157 = vsel %vm6029, %v4487, 0.0
      %v6158 = vsel %vm5065, %v6030, 0.0
      %6159 = vadd.xlane.f32.xlu0 %v6158
      %v6160 = vpop.xlane.xlu0 %6159
      %v6161 = vsel %vm5065, %v6031, 0.0
      %6162 = vadd.xlane.f32.xlu0 %v6161
      %v6163 = vpop.xlane.xlu0 %6162
      %v6164 = vsel %vm5065, %v6032, 0.0
      %6165 = vadd.xlane.f32.xlu0 %v6164
      %v6166 = vpop.xlane.xlu0 %6165
      %v6167 = vsel %vm5065, %v6033, 0.0
      %6168 = vadd.xlane.f32.xlu0 %v6167
      %v6169 = vpop.xlane.xlu0 %6168
      %v6170 = vsel %vm5065, %v6034, 0.0
      %6171 = vadd.xlane.f32.xlu0 %v6170
      %v6172 = vpop.xlane.xlu0 %6171
      %v6173 = vsel %vm5065, %v6035, 0.0
      %6174 = vadd.xlane.f32.xlu0 %v6173
      %v6175 = vpop.xlane.xlu0 %6174
      %v6176 = vsel %vm5065, %v6036, 0.0
      %6177 = vadd.xlane.f32.xlu0 %v6176
      %v6178 = vpop.xlane.xlu0 %6177
      %v6179 = vsel %vm5065, %v6037, 0.0
      %6180 = vadd.xlane.f32.xlu0 %v6179
      %v6181 = vpop.xlane.xlu0 %6180
      %v6182 = vsel %vm5065, %v6038, 0.0
      %6183 = vadd.xlane.f32.xlu0 %v6182
      %v6184 = vpop.xlane.xlu0 %6183
      %v6185 = vsel %vm5065, %v6039, 0.0
      %6186 = vadd.xlane.f32.xlu0 %v6185
      %v6187 = vpop.xlane.xlu0 %6186
      %v6188 = vsel %vm5065, %v6040, 0.0
      %6189 = vadd.xlane.f32.xlu0 %v6188
      %v6190 = vpop.xlane.xlu0 %6189
      %v6191 = vsel %vm5065, %v6041, 0.0
      %6192 = vadd.xlane.f32.xlu0 %v6191
      %v6193 = vpop.xlane.xlu0 %6192
      %v6194 = vsel %vm5065, %v6042, 0.0
      %6195 = vadd.xlane.f32.xlu0 %v6194
      %v6196 = vpop.xlane.xlu0 %6195
      %v6197 = vsel %vm5065, %v6043, 0.0
      %6198 = vadd.xlane.f32.xlu0 %v6197
      %v6199 = vpop.xlane.xlu0 %6198
      %v6200 = vsel %vm5065, %v6044, 0.0
      %6201 = vadd.xlane.f32.xlu0 %v6200
      %v6202 = vpop.xlane.xlu0 %6201
      %v6203 = vsel %vm5065, %v6045, 0.0
      %6204 = vadd.xlane.f32.xlu0 %v6203
      %v6205 = vpop.xlane.xlu0 %6204
      %v6206 = vsel %vm5065, %v6046, 0.0
      %6207 = vadd.xlane.f32.xlu0 %v6206
      %v6208 = vpop.xlane.xlu0 %6207
      %v6209 = vsel %vm5065, %v6047, 0.0
      %6210 = vadd.xlane.f32.xlu0 %v6209
      %v6211 = vpop.xlane.xlu0 %6210
      %v6212 = vsel %vm5065, %v6048, 0.0
      %6213 = vadd.xlane.f32.xlu0 %v6212
      %v6214 = vpop.xlane.xlu0 %6213
      %v6215 = vsel %vm5065, %v6049, 0.0
      %6216 = vadd.xlane.f32.xlu0 %v6215
      %v6217 = vpop.xlane.xlu0 %6216
      %v6218 = vsel %vm5065, %v6050, 0.0
      %6219 = vadd.xlane.f32.xlu0 %v6218
      %v6220 = vpop.xlane.xlu0 %6219
      %v6221 = vsel %vm5065, %v6051, 0.0
      %6222 = vadd.xlane.f32.xlu0 %v6221
      %v6223 = vpop.xlane.xlu0 %6222
      %v6224 = vsel %vm5065, %v6052, 0.0
      %6225 = vadd.xlane.f32.xlu0 %v6224
      %v6226 = vpop.xlane.xlu0 %6225
      %v6227 = vsel %vm5065, %v6053, 0.0
      %6228 = vadd.xlane.f32.xlu0 %v6227
      %v6229 = vpop.xlane.xlu0 %6228
      %v6230 = vsel %vm5065, %v6054, 0.0
      %6231 = vadd.xlane.f32.xlu0 %v6230
      %v6232 = vpop.xlane.xlu0 %6231
      %v6233 = vsel %vm5065, %v6055, 0.0
      %6234 = vadd.xlane.f32.xlu0 %v6233
      %v6235 = vpop.xlane.xlu0 %6234
      %v6236 = vsel %vm5065, %v6056, 0.0
      %6237 = vadd.xlane.f32.xlu0 %v6236
      %v6238 = vpop.xlane.xlu0 %6237
      %v6239 = vsel %vm5065, %v6057, 0.0
      %6240 = vadd.xlane.f32.xlu0 %v6239
      %v6241 = vpop.xlane.xlu0 %6240
      %v6242 = vsel %vm5065, %v6058, 0.0
      %6243 = vadd.xlane.f32.xlu0 %v6242
      %v6244 = vpop.xlane.xlu0 %6243
      %v6245 = vsel %vm5065, %v6059, 0.0
      %6246 = vadd.xlane.f32.xlu0 %v6245
      %v6247 = vpop.xlane.xlu0 %6246
      %v6248 = vsel %vm5065, %v6060, 0.0
      %6249 = vadd.xlane.f32.xlu0 %v6248
      %v6250 = vpop.xlane.xlu0 %6249
      %v6251 = vsel %vm5065, %v6061, 0.0
      %6252 = vadd.xlane.f32.xlu0 %v6251
      %v6253 = vpop.xlane.xlu0 %6252
      %v6254 = vsel %vm5065, %v6062, 0.0
      %6255 = vadd.xlane.f32.xlu0 %v6254
      %v6256 = vpop.xlane.xlu0 %6255
      %v6257 = vsel %vm5065, %v6063, 0.0
      %6258 = vadd.xlane.f32.xlu0 %v6257
      %v6259 = vpop.xlane.xlu0 %6258
      %v6260 = vsel %vm5065, %v6064, 0.0
      %6261 = vadd.xlane.f32.xlu0 %v6260
      %v6262 = vpop.xlane.xlu0 %6261
      %v6263 = vsel %vm5065, %v6065, 0.0
      %6264 = vadd.xlane.f32.xlu0 %v6263
      %v6265 = vpop.xlane.xlu0 %6264
      %v6266 = vsel %vm5065, %v6066, 0.0
      %6267 = vadd.xlane.f32.xlu0 %v6266
      %v6268 = vpop.xlane.xlu0 %6267
      %v6269 = vsel %vm5065, %v6067, 0.0
      %6270 = vadd.xlane.f32.xlu0 %v6269
      %v6271 = vpop.xlane.xlu0 %6270
      %v6272 = vsel %vm5065, %v6068, 0.0
      %6273 = vadd.xlane.f32.xlu0 %v6272
      %v6274 = vpop.xlane.xlu0 %6273
      %v6275 = vsel %vm5065, %v6069, 0.0
      %6276 = vadd.xlane.f32.xlu0 %v6275
      %v6277 = vpop.xlane.xlu0 %6276
      %v6278 = vsel %vm5065, %v6070, 0.0
      %6279 = vadd.xlane.f32.xlu0 %v6278
      %v6280 = vpop.xlane.xlu0 %6279
      %v6281 = vsel %vm5065, %v6071, 0.0
      %6282 = vadd.xlane.f32.xlu0 %v6281
      %v6283 = vpop.xlane.xlu0 %6282
      %v6284 = vsel %vm5065, %v6072, 0.0
      %6285 = vadd.xlane.f32.xlu0 %v6284
      %v6286 = vpop.xlane.xlu0 %6285
      %v6287 = vsel %vm5065, %v6073, 0.0
      %6288 = vadd.xlane.f32.xlu0 %v6287
      %v6289 = vpop.xlane.xlu0 %6288
      %v6290 = vsel %vm5065, %v6074, 0.0
      %6291 = vadd.xlane.f32.xlu0 %v6290
      %v6292 = vpop.xlane.xlu0 %6291
      %v6293 = vsel %vm5065, %v6075, 0.0
      %6294 = vadd.xlane.f32.xlu0 %v6293
      %v6295 = vpop.xlane.xlu0 %6294
      %v6296 = vsel %vm5065, %v6076, 0.0
      %6297 = vadd.xlane.f32.xlu0 %v6296
      %v6298 = vpop.xlane.xlu0 %6297
      %v6299 = vsel %vm5065, %v6077, 0.0
      %6300 = vadd.xlane.f32.xlu0 %v6299
      %v6301 = vpop.xlane.xlu0 %6300
      %v6302 = vsel %vm5065, %v6078, 0.0
      %6303 = vadd.xlane.f32.xlu0 %v6302
      %v6304 = vpop.xlane.xlu0 %6303
      %v6305 = vsel %vm5065, %v6079, 0.0
      %6306 = vadd.xlane.f32.xlu0 %v6305
      %v6307 = vpop.xlane.xlu0 %6306
      %v6308 = vsel %vm5065, %v6080, 0.0
      %6309 = vadd.xlane.f32.xlu0 %v6308
      %v6310 = vpop.xlane.xlu0 %6309
      %v6311 = vsel %vm5065, %v6081, 0.0
      %6312 = vadd.xlane.f32.xlu0 %v6311
      %v6313 = vpop.xlane.xlu0 %6312
      %v6314 = vsel %vm5065, %v6082, 0.0
      %6315 = vadd.xlane.f32.xlu0 %v6314
      %v6316 = vpop.xlane.xlu0 %6315
      %v6317 = vsel %vm5065, %v6083, 0.0
      %6318 = vadd.xlane.f32.xlu0 %v6317
      %v6319 = vpop.xlane.xlu0 %6318
      %v6320 = vsel %vm5065, %v6084, 0.0
      %6321 = vadd.xlane.f32.xlu0 %v6320
      %v6322 = vpop.xlane.xlu0 %6321
      %v6323 = vsel %vm5065, %v6085, 0.0
      %6324 = vadd.xlane.f32.xlu0 %v6323
      %v6325 = vpop.xlane.xlu0 %6324
      %v6326 = vsel %vm5065, %v6086, 0.0
      %6327 = vadd.xlane.f32.xlu0 %v6326
      %v6328 = vpop.xlane.xlu0 %6327
      %v6329 = vsel %vm5065, %v6087, 0.0
      %6330 = vadd.xlane.f32.xlu0 %v6329
      %v6331 = vpop.xlane.xlu0 %6330
      %v6332 = vsel %vm5065, %v6088, 0.0
      %6333 = vadd.xlane.f32.xlu0 %v6332
      %v6334 = vpop.xlane.xlu0 %6333
      %v6335 = vsel %vm5065, %v6089, 0.0
      %6336 = vadd.xlane.f32.xlu0 %v6335
      %v6337 = vpop.xlane.xlu0 %6336
      %v6338 = vsel %vm5065, %v6090, 0.0
      %6339 = vadd.xlane.f32.xlu0 %v6338
      %v6340 = vpop.xlane.xlu0 %6339
      %v6341 = vsel %vm5065, %v6091, 0.0
      %6342 = vadd.xlane.f32.xlu0 %v6341
      %v6343 = vpop.xlane.xlu0 %6342
      %v6344 = vsel %vm5065, %v6092, 0.0
      %6345 = vadd.xlane.f32.xlu0 %v6344
      %v6346 = vpop.xlane.xlu0 %6345
      %v6347 = vsel %vm5065, %v6093, 0.0
      %6348 = vadd.xlane.f32.xlu0 %v6347
      %v6349 = vpop.xlane.xlu0 %6348
      %v6350 = vsel %vm5065, %v6094, 0.0
      %6351 = vadd.xlane.f32.xlu0 %v6350
      %v6352 = vpop.xlane.xlu0 %6351
      %v6353 = vsel %vm5065, %v6095, 0.0
      %6354 = vadd.xlane.f32.xlu0 %v6353
      %v6355 = vpop.xlane.xlu0 %6354
      %v6356 = vsel %vm5065, %v6096, 0.0
      %6357 = vadd.xlane.f32.xlu0 %v6356
      %v6358 = vpop.xlane.xlu0 %6357
      %v6359 = vsel %vm5065, %v6097, 0.0
      %6360 = vadd.xlane.f32.xlu0 %v6359
      %v6361 = vpop.xlane.xlu0 %6360
      %v6362 = vsel %vm5065, %v6098, 0.0
      %6363 = vadd.xlane.f32.xlu0 %v6362
      %v6364 = vpop.xlane.xlu0 %6363
      %v6365 = vsel %vm5065, %v6099, 0.0
      %6366 = vadd.xlane.f32.xlu0 %v6365
      %v6367 = vpop.xlane.xlu0 %6366
      %v6368 = vsel %vm5065, %v6100, 0.0
      %6369 = vadd.xlane.f32.xlu0 %v6368
      %v6370 = vpop.xlane.xlu0 %6369
      %v6371 = vsel %vm5065, %v6101, 0.0
      %6372 = vadd.xlane.f32.xlu0 %v6371
      %v6373 = vpop.xlane.xlu0 %6372
      %v6374 = vsel %vm5065, %v6102, 0.0
      %6375 = vadd.xlane.f32.xlu0 %v6374
      %v6376 = vpop.xlane.xlu0 %6375
      %v6377 = vsel %vm5065, %v6103, 0.0
      %6378 = vadd.xlane.f32.xlu0 %v6377
      %v6379 = vpop.xlane.xlu0 %6378
      %v6380 = vsel %vm5065, %v6104, 0.0
      %6381 = vadd.xlane.f32.xlu0 %v6380
      %v6382 = vpop.xlane.xlu0 %6381
      %v6383 = vsel %vm5065, %v6105, 0.0
      %6384 = vadd.xlane.f32.xlu0 %v6383
      %v6385 = vpop.xlane.xlu0 %6384
      %v6386 = vsel %vm5065, %v6106, 0.0
      %6387 = vadd.xlane.f32.xlu0 %v6386
      %v6388 = vpop.xlane.xlu0 %6387
      %v6389 = vsel %vm5065, %v6107, 0.0
      %6390 = vadd.xlane.f32.xlu0 %v6389
      %v6391 = vpop.xlane.xlu0 %6390
      %v6392 = vsel %vm5065, %v6108, 0.0
      %6393 = vadd.xlane.f32.xlu0 %v6392
      %v6394 = vpop.xlane.xlu0 %6393
      %v6395 = vsel %vm5065, %v6109, 0.0
      %6396 = vadd.xlane.f32.xlu0 %v6395
      %v6397 = vpop.xlane.xlu0 %6396
      %v6398 = vsel %vm5065, %v6110, 0.0
      %6399 = vadd.xlane.f32.xlu0 %v6398
      %v6400 = vpop.xlane.xlu0 %6399
      %v6401 = vsel %vm5065, %v6111, 0.0
      %6402 = vadd.xlane.f32.xlu0 %v6401
      %v6403 = vpop.xlane.xlu0 %6402
      %v6404 = vsel %vm5065, %v6112, 0.0
      %6405 = vadd.xlane.f32.xlu0 %v6404
      %v6406 = vpop.xlane.xlu0 %6405
      %v6407 = vsel %vm5065, %v6113, 0.0
      %6408 = vadd.xlane.f32.xlu0 %v6407
      %v6409 = vpop.xlane.xlu0 %6408
      %v6410 = vsel %vm5065, %v6114, 0.0
      %6411 = vadd.xlane.f32.xlu0 %v6410
      %v6412 = vpop.xlane.xlu0 %6411
      %v6413 = vsel %vm5065, %v6115, 0.0
      %6414 = vadd.xlane.f32.xlu0 %v6413
      %v6415 = vpop.xlane.xlu0 %6414
      %v6416 = vsel %vm5065, %v6116, 0.0
      %6417 = vadd.xlane.f32.xlu0 %v6416
      %v6418 = vpop.xlane.xlu0 %6417
      %v6419 = vsel %vm5065, %v6117, 0.0
      %6420 = vadd.xlane.f32.xlu0 %v6419
      %v6421 = vpop.xlane.xlu0 %6420
      %v6422 = vsel %vm5065, %v6118, 0.0
      %6423 = vadd.xlane.f32.xlu0 %v6422
      %v6424 = vpop.xlane.xlu0 %6423
      %v6425 = vsel %vm5065, %v6119, 0.0
      %6426 = vadd.xlane.f32.xlu0 %v6425
      %v6427 = vpop.xlane.xlu0 %6426
      %v6428 = vsel %vm5065, %v6120, 0.0
      %6429 = vadd.xlane.f32.xlu0 %v6428
      %v6430 = vpop.xlane.xlu0 %6429
      %v6431 = vsel %vm5065, %v6121, 0.0
      %6432 = vadd.xlane.f32.xlu0 %v6431
      %v6433 = vpop.xlane.xlu0 %6432
      %v6434 = vsel %vm5065, %v6122, 0.0
      %6435 = vadd.xlane.f32.xlu0 %v6434
      %v6436 = vpop.xlane.xlu0 %6435
      %v6437 = vsel %vm5065, %v6123, 0.0
      %6438 = vadd.xlane.f32.xlu0 %v6437
      %v6439 = vpop.xlane.xlu0 %6438
      %v6440 = vsel %vm5065, %v6124, 0.0
      %6441 = vadd.xlane.f32.xlu0 %v6440
      %v6442 = vpop.xlane.xlu0 %6441
      %v6443 = vsel %vm5065, %v6125, 0.0
      %6444 = vadd.xlane.f32.xlu0 %v6443
      %v6445 = vpop.xlane.xlu0 %6444
      %v6446 = vsel %vm5065, %v6126, 0.0
      %6447 = vadd.xlane.f32.xlu0 %v6446
      %v6448 = vpop.xlane.xlu0 %6447
      %v6449 = vsel %vm5065, %v6127, 0.0
      %6450 = vadd.xlane.f32.xlu0 %v6449
      %v6451 = vpop.xlane.xlu0 %6450
      %v6452 = vsel %vm5065, %v6128, 0.0
      %6453 = vadd.xlane.f32.xlu0 %v6452
      %v6454 = vpop.xlane.xlu0 %6453
      %v6455 = vsel %vm5065, %v6129, 0.0
      %6456 = vadd.xlane.f32.xlu0 %v6455
      %v6457 = vpop.xlane.xlu0 %6456
      %v6458 = vsel %vm5065, %v6130, 0.0
      %6459 = vadd.xlane.f32.xlu0 %v6458
      %v6460 = vpop.xlane.xlu0 %6459
      %v6461 = vsel %vm5065, %v6131, 0.0
      %6462 = vadd.xlane.f32.xlu0 %v6461
      %v6463 = vpop.xlane.xlu0 %6462
      %v6464 = vsel %vm5065, %v6132, 0.0
      %6465 = vadd.xlane.f32.xlu0 %v6464
      %v6466 = vpop.xlane.xlu0 %6465
      %v6467 = vsel %vm5065, %v6133, 0.0
      %6468 = vadd.xlane.f32.xlu0 %v6467
      %v6469 = vpop.xlane.xlu0 %6468
      %v6470 = vsel %vm5065, %v6134, 0.0
      %6471 = vadd.xlane.f32.xlu0 %v6470
      %v6472 = vpop.xlane.xlu0 %6471
      %v6473 = vsel %vm5065, %v6135, 0.0
      %6474 = vadd.xlane.f32.xlu0 %v6473
      %v6475 = vpop.xlane.xlu0 %6474
      %v6476 = vsel %vm5065, %v6136, 0.0
      %6477 = vadd.xlane.f32.xlu0 %v6476
      %v6478 = vpop.xlane.xlu0 %6477
      %v6479 = vsel %vm5065, %v6137, 0.0
      %6480 = vadd.xlane.f32.xlu0 %v6479
      %v6481 = vpop.xlane.xlu0 %6480
      %v6482 = vsel %vm5065, %v6138, 0.0
      %6483 = vadd.xlane.f32.xlu0 %v6482
      %v6484 = vpop.xlane.xlu0 %6483
      %v6485 = vsel %vm5065, %v6139, 0.0
      %6486 = vadd.xlane.f32.xlu0 %v6485
      %v6487 = vpop.xlane.xlu0 %6486
      %v6488 = vsel %vm5065, %v6140, 0.0
      %6489 = vadd.xlane.f32.xlu0 %v6488
      %v6490 = vpop.xlane.xlu0 %6489
      %v6491 = vsel %vm5065, %v6141, 0.0
      %6492 = vadd.xlane.f32.xlu0 %v6491
      %v6493 = vpop.xlane.xlu0 %6492
      %v6494 = vsel %vm5065, %v6142, 0.0
      %6495 = vadd.xlane.f32.xlu0 %v6494
      %v6496 = vpop.xlane.xlu0 %6495
      %v6497 = vsel %vm5065, %v6143, 0.0
      %6498 = vadd.xlane.f32.xlu0 %v6497
      %v6499 = vpop.xlane.xlu0 %6498
      %v6500 = vsel %vm5065, %v6144, 0.0
      %6501 = vadd.xlane.f32.xlu0 %v6500
      %v6502 = vpop.xlane.xlu0 %6501
      %v6503 = vsel %vm5065, %v6145, 0.0
      %6504 = vadd.xlane.f32.xlu0 %v6503
      %v6505 = vpop.xlane.xlu0 %6504
      %v6506 = vsel %vm5065, %v6146, 0.0
      %6507 = vadd.xlane.f32.xlu0 %v6506
      %v6508 = vpop.xlane.xlu0 %6507
      %v6509 = vsel %vm5065, %v6147, 0.0
      %6510 = vadd.xlane.f32.xlu0 %v6509
      %v6511 = vpop.xlane.xlu0 %6510
      %v6512 = vsel %vm5065, %v6148, 0.0
      %6513 = vadd.xlane.f32.xlu0 %v6512
      %v6514 = vpop.xlane.xlu0 %6513
      %v6515 = vsel %vm5065, %v6149, 0.0
      %6516 = vadd.xlane.f32.xlu0 %v6515
      %v6517 = vpop.xlane.xlu0 %6516
      %v6518 = vsel %vm5065, %v6150, 0.0
      %6519 = vadd.xlane.f32.xlu0 %v6518
      %v6520 = vpop.xlane.xlu0 %6519
      %v6521 = vsel %vm5065, %v6151, 0.0
      %6522 = vadd.xlane.f32.xlu0 %v6521
      %v6523 = vpop.xlane.xlu0 %6522
      %v6524 = vsel %vm5065, %v6152, 0.0
      %6525 = vadd.xlane.f32.xlu0 %v6524
      %v6526 = vpop.xlane.xlu0 %6525
      %v6527 = vsel %vm5065, %v6153, 0.0
      %6528 = vadd.xlane.f32.xlu0 %v6527
      %v6529 = vpop.xlane.xlu0 %6528
      %v6530 = vsel %vm5065, %v6154, 0.0
      %6531 = vadd.xlane.f32.xlu0 %v6530
      %v6532 = vpop.xlane.xlu0 %6531
      %v6533 = vsel %vm5065, %v6155, 0.0
      %6534 = vadd.xlane.f32.xlu0 %v6533
      %v6535 = vpop.xlane.xlu0 %6534
      %v6536 = vsel %vm5065, %v6156, 0.0
      %6537 = vadd.xlane.f32.xlu0 %v6536
      %v6538 = vpop.xlane.xlu0 %6537
      %v6539 = vsel %vm5065, %v6157, 0.0
      %6540 = vadd.xlane.f32.xlu0 %v6539
      %v6541 = vpop.xlane.xlu0 %6540
      %v6542 = vlaneseq
      %v6543 = vshrl.u32 %v6542, 7
      %v6544 = vsub.s32 1, %v6543
      %v6545 = vrot.slane %v4488, %v6544
      %v6546 = vmul.f32 %v6160, %v6545
      %v6547 = vmul.f32 %v6163, %v6545
      %v6548 = vmul.f32 %v6166, %v6545
      %v6549 = vmul.f32 %v6169, %v6545
      %v6550 = vmul.f32 %v6172, %v6545
      %v6551 = vmul.f32 %v6175, %v6545
      %v6552 = vmul.f32 %v6178, %v6545
      %v6553 = vmul.f32 %v6181, %v6545
      %v6554 = vmul.f32 %v6184, %v6545
      %v6555 = vmul.f32 %v6187, %v6545
      %v6556 = vmul.f32 %v6190, %v6545
      %v6557 = vmul.f32 %v6193, %v6545
      %v6558 = vmul.f32 %v6196, %v6545
      %v6559 = vmul.f32 %v6199, %v6545
      %v6560 = vmul.f32 %v6202, %v6545
      %v6561 = vmul.f32 %v6205, %v6545
      %v6562 = vmul.f32 %v6208, %v6545
      %v6563 = vmul.f32 %v6211, %v6545
      %v6564 = vmul.f32 %v6214, %v6545
      %v6565 = vmul.f32 %v6217, %v6545
      %v6566 = vmul.f32 %v6220, %v6545
      %v6567 = vmul.f32 %v6223, %v6545
      %v6568 = vmul.f32 %v6226, %v6545
      %v6569 = vmul.f32 %v6229, %v6545
      %v6570 = vmul.f32 %v6232, %v6545
      %v6571 = vmul.f32 %v6235, %v6545
      %v6572 = vmul.f32 %v6238, %v6545
      %v6573 = vmul.f32 %v6241, %v6545
      %v6574 = vmul.f32 %v6244, %v6545
      %v6575 = vmul.f32 %v6247, %v6545
      %v6576 = vmul.f32 %v6250, %v6545
      %v6577 = vmul.f32 %v6253, %v6545
      %v6578 = vmul.f32 %v6256, %v6545
      %v6579 = vmul.f32 %v6259, %v6545
      %v6580 = vmul.f32 %v6262, %v6545
      %v6581 = vmul.f32 %v6265, %v6545
      %v6582 = vmul.f32 %v6268, %v6545
      %v6583 = vmul.f32 %v6271, %v6545
      %v6584 = vmul.f32 %v6274, %v6545
      %v6585 = vmul.f32 %v6277, %v6545
      %v6586 = vmul.f32 %v6280, %v6545
      %v6587 = vmul.f32 %v6283, %v6545
      %v6588 = vmul.f32 %v6286, %v6545
      %v6589 = vmul.f32 %v6289, %v6545
      %v6590 = vmul.f32 %v6292, %v6545
      %v6591 = vmul.f32 %v6295, %v6545
      %v6592 = vmul.f32 %v6298, %v6545
      %v6593 = vmul.f32 %v6301, %v6545
      %v6594 = vmul.f32 %v6304, %v6545
      %v6595 = vmul.f32 %v6307, %v6545
      %v6596 = vmul.f32 %v6310, %v6545
      %v6597 = vmul.f32 %v6313, %v6545
      %v6598 = vmul.f32 %v6316, %v6545
      %v6599 = vmul.f32 %v6319, %v6545
      %v6600 = vmul.f32 %v6322, %v6545
      %v6601 = vmul.f32 %v6325, %v6545
      %v6602 = vmul.f32 %v6328, %v6545
      %v6603 = vmul.f32 %v6331, %v6545
      %v6604 = vmul.f32 %v6334, %v6545
      %v6605 = vmul.f32 %v6337, %v6545
      %v6606 = vmul.f32 %v6340, %v6545
      %v6607 = vmul.f32 %v6343, %v6545
      %v6608 = vmul.f32 %v6346, %v6545
      %v6609 = vmul.f32 %v6349, %v6545
      %v6610 = vmul.f32 %v6352, %v6545
      %v6611 = vmul.f32 %v6355, %v6545
      %v6612 = vmul.f32 %v6358, %v6545
      %v6613 = vmul.f32 %v6361, %v6545
      %v6614 = vmul.f32 %v6364, %v6545
      %v6615 = vmul.f32 %v6367, %v6545
      %v6616 = vmul.f32 %v6370, %v6545
      %v6617 = vmul.f32 %v6373, %v6545
      %v6618 = vmul.f32 %v6376, %v6545
      %v6619 = vmul.f32 %v6379, %v6545
      %v6620 = vmul.f32 %v6382, %v6545
      %v6621 = vmul.f32 %v6385, %v6545
      %v6622 = vmul.f32 %v6388, %v6545
      %v6623 = vmul.f32 %v6391, %v6545
      %v6624 = vmul.f32 %v6394, %v6545
      %v6625 = vmul.f32 %v6397, %v6545
      %v6626 = vmul.f32 %v6400, %v6545
      %v6627 = vmul.f32 %v6403, %v6545
      %v6628 = vmul.f32 %v6406, %v6545
      %v6629 = vmul.f32 %v6409, %v6545
      %v6630 = vmul.f32 %v6412, %v6545
      %v6631 = vmul.f32 %v6415, %v6545
      %v6632 = vmul.f32 %v6418, %v6545
      %v6633 = vmul.f32 %v6421, %v6545
      %v6634 = vmul.f32 %v6424, %v6545
      %v6635 = vmul.f32 %v6427, %v6545
      %v6636 = vmul.f32 %v6430, %v6545
      %v6637 = vmul.f32 %v6433, %v6545
      %v6638 = vmul.f32 %v6436, %v6545
      %v6639 = vmul.f32 %v6439, %v6545
      %v6640 = vmul.f32 %v6442, %v6545
      %v6641 = vmul.f32 %v6445, %v6545
      %v6642 = vmul.f32 %v6448, %v6545
      %v6643 = vmul.f32 %v6451, %v6545
      %v6644 = vmul.f32 %v6454, %v6545
      %v6645 = vmul.f32 %v6457, %v6545
      %v6646 = vmul.f32 %v6460, %v6545
      %v6647 = vmul.f32 %v6463, %v6545
      %v6648 = vmul.f32 %v6466, %v6545
      %v6649 = vmul.f32 %v6469, %v6545
      %v6650 = vmul.f32 %v6472, %v6545
      %v6651 = vmul.f32 %v6475, %v6545
      %v6652 = vmul.f32 %v6478, %v6545
      %v6653 = vmul.f32 %v6481, %v6545
      %v6654 = vmul.f32 %v6484, %v6545
      %v6655 = vmul.f32 %v6487, %v6545
      %v6656 = vmul.f32 %v6490, %v6545
      %v6657 = vmul.f32 %v6493, %v6545
      %v6658 = vmul.f32 %v6496, %v6545
      %v6659 = vmul.f32 %v6499, %v6545
      %v6660 = vmul.f32 %v6502, %v6545
      %v6661 = vmul.f32 %v6505, %v6545
      %v6662 = vmul.f32 %v6508, %v6545
      %v6663 = vmul.f32 %v6511, %v6545
      %v6664 = vmul.f32 %v6514, %v6545
      %v6665 = vmul.f32 %v6517, %v6545
      %v6666 = vmul.f32 %v6520, %v6545
      %v6667 = vmul.f32 %v6523, %v6545
      %v6668 = vmul.f32 %v6526, %v6545
      %v6669 = vmul.f32 %v6529, %v6545
      %v6670 = vmul.f32 %v6532, %v6545
      %v6671 = vmul.f32 %v6535, %v6545
      %v6672 = vmul.f32 %v6538, %v6545
      %v6673 = vmul.f32 %v6541, %v6545
      %v6674 = vadd.f32 %v5454, %v6546
      %v6675 = vadd.f32 %v5455, %v6547
      %v6676 = vadd.f32 %v5456, %v6548
      %v6677 = vadd.f32 %v5457, %v6549
      %v6678 = vadd.f32 %v5458, %v6550
      %v6679 = vadd.f32 %v5459, %v6551
      %v6680 = vadd.f32 %v5460, %v6552
      %v6681 = vadd.f32 %v5461, %v6553
      %v6682 = vadd.f32 %v5462, %v6554
      %v6683 = vadd.f32 %v5463, %v6555
      %v6684 = vadd.f32 %v5464, %v6556
      %v6685 = vadd.f32 %v5465, %v6557
      %v6686 = vadd.f32 %v5466, %v6558
      %v6687 = vadd.f32 %v5467, %v6559
      %v6688 = vadd.f32 %v5468, %v6560
      %v6689 = vadd.f32 %v5469, %v6561
      %v6690 = vadd.f32 %v5470, %v6562
      %v6691 = vadd.f32 %v5471, %v6563
      %v6692 = vadd.f32 %v5472, %v6564
      %v6693 = vadd.f32 %v5473, %v6565
      %v6694 = vadd.f32 %v5474, %v6566
      %v6695 = vadd.f32 %v5475, %v6567
      %v6696 = vadd.f32 %v5476, %v6568
      %v6697 = vadd.f32 %v5477, %v6569
      %v6698 = vadd.f32 %v5478, %v6570
      %v6699 = vadd.f32 %v5479, %v6571
      %v6700 = vadd.f32 %v5480, %v6572
      %v6701 = vadd.f32 %v5481, %v6573
      %v6702 = vadd.f32 %v5482, %v6574
      %v6703 = vadd.f32 %v5483, %v6575
      %v6704 = vadd.f32 %v5484, %v6576
      %v6705 = vadd.f32 %v5485, %v6577
      %v6706 = vadd.f32 %v5486, %v6578
      %v6707 = vadd.f32 %v5487, %v6579
      %v6708 = vadd.f32 %v5488, %v6580
      %v6709 = vadd.f32 %v5489, %v6581
      %v6710 = vadd.f32 %v5490, %v6582
      %v6711 = vadd.f32 %v5491, %v6583
      %v6712 = vadd.f32 %v5492, %v6584
      %v6713 = vadd.f32 %v5493, %v6585
      %v6714 = vadd.f32 %v5494, %v6586
      %v6715 = vadd.f32 %v5495, %v6587
      %v6716 = vadd.f32 %v5496, %v6588
      %v6717 = vadd.f32 %v5497, %v6589
      %v6718 = vadd.f32 %v5498, %v6590
      %v6719 = vadd.f32 %v5499, %v6591
      %v6720 = vadd.f32 %v5500, %v6592
      %v6721 = vadd.f32 %v5501, %v6593
      %v6722 = vadd.f32 %v5502, %v6594
      %v6723 = vadd.f32 %v5503, %v6595
      %v6724 = vadd.f32 %v5504, %v6596
      %v6725 = vadd.f32 %v5505, %v6597
      %v6726 = vadd.f32 %v5506, %v6598
      %v6727 = vadd.f32 %v5507, %v6599
      %v6728 = vadd.f32 %v5508, %v6600
      %v6729 = vadd.f32 %v5509, %v6601
      %v6730 = vadd.f32 %v5510, %v6602
      %v6731 = vadd.f32 %v5511, %v6603
      %v6732 = vadd.f32 %v5512, %v6604
      %v6733 = vadd.f32 %v5513, %v6605
      %v6734 = vadd.f32 %v5514, %v6606
      %v6735 = vadd.f32 %v5515, %v6607
      %v6736 = vadd.f32 %v5516, %v6608
      %v6737 = vadd.f32 %v5517, %v6609
      %v6738 = vadd.f32 %v5518, %v6610
      %v6739 = vadd.f32 %v5519, %v6611
      %v6740 = vadd.f32 %v5520, %v6612
      %v6741 = vadd.f32 %v5521, %v6613
      %v6742 = vadd.f32 %v5522, %v6614
      %v6743 = vadd.f32 %v5523, %v6615
      %v6744 = vadd.f32 %v5524, %v6616
      %v6745 = vadd.f32 %v5525, %v6617
      %v6746 = vadd.f32 %v5526, %v6618
      %v6747 = vadd.f32 %v5527, %v6619
      %v6748 = vadd.f32 %v5528, %v6620
      %v6749 = vadd.f32 %v5529, %v6621
      %v6750 = vadd.f32 %v5530, %v6622
      %v6751 = vadd.f32 %v5531, %v6623
      %v6752 = vadd.f32 %v5532, %v6624
      %v6753 = vadd.f32 %v5533, %v6625
      %v6754 = vadd.f32 %v5534, %v6626
      %v6755 = vadd.f32 %v5535, %v6627
      %v6756 = vadd.f32 %v5536, %v6628
      %v6757 = vadd.f32 %v5537, %v6629
      %v6758 = vadd.f32 %v5538, %v6630
      %v6759 = vadd.f32 %v5539, %v6631
      %v6760 = vadd.f32 %v5540, %v6632
      %v6761 = vadd.f32 %v5541, %v6633
      %v6762 = vadd.f32 %v5542, %v6634
      %v6763 = vadd.f32 %v5543, %v6635
      %v6764 = vadd.f32 %v5544, %v6636
      %v6765 = vadd.f32 %v5545, %v6637
      %v6766 = vadd.f32 %v5546, %v6638
      %v6767 = vadd.f32 %v5547, %v6639
      %v6768 = vadd.f32 %v5548, %v6640
      %v6769 = vadd.f32 %v5549, %v6641
      %v6770 = vadd.f32 %v5550, %v6642
      %v6771 = vadd.f32 %v5551, %v6643
      %v6772 = vadd.f32 %v5552, %v6644
      %v6773 = vadd.f32 %v5553, %v6645
      %v6774 = vadd.f32 %v5554, %v6646
      %v6775 = vadd.f32 %v5555, %v6647
      %v6776 = vadd.f32 %v5556, %v6648
      %v6777 = vadd.f32 %v5557, %v6649
      %v6778 = vadd.f32 %v5558, %v6650
      %v6779 = vadd.f32 %v5559, %v6651
      %v6780 = vadd.f32 %v5560, %v6652
      %v6781 = vadd.f32 %v5561, %v6653
      %v6782 = vadd.f32 %v5562, %v6654
      %v6783 = vadd.f32 %v5563, %v6655
      %v6784 = vadd.f32 %v5564, %v6656
      %v6785 = vadd.f32 %v5565, %v6657
      %v6786 = vadd.f32 %v5566, %v6658
      %v6787 = vadd.f32 %v5567, %v6659
      %v6788 = vadd.f32 %v5568, %v6660
      %v6789 = vadd.f32 %v5569, %v6661
      %v6790 = vadd.f32 %v5570, %v6662
      %v6791 = vadd.f32 %v5571, %v6663
      %v6792 = vadd.f32 %v5572, %v6664
      %v6793 = vadd.f32 %v5573, %v6665
      %v6794 = vadd.f32 %v5574, %v6666
      %v6795 = vadd.f32 %v5575, %v6667
      %v6796 = vadd.f32 %v5576, %v6668
      %v6797 = vadd.f32 %v5577, %v6669
      %v6798 = vadd.f32 %v5578, %v6670
      %v6799 = vadd.f32 %v5579, %v6671
      %v6800 = vadd.f32 %v5580, %v6672
      %v6801 = vadd.f32 %v5581, %v6673
      %vm6802 = vcmp.eq.s32.totalorder %v573, 2
      %vm6803 = vcmp.eq.s32.totalorder %v574, 2
      %vm6804 = vcmp.eq.s32.totalorder %v575, 2
      %vm6805 = vcmp.eq.s32.totalorder %v576, 2
      %vm6806 = vcmp.eq.s32.totalorder %v577, 2
      %vm6807 = vcmp.eq.s32.totalorder %v578, 2
      %vm6808 = vcmp.eq.s32.totalorder %v579, 2
      %vm6809 = vcmp.eq.s32.totalorder %v580, 2
      %vm6810 = vcmp.eq.s32.totalorder %v581, 2
      %vm6811 = vcmp.eq.s32.totalorder %v582, 2
      %vm6812 = vcmp.eq.s32.totalorder %v583, 2
      %vm6813 = vcmp.eq.s32.totalorder %v584, 2
      %vm6814 = vcmp.eq.s32.totalorder %v585, 2
      %vm6815 = vcmp.eq.s32.totalorder %v586, 2
      %vm6816 = vcmp.eq.s32.totalorder %v587, 2
      %vm6817 = vcmp.eq.s32.totalorder %v588, 2
      %vm6818 = vcmp.eq.s32.totalorder %v589, 2
      %vm6819 = vcmp.eq.s32.totalorder %v590, 2
      %vm6820 = vcmp.eq.s32.totalorder %v591, 2
      %vm6821 = vcmp.eq.s32.totalorder %v592, 2
      %vm6822 = vcmp.eq.s32.totalorder %v593, 2
      %vm6823 = vcmp.eq.s32.totalorder %v594, 2
      %vm6824 = vcmp.eq.s32.totalorder %v595, 2
      %vm6825 = vcmp.eq.s32.totalorder %v596, 2
      %vm6826 = vcmp.eq.s32.totalorder %v597, 2
      %vm6827 = vcmp.eq.s32.totalorder %v598, 2
      %vm6828 = vcmp.eq.s32.totalorder %v599, 2
      %vm6829 = vcmp.eq.s32.totalorder %v600, 2
      %vm6830 = vcmp.eq.s32.totalorder %v601, 2
      %vm6831 = vcmp.eq.s32.totalorder %v602, 2
      %vm6832 = vcmp.eq.s32.totalorder %v603, 2
      %vm6833 = vcmp.eq.s32.totalorder %v604, 2
      %vm6834 = vcmp.eq.s32.totalorder %v605, 2
      %vm6835 = vcmp.eq.s32.totalorder %v606, 2
      %vm6836 = vcmp.eq.s32.totalorder %v607, 2
      %vm6837 = vcmp.eq.s32.totalorder %v608, 2
      %vm6838 = vcmp.eq.s32.totalorder %v609, 2
      %vm6839 = vcmp.eq.s32.totalorder %v610, 2
      %vm6840 = vcmp.eq.s32.totalorder %v611, 2
      %vm6841 = vcmp.eq.s32.totalorder %v612, 2
      %vm6842 = vcmp.eq.s32.totalorder %v613, 2
      %vm6843 = vcmp.eq.s32.totalorder %v614, 2
      %vm6844 = vcmp.eq.s32.totalorder %v615, 2
      %vm6845 = vcmp.eq.s32.totalorder %v616, 2
      %vm6846 = vcmp.eq.s32.totalorder %v617, 2
      %vm6847 = vcmp.eq.s32.totalorder %v618, 2
      %vm6848 = vcmp.eq.s32.totalorder %v619, 2
      %vm6849 = vcmp.eq.s32.totalorder %v620, 2
      %vm6850 = vcmp.eq.s32.totalorder %v621, 2
      %vm6851 = vcmp.eq.s32.totalorder %v622, 2
      %vm6852 = vcmp.eq.s32.totalorder %v623, 2
      %vm6853 = vcmp.eq.s32.totalorder %v624, 2
      %vm6854 = vcmp.eq.s32.totalorder %v625, 2
      %vm6855 = vcmp.eq.s32.totalorder %v626, 2
      %vm6856 = vcmp.eq.s32.totalorder %v627, 2
      %vm6857 = vcmp.eq.s32.totalorder %v628, 2
      %vm6858 = vcmp.eq.s32.totalorder %v629, 2
      %vm6859 = vcmp.eq.s32.totalorder %v630, 2
      %vm6860 = vcmp.eq.s32.totalorder %v631, 2
      %vm6861 = vcmp.eq.s32.totalorder %v632, 2
      %vm6862 = vcmp.eq.s32.totalorder %v633, 2
      %vm6863 = vcmp.eq.s32.totalorder %v634, 2
      %vm6864 = vcmp.eq.s32.totalorder %v635, 2
      %vm6865 = vcmp.eq.s32.totalorder %v636, 2
      %v6866 = vsel %vm6802, 1, 0
      %v6867 = vsel %vm6803, 1, 0
      %v6868 = vsel %vm6804, 1, 0
      %v6869 = vsel %vm6805, 1, 0
      %v6870 = vsel %vm6806, 1, 0
      %v6871 = vsel %vm6807, 1, 0
      %v6872 = vsel %vm6808, 1, 0
      %v6873 = vsel %vm6809, 1, 0
      %v6874 = vsel %vm6810, 1, 0
      %v6875 = vsel %vm6811, 1, 0
      %v6876 = vsel %vm6812, 1, 0
      %v6877 = vsel %vm6813, 1, 0
      %v6878 = vsel %vm6814, 1, 0
      %v6879 = vsel %vm6815, 1, 0
      %v6880 = vsel %vm6816, 1, 0
      %v6881 = vsel %vm6817, 1, 0
      %v6882 = vsel %vm6818, 1, 0
      %v6883 = vsel %vm6819, 1, 0
      %v6884 = vsel %vm6820, 1, 0
      %v6885 = vsel %vm6821, 1, 0
      %v6886 = vsel %vm6822, 1, 0
      %v6887 = vsel %vm6823, 1, 0
      %v6888 = vsel %vm6824, 1, 0
      %v6889 = vsel %vm6825, 1, 0
      %v6890 = vsel %vm6826, 1, 0
      %v6891 = vsel %vm6827, 1, 0
      %v6892 = vsel %vm6828, 1, 0
      %v6893 = vsel %vm6829, 1, 0
      %v6894 = vsel %vm6830, 1, 0
      %v6895 = vsel %vm6831, 1, 0
      %v6896 = vsel %vm6832, 1, 0
      %v6897 = vsel %vm6833, 1, 0
      %v6898 = vsel %vm6834, 1, 0
      %v6899 = vsel %vm6835, 1, 0
      %v6900 = vsel %vm6836, 1, 0
      %v6901 = vsel %vm6837, 1, 0
      %v6902 = vsel %vm6838, 1, 0
      %v6903 = vsel %vm6839, 1, 0
      %v6904 = vsel %vm6840, 1, 0
      %v6905 = vsel %vm6841, 1, 0
      %v6906 = vsel %vm6842, 1, 0
      %v6907 = vsel %vm6843, 1, 0
      %v6908 = vsel %vm6844, 1, 0
      %v6909 = vsel %vm6845, 1, 0
      %v6910 = vsel %vm6846, 1, 0
      %v6911 = vsel %vm6847, 1, 0
      %v6912 = vsel %vm6848, 1, 0
      %v6913 = vsel %vm6849, 1, 0
      %v6914 = vsel %vm6850, 1, 0
      %v6915 = vsel %vm6851, 1, 0
      %v6916 = vsel %vm6852, 1, 0
      %v6917 = vsel %vm6853, 1, 0
      %v6918 = vsel %vm6854, 1, 0
      %v6919 = vsel %vm6855, 1, 0
      %v6920 = vsel %vm6856, 1, 0
      %v6921 = vsel %vm6857, 1, 0
      %v6922 = vsel %vm6858, 1, 0
      %v6923 = vsel %vm6859, 1, 0
      %v6924 = vsel %vm6860, 1, 0
      %v6925 = vsel %vm6861, 1, 0
      %v6926 = vsel %vm6862, 1, 0
      %v6927 = vsel %vm6863, 1, 0
      %v6928 = vsel %vm6864, 1, 0
      %v6929 = vsel %vm6865, 1, 0
      %v6930 = vlaneseq
      %v6931 = vshrl.u32 %v6930, 7
      %v6932 = vsub.s32 0, %v6931
      %v6933 = vrot.slane %v6866, %v6932
      %v6934 = vlaneseq
      %v6935 = vshrl.u32 %v6934, 7
      %v6936 = vsub.s32 0, %v6935
      %v6937 = vrot.slane %v6867, %v6936
      %v6938 = vlaneseq
      %v6939 = vshrl.u32 %v6938, 7
      %v6940 = vsub.s32 0, %v6939
      %v6941 = vrot.slane %v6868, %v6940
      %v6942 = vlaneseq
      %v6943 = vshrl.u32 %v6942, 7
      %v6944 = vsub.s32 0, %v6943
      %v6945 = vrot.slane %v6869, %v6944
      %v6946 = vlaneseq
      %v6947 = vshrl.u32 %v6946, 7
      %v6948 = vsub.s32 0, %v6947
      %v6949 = vrot.slane %v6870, %v6948
      %v6950 = vlaneseq
      %v6951 = vshrl.u32 %v6950, 7
      %v6952 = vsub.s32 0, %v6951
      %v6953 = vrot.slane %v6871, %v6952
      %v6954 = vlaneseq
      %v6955 = vshrl.u32 %v6954, 7
      %v6956 = vsub.s32 0, %v6955
      %v6957 = vrot.slane %v6872, %v6956
      %v6958 = vlaneseq
      %v6959 = vshrl.u32 %v6958, 7
      %v6960 = vsub.s32 0, %v6959
      %v6961 = vrot.slane %v6873, %v6960
      %v6962 = vlaneseq
      %v6963 = vshrl.u32 %v6962, 7
      %v6964 = vsub.s32 0, %v6963
      %v6965 = vrot.slane %v6874, %v6964
      %v6966 = vlaneseq
      %v6967 = vshrl.u32 %v6966, 7
      %v6968 = vsub.s32 0, %v6967
      %v6969 = vrot.slane %v6875, %v6968
      %v6970 = vlaneseq
      %v6971 = vshrl.u32 %v6970, 7
      %v6972 = vsub.s32 0, %v6971
      %v6973 = vrot.slane %v6876, %v6972
      %v6974 = vlaneseq
      %v6975 = vshrl.u32 %v6974, 7
      %v6976 = vsub.s32 0, %v6975
      %v6977 = vrot.slane %v6877, %v6976
      %v6978 = vlaneseq
      %v6979 = vshrl.u32 %v6978, 7
      %v6980 = vsub.s32 0, %v6979
      %v6981 = vrot.slane %v6878, %v6980
      %v6982 = vlaneseq
      %v6983 = vshrl.u32 %v6982, 7
      %v6984 = vsub.s32 0, %v6983
      %v6985 = vrot.slane %v6879, %v6984
      %v6986 = vlaneseq
      %v6987 = vshrl.u32 %v6986, 7
      %v6988 = vsub.s32 0, %v6987
      %v6989 = vrot.slane %v6880, %v6988
      %v6990 = vlaneseq
      %v6991 = vshrl.u32 %v6990, 7
      %v6992 = vsub.s32 0, %v6991
      %v6993 = vrot.slane %v6881, %v6992
      %v6994 = vlaneseq
      %v6995 = vshrl.u32 %v6994, 7
      %v6996 = vsub.s32 0, %v6995
      %v6997 = vrot.slane %v6882, %v6996
      %v6998 = vlaneseq
      %v6999 = vshrl.u32 %v6998, 7
      %v7000 = vsub.s32 0, %v6999
      %v7001 = vrot.slane %v6883, %v7000
      %v7002 = vlaneseq
      %v7003 = vshrl.u32 %v7002, 7
      %v7004 = vsub.s32 0, %v7003
      %v7005 = vrot.slane %v6884, %v7004
      %v7006 = vlaneseq
      %v7007 = vshrl.u32 %v7006, 7
      %v7008 = vsub.s32 0, %v7007
      %v7009 = vrot.slane %v6885, %v7008
      %v7010 = vlaneseq
      %v7011 = vshrl.u32 %v7010, 7
      %v7012 = vsub.s32 0, %v7011
      %v7013 = vrot.slane %v6886, %v7012
      %v7014 = vlaneseq
      %v7015 = vshrl.u32 %v7014, 7
      %v7016 = vsub.s32 0, %v7015
      %v7017 = vrot.slane %v6887, %v7016
      %v7018 = vlaneseq
      %v7019 = vshrl.u32 %v7018, 7
      %v7020 = vsub.s32 0, %v7019
      %v7021 = vrot.slane %v6888, %v7020
      %v7022 = vlaneseq
      %v7023 = vshrl.u32 %v7022, 7
      %v7024 = vsub.s32 0, %v7023
      %v7025 = vrot.slane %v6889, %v7024
      %v7026 = vlaneseq
      %v7027 = vshrl.u32 %v7026, 7
      %v7028 = vsub.s32 0, %v7027
      %v7029 = vrot.slane %v6890, %v7028
      %v7030 = vlaneseq
      %v7031 = vshrl.u32 %v7030, 7
      %v7032 = vsub.s32 0, %v7031
      %v7033 = vrot.slane %v6891, %v7032
      %v7034 = vlaneseq
      %v7035 = vshrl.u32 %v7034, 7
      %v7036 = vsub.s32 0, %v7035
      %v7037 = vrot.slane %v6892, %v7036
      %v7038 = vlaneseq
      %v7039 = vshrl.u32 %v7038, 7
      %v7040 = vsub.s32 0, %v7039
      %v7041 = vrot.slane %v6893, %v7040
      %v7042 = vlaneseq
      %v7043 = vshrl.u32 %v7042, 7
      %v7044 = vsub.s32 0, %v7043
      %v7045 = vrot.slane %v6894, %v7044
      %v7046 = vlaneseq
      %v7047 = vshrl.u32 %v7046, 7
      %v7048 = vsub.s32 0, %v7047
      %v7049 = vrot.slane %v6895, %v7048
      %v7050 = vlaneseq
      %v7051 = vshrl.u32 %v7050, 7
      %v7052 = vsub.s32 0, %v7051
      %v7053 = vrot.slane %v6896, %v7052
      %v7054 = vlaneseq
      %v7055 = vshrl.u32 %v7054, 7
      %v7056 = vsub.s32 0, %v7055
      %v7057 = vrot.slane %v6897, %v7056
      %v7058 = vlaneseq
      %v7059 = vshrl.u32 %v7058, 7
      %v7060 = vsub.s32 0, %v7059
      %v7061 = vrot.slane %v6898, %v7060
      %v7062 = vlaneseq
      %v7063 = vshrl.u32 %v7062, 7
      %v7064 = vsub.s32 0, %v7063
      %v7065 = vrot.slane %v6899, %v7064
      %v7066 = vlaneseq
      %v7067 = vshrl.u32 %v7066, 7
      %v7068 = vsub.s32 0, %v7067
      %v7069 = vrot.slane %v6900, %v7068
      %v7070 = vlaneseq
      %v7071 = vshrl.u32 %v7070, 7
      %v7072 = vsub.s32 0, %v7071
      %v7073 = vrot.slane %v6901, %v7072
      %v7074 = vlaneseq
      %v7075 = vshrl.u32 %v7074, 7
      %v7076 = vsub.s32 0, %v7075
      %v7077 = vrot.slane %v6902, %v7076
      %v7078 = vlaneseq
      %v7079 = vshrl.u32 %v7078, 7
      %v7080 = vsub.s32 0, %v7079
      %v7081 = vrot.slane %v6903, %v7080
      %v7082 = vlaneseq
      %v7083 = vshrl.u32 %v7082, 7
      %v7084 = vsub.s32 0, %v7083
      %v7085 = vrot.slane %v6904, %v7084
      %v7086 = vlaneseq
      %v7087 = vshrl.u32 %v7086, 7
      %v7088 = vsub.s32 0, %v7087
      %v7089 = vrot.slane %v6905, %v7088
      %v7090 = vlaneseq
      %v7091 = vshrl.u32 %v7090, 7
      %v7092 = vsub.s32 0, %v7091
      %v7093 = vrot.slane %v6906, %v7092
      %v7094 = vlaneseq
      %v7095 = vshrl.u32 %v7094, 7
      %v7096 = vsub.s32 0, %v7095
      %v7097 = vrot.slane %v6907, %v7096
      %v7098 = vlaneseq
      %v7099 = vshrl.u32 %v7098, 7
      %v7100 = vsub.s32 0, %v7099
      %v7101 = vrot.slane %v6908, %v7100
      %v7102 = vlaneseq
      %v7103 = vshrl.u32 %v7102, 7
      %v7104 = vsub.s32 0, %v7103
      %v7105 = vrot.slane %v6909, %v7104
      %v7106 = vlaneseq
      %v7107 = vshrl.u32 %v7106, 7
      %v7108 = vsub.s32 0, %v7107
      %v7109 = vrot.slane %v6910, %v7108
      %v7110 = vlaneseq
      %v7111 = vshrl.u32 %v7110, 7
      %v7112 = vsub.s32 0, %v7111
      %v7113 = vrot.slane %v6911, %v7112
      %v7114 = vlaneseq
      %v7115 = vshrl.u32 %v7114, 7
      %v7116 = vsub.s32 0, %v7115
      %v7117 = vrot.slane %v6912, %v7116
      %v7118 = vlaneseq
      %v7119 = vshrl.u32 %v7118, 7
      %v7120 = vsub.s32 0, %v7119
      %v7121 = vrot.slane %v6913, %v7120
      %v7122 = vlaneseq
      %v7123 = vshrl.u32 %v7122, 7
      %v7124 = vsub.s32 0, %v7123
      %v7125 = vrot.slane %v6914, %v7124
      %v7126 = vlaneseq
      %v7127 = vshrl.u32 %v7126, 7
      %v7128 = vsub.s32 0, %v7127
      %v7129 = vrot.slane %v6915, %v7128
      %v7130 = vlaneseq
      %v7131 = vshrl.u32 %v7130, 7
      %v7132 = vsub.s32 0, %v7131
      %v7133 = vrot.slane %v6916, %v7132
      %v7134 = vlaneseq
      %v7135 = vshrl.u32 %v7134, 7
      %v7136 = vsub.s32 0, %v7135
      %v7137 = vrot.slane %v6917, %v7136
      %v7138 = vlaneseq
      %v7139 = vshrl.u32 %v7138, 7
      %v7140 = vsub.s32 0, %v7139
      %v7141 = vrot.slane %v6918, %v7140
      %v7142 = vlaneseq
      %v7143 = vshrl.u32 %v7142, 7
      %v7144 = vsub.s32 0, %v7143
      %v7145 = vrot.slane %v6919, %v7144
      %v7146 = vlaneseq
      %v7147 = vshrl.u32 %v7146, 7
      %v7148 = vsub.s32 0, %v7147
      %v7149 = vrot.slane %v6920, %v7148
      %v7150 = vlaneseq
      %v7151 = vshrl.u32 %v7150, 7
      %v7152 = vsub.s32 0, %v7151
      %v7153 = vrot.slane %v6921, %v7152
      %v7154 = vlaneseq
      %v7155 = vshrl.u32 %v7154, 7
      %v7156 = vsub.s32 0, %v7155
      %v7157 = vrot.slane %v6922, %v7156
      %v7158 = vlaneseq
      %v7159 = vshrl.u32 %v7158, 7
      %v7160 = vsub.s32 0, %v7159
      %v7161 = vrot.slane %v6923, %v7160
      %v7162 = vlaneseq
      %v7163 = vshrl.u32 %v7162, 7
      %v7164 = vsub.s32 0, %v7163
      %v7165 = vrot.slane %v6924, %v7164
      %v7166 = vlaneseq
      %v7167 = vshrl.u32 %v7166, 7
      %v7168 = vsub.s32 0, %v7167
      %v7169 = vrot.slane %v6925, %v7168
      %v7170 = vlaneseq
      %v7171 = vshrl.u32 %v7170, 7
      %v7172 = vsub.s32 0, %v7171
      %v7173 = vrot.slane %v6926, %v7172
      %v7174 = vlaneseq
      %v7175 = vshrl.u32 %v7174, 7
      %v7176 = vsub.s32 0, %v7175
      %v7177 = vrot.slane %v6927, %v7176
      %v7178 = vlaneseq
      %v7179 = vshrl.u32 %v7178, 7
      %v7180 = vsub.s32 0, %v7179
      %v7181 = vrot.slane %v6928, %v7180
      %v7182 = vlaneseq
      %v7183 = vshrl.u32 %v7182, 7
      %v7184 = vsub.s32 0, %v7183
      %v7185 = vrot.slane %v6929, %v7184
      %vm7186 = vcmp.eq.s32.totalorder %v6933, 1
      %vm7187 = vcmp.eq.s32.totalorder %v6937, 1
      %vm7188 = vcmp.eq.s32.totalorder %v6941, 1
      %vm7189 = vcmp.eq.s32.totalorder %v6945, 1
      %vm7190 = vcmp.eq.s32.totalorder %v6949, 1
      %vm7191 = vcmp.eq.s32.totalorder %v6953, 1
      %vm7192 = vcmp.eq.s32.totalorder %v6957, 1
      %vm7193 = vcmp.eq.s32.totalorder %v6961, 1
      %vm7194 = vcmp.eq.s32.totalorder %v6965, 1
      %vm7195 = vcmp.eq.s32.totalorder %v6969, 1
      %vm7196 = vcmp.eq.s32.totalorder %v6973, 1
      %vm7197 = vcmp.eq.s32.totalorder %v6977, 1
      %vm7198 = vcmp.eq.s32.totalorder %v6981, 1
      %vm7199 = vcmp.eq.s32.totalorder %v6985, 1
      %vm7200 = vcmp.eq.s32.totalorder %v6989, 1
      %vm7201 = vcmp.eq.s32.totalorder %v6993, 1
      %vm7202 = vcmp.eq.s32.totalorder %v6997, 1
      %vm7203 = vcmp.eq.s32.totalorder %v7001, 1
      %vm7204 = vcmp.eq.s32.totalorder %v7005, 1
      %vm7205 = vcmp.eq.s32.totalorder %v7009, 1
      %vm7206 = vcmp.eq.s32.totalorder %v7013, 1
      %vm7207 = vcmp.eq.s32.totalorder %v7017, 1
      %vm7208 = vcmp.eq.s32.totalorder %v7021, 1
      %vm7209 = vcmp.eq.s32.totalorder %v7025, 1
      %vm7210 = vcmp.eq.s32.totalorder %v7029, 1
      %vm7211 = vcmp.eq.s32.totalorder %v7033, 1
      %vm7212 = vcmp.eq.s32.totalorder %v7037, 1
      %vm7213 = vcmp.eq.s32.totalorder %v7041, 1
      %vm7214 = vcmp.eq.s32.totalorder %v7045, 1
      %vm7215 = vcmp.eq.s32.totalorder %v7049, 1
      %vm7216 = vcmp.eq.s32.totalorder %v7053, 1
      %vm7217 = vcmp.eq.s32.totalorder %v7057, 1
      %vm7218 = vcmp.eq.s32.totalorder %v7061, 1
      %vm7219 = vcmp.eq.s32.totalorder %v7065, 1
      %vm7220 = vcmp.eq.s32.totalorder %v7069, 1
      %vm7221 = vcmp.eq.s32.totalorder %v7073, 1
      %vm7222 = vcmp.eq.s32.totalorder %v7077, 1
      %vm7223 = vcmp.eq.s32.totalorder %v7081, 1
      %vm7224 = vcmp.eq.s32.totalorder %v7085, 1
      %vm7225 = vcmp.eq.s32.totalorder %v7089, 1
      %vm7226 = vcmp.eq.s32.totalorder %v7093, 1
      %vm7227 = vcmp.eq.s32.totalorder %v7097, 1
      %vm7228 = vcmp.eq.s32.totalorder %v7101, 1
      %vm7229 = vcmp.eq.s32.totalorder %v7105, 1
      %vm7230 = vcmp.eq.s32.totalorder %v7109, 1
      %vm7231 = vcmp.eq.s32.totalorder %v7113, 1
      %vm7232 = vcmp.eq.s32.totalorder %v7117, 1
      %vm7233 = vcmp.eq.s32.totalorder %v7121, 1
      %vm7234 = vcmp.eq.s32.totalorder %v7125, 1
      %vm7235 = vcmp.eq.s32.totalorder %v7129, 1
      %vm7236 = vcmp.eq.s32.totalorder %v7133, 1
      %vm7237 = vcmp.eq.s32.totalorder %v7137, 1
      %vm7238 = vcmp.eq.s32.totalorder %v7141, 1
      %vm7239 = vcmp.eq.s32.totalorder %v7145, 1
      %vm7240 = vcmp.eq.s32.totalorder %v7149, 1
      %vm7241 = vcmp.eq.s32.totalorder %v7153, 1
      %vm7242 = vcmp.eq.s32.totalorder %v7157, 1
      %vm7243 = vcmp.eq.s32.totalorder %v7161, 1
      %vm7244 = vcmp.eq.s32.totalorder %v7165, 1
      %vm7245 = vcmp.eq.s32.totalorder %v7169, 1
      %vm7246 = vcmp.eq.s32.totalorder %v7173, 1
      %vm7247 = vcmp.eq.s32.totalorder %v7177, 1
      %vm7248 = vcmp.eq.s32.totalorder %v7181, 1
      %vm7249 = vcmp.eq.s32.totalorder %v7185, 1
      %v7250 = vsel %vm7186, %v4360, 0.0
      %v7251 = vsel %vm7186, %v4361, 0.0
      %v7252 = vsel %vm7187, %v4362, 0.0
      %v7253 = vsel %vm7187, %v4363, 0.0
      %v7254 = vsel %vm7188, %v4364, 0.0
      %v7255 = vsel %vm7188, %v4365, 0.0
      %v7256 = vsel %vm7189, %v4366, 0.0
      %v7257 = vsel %vm7189, %v4367, 0.0
      %v7258 = vsel %vm7190, %v4368, 0.0
      %v7259 = vsel %vm7190, %v4369, 0.0
      %v7260 = vsel %vm7191, %v4370, 0.0
      %v7261 = vsel %vm7191, %v4371, 0.0
      %v7262 = vsel %vm7192, %v4372, 0.0
      %v7263 = vsel %vm7192, %v4373, 0.0
      %v7264 = vsel %vm7193, %v4374, 0.0
      %v7265 = vsel %vm7193, %v4375, 0.0
      %v7266 = vsel %vm7194, %v4376, 0.0
      %v7267 = vsel %vm7194, %v4377, 0.0
      %v7268 = vsel %vm7195, %v4378, 0.0
      %v7269 = vsel %vm7195, %v4379, 0.0
      %v7270 = vsel %vm7196, %v4380, 0.0
      %v7271 = vsel %vm7196, %v4381, 0.0
      %v7272 = vsel %vm7197, %v4382, 0.0
      %v7273 = vsel %vm7197, %v4383, 0.0
      %v7274 = vsel %vm7198, %v4384, 0.0
      %v7275 = vsel %vm7198, %v4385, 0.0
      %v7276 = vsel %vm7199, %v4386, 0.0
      %v7277 = vsel %vm7199, %v4387, 0.0
      %v7278 = vsel %vm7200, %v4388, 0.0
      %v7279 = vsel %vm7200, %v4389, 0.0
      %v7280 = vsel %vm7201, %v4390, 0.0
      %v7281 = vsel %vm7201, %v4391, 0.0
      %v7282 = vsel %vm7202, %v4392, 0.0
      %v7283 = vsel %vm7202, %v4393, 0.0
      %v7284 = vsel %vm7203, %v4394, 0.0
      %v7285 = vsel %vm7203, %v4395, 0.0
      %v7286 = vsel %vm7204, %v4396, 0.0
      %v7287 = vsel %vm7204, %v4397, 0.0
      %v7288 = vsel %vm7205, %v4398, 0.0
      %v7289 = vsel %vm7205, %v4399, 0.0
      %v7290 = vsel %vm7206, %v4400, 0.0
      %v7291 = vsel %vm7206, %v4401, 0.0
      %v7292 = vsel %vm7207, %v4402, 0.0
      %v7293 = vsel %vm7207, %v4403, 0.0
      %v7294 = vsel %vm7208, %v4404, 0.0
      %v7295 = vsel %vm7208, %v4405, 0.0
      %v7296 = vsel %vm7209, %v4406, 0.0
      %v7297 = vsel %vm7209, %v4407, 0.0
      %v7298 = vsel %vm7210, %v4408, 0.0
      %v7299 = vsel %vm7210, %v4409, 0.0
      %v7300 = vsel %vm7211, %v4410, 0.0
      %v7301 = vsel %vm7211, %v4411, 0.0
      %v7302 = vsel %vm7212, %v4412, 0.0
      %v7303 = vsel %vm7212, %v4413, 0.0
      %v7304 = vsel %vm7213, %v4414, 0.0
      %v7305 = vsel %vm7213, %v4415, 0.0
      %v7306 = vsel %vm7214, %v4416, 0.0
      %v7307 = vsel %vm7214, %v4417, 0.0
      %v7308 = vsel %vm7215, %v4418, 0.0
      %v7309 = vsel %vm7215, %v4419, 0.0
      %v7310 = vsel %vm7216, %v4420, 0.0
      %v7311 = vsel %vm7216, %v4421, 0.0
      %v7312 = vsel %vm7217, %v4422, 0.0
      %v7313 = vsel %vm7217, %v4423, 0.0
      %v7314 = vsel %vm7218, %v4424, 0.0
      %v7315 = vsel %vm7218, %v4425, 0.0
      %v7316 = vsel %vm7219, %v4426, 0.0
      %v7317 = vsel %vm7219, %v4427, 0.0
      %v7318 = vsel %vm7220, %v4428, 0.0
      %v7319 = vsel %vm7220, %v4429, 0.0
      %v7320 = vsel %vm7221, %v4430, 0.0
      %v7321 = vsel %vm7221, %v4431, 0.0
      %v7322 = vsel %vm7222, %v4432, 0.0
      %v7323 = vsel %vm7222, %v4433, 0.0
      %v7324 = vsel %vm7223, %v4434, 0.0
      %v7325 = vsel %vm7223, %v4435, 0.0
      %v7326 = vsel %vm7224, %v4436, 0.0
      %v7327 = vsel %vm7224, %v4437, 0.0
      %v7328 = vsel %vm7225, %v4438, 0.0
      %v7329 = vsel %vm7225, %v4439, 0.0
      %v7330 = vsel %vm7226, %v4440, 0.0
      %v7331 = vsel %vm7226, %v4441, 0.0
      %v7332 = vsel %vm7227, %v4442, 0.0
      %v7333 = vsel %vm7227, %v4443, 0.0
      %v7334 = vsel %vm7228, %v4444, 0.0
      %v7335 = vsel %vm7228, %v4445, 0.0
      %v7336 = vsel %vm7229, %v4446, 0.0
      %v7337 = vsel %vm7229, %v4447, 0.0
      %v7338 = vsel %vm7230, %v4448, 0.0
      %v7339 = vsel %vm7230, %v4449, 0.0
      %v7340 = vsel %vm7231, %v4450, 0.0
      %v7341 = vsel %vm7231, %v4451, 0.0
      %v7342 = vsel %vm7232, %v4452, 0.0
      %v7343 = vsel %vm7232, %v4453, 0.0
      %v7344 = vsel %vm7233, %v4454, 0.0
      %v7345 = vsel %vm7233, %v4455, 0.0
      %v7346 = vsel %vm7234, %v4456, 0.0
      %v7347 = vsel %vm7234, %v4457, 0.0
      %v7348 = vsel %vm7235, %v4458, 0.0
      %v7349 = vsel %vm7235, %v4459, 0.0
      %v7350 = vsel %vm7236, %v4460, 0.0
      %v7351 = vsel %vm7236, %v4461, 0.0
      %v7352 = vsel %vm7237, %v4462, 0.0
      %v7353 = vsel %vm7237, %v4463, 0.0
      %v7354 = vsel %vm7238, %v4464, 0.0
      %v7355 = vsel %vm7238, %v4465, 0.0
      %v7356 = vsel %vm7239, %v4466, 0.0
      %v7357 = vsel %vm7239, %v4467, 0.0
      %v7358 = vsel %vm7240, %v4468, 0.0
      %v7359 = vsel %vm7240, %v4469, 0.0
      %v7360 = vsel %vm7241, %v4470, 0.0
      %v7361 = vsel %vm7241, %v4471, 0.0
      %v7362 = vsel %vm7242, %v4472, 0.0
      %v7363 = vsel %vm7242, %v4473, 0.0
      %v7364 = vsel %vm7243, %v4474, 0.0
      %v7365 = vsel %vm7243, %v4475, 0.0
      %v7366 = vsel %vm7244, %v4476, 0.0
      %v7367 = vsel %vm7244, %v4477, 0.0
      %v7368 = vsel %vm7245, %v4478, 0.0
      %v7369 = vsel %vm7245, %v4479, 0.0
      %v7370 = vsel %vm7246, %v4480, 0.0
      %v7371 = vsel %vm7246, %v4481, 0.0
      %v7372 = vsel %vm7247, %v4482, 0.0
      %v7373 = vsel %vm7247, %v4483, 0.0
      %v7374 = vsel %vm7248, %v4484, 0.0
      %v7375 = vsel %vm7248, %v4485, 0.0
      %v7376 = vsel %vm7249, %v4486, 0.0
      %v7377 = vsel %vm7249, %v4487, 0.0
      %v7378 = vsel %vm5065, %v7250, 0.0
      %7379 = vadd.xlane.f32.xlu0 %v7378
      %v7380 = vpop.xlane.xlu0 %7379
      %v7381 = vsel %vm5065, %v7251, 0.0
      %7382 = vadd.xlane.f32.xlu0 %v7381
      %v7383 = vpop.xlane.xlu0 %7382
      %v7384 = vsel %vm5065, %v7252, 0.0
      %7385 = vadd.xlane.f32.xlu0 %v7384
      %v7386 = vpop.xlane.xlu0 %7385
      %v7387 = vsel %vm5065, %v7253, 0.0
      %7388 = vadd.xlane.f32.xlu0 %v7387
      %v7389 = vpop.xlane.xlu0 %7388
      %v7390 = vsel %vm5065, %v7254, 0.0
      %7391 = vadd.xlane.f32.xlu0 %v7390
      %v7392 = vpop.xlane.xlu0 %7391
      %v7393 = vsel %vm5065, %v7255, 0.0
      %7394 = vadd.xlane.f32.xlu0 %v7393
      %v7395 = vpop.xlane.xlu0 %7394
      %v7396 = vsel %vm5065, %v7256, 0.0
      %7397 = vadd.xlane.f32.xlu0 %v7396
      %v7398 = vpop.xlane.xlu0 %7397
      %v7399 = vsel %vm5065, %v7257, 0.0
      %7400 = vadd.xlane.f32.xlu0 %v7399
      %v7401 = vpop.xlane.xlu0 %7400
      %v7402 = vsel %vm5065, %v7258, 0.0
      %7403 = vadd.xlane.f32.xlu0 %v7402
      %v7404 = vpop.xlane.xlu0 %7403
      %v7405 = vsel %vm5065, %v7259, 0.0
      %7406 = vadd.xlane.f32.xlu0 %v7405
      %v7407 = vpop.xlane.xlu0 %7406
      %v7408 = vsel %vm5065, %v7260, 0.0
      %7409 = vadd.xlane.f32.xlu0 %v7408
      %v7410 = vpop.xlane.xlu0 %7409
      %v7411 = vsel %vm5065, %v7261, 0.0
      %7412 = vadd.xlane.f32.xlu0 %v7411
      %v7413 = vpop.xlane.xlu0 %7412
      %v7414 = vsel %vm5065, %v7262, 0.0
      %7415 = vadd.xlane.f32.xlu0 %v7414
      %v7416 = vpop.xlane.xlu0 %7415
      %v7417 = vsel %vm5065, %v7263, 0.0
      %7418 = vadd.xlane.f32.xlu0 %v7417
      %v7419 = vpop.xlane.xlu0 %7418
      %v7420 = vsel %vm5065, %v7264, 0.0
      %7421 = vadd.xlane.f32.xlu0 %v7420
      %v7422 = vpop.xlane.xlu0 %7421
      %v7423 = vsel %vm5065, %v7265, 0.0
      %7424 = vadd.xlane.f32.xlu0 %v7423
      %v7425 = vpop.xlane.xlu0 %7424
      %v7426 = vsel %vm5065, %v7266, 0.0
      %7427 = vadd.xlane.f32.xlu0 %v7426
      %v7428 = vpop.xlane.xlu0 %7427
      %v7429 = vsel %vm5065, %v7267, 0.0
      %7430 = vadd.xlane.f32.xlu0 %v7429
      %v7431 = vpop.xlane.xlu0 %7430
      %v7432 = vsel %vm5065, %v7268, 0.0
      %7433 = vadd.xlane.f32.xlu0 %v7432
      %v7434 = vpop.xlane.xlu0 %7433
      %v7435 = vsel %vm5065, %v7269, 0.0
      %7436 = vadd.xlane.f32.xlu0 %v7435
      %v7437 = vpop.xlane.xlu0 %7436
      %v7438 = vsel %vm5065, %v7270, 0.0
      %7439 = vadd.xlane.f32.xlu0 %v7438
      %v7440 = vpop.xlane.xlu0 %7439
      %v7441 = vsel %vm5065, %v7271, 0.0
      %7442 = vadd.xlane.f32.xlu0 %v7441
      %v7443 = vpop.xlane.xlu0 %7442
      %v7444 = vsel %vm5065, %v7272, 0.0
      %7445 = vadd.xlane.f32.xlu0 %v7444
      %v7446 = vpop.xlane.xlu0 %7445
      %v7447 = vsel %vm5065, %v7273, 0.0
      %7448 = vadd.xlane.f32.xlu0 %v7447
      %v7449 = vpop.xlane.xlu0 %7448
      %v7450 = vsel %vm5065, %v7274, 0.0
      %7451 = vadd.xlane.f32.xlu0 %v7450
      %v7452 = vpop.xlane.xlu0 %7451
      %v7453 = vsel %vm5065, %v7275, 0.0
      %7454 = vadd.xlane.f32.xlu0 %v7453
      %v7455 = vpop.xlane.xlu0 %7454
      %v7456 = vsel %vm5065, %v7276, 0.0
      %7457 = vadd.xlane.f32.xlu0 %v7456
      %v7458 = vpop.xlane.xlu0 %7457
      %v7459 = vsel %vm5065, %v7277, 0.0
      %7460 = vadd.xlane.f32.xlu0 %v7459
      %v7461 = vpop.xlane.xlu0 %7460
      %v7462 = vsel %vm5065, %v7278, 0.0
      %7463 = vadd.xlane.f32.xlu0 %v7462
      %v7464 = vpop.xlane.xlu0 %7463
      %v7465 = vsel %vm5065, %v7279, 0.0
      %7466 = vadd.xlane.f32.xlu0 %v7465
      %v7467 = vpop.xlane.xlu0 %7466
      %v7468 = vsel %vm5065, %v7280, 0.0
      %7469 = vadd.xlane.f32.xlu0 %v7468
      %v7470 = vpop.xlane.xlu0 %7469
      %v7471 = vsel %vm5065, %v7281, 0.0
      %7472 = vadd.xlane.f32.xlu0 %v7471
      %v7473 = vpop.xlane.xlu0 %7472
      %v7474 = vsel %vm5065, %v7282, 0.0
      %7475 = vadd.xlane.f32.xlu0 %v7474
      %v7476 = vpop.xlane.xlu0 %7475
      %v7477 = vsel %vm5065, %v7283, 0.0
      %7478 = vadd.xlane.f32.xlu0 %v7477
      %v7479 = vpop.xlane.xlu0 %7478
      %v7480 = vsel %vm5065, %v7284, 0.0
      %7481 = vadd.xlane.f32.xlu0 %v7480
      %v7482 = vpop.xlane.xlu0 %7481
      %v7483 = vsel %vm5065, %v7285, 0.0
      %7484 = vadd.xlane.f32.xlu0 %v7483
      %v7485 = vpop.xlane.xlu0 %7484
      %v7486 = vsel %vm5065, %v7286, 0.0
      %7487 = vadd.xlane.f32.xlu0 %v7486
      %v7488 = vpop.xlane.xlu0 %7487
      %v7489 = vsel %vm5065, %v7287, 0.0
      %7490 = vadd.xlane.f32.xlu0 %v7489
      %v7491 = vpop.xlane.xlu0 %7490
      %v7492 = vsel %vm5065, %v7288, 0.0
      %7493 = vadd.xlane.f32.xlu0 %v7492
      %v7494 = vpop.xlane.xlu0 %7493
      %v7495 = vsel %vm5065, %v7289, 0.0
      %7496 = vadd.xlane.f32.xlu0 %v7495
      %v7497 = vpop.xlane.xlu0 %7496
      %v7498 = vsel %vm5065, %v7290, 0.0
      %7499 = vadd.xlane.f32.xlu0 %v7498
      %v7500 = vpop.xlane.xlu0 %7499
      %v7501 = vsel %vm5065, %v7291, 0.0
      %7502 = vadd.xlane.f32.xlu0 %v7501
      %v7503 = vpop.xlane.xlu0 %7502
      %v7504 = vsel %vm5065, %v7292, 0.0
      %7505 = vadd.xlane.f32.xlu0 %v7504
      %v7506 = vpop.xlane.xlu0 %7505
      %v7507 = vsel %vm5065, %v7293, 0.0
      %7508 = vadd.xlane.f32.xlu0 %v7507
      %v7509 = vpop.xlane.xlu0 %7508
      %v7510 = vsel %vm5065, %v7294, 0.0
      %7511 = vadd.xlane.f32.xlu0 %v7510
      %v7512 = vpop.xlane.xlu0 %7511
      %v7513 = vsel %vm5065, %v7295, 0.0
      %7514 = vadd.xlane.f32.xlu0 %v7513
      %v7515 = vpop.xlane.xlu0 %7514
      %v7516 = vsel %vm5065, %v7296, 0.0
      %7517 = vadd.xlane.f32.xlu0 %v7516
      %v7518 = vpop.xlane.xlu0 %7517
      %v7519 = vsel %vm5065, %v7297, 0.0
      %7520 = vadd.xlane.f32.xlu0 %v7519
      %v7521 = vpop.xlane.xlu0 %7520
      %v7522 = vsel %vm5065, %v7298, 0.0
      %7523 = vadd.xlane.f32.xlu0 %v7522
      %v7524 = vpop.xlane.xlu0 %7523
      %v7525 = vsel %vm5065, %v7299, 0.0
      %7526 = vadd.xlane.f32.xlu0 %v7525
      %v7527 = vpop.xlane.xlu0 %7526
      %v7528 = vsel %vm5065, %v7300, 0.0
      %7529 = vadd.xlane.f32.xlu0 %v7528
      %v7530 = vpop.xlane.xlu0 %7529
      %v7531 = vsel %vm5065, %v7301, 0.0
      %7532 = vadd.xlane.f32.xlu0 %v7531
      %v7533 = vpop.xlane.xlu0 %7532
      %v7534 = vsel %vm5065, %v7302, 0.0
      %7535 = vadd.xlane.f32.xlu0 %v7534
      %v7536 = vpop.xlane.xlu0 %7535
      %v7537 = vsel %vm5065, %v7303, 0.0
      %7538 = vadd.xlane.f32.xlu0 %v7537
      %v7539 = vpop.xlane.xlu0 %7538
      %v7540 = vsel %vm5065, %v7304, 0.0
      %7541 = vadd.xlane.f32.xlu0 %v7540
      %v7542 = vpop.xlane.xlu0 %7541
      %v7543 = vsel %vm5065, %v7305, 0.0
      %7544 = vadd.xlane.f32.xlu0 %v7543
      %v7545 = vpop.xlane.xlu0 %7544
      %v7546 = vsel %vm5065, %v7306, 0.0
      %7547 = vadd.xlane.f32.xlu0 %v7546
      %v7548 = vpop.xlane.xlu0 %7547
      %v7549 = vsel %vm5065, %v7307, 0.0
      %7550 = vadd.xlane.f32.xlu0 %v7549
      %v7551 = vpop.xlane.xlu0 %7550
      %v7552 = vsel %vm5065, %v7308, 0.0
      %7553 = vadd.xlane.f32.xlu0 %v7552
      %v7554 = vpop.xlane.xlu0 %7553
      %v7555 = vsel %vm5065, %v7309, 0.0
      %7556 = vadd.xlane.f32.xlu0 %v7555
      %v7557 = vpop.xlane.xlu0 %7556
      %v7558 = vsel %vm5065, %v7310, 0.0
      %7559 = vadd.xlane.f32.xlu0 %v7558
      %v7560 = vpop.xlane.xlu0 %7559
      %v7561 = vsel %vm5065, %v7311, 0.0
      %7562 = vadd.xlane.f32.xlu0 %v7561
      %v7563 = vpop.xlane.xlu0 %7562
      %v7564 = vsel %vm5065, %v7312, 0.0
      %7565 = vadd.xlane.f32.xlu0 %v7564
      %v7566 = vpop.xlane.xlu0 %7565
      %v7567 = vsel %vm5065, %v7313, 0.0
      %7568 = vadd.xlane.f32.xlu0 %v7567
      %v7569 = vpop.xlane.xlu0 %7568
      %v7570 = vsel %vm5065, %v7314, 0.0
      %7571 = vadd.xlane.f32.xlu0 %v7570
      %v7572 = vpop.xlane.xlu0 %7571
      %v7573 = vsel %vm5065, %v7315, 0.0
      %7574 = vadd.xlane.f32.xlu0 %v7573
      %v7575 = vpop.xlane.xlu0 %7574
      %v7576 = vsel %vm5065, %v7316, 0.0
      %7577 = vadd.xlane.f32.xlu0 %v7576
      %v7578 = vpop.xlane.xlu0 %7577
      %v7579 = vsel %vm5065, %v7317, 0.0
      %7580 = vadd.xlane.f32.xlu0 %v7579
      %v7581 = vpop.xlane.xlu0 %7580
      %v7582 = vsel %vm5065, %v7318, 0.0
      %7583 = vadd.xlane.f32.xlu0 %v7582
      %v7584 = vpop.xlane.xlu0 %7583
      %v7585 = vsel %vm5065, %v7319, 0.0
      %7586 = vadd.xlane.f32.xlu0 %v7585
      %v7587 = vpop.xlane.xlu0 %7586
      %v7588 = vsel %vm5065, %v7320, 0.0
      %7589 = vadd.xlane.f32.xlu0 %v7588
      %v7590 = vpop.xlane.xlu0 %7589
      %v7591 = vsel %vm5065, %v7321, 0.0
      %7592 = vadd.xlane.f32.xlu0 %v7591
      %v7593 = vpop.xlane.xlu0 %7592
      %v7594 = vsel %vm5065, %v7322, 0.0
      %7595 = vadd.xlane.f32.xlu0 %v7594
      %v7596 = vpop.xlane.xlu0 %7595
      %v7597 = vsel %vm5065, %v7323, 0.0
      %7598 = vadd.xlane.f32.xlu0 %v7597
      %v7599 = vpop.xlane.xlu0 %7598
      %v7600 = vsel %vm5065, %v7324, 0.0
      %7601 = vadd.xlane.f32.xlu0 %v7600
      %v7602 = vpop.xlane.xlu0 %7601
      %v7603 = vsel %vm5065, %v7325, 0.0
      %7604 = vadd.xlane.f32.xlu0 %v7603
      %v7605 = vpop.xlane.xlu0 %7604
      %v7606 = vsel %vm5065, %v7326, 0.0
      %7607 = vadd.xlane.f32.xlu0 %v7606
      %v7608 = vpop.xlane.xlu0 %7607
      %v7609 = vsel %vm5065, %v7327, 0.0
      %7610 = vadd.xlane.f32.xlu0 %v7609
      %v7611 = vpop.xlane.xlu0 %7610
      %v7612 = vsel %vm5065, %v7328, 0.0
      %7613 = vadd.xlane.f32.xlu0 %v7612
      %v7614 = vpop.xlane.xlu0 %7613
      %v7615 = vsel %vm5065, %v7329, 0.0
      %7616 = vadd.xlane.f32.xlu0 %v7615
      %v7617 = vpop.xlane.xlu0 %7616
      %v7618 = vsel %vm5065, %v7330, 0.0
      %7619 = vadd.xlane.f32.xlu0 %v7618
      %v7620 = vpop.xlane.xlu0 %7619
      %v7621 = vsel %vm5065, %v7331, 0.0
      %7622 = vadd.xlane.f32.xlu0 %v7621
      %v7623 = vpop.xlane.xlu0 %7622
      %v7624 = vsel %vm5065, %v7332, 0.0
      %7625 = vadd.xlane.f32.xlu0 %v7624
      %v7626 = vpop.xlane.xlu0 %7625
      %v7627 = vsel %vm5065, %v7333, 0.0
      %7628 = vadd.xlane.f32.xlu0 %v7627
      %v7629 = vpop.xlane.xlu0 %7628
      %v7630 = vsel %vm5065, %v7334, 0.0
      %7631 = vadd.xlane.f32.xlu0 %v7630
      %v7632 = vpop.xlane.xlu0 %7631
      %v7633 = vsel %vm5065, %v7335, 0.0
      %7634 = vadd.xlane.f32.xlu0 %v7633
      %v7635 = vpop.xlane.xlu0 %7634
      %v7636 = vsel %vm5065, %v7336, 0.0
      %7637 = vadd.xlane.f32.xlu0 %v7636
      %v7638 = vpop.xlane.xlu0 %7637
      %v7639 = vsel %vm5065, %v7337, 0.0
      %7640 = vadd.xlane.f32.xlu0 %v7639
      %v7641 = vpop.xlane.xlu0 %7640
      %v7642 = vsel %vm5065, %v7338, 0.0
      %7643 = vadd.xlane.f32.xlu0 %v7642
      %v7644 = vpop.xlane.xlu0 %7643
      %v7645 = vsel %vm5065, %v7339, 0.0
      %7646 = vadd.xlane.f32.xlu0 %v7645
      %v7647 = vpop.xlane.xlu0 %7646
      %v7648 = vsel %vm5065, %v7340, 0.0
      %7649 = vadd.xlane.f32.xlu0 %v7648
      %v7650 = vpop.xlane.xlu0 %7649
      %v7651 = vsel %vm5065, %v7341, 0.0
      %7652 = vadd.xlane.f32.xlu0 %v7651
      %v7653 = vpop.xlane.xlu0 %7652
      %v7654 = vsel %vm5065, %v7342, 0.0
      %7655 = vadd.xlane.f32.xlu0 %v7654
      %v7656 = vpop.xlane.xlu0 %7655
      %v7657 = vsel %vm5065, %v7343, 0.0
      %7658 = vadd.xlane.f32.xlu0 %v7657
      %v7659 = vpop.xlane.xlu0 %7658
      %v7660 = vsel %vm5065, %v7344, 0.0
      %7661 = vadd.xlane.f32.xlu0 %v7660
      %v7662 = vpop.xlane.xlu0 %7661
      %v7663 = vsel %vm5065, %v7345, 0.0
      %7664 = vadd.xlane.f32.xlu0 %v7663
      %v7665 = vpop.xlane.xlu0 %7664
      %v7666 = vsel %vm5065, %v7346, 0.0
      %7667 = vadd.xlane.f32.xlu0 %v7666
      %v7668 = vpop.xlane.xlu0 %7667
      %v7669 = vsel %vm5065, %v7347, 0.0
      %7670 = vadd.xlane.f32.xlu0 %v7669
      %v7671 = vpop.xlane.xlu0 %7670
      %v7672 = vsel %vm5065, %v7348, 0.0
      %7673 = vadd.xlane.f32.xlu0 %v7672
      %v7674 = vpop.xlane.xlu0 %7673
      %v7675 = vsel %vm5065, %v7349, 0.0
      %7676 = vadd.xlane.f32.xlu0 %v7675
      %v7677 = vpop.xlane.xlu0 %7676
      %v7678 = vsel %vm5065, %v7350, 0.0
      %7679 = vadd.xlane.f32.xlu0 %v7678
      %v7680 = vpop.xlane.xlu0 %7679
      %v7681 = vsel %vm5065, %v7351, 0.0
      %7682 = vadd.xlane.f32.xlu0 %v7681
      %v7683 = vpop.xlane.xlu0 %7682
      %v7684 = vsel %vm5065, %v7352, 0.0
      %7685 = vadd.xlane.f32.xlu0 %v7684
      %v7686 = vpop.xlane.xlu0 %7685
      %v7687 = vsel %vm5065, %v7353, 0.0
      %7688 = vadd.xlane.f32.xlu0 %v7687
      %v7689 = vpop.xlane.xlu0 %7688
      %v7690 = vsel %vm5065, %v7354, 0.0
      %7691 = vadd.xlane.f32.xlu0 %v7690
      %v7692 = vpop.xlane.xlu0 %7691
      %v7693 = vsel %vm5065, %v7355, 0.0
      %7694 = vadd.xlane.f32.xlu0 %v7693
      %v7695 = vpop.xlane.xlu0 %7694
      %v7696 = vsel %vm5065, %v7356, 0.0
      %7697 = vadd.xlane.f32.xlu0 %v7696
      %v7698 = vpop.xlane.xlu0 %7697
      %v7699 = vsel %vm5065, %v7357, 0.0
      %7700 = vadd.xlane.f32.xlu0 %v7699
      %v7701 = vpop.xlane.xlu0 %7700
      %v7702 = vsel %vm5065, %v7358, 0.0
      %7703 = vadd.xlane.f32.xlu0 %v7702
      %v7704 = vpop.xlane.xlu0 %7703
      %v7705 = vsel %vm5065, %v7359, 0.0
      %7706 = vadd.xlane.f32.xlu0 %v7705
      %v7707 = vpop.xlane.xlu0 %7706
      %v7708 = vsel %vm5065, %v7360, 0.0
      %7709 = vadd.xlane.f32.xlu0 %v7708
      %v7710 = vpop.xlane.xlu0 %7709
      %v7711 = vsel %vm5065, %v7361, 0.0
      %7712 = vadd.xlane.f32.xlu0 %v7711
      %v7713 = vpop.xlane.xlu0 %7712
      %v7714 = vsel %vm5065, %v7362, 0.0
      %7715 = vadd.xlane.f32.xlu0 %v7714
      %v7716 = vpop.xlane.xlu0 %7715
      %v7717 = vsel %vm5065, %v7363, 0.0
      %7718 = vadd.xlane.f32.xlu0 %v7717
      %v7719 = vpop.xlane.xlu0 %7718
      %v7720 = vsel %vm5065, %v7364, 0.0
      %7721 = vadd.xlane.f32.xlu0 %v7720
      %v7722 = vpop.xlane.xlu0 %7721
      %v7723 = vsel %vm5065, %v7365, 0.0
      %7724 = vadd.xlane.f32.xlu0 %v7723
      %v7725 = vpop.xlane.xlu0 %7724
      %v7726 = vsel %vm5065, %v7366, 0.0
      %7727 = vadd.xlane.f32.xlu0 %v7726
      %v7728 = vpop.xlane.xlu0 %7727
      %v7729 = vsel %vm5065, %v7367, 0.0
      %7730 = vadd.xlane.f32.xlu0 %v7729
      %v7731 = vpop.xlane.xlu0 %7730
      %v7732 = vsel %vm5065, %v7368, 0.0
      %7733 = vadd.xlane.f32.xlu0 %v7732
      %v7734 = vpop.xlane.xlu0 %7733
      %v7735 = vsel %vm5065, %v7369, 0.0
      %7736 = vadd.xlane.f32.xlu0 %v7735
      %v7737 = vpop.xlane.xlu0 %7736
      %v7738 = vsel %vm5065, %v7370, 0.0
      %7739 = vadd.xlane.f32.xlu0 %v7738
      %v7740 = vpop.xlane.xlu0 %7739
      %v7741 = vsel %vm5065, %v7371, 0.0
      %7742 = vadd.xlane.f32.xlu0 %v7741
      %v7743 = vpop.xlane.xlu0 %7742
      %v7744 = vsel %vm5065, %v7372, 0.0
      %7745 = vadd.xlane.f32.xlu0 %v7744
      %v7746 = vpop.xlane.xlu0 %7745
      %v7747 = vsel %vm5065, %v7373, 0.0
      %7748 = vadd.xlane.f32.xlu0 %v7747
      %v7749 = vpop.xlane.xlu0 %7748
      %v7750 = vsel %vm5065, %v7374, 0.0
      %7751 = vadd.xlane.f32.xlu0 %v7750
      %v7752 = vpop.xlane.xlu0 %7751
      %v7753 = vsel %vm5065, %v7375, 0.0
      %7754 = vadd.xlane.f32.xlu0 %v7753
      %v7755 = vpop.xlane.xlu0 %7754
      %v7756 = vsel %vm5065, %v7376, 0.0
      %7757 = vadd.xlane.f32.xlu0 %v7756
      %v7758 = vpop.xlane.xlu0 %7757
      %v7759 = vsel %vm5065, %v7377, 0.0
      %7760 = vadd.xlane.f32.xlu0 %v7759
      %v7761 = vpop.xlane.xlu0 %7760
      %v7762 = vlaneseq
      %v7763 = vshrl.u32 %v7762, 7
      %v7764 = vsub.s32 2, %v7763
      %v7765 = vrot.slane %v4488, %v7764
      %v7766 = vmul.f32 %v7380, %v7765
      %v7767 = vmul.f32 %v7383, %v7765
      %v7768 = vmul.f32 %v7386, %v7765
      %v7769 = vmul.f32 %v7389, %v7765
      %v7770 = vmul.f32 %v7392, %v7765
      %v7771 = vmul.f32 %v7395, %v7765
      %v7772 = vmul.f32 %v7398, %v7765
      %v7773 = vmul.f32 %v7401, %v7765
      %v7774 = vmul.f32 %v7404, %v7765
      %v7775 = vmul.f32 %v7407, %v7765
      %v7776 = vmul.f32 %v7410, %v7765
      %v7777 = vmul.f32 %v7413, %v7765
      %v7778 = vmul.f32 %v7416, %v7765
      %v7779 = vmul.f32 %v7419, %v7765
      %v7780 = vmul.f32 %v7422, %v7765
      %v7781 = vmul.f32 %v7425, %v7765
      %v7782 = vmul.f32 %v7428, %v7765
      %v7783 = vmul.f32 %v7431, %v7765
      %v7784 = vmul.f32 %v7434, %v7765
      %v7785 = vmul.f32 %v7437, %v7765
      %v7786 = vmul.f32 %v7440, %v7765
      %v7787 = vmul.f32 %v7443, %v7765
      %v7788 = vmul.f32 %v7446, %v7765
      %v7789 = vmul.f32 %v7449, %v7765
      %v7790 = vmul.f32 %v7452, %v7765
      %v7791 = vmul.f32 %v7455, %v7765
      %v7792 = vmul.f32 %v7458, %v7765
      %v7793 = vmul.f32 %v7461, %v7765
      %v7794 = vmul.f32 %v7464, %v7765
      %v7795 = vmul.f32 %v7467, %v7765
      %v7796 = vmul.f32 %v7470, %v7765
      %v7797 = vmul.f32 %v7473, %v7765
      %v7798 = vmul.f32 %v7476, %v7765
      %v7799 = vmul.f32 %v7479, %v7765
      %v7800 = vmul.f32 %v7482, %v7765
      %v7801 = vmul.f32 %v7485, %v7765
      %v7802 = vmul.f32 %v7488, %v7765
      %v7803 = vmul.f32 %v7491, %v7765
      %v7804 = vmul.f32 %v7494, %v7765
      %v7805 = vmul.f32 %v7497, %v7765
      %v7806 = vmul.f32 %v7500, %v7765
      %v7807 = vmul.f32 %v7503, %v7765
      %v7808 = vmul.f32 %v7506, %v7765
      %v7809 = vmul.f32 %v7509, %v7765
      %v7810 = vmul.f32 %v7512, %v7765
      %v7811 = vmul.f32 %v7515, %v7765
      %v7812 = vmul.f32 %v7518, %v7765
      %v7813 = vmul.f32 %v7521, %v7765
      %v7814 = vmul.f32 %v7524, %v7765
      %v7815 = vmul.f32 %v7527, %v7765
      %v7816 = vmul.f32 %v7530, %v7765
      %v7817 = vmul.f32 %v7533, %v7765
      %v7818 = vmul.f32 %v7536, %v7765
      %v7819 = vmul.f32 %v7539, %v7765
      %v7820 = vmul.f32 %v7542, %v7765
      %v7821 = vmul.f32 %v7545, %v7765
      %v7822 = vmul.f32 %v7548, %v7765
      %v7823 = vmul.f32 %v7551, %v7765
      %v7824 = vmul.f32 %v7554, %v7765
      %v7825 = vmul.f32 %v7557, %v7765
      %v7826 = vmul.f32 %v7560, %v7765
      %v7827 = vmul.f32 %v7563, %v7765
      %v7828 = vmul.f32 %v7566, %v7765
      %v7829 = vmul.f32 %v7569, %v7765
      %v7830 = vmul.f32 %v7572, %v7765
      %v7831 = vmul.f32 %v7575, %v7765
      %v7832 = vmul.f32 %v7578, %v7765
      %v7833 = vmul.f32 %v7581, %v7765
      %v7834 = vmul.f32 %v7584, %v7765
      %v7835 = vmul.f32 %v7587, %v7765
      %v7836 = vmul.f32 %v7590, %v7765
      %v7837 = vmul.f32 %v7593, %v7765
      %v7838 = vmul.f32 %v7596, %v7765
      %v7839 = vmul.f32 %v7599, %v7765
      %v7840 = vmul.f32 %v7602, %v7765
      %v7841 = vmul.f32 %v7605, %v7765
      %v7842 = vmul.f32 %v7608, %v7765
      %v7843 = vmul.f32 %v7611, %v7765
      %v7844 = vmul.f32 %v7614, %v7765
      %v7845 = vmul.f32 %v7617, %v7765
      %v7846 = vmul.f32 %v7620, %v7765
      %v7847 = vmul.f32 %v7623, %v7765
      %v7848 = vmul.f32 %v7626, %v7765
      %v7849 = vmul.f32 %v7629, %v7765
      %v7850 = vmul.f32 %v7632, %v7765
      %v7851 = vmul.f32 %v7635, %v7765
      %v7852 = vmul.f32 %v7638, %v7765
      %v7853 = vmul.f32 %v7641, %v7765
      %v7854 = vmul.f32 %v7644, %v7765
      %v7855 = vmul.f32 %v7647, %v7765
      %v7856 = vmul.f32 %v7650, %v7765
      %v7857 = vmul.f32 %v7653, %v7765
      %v7858 = vmul.f32 %v7656, %v7765
      %v7859 = vmul.f32 %v7659, %v7765
      %v7860 = vmul.f32 %v7662, %v7765
      %v7861 = vmul.f32 %v7665, %v7765
      %v7862 = vmul.f32 %v7668, %v7765
      %v7863 = vmul.f32 %v7671, %v7765
      %v7864 = vmul.f32 %v7674, %v7765
      %v7865 = vmul.f32 %v7677, %v7765
      %v7866 = vmul.f32 %v7680, %v7765
      %v7867 = vmul.f32 %v7683, %v7765
      %v7868 = vmul.f32 %v7686, %v7765
      %v7869 = vmul.f32 %v7689, %v7765
      %v7870 = vmul.f32 %v7692, %v7765
      %v7871 = vmul.f32 %v7695, %v7765
      %v7872 = vmul.f32 %v7698, %v7765
      %v7873 = vmul.f32 %v7701, %v7765
      %v7874 = vmul.f32 %v7704, %v7765
      %v7875 = vmul.f32 %v7707, %v7765
      %v7876 = vmul.f32 %v7710, %v7765
      %v7877 = vmul.f32 %v7713, %v7765
      %v7878 = vmul.f32 %v7716, %v7765
      %v7879 = vmul.f32 %v7719, %v7765
      %v7880 = vmul.f32 %v7722, %v7765
      %v7881 = vmul.f32 %v7725, %v7765
      %v7882 = vmul.f32 %v7728, %v7765
      %v7883 = vmul.f32 %v7731, %v7765
      %v7884 = vmul.f32 %v7734, %v7765
      %v7885 = vmul.f32 %v7737, %v7765
      %v7886 = vmul.f32 %v7740, %v7765
      %v7887 = vmul.f32 %v7743, %v7765
      %v7888 = vmul.f32 %v7746, %v7765
      %v7889 = vmul.f32 %v7749, %v7765
      %v7890 = vmul.f32 %v7752, %v7765
      %v7891 = vmul.f32 %v7755, %v7765
      %v7892 = vmul.f32 %v7758, %v7765
      %v7893 = vmul.f32 %v7761, %v7765
      %v7894 = vadd.f32 %v6674, %v7766
      %v7895 = vadd.f32 %v6675, %v7767
      %v7896 = vadd.f32 %v6676, %v7768
      %v7897 = vadd.f32 %v6677, %v7769
      %v7898 = vadd.f32 %v6678, %v7770
      %v7899 = vadd.f32 %v6679, %v7771
      %v7900 = vadd.f32 %v6680, %v7772
      %v7901 = vadd.f32 %v6681, %v7773
      %v7902 = vadd.f32 %v6682, %v7774
      %v7903 = vadd.f32 %v6683, %v7775
      %v7904 = vadd.f32 %v6684, %v7776
      %v7905 = vadd.f32 %v6685, %v7777
      %v7906 = vadd.f32 %v6686, %v7778
      %v7907 = vadd.f32 %v6687, %v7779
      %v7908 = vadd.f32 %v6688, %v7780
      %v7909 = vadd.f32 %v6689, %v7781
      %v7910 = vadd.f32 %v6690, %v7782
      %v7911 = vadd.f32 %v6691, %v7783
      %v7912 = vadd.f32 %v6692, %v7784
      %v7913 = vadd.f32 %v6693, %v7785
      %v7914 = vadd.f32 %v6694, %v7786
      %v7915 = vadd.f32 %v6695, %v7787
      %v7916 = vadd.f32 %v6696, %v7788
      %v7917 = vadd.f32 %v6697, %v7789
      %v7918 = vadd.f32 %v6698, %v7790
      %v7919 = vadd.f32 %v6699, %v7791
      %v7920 = vadd.f32 %v6700, %v7792
      %v7921 = vadd.f32 %v6701, %v7793
      %v7922 = vadd.f32 %v6702, %v7794
      %v7923 = vadd.f32 %v6703, %v7795
      %v7924 = vadd.f32 %v6704, %v7796
      %v7925 = vadd.f32 %v6705, %v7797
      %v7926 = vadd.f32 %v6706, %v7798
      %v7927 = vadd.f32 %v6707, %v7799
      %v7928 = vadd.f32 %v6708, %v7800
      %v7929 = vadd.f32 %v6709, %v7801
      %v7930 = vadd.f32 %v6710, %v7802
      %v7931 = vadd.f32 %v6711, %v7803
      %v7932 = vadd.f32 %v6712, %v7804
      %v7933 = vadd.f32 %v6713, %v7805
      %v7934 = vadd.f32 %v6714, %v7806
      %v7935 = vadd.f32 %v6715, %v7807
      %v7936 = vadd.f32 %v6716, %v7808
      %v7937 = vadd.f32 %v6717, %v7809
      %v7938 = vadd.f32 %v6718, %v7810
      %v7939 = vadd.f32 %v6719, %v7811
      %v7940 = vadd.f32 %v6720, %v7812
      %v7941 = vadd.f32 %v6721, %v7813
      %v7942 = vadd.f32 %v6722, %v7814
      %v7943 = vadd.f32 %v6723, %v7815
      %v7944 = vadd.f32 %v6724, %v7816
      %v7945 = vadd.f32 %v6725, %v7817
      %v7946 = vadd.f32 %v6726, %v7818
      %v7947 = vadd.f32 %v6727, %v7819
      %v7948 = vadd.f32 %v6728, %v7820
      %v7949 = vadd.f32 %v6729, %v7821
      %v7950 = vadd.f32 %v6730, %v7822
      %v7951 = vadd.f32 %v6731, %v7823
      %v7952 = vadd.f32 %v6732, %v7824
      %v7953 = vadd.f32 %v6733, %v7825
      %v7954 = vadd.f32 %v6734, %v7826
      %v7955 = vadd.f32 %v6735, %v7827
      %v7956 = vadd.f32 %v6736, %v7828
      %v7957 = vadd.f32 %v6737, %v7829
      %v7958 = vadd.f32 %v6738, %v7830
      %v7959 = vadd.f32 %v6739, %v7831
      %v7960 = vadd.f32 %v6740, %v7832
      %v7961 = vadd.f32 %v6741, %v7833
      %v7962 = vadd.f32 %v6742, %v7834
      %v7963 = vadd.f32 %v6743, %v7835
      %v7964 = vadd.f32 %v6744, %v7836
      %v7965 = vadd.f32 %v6745, %v7837
      %v7966 = vadd.f32 %v6746, %v7838
      %v7967 = vadd.f32 %v6747, %v7839
      %v7968 = vadd.f32 %v6748, %v7840
      %v7969 = vadd.f32 %v6749, %v7841
      %v7970 = vadd.f32 %v6750, %v7842
      %v7971 = vadd.f32 %v6751, %v7843
      %v7972 = vadd.f32 %v6752, %v7844
      %v7973 = vadd.f32 %v6753, %v7845
      %v7974 = vadd.f32 %v6754, %v7846
      %v7975 = vadd.f32 %v6755, %v7847
      %v7976 = vadd.f32 %v6756, %v7848
      %v7977 = vadd.f32 %v6757, %v7849
      %v7978 = vadd.f32 %v6758, %v7850
      %v7979 = vadd.f32 %v6759, %v7851
      %v7980 = vadd.f32 %v6760, %v7852
      %v7981 = vadd.f32 %v6761, %v7853
      %v7982 = vadd.f32 %v6762, %v7854
      %v7983 = vadd.f32 %v6763, %v7855
      %v7984 = vadd.f32 %v6764, %v7856
      %v7985 = vadd.f32 %v6765, %v7857
      %v7986 = vadd.f32 %v6766, %v7858
      %v7987 = vadd.f32 %v6767, %v7859
      %v7988 = vadd.f32 %v6768, %v7860
      %v7989 = vadd.f32 %v6769, %v7861
      %v7990 = vadd.f32 %v6770, %v7862
      %v7991 = vadd.f32 %v6771, %v7863
      %v7992 = vadd.f32 %v6772, %v7864
      %v7993 = vadd.f32 %v6773, %v7865
      %v7994 = vadd.f32 %v6774, %v7866
      %v7995 = vadd.f32 %v6775, %v7867
      %v7996 = vadd.f32 %v6776, %v7868
      %v7997 = vadd.f32 %v6777, %v7869
      %v7998 = vadd.f32 %v6778, %v7870
      %v7999 = vadd.f32 %v6779, %v7871
      %v8000 = vadd.f32 %v6780, %v7872
      %v8001 = vadd.f32 %v6781, %v7873
      %v8002 = vadd.f32 %v6782, %v7874
      %v8003 = vadd.f32 %v6783, %v7875
      %v8004 = vadd.f32 %v6784, %v7876
      %v8005 = vadd.f32 %v6785, %v7877
      %v8006 = vadd.f32 %v6786, %v7878
      %v8007 = vadd.f32 %v6787, %v7879
      %v8008 = vadd.f32 %v6788, %v7880
      %v8009 = vadd.f32 %v6789, %v7881
      %v8010 = vadd.f32 %v6790, %v7882
      %v8011 = vadd.f32 %v6791, %v7883
      %v8012 = vadd.f32 %v6792, %v7884
      %v8013 = vadd.f32 %v6793, %v7885
      %v8014 = vadd.f32 %v6794, %v7886
      %v8015 = vadd.f32 %v6795, %v7887
      %v8016 = vadd.f32 %v6796, %v7888
      %v8017 = vadd.f32 %v6797, %v7889
      %v8018 = vadd.f32 %v6798, %v7890
      %v8019 = vadd.f32 %v6799, %v7891
      %v8020 = vadd.f32 %v6800, %v7892
      %v8021 = vadd.f32 %v6801, %v7893
      %vm8022 = vcmp.eq.s32.totalorder %v573, 3
      %vm8023 = vcmp.eq.s32.totalorder %v574, 3
      %vm8024 = vcmp.eq.s32.totalorder %v575, 3
      %vm8025 = vcmp.eq.s32.totalorder %v576, 3
      %vm8026 = vcmp.eq.s32.totalorder %v577, 3
      %vm8027 = vcmp.eq.s32.totalorder %v578, 3
      %vm8028 = vcmp.eq.s32.totalorder %v579, 3
      %vm8029 = vcmp.eq.s32.totalorder %v580, 3
      %vm8030 = vcmp.eq.s32.totalorder %v581, 3
      %vm8031 = vcmp.eq.s32.totalorder %v582, 3
      %vm8032 = vcmp.eq.s32.totalorder %v583, 3
      %vm8033 = vcmp.eq.s32.totalorder %v584, 3
      %vm8034 = vcmp.eq.s32.totalorder %v585, 3
      %vm8035 = vcmp.eq.s32.totalorder %v586, 3
      %vm8036 = vcmp.eq.s32.totalorder %v587, 3
      %vm8037 = vcmp.eq.s32.totalorder %v588, 3
      %vm8038 = vcmp.eq.s32.totalorder %v589, 3
      %vm8039 = vcmp.eq.s32.totalorder %v590, 3
      %vm8040 = vcmp.eq.s32.totalorder %v591, 3
      %vm8041 = vcmp.eq.s32.totalorder %v592, 3
      %vm8042 = vcmp.eq.s32.totalorder %v593, 3
      %vm8043 = vcmp.eq.s32.totalorder %v594, 3
      %vm8044 = vcmp.eq.s32.totalorder %v595, 3
      %vm8045 = vcmp.eq.s32.totalorder %v596, 3
      %vm8046 = vcmp.eq.s32.totalorder %v597, 3
      %vm8047 = vcmp.eq.s32.totalorder %v598, 3
      %vm8048 = vcmp.eq.s32.totalorder %v599, 3
      %vm8049 = vcmp.eq.s32.totalorder %v600, 3
      %vm8050 = vcmp.eq.s32.totalorder %v601, 3
      %vm8051 = vcmp.eq.s32.totalorder %v602, 3
      %vm8052 = vcmp.eq.s32.totalorder %v603, 3
      %vm8053 = vcmp.eq.s32.totalorder %v604, 3
      %vm8054 = vcmp.eq.s32.totalorder %v605, 3
      %vm8055 = vcmp.eq.s32.totalorder %v606, 3
      %vm8056 = vcmp.eq.s32.totalorder %v607, 3
      %vm8057 = vcmp.eq.s32.totalorder %v608, 3
      %vm8058 = vcmp.eq.s32.totalorder %v609, 3
      %vm8059 = vcmp.eq.s32.totalorder %v610, 3
      %vm8060 = vcmp.eq.s32.totalorder %v611, 3
      %vm8061 = vcmp.eq.s32.totalorder %v612, 3
      %vm8062 = vcmp.eq.s32.totalorder %v613, 3
      %vm8063 = vcmp.eq.s32.totalorder %v614, 3
      %vm8064 = vcmp.eq.s32.totalorder %v615, 3
      %vm8065 = vcmp.eq.s32.totalorder %v616, 3
      %vm8066 = vcmp.eq.s32.totalorder %v617, 3
      %vm8067 = vcmp.eq.s32.totalorder %v618, 3
      %vm8068 = vcmp.eq.s32.totalorder %v619, 3
      %vm8069 = vcmp.eq.s32.totalorder %v620, 3
      %vm8070 = vcmp.eq.s32.totalorder %v621, 3
      %vm8071 = vcmp.eq.s32.totalorder %v622, 3
      %vm8072 = vcmp.eq.s32.totalorder %v623, 3
      %vm8073 = vcmp.eq.s32.totalorder %v624, 3
      %vm8074 = vcmp.eq.s32.totalorder %v625, 3
      %vm8075 = vcmp.eq.s32.totalorder %v626, 3
      %vm8076 = vcmp.eq.s32.totalorder %v627, 3
      %vm8077 = vcmp.eq.s32.totalorder %v628, 3
      %vm8078 = vcmp.eq.s32.totalorder %v629, 3
      %vm8079 = vcmp.eq.s32.totalorder %v630, 3
      %vm8080 = vcmp.eq.s32.totalorder %v631, 3
      %vm8081 = vcmp.eq.s32.totalorder %v632, 3
      %vm8082 = vcmp.eq.s32.totalorder %v633, 3
      %vm8083 = vcmp.eq.s32.totalorder %v634, 3
      %vm8084 = vcmp.eq.s32.totalorder %v635, 3
      %vm8085 = vcmp.eq.s32.totalorder %v636, 3
      %v8086 = vsel %vm8022, 1, 0
      %v8087 = vsel %vm8023, 1, 0
      %v8088 = vsel %vm8024, 1, 0
      %v8089 = vsel %vm8025, 1, 0
      %v8090 = vsel %vm8026, 1, 0
      %v8091 = vsel %vm8027, 1, 0
      %v8092 = vsel %vm8028, 1, 0
      %v8093 = vsel %vm8029, 1, 0
      %v8094 = vsel %vm8030, 1, 0
      %v8095 = vsel %vm8031, 1, 0
      %v8096 = vsel %vm8032, 1, 0
      %v8097 = vsel %vm8033, 1, 0
      %v8098 = vsel %vm8034, 1, 0
      %v8099 = vsel %vm8035, 1, 0
      %v8100 = vsel %vm8036, 1, 0
      %v8101 = vsel %vm8037, 1, 0
      %v8102 = vsel %vm8038, 1, 0
      %v8103 = vsel %vm8039, 1, 0
      %v8104 = vsel %vm8040, 1, 0
      %v8105 = vsel %vm8041, 1, 0
      %v8106 = vsel %vm8042, 1, 0
      %v8107 = vsel %vm8043, 1, 0
      %v8108 = vsel %vm8044, 1, 0
      %v8109 = vsel %vm8045, 1, 0
      %v8110 = vsel %vm8046, 1, 0
      %v8111 = vsel %vm8047, 1, 0
      %v8112 = vsel %vm8048, 1, 0
      %v8113 = vsel %vm8049, 1, 0
      %v8114 = vsel %vm8050, 1, 0
      %v8115 = vsel %vm8051, 1, 0
      %v8116 = vsel %vm8052, 1, 0
      %v8117 = vsel %vm8053, 1, 0
      %v8118 = vsel %vm8054, 1, 0
      %v8119 = vsel %vm8055, 1, 0
      %v8120 = vsel %vm8056, 1, 0
      %v8121 = vsel %vm8057, 1, 0
      %v8122 = vsel %vm8058, 1, 0
      %v8123 = vsel %vm8059, 1, 0
      %v8124 = vsel %vm8060, 1, 0
      %v8125 = vsel %vm8061, 1, 0
      %v8126 = vsel %vm8062, 1, 0
      %v8127 = vsel %vm8063, 1, 0
      %v8128 = vsel %vm8064, 1, 0
      %v8129 = vsel %vm8065, 1, 0
      %v8130 = vsel %vm8066, 1, 0
      %v8131 = vsel %vm8067, 1, 0
      %v8132 = vsel %vm8068, 1, 0
      %v8133 = vsel %vm8069, 1, 0
      %v8134 = vsel %vm8070, 1, 0
      %v8135 = vsel %vm8071, 1, 0
      %v8136 = vsel %vm8072, 1, 0
      %v8137 = vsel %vm8073, 1, 0
      %v8138 = vsel %vm8074, 1, 0
      %v8139 = vsel %vm8075, 1, 0
      %v8140 = vsel %vm8076, 1, 0
      %v8141 = vsel %vm8077, 1, 0
      %v8142 = vsel %vm8078, 1, 0
      %v8143 = vsel %vm8079, 1, 0
      %v8144 = vsel %vm8080, 1, 0
      %v8145 = vsel %vm8081, 1, 0
      %v8146 = vsel %vm8082, 1, 0
      %v8147 = vsel %vm8083, 1, 0
      %v8148 = vsel %vm8084, 1, 0
      %v8149 = vsel %vm8085, 1, 0
      %v8150 = vlaneseq
      %v8151 = vshrl.u32 %v8150, 7
      %v8152 = vsub.s32 0, %v8151
      %v8153 = vrot.slane %v8086, %v8152
      %v8154 = vlaneseq
      %v8155 = vshrl.u32 %v8154, 7
      %v8156 = vsub.s32 0, %v8155
      %v8157 = vrot.slane %v8087, %v8156
      %v8158 = vlaneseq
      %v8159 = vshrl.u32 %v8158, 7
      %v8160 = vsub.s32 0, %v8159
      %v8161 = vrot.slane %v8088, %v8160
      %v8162 = vlaneseq
      %v8163 = vshrl.u32 %v8162, 7
      %v8164 = vsub.s32 0, %v8163
      %v8165 = vrot.slane %v8089, %v8164
      %v8166 = vlaneseq
      %v8167 = vshrl.u32 %v8166, 7
      %v8168 = vsub.s32 0, %v8167
      %v8169 = vrot.slane %v8090, %v8168
      %v8170 = vlaneseq
      %v8171 = vshrl.u32 %v8170, 7
      %v8172 = vsub.s32 0, %v8171
      %v8173 = vrot.slane %v8091, %v8172
      %v8174 = vlaneseq
      %v8175 = vshrl.u32 %v8174, 7
      %v8176 = vsub.s32 0, %v8175
      %v8177 = vrot.slane %v8092, %v8176
      %v8178 = vlaneseq
      %v8179 = vshrl.u32 %v8178, 7
      %v8180 = vsub.s32 0, %v8179
      %v8181 = vrot.slane %v8093, %v8180
      %v8182 = vlaneseq
      %v8183 = vshrl.u32 %v8182, 7
      %v8184 = vsub.s32 0, %v8183
      %v8185 = vrot.slane %v8094, %v8184
      %v8186 = vlaneseq
      %v8187 = vshrl.u32 %v8186, 7
      %v8188 = vsub.s32 0, %v8187
      %v8189 = vrot.slane %v8095, %v8188
      %v8190 = vlaneseq
      %v8191 = vshrl.u32 %v8190, 7
      %v8192 = vsub.s32 0, %v8191
      %v8193 = vrot.slane %v8096, %v8192
      %v8194 = vlaneseq
      %v8195 = vshrl.u32 %v8194, 7
      %v8196 = vsub.s32 0, %v8195
      %v8197 = vrot.slane %v8097, %v8196
      %v8198 = vlaneseq
      %v8199 = vshrl.u32 %v8198, 7
      %v8200 = vsub.s32 0, %v8199
      %v8201 = vrot.slane %v8098, %v8200
      %v8202 = vlaneseq
      %v8203 = vshrl.u32 %v8202, 7
      %v8204 = vsub.s32 0, %v8203
      %v8205 = vrot.slane %v8099, %v8204
      %v8206 = vlaneseq
      %v8207 = vshrl.u32 %v8206, 7
      %v8208 = vsub.s32 0, %v8207
      %v8209 = vrot.slane %v8100, %v8208
      %v8210 = vlaneseq
      %v8211 = vshrl.u32 %v8210, 7
      %v8212 = vsub.s32 0, %v8211
      %v8213 = vrot.slane %v8101, %v8212
      %v8214 = vlaneseq
      %v8215 = vshrl.u32 %v8214, 7
      %v8216 = vsub.s32 0, %v8215
      %v8217 = vrot.slane %v8102, %v8216
      %v8218 = vlaneseq
      %v8219 = vshrl.u32 %v8218, 7
      %v8220 = vsub.s32 0, %v8219
      %v8221 = vrot.slane %v8103, %v8220
      %v8222 = vlaneseq
      %v8223 = vshrl.u32 %v8222, 7
      %v8224 = vsub.s32 0, %v8223
      %v8225 = vrot.slane %v8104, %v8224
      %v8226 = vlaneseq
      %v8227 = vshrl.u32 %v8226, 7
      %v8228 = vsub.s32 0, %v8227
      %v8229 = vrot.slane %v8105, %v8228
      %v8230 = vlaneseq
      %v8231 = vshrl.u32 %v8230, 7
      %v8232 = vsub.s32 0, %v8231
      %v8233 = vrot.slane %v8106, %v8232
      %v8234 = vlaneseq
      %v8235 = vshrl.u32 %v8234, 7
      %v8236 = vsub.s32 0, %v8235
      %v8237 = vrot.slane %v8107, %v8236
      %v8238 = vlaneseq
      %v8239 = vshrl.u32 %v8238, 7
      %v8240 = vsub.s32 0, %v8239
      %v8241 = vrot.slane %v8108, %v8240
      %v8242 = vlaneseq
      %v8243 = vshrl.u32 %v8242, 7
      %v8244 = vsub.s32 0, %v8243
      %v8245 = vrot.slane %v8109, %v8244
      %v8246 = vlaneseq
      %v8247 = vshrl.u32 %v8246, 7
      %v8248 = vsub.s32 0, %v8247
      %v8249 = vrot.slane %v8110, %v8248
      %v8250 = vlaneseq
      %v8251 = vshrl.u32 %v8250, 7
      %v8252 = vsub.s32 0, %v8251
      %v8253 = vrot.slane %v8111, %v8252
      %v8254 = vlaneseq
      %v8255 = vshrl.u32 %v8254, 7
      %v8256 = vsub.s32 0, %v8255
      %v8257 = vrot.slane %v8112, %v8256
      %v8258 = vlaneseq
      %v8259 = vshrl.u32 %v8258, 7
      %v8260 = vsub.s32 0, %v8259
      %v8261 = vrot.slane %v8113, %v8260
      %v8262 = vlaneseq
      %v8263 = vshrl.u32 %v8262, 7
      %v8264 = vsub.s32 0, %v8263
      %v8265 = vrot.slane %v8114, %v8264
      %v8266 = vlaneseq
      %v8267 = vshrl.u32 %v8266, 7
      %v8268 = vsub.s32 0, %v8267
      %v8269 = vrot.slane %v8115, %v8268
      %v8270 = vlaneseq
      %v8271 = vshrl.u32 %v8270, 7
      %v8272 = vsub.s32 0, %v8271
      %v8273 = vrot.slane %v8116, %v8272
      %v8274 = vlaneseq
      %v8275 = vshrl.u32 %v8274, 7
      %v8276 = vsub.s32 0, %v8275
      %v8277 = vrot.slane %v8117, %v8276
      %v8278 = vlaneseq
      %v8279 = vshrl.u32 %v8278, 7
      %v8280 = vsub.s32 0, %v8279
      %v8281 = vrot.slane %v8118, %v8280
      %v8282 = vlaneseq
      %v8283 = vshrl.u32 %v8282, 7
      %v8284 = vsub.s32 0, %v8283
      %v8285 = vrot.slane %v8119, %v8284
      %v8286 = vlaneseq
      %v8287 = vshrl.u32 %v8286, 7
      %v8288 = vsub.s32 0, %v8287
      %v8289 = vrot.slane %v8120, %v8288
      %v8290 = vlaneseq
      %v8291 = vshrl.u32 %v8290, 7
      %v8292 = vsub.s32 0, %v8291
      %v8293 = vrot.slane %v8121, %v8292
      %v8294 = vlaneseq
      %v8295 = vshrl.u32 %v8294, 7
      %v8296 = vsub.s32 0, %v8295
      %v8297 = vrot.slane %v8122, %v8296
      %v8298 = vlaneseq
      %v8299 = vshrl.u32 %v8298, 7
      %v8300 = vsub.s32 0, %v8299
      %v8301 = vrot.slane %v8123, %v8300
      %v8302 = vlaneseq
      %v8303 = vshrl.u32 %v8302, 7
      %v8304 = vsub.s32 0, %v8303
      %v8305 = vrot.slane %v8124, %v8304
      %v8306 = vlaneseq
      %v8307 = vshrl.u32 %v8306, 7
      %v8308 = vsub.s32 0, %v8307
      %v8309 = vrot.slane %v8125, %v8308
      %v8310 = vlaneseq
      %v8311 = vshrl.u32 %v8310, 7
      %v8312 = vsub.s32 0, %v8311
      %v8313 = vrot.slane %v8126, %v8312
      %v8314 = vlaneseq
      %v8315 = vshrl.u32 %v8314, 7
      %v8316 = vsub.s32 0, %v8315
      %v8317 = vrot.slane %v8127, %v8316
      %v8318 = vlaneseq
      %v8319 = vshrl.u32 %v8318, 7
      %v8320 = vsub.s32 0, %v8319
      %v8321 = vrot.slane %v8128, %v8320
      %v8322 = vlaneseq
      %v8323 = vshrl.u32 %v8322, 7
      %v8324 = vsub.s32 0, %v8323
      %v8325 = vrot.slane %v8129, %v8324
      %v8326 = vlaneseq
      %v8327 = vshrl.u32 %v8326, 7
      %v8328 = vsub.s32 0, %v8327
      %v8329 = vrot.slane %v8130, %v8328
      %v8330 = vlaneseq
      %v8331 = vshrl.u32 %v8330, 7
      %v8332 = vsub.s32 0, %v8331
      %v8333 = vrot.slane %v8131, %v8332
      %v8334 = vlaneseq
      %v8335 = vshrl.u32 %v8334, 7
      %v8336 = vsub.s32 0, %v8335
      %v8337 = vrot.slane %v8132, %v8336
      %v8338 = vlaneseq
      %v8339 = vshrl.u32 %v8338, 7
      %v8340 = vsub.s32 0, %v8339
      %v8341 = vrot.slane %v8133, %v8340
      %v8342 = vlaneseq
      %v8343 = vshrl.u32 %v8342, 7
      %v8344 = vsub.s32 0, %v8343
      %v8345 = vrot.slane %v8134, %v8344
      %v8346 = vlaneseq
      %v8347 = vshrl.u32 %v8346, 7
      %v8348 = vsub.s32 0, %v8347
      %v8349 = vrot.slane %v8135, %v8348
      %v8350 = vlaneseq
      %v8351 = vshrl.u32 %v8350, 7
      %v8352 = vsub.s32 0, %v8351
      %v8353 = vrot.slane %v8136, %v8352
      %v8354 = vlaneseq
      %v8355 = vshrl.u32 %v8354, 7
      %v8356 = vsub.s32 0, %v8355
      %v8357 = vrot.slane %v8137, %v8356
      %v8358 = vlaneseq
      %v8359 = vshrl.u32 %v8358, 7
      %v8360 = vsub.s32 0, %v8359
      %v8361 = vrot.slane %v8138, %v8360
      %v8362 = vlaneseq
      %v8363 = vshrl.u32 %v8362, 7
      %v8364 = vsub.s32 0, %v8363
      %v8365 = vrot.slane %v8139, %v8364
      %v8366 = vlaneseq
      %v8367 = vshrl.u32 %v8366, 7
      %v8368 = vsub.s32 0, %v8367
      %v8369 = vrot.slane %v8140, %v8368
      %v8370 = vlaneseq
      %v8371 = vshrl.u32 %v8370, 7
      %v8372 = vsub.s32 0, %v8371
      %v8373 = vrot.slane %v8141, %v8372
      %v8374 = vlaneseq
      %v8375 = vshrl.u32 %v8374, 7
      %v8376 = vsub.s32 0, %v8375
      %v8377 = vrot.slane %v8142, %v8376
      %v8378 = vlaneseq
      %v8379 = vshrl.u32 %v8378, 7
      %v8380 = vsub.s32 0, %v8379
      %v8381 = vrot.slane %v8143, %v8380
      %v8382 = vlaneseq
      %v8383 = vshrl.u32 %v8382, 7
      %v8384 = vsub.s32 0, %v8383
      %v8385 = vrot.slane %v8144, %v8384
      %v8386 = vlaneseq
      %v8387 = vshrl.u32 %v8386, 7
      %v8388 = vsub.s32 0, %v8387
      %v8389 = vrot.slane %v8145, %v8388
      %v8390 = vlaneseq
      %v8391 = vshrl.u32 %v8390, 7
      %v8392 = vsub.s32 0, %v8391
      %v8393 = vrot.slane %v8146, %v8392
      %v8394 = vlaneseq
      %v8395 = vshrl.u32 %v8394, 7
      %v8396 = vsub.s32 0, %v8395
      %v8397 = vrot.slane %v8147, %v8396
      %v8398 = vlaneseq
      %v8399 = vshrl.u32 %v8398, 7
      %v8400 = vsub.s32 0, %v8399
      %v8401 = vrot.slane %v8148, %v8400
      %v8402 = vlaneseq
      %v8403 = vshrl.u32 %v8402, 7
      %v8404 = vsub.s32 0, %v8403
      %v8405 = vrot.slane %v8149, %v8404
      %vm8406 = vcmp.eq.s32.totalorder %v8153, 1
      %vm8407 = vcmp.eq.s32.totalorder %v8157, 1
      %vm8408 = vcmp.eq.s32.totalorder %v8161, 1
      %vm8409 = vcmp.eq.s32.totalorder %v8165, 1
      %vm8410 = vcmp.eq.s32.totalorder %v8169, 1
      %vm8411 = vcmp.eq.s32.totalorder %v8173, 1
      %vm8412 = vcmp.eq.s32.totalorder %v8177, 1
      %vm8413 = vcmp.eq.s32.totalorder %v8181, 1
      %vm8414 = vcmp.eq.s32.totalorder %v8185, 1
      %vm8415 = vcmp.eq.s32.totalorder %v8189, 1
      %vm8416 = vcmp.eq.s32.totalorder %v8193, 1
      %vm8417 = vcmp.eq.s32.totalorder %v8197, 1
      %vm8418 = vcmp.eq.s32.totalorder %v8201, 1
      %vm8419 = vcmp.eq.s32.totalorder %v8205, 1
      %vm8420 = vcmp.eq.s32.totalorder %v8209, 1
      %vm8421 = vcmp.eq.s32.totalorder %v8213, 1
      %vm8422 = vcmp.eq.s32.totalorder %v8217, 1
      %vm8423 = vcmp.eq.s32.totalorder %v8221, 1
      %vm8424 = vcmp.eq.s32.totalorder %v8225, 1
      %vm8425 = vcmp.eq.s32.totalorder %v8229, 1
      %vm8426 = vcmp.eq.s32.totalorder %v8233, 1
      %vm8427 = vcmp.eq.s32.totalorder %v8237, 1
      %vm8428 = vcmp.eq.s32.totalorder %v8241, 1
      %vm8429 = vcmp.eq.s32.totalorder %v8245, 1
      %vm8430 = vcmp.eq.s32.totalorder %v8249, 1
      %vm8431 = vcmp.eq.s32.totalorder %v8253, 1
      %vm8432 = vcmp.eq.s32.totalorder %v8257, 1
      %vm8433 = vcmp.eq.s32.totalorder %v8261, 1
      %vm8434 = vcmp.eq.s32.totalorder %v8265, 1
      %vm8435 = vcmp.eq.s32.totalorder %v8269, 1
      %vm8436 = vcmp.eq.s32.totalorder %v8273, 1
      %vm8437 = vcmp.eq.s32.totalorder %v8277, 1
      %vm8438 = vcmp.eq.s32.totalorder %v8281, 1
      %vm8439 = vcmp.eq.s32.totalorder %v8285, 1
      %vm8440 = vcmp.eq.s32.totalorder %v8289, 1
      %vm8441 = vcmp.eq.s32.totalorder %v8293, 1
      %vm8442 = vcmp.eq.s32.totalorder %v8297, 1
      %vm8443 = vcmp.eq.s32.totalorder %v8301, 1
      %vm8444 = vcmp.eq.s32.totalorder %v8305, 1
      %vm8445 = vcmp.eq.s32.totalorder %v8309, 1
      %vm8446 = vcmp.eq.s32.totalorder %v8313, 1
      %vm8447 = vcmp.eq.s32.totalorder %v8317, 1
      %vm8448 = vcmp.eq.s32.totalorder %v8321, 1
      %vm8449 = vcmp.eq.s32.totalorder %v8325, 1
      %vm8450 = vcmp.eq.s32.totalorder %v8329, 1
      %vm8451 = vcmp.eq.s32.totalorder %v8333, 1
      %vm8452 = vcmp.eq.s32.totalorder %v8337, 1
      %vm8453 = vcmp.eq.s32.totalorder %v8341, 1
      %vm8454 = vcmp.eq.s32.totalorder %v8345, 1
      %vm8455 = vcmp.eq.s32.totalorder %v8349, 1
      %vm8456 = vcmp.eq.s32.totalorder %v8353, 1
      %vm8457 = vcmp.eq.s32.totalorder %v8357, 1
      %vm8458 = vcmp.eq.s32.totalorder %v8361, 1
      %vm8459 = vcmp.eq.s32.totalorder %v8365, 1
      %vm8460 = vcmp.eq.s32.totalorder %v8369, 1
      %vm8461 = vcmp.eq.s32.totalorder %v8373, 1
      %vm8462 = vcmp.eq.s32.totalorder %v8377, 1
      %vm8463 = vcmp.eq.s32.totalorder %v8381, 1
      %vm8464 = vcmp.eq.s32.totalorder %v8385, 1
      %vm8465 = vcmp.eq.s32.totalorder %v8389, 1
      %vm8466 = vcmp.eq.s32.totalorder %v8393, 1
      %vm8467 = vcmp.eq.s32.totalorder %v8397, 1
      %vm8468 = vcmp.eq.s32.totalorder %v8401, 1
      %vm8469 = vcmp.eq.s32.totalorder %v8405, 1
      %v8470 = vsel %vm8406, %v4360, 0.0
      %v8471 = vsel %vm8406, %v4361, 0.0
      %v8472 = vsel %vm8407, %v4362, 0.0
      %v8473 = vsel %vm8407, %v4363, 0.0
      %v8474 = vsel %vm8408, %v4364, 0.0
      %v8475 = vsel %vm8408, %v4365, 0.0
      %v8476 = vsel %vm8409, %v4366, 0.0
      %v8477 = vsel %vm8409, %v4367, 0.0
      %v8478 = vsel %vm8410, %v4368, 0.0
      %v8479 = vsel %vm8410, %v4369, 0.0
      %v8480 = vsel %vm8411, %v4370, 0.0
      %v8481 = vsel %vm8411, %v4371, 0.0
      %v8482 = vsel %vm8412, %v4372, 0.0
      %v8483 = vsel %vm8412, %v4373, 0.0
      %v8484 = vsel %vm8413, %v4374, 0.0
      %v8485 = vsel %vm8413, %v4375, 0.0
      %v8486 = vsel %vm8414, %v4376, 0.0
      %v8487 = vsel %vm8414, %v4377, 0.0
      %v8488 = vsel %vm8415, %v4378, 0.0
      %v8489 = vsel %vm8415, %v4379, 0.0
      %v8490 = vsel %vm8416, %v4380, 0.0
      %v8491 = vsel %vm8416, %v4381, 0.0
      %v8492 = vsel %vm8417, %v4382, 0.0
      %v8493 = vsel %vm8417, %v4383, 0.0
      %v8494 = vsel %vm8418, %v4384, 0.0
      %v8495 = vsel %vm8418, %v4385, 0.0
      %v8496 = vsel %vm8419, %v4386, 0.0
      %v8497 = vsel %vm8419, %v4387, 0.0
      %v8498 = vsel %vm8420, %v4388, 0.0
      %v8499 = vsel %vm8420, %v4389, 0.0
      %v8500 = vsel %vm8421, %v4390, 0.0
      %v8501 = vsel %vm8421, %v4391, 0.0
      %v8502 = vsel %vm8422, %v4392, 0.0
      %v8503 = vsel %vm8422, %v4393, 0.0
      %v8504 = vsel %vm8423, %v4394, 0.0
      %v8505 = vsel %vm8423, %v4395, 0.0
      %v8506 = vsel %vm8424, %v4396, 0.0
      %v8507 = vsel %vm8424, %v4397, 0.0
      %v8508 = vsel %vm8425, %v4398, 0.0
      %v8509 = vsel %vm8425, %v4399, 0.0
      %v8510 = vsel %vm8426, %v4400, 0.0
      %v8511 = vsel %vm8426, %v4401, 0.0
      %v8512 = vsel %vm8427, %v4402, 0.0
      %v8513 = vsel %vm8427, %v4403, 0.0
      %v8514 = vsel %vm8428, %v4404, 0.0
      %v8515 = vsel %vm8428, %v4405, 0.0
      %v8516 = vsel %vm8429, %v4406, 0.0
      %v8517 = vsel %vm8429, %v4407, 0.0
      %v8518 = vsel %vm8430, %v4408, 0.0
      %v8519 = vsel %vm8430, %v4409, 0.0
      %v8520 = vsel %vm8431, %v4410, 0.0
      %v8521 = vsel %vm8431, %v4411, 0.0
      %v8522 = vsel %vm8432, %v4412, 0.0
      %v8523 = vsel %vm8432, %v4413, 0.0
      %v8524 = vsel %vm8433, %v4414, 0.0
      %v8525 = vsel %vm8433, %v4415, 0.0
      %v8526 = vsel %vm8434, %v4416, 0.0
      %v8527 = vsel %vm8434, %v4417, 0.0
      %v8528 = vsel %vm8435, %v4418, 0.0
      %v8529 = vsel %vm8435, %v4419, 0.0
      %v8530 = vsel %vm8436, %v4420, 0.0
      %v8531 = vsel %vm8436, %v4421, 0.0
      %v8532 = vsel %vm8437, %v4422, 0.0
      %v8533 = vsel %vm8437, %v4423, 0.0
      %v8534 = vsel %vm8438, %v4424, 0.0
      %v8535 = vsel %vm8438, %v4425, 0.0
      %v8536 = vsel %vm8439, %v4426, 0.0
      %v8537 = vsel %vm8439, %v4427, 0.0
      %v8538 = vsel %vm8440, %v4428, 0.0
      %v8539 = vsel %vm8440, %v4429, 0.0
      %v8540 = vsel %vm8441, %v4430, 0.0
      %v8541 = vsel %vm8441, %v4431, 0.0
      %v8542 = vsel %vm8442, %v4432, 0.0
      %v8543 = vsel %vm8442, %v4433, 0.0
      %v8544 = vsel %vm8443, %v4434, 0.0
      %v8545 = vsel %vm8443, %v4435, 0.0
      %v8546 = vsel %vm8444, %v4436, 0.0
      %v8547 = vsel %vm8444, %v4437, 0.0
      %v8548 = vsel %vm8445, %v4438, 0.0
      %v8549 = vsel %vm8445, %v4439, 0.0
      %v8550 = vsel %vm8446, %v4440, 0.0
      %v8551 = vsel %vm8446, %v4441, 0.0
      %v8552 = vsel %vm8447, %v4442, 0.0
      %v8553 = vsel %vm8447, %v4443, 0.0
      %v8554 = vsel %vm8448, %v4444, 0.0
      %v8555 = vsel %vm8448, %v4445, 0.0
      %v8556 = vsel %vm8449, %v4446, 0.0
      %v8557 = vsel %vm8449, %v4447, 0.0
      %v8558 = vsel %vm8450, %v4448, 0.0
      %v8559 = vsel %vm8450, %v4449, 0.0
      %v8560 = vsel %vm8451, %v4450, 0.0
      %v8561 = vsel %vm8451, %v4451, 0.0
      %v8562 = vsel %vm8452, %v4452, 0.0
      %v8563 = vsel %vm8452, %v4453, 0.0
      %v8564 = vsel %vm8453, %v4454, 0.0
      %v8565 = vsel %vm8453, %v4455, 0.0
      %v8566 = vsel %vm8454, %v4456, 0.0
      %v8567 = vsel %vm8454, %v4457, 0.0
      %v8568 = vsel %vm8455, %v4458, 0.0
      %v8569 = vsel %vm8455, %v4459, 0.0
      %v8570 = vsel %vm8456, %v4460, 0.0
      %v8571 = vsel %vm8456, %v4461, 0.0
      %v8572 = vsel %vm8457, %v4462, 0.0
      %v8573 = vsel %vm8457, %v4463, 0.0
      %v8574 = vsel %vm8458, %v4464, 0.0
      %v8575 = vsel %vm8458, %v4465, 0.0
      %v8576 = vsel %vm8459, %v4466, 0.0
      %v8577 = vsel %vm8459, %v4467, 0.0
      %v8578 = vsel %vm8460, %v4468, 0.0
      %v8579 = vsel %vm8460, %v4469, 0.0
      %v8580 = vsel %vm8461, %v4470, 0.0
      %v8581 = vsel %vm8461, %v4471, 0.0
      %v8582 = vsel %vm8462, %v4472, 0.0
      %v8583 = vsel %vm8462, %v4473, 0.0
      %v8584 = vsel %vm8463, %v4474, 0.0
      %v8585 = vsel %vm8463, %v4475, 0.0
      %v8586 = vsel %vm8464, %v4476, 0.0
      %v8587 = vsel %vm8464, %v4477, 0.0
      %v8588 = vsel %vm8465, %v4478, 0.0
      %v8589 = vsel %vm8465, %v4479, 0.0
      %v8590 = vsel %vm8466, %v4480, 0.0
      %v8591 = vsel %vm8466, %v4481, 0.0
      %v8592 = vsel %vm8467, %v4482, 0.0
      %v8593 = vsel %vm8467, %v4483, 0.0
      %v8594 = vsel %vm8468, %v4484, 0.0
      %v8595 = vsel %vm8468, %v4485, 0.0
      %v8596 = vsel %vm8469, %v4486, 0.0
      %v8597 = vsel %vm8469, %v4487, 0.0
      %v8598 = vsel %vm5065, %v8470, 0.0
      %8599 = vadd.xlane.f32.xlu0 %v8598
      %v8600 = vpop.xlane.xlu0 %8599
      %v8601 = vsel %vm5065, %v8471, 0.0
      %8602 = vadd.xlane.f32.xlu0 %v8601
      %v8603 = vpop.xlane.xlu0 %8602
      %v8604 = vsel %vm5065, %v8472, 0.0
      %8605 = vadd.xlane.f32.xlu0 %v8604
      %v8606 = vpop.xlane.xlu0 %8605
      %v8607 = vsel %vm5065, %v8473, 0.0
      %8608 = vadd.xlane.f32.xlu0 %v8607
      %v8609 = vpop.xlane.xlu0 %8608
      %v8610 = vsel %vm5065, %v8474, 0.0
      %8611 = vadd.xlane.f32.xlu0 %v8610
      %v8612 = vpop.xlane.xlu0 %8611
      %v8613 = vsel %vm5065, %v8475, 0.0
      %8614 = vadd.xlane.f32.xlu0 %v8613
      %v8615 = vpop.xlane.xlu0 %8614
      %v8616 = vsel %vm5065, %v8476, 0.0
      %8617 = vadd.xlane.f32.xlu0 %v8616
      %v8618 = vpop.xlane.xlu0 %8617
      %v8619 = vsel %vm5065, %v8477, 0.0
      %8620 = vadd.xlane.f32.xlu0 %v8619
      %v8621 = vpop.xlane.xlu0 %8620
      %v8622 = vsel %vm5065, %v8478, 0.0
      %8623 = vadd.xlane.f32.xlu0 %v8622
      %v8624 = vpop.xlane.xlu0 %8623
      %v8625 = vsel %vm5065, %v8479, 0.0
      %8626 = vadd.xlane.f32.xlu0 %v8625
      %v8627 = vpop.xlane.xlu0 %8626
      %v8628 = vsel %vm5065, %v8480, 0.0
      %8629 = vadd.xlane.f32.xlu0 %v8628
      %v8630 = vpop.xlane.xlu0 %8629
      %v8631 = vsel %vm5065, %v8481, 0.0
      %8632 = vadd.xlane.f32.xlu0 %v8631
      %v8633 = vpop.xlane.xlu0 %8632
      %v8634 = vsel %vm5065, %v8482, 0.0
      %8635 = vadd.xlane.f32.xlu0 %v8634
      %v8636 = vpop.xlane.xlu0 %8635
      %v8637 = vsel %vm5065, %v8483, 0.0
      %8638 = vadd.xlane.f32.xlu0 %v8637
      %v8639 = vpop.xlane.xlu0 %8638
      %v8640 = vsel %vm5065, %v8484, 0.0
      %8641 = vadd.xlane.f32.xlu0 %v8640
      %v8642 = vpop.xlane.xlu0 %8641
      %v8643 = vsel %vm5065, %v8485, 0.0
      %8644 = vadd.xlane.f32.xlu0 %v8643
      %v8645 = vpop.xlane.xlu0 %8644
      %v8646 = vsel %vm5065, %v8486, 0.0
      %8647 = vadd.xlane.f32.xlu0 %v8646
      %v8648 = vpop.xlane.xlu0 %8647
      %v8649 = vsel %vm5065, %v8487, 0.0
      %8650 = vadd.xlane.f32.xlu0 %v8649
      %v8651 = vpop.xlane.xlu0 %8650
      %v8652 = vsel %vm5065, %v8488, 0.0
      %8653 = vadd.xlane.f32.xlu0 %v8652
      %v8654 = vpop.xlane.xlu0 %8653
      %v8655 = vsel %vm5065, %v8489, 0.0
      %8656 = vadd.xlane.f32.xlu0 %v8655
      %v8657 = vpop.xlane.xlu0 %8656
      %v8658 = vsel %vm5065, %v8490, 0.0
      %8659 = vadd.xlane.f32.xlu0 %v8658
      %v8660 = vpop.xlane.xlu0 %8659
      %v8661 = vsel %vm5065, %v8491, 0.0
      %8662 = vadd.xlane.f32.xlu0 %v8661
      %v8663 = vpop.xlane.xlu0 %8662
      %v8664 = vsel %vm5065, %v8492, 0.0
      %8665 = vadd.xlane.f32.xlu0 %v8664
      %v8666 = vpop.xlane.xlu0 %8665
      %v8667 = vsel %vm5065, %v8493, 0.0
      %8668 = vadd.xlane.f32.xlu0 %v8667
      %v8669 = vpop.xlane.xlu0 %8668
      %v8670 = vsel %vm5065, %v8494, 0.0
      %8671 = vadd.xlane.f32.xlu0 %v8670
      %v8672 = vpop.xlane.xlu0 %8671
      %v8673 = vsel %vm5065, %v8495, 0.0
      %8674 = vadd.xlane.f32.xlu0 %v8673
      %v8675 = vpop.xlane.xlu0 %8674
      %v8676 = vsel %vm5065, %v8496, 0.0
      %8677 = vadd.xlane.f32.xlu0 %v8676
      %v8678 = vpop.xlane.xlu0 %8677
      %v8679 = vsel %vm5065, %v8497, 0.0
      %8680 = vadd.xlane.f32.xlu0 %v8679
      %v8681 = vpop.xlane.xlu0 %8680
      %v8682 = vsel %vm5065, %v8498, 0.0
      %8683 = vadd.xlane.f32.xlu0 %v8682
      %v8684 = vpop.xlane.xlu0 %8683
      %v8685 = vsel %vm5065, %v8499, 0.0
      %8686 = vadd.xlane.f32.xlu0 %v8685
      %v8687 = vpop.xlane.xlu0 %8686
      %v8688 = vsel %vm5065, %v8500, 0.0
      %8689 = vadd.xlane.f32.xlu0 %v8688
      %v8690 = vpop.xlane.xlu0 %8689
      %v8691 = vsel %vm5065, %v8501, 0.0
      %8692 = vadd.xlane.f32.xlu0 %v8691
      %v8693 = vpop.xlane.xlu0 %8692
      %v8694 = vsel %vm5065, %v8502, 0.0
      %8695 = vadd.xlane.f32.xlu0 %v8694
      %v8696 = vpop.xlane.xlu0 %8695
      %v8697 = vsel %vm5065, %v8503, 0.0
      %8698 = vadd.xlane.f32.xlu0 %v8697
      %v8699 = vpop.xlane.xlu0 %8698
      %v8700 = vsel %vm5065, %v8504, 0.0
      %8701 = vadd.xlane.f32.xlu0 %v8700
      %v8702 = vpop.xlane.xlu0 %8701
      %v8703 = vsel %vm5065, %v8505, 0.0
      %8704 = vadd.xlane.f32.xlu0 %v8703
      %v8705 = vpop.xlane.xlu0 %8704
      %v8706 = vsel %vm5065, %v8506, 0.0
      %8707 = vadd.xlane.f32.xlu0 %v8706
      %v8708 = vpop.xlane.xlu0 %8707
      %v8709 = vsel %vm5065, %v8507, 0.0
      %8710 = vadd.xlane.f32.xlu0 %v8709
      %v8711 = vpop.xlane.xlu0 %8710
      %v8712 = vsel %vm5065, %v8508, 0.0
      %8713 = vadd.xlane.f32.xlu0 %v8712
      %v8714 = vpop.xlane.xlu0 %8713
      %v8715 = vsel %vm5065, %v8509, 0.0
      %8716 = vadd.xlane.f32.xlu0 %v8715
      %v8717 = vpop.xlane.xlu0 %8716
      %v8718 = vsel %vm5065, %v8510, 0.0
      %8719 = vadd.xlane.f32.xlu0 %v8718
      %v8720 = vpop.xlane.xlu0 %8719
      %v8721 = vsel %vm5065, %v8511, 0.0
      %8722 = vadd.xlane.f32.xlu0 %v8721
      %v8723 = vpop.xlane.xlu0 %8722
      %v8724 = vsel %vm5065, %v8512, 0.0
      %8725 = vadd.xlane.f32.xlu0 %v8724
      %v8726 = vpop.xlane.xlu0 %8725
      %v8727 = vsel %vm5065, %v8513, 0.0
      %8728 = vadd.xlane.f32.xlu0 %v8727
      %v8729 = vpop.xlane.xlu0 %8728
      %v8730 = vsel %vm5065, %v8514, 0.0
      %8731 = vadd.xlane.f32.xlu0 %v8730
      %v8732 = vpop.xlane.xlu0 %8731
      %v8733 = vsel %vm5065, %v8515, 0.0
      %8734 = vadd.xlane.f32.xlu0 %v8733
      %v8735 = vpop.xlane.xlu0 %8734
      %v8736 = vsel %vm5065, %v8516, 0.0
      %8737 = vadd.xlane.f32.xlu0 %v8736
      %v8738 = vpop.xlane.xlu0 %8737
      %v8739 = vsel %vm5065, %v8517, 0.0
      %8740 = vadd.xlane.f32.xlu0 %v8739
      %v8741 = vpop.xlane.xlu0 %8740
      %v8742 = vsel %vm5065, %v8518, 0.0
      %8743 = vadd.xlane.f32.xlu0 %v8742
      %v8744 = vpop.xlane.xlu0 %8743
      %v8745 = vsel %vm5065, %v8519, 0.0
      %8746 = vadd.xlane.f32.xlu0 %v8745
      %v8747 = vpop.xlane.xlu0 %8746
      %v8748 = vsel %vm5065, %v8520, 0.0
      %8749 = vadd.xlane.f32.xlu0 %v8748
      %v8750 = vpop.xlane.xlu0 %8749
      %v8751 = vsel %vm5065, %v8521, 0.0
      %8752 = vadd.xlane.f32.xlu0 %v8751
      %v8753 = vpop.xlane.xlu0 %8752
      %v8754 = vsel %vm5065, %v8522, 0.0
      %8755 = vadd.xlane.f32.xlu0 %v8754
      %v8756 = vpop.xlane.xlu0 %8755
      %v8757 = vsel %vm5065, %v8523, 0.0
      %8758 = vadd.xlane.f32.xlu0 %v8757
      %v8759 = vpop.xlane.xlu0 %8758
      %v8760 = vsel %vm5065, %v8524, 0.0
      %8761 = vadd.xlane.f32.xlu0 %v8760
      %v8762 = vpop.xlane.xlu0 %8761
      %v8763 = vsel %vm5065, %v8525, 0.0
      %8764 = vadd.xlane.f32.xlu0 %v8763
      %v8765 = vpop.xlane.xlu0 %8764
      %v8766 = vsel %vm5065, %v8526, 0.0
      %8767 = vadd.xlane.f32.xlu0 %v8766
      %v8768 = vpop.xlane.xlu0 %8767
      %v8769 = vsel %vm5065, %v8527, 0.0
      %8770 = vadd.xlane.f32.xlu0 %v8769
      %v8771 = vpop.xlane.xlu0 %8770
      %v8772 = vsel %vm5065, %v8528, 0.0
      %8773 = vadd.xlane.f32.xlu0 %v8772
      %v8774 = vpop.xlane.xlu0 %8773
      %v8775 = vsel %vm5065, %v8529, 0.0
      %8776 = vadd.xlane.f32.xlu0 %v8775
      %v8777 = vpop.xlane.xlu0 %8776
      %v8778 = vsel %vm5065, %v8530, 0.0
      %8779 = vadd.xlane.f32.xlu0 %v8778
      %v8780 = vpop.xlane.xlu0 %8779
      %v8781 = vsel %vm5065, %v8531, 0.0
      %8782 = vadd.xlane.f32.xlu0 %v8781
      %v8783 = vpop.xlane.xlu0 %8782
      %v8784 = vsel %vm5065, %v8532, 0.0
      %8785 = vadd.xlane.f32.xlu0 %v8784
      %v8786 = vpop.xlane.xlu0 %8785
      %v8787 = vsel %vm5065, %v8533, 0.0
      %8788 = vadd.xlane.f32.xlu0 %v8787
      %v8789 = vpop.xlane.xlu0 %8788
      %v8790 = vsel %vm5065, %v8534, 0.0
      %8791 = vadd.xlane.f32.xlu0 %v8790
      %v8792 = vpop.xlane.xlu0 %8791
      %v8793 = vsel %vm5065, %v8535, 0.0
      %8794 = vadd.xlane.f32.xlu0 %v8793
      %v8795 = vpop.xlane.xlu0 %8794
      %v8796 = vsel %vm5065, %v8536, 0.0
      %8797 = vadd.xlane.f32.xlu0 %v8796
      %v8798 = vpop.xlane.xlu0 %8797
      %v8799 = vsel %vm5065, %v8537, 0.0
      %8800 = vadd.xlane.f32.xlu0 %v8799
      %v8801 = vpop.xlane.xlu0 %8800
      %v8802 = vsel %vm5065, %v8538, 0.0
      %8803 = vadd.xlane.f32.xlu0 %v8802
      %v8804 = vpop.xlane.xlu0 %8803
      %v8805 = vsel %vm5065, %v8539, 0.0
      %8806 = vadd.xlane.f32.xlu0 %v8805
      %v8807 = vpop.xlane.xlu0 %8806
      %v8808 = vsel %vm5065, %v8540, 0.0
      %8809 = vadd.xlane.f32.xlu0 %v8808
      %v8810 = vpop.xlane.xlu0 %8809
      %v8811 = vsel %vm5065, %v8541, 0.0
      %8812 = vadd.xlane.f32.xlu0 %v8811
      %v8813 = vpop.xlane.xlu0 %8812
      %v8814 = vsel %vm5065, %v8542, 0.0
      %8815 = vadd.xlane.f32.xlu0 %v8814
      %v8816 = vpop.xlane.xlu0 %8815
      %v8817 = vsel %vm5065, %v8543, 0.0
      %8818 = vadd.xlane.f32.xlu0 %v8817
      %v8819 = vpop.xlane.xlu0 %8818
      %v8820 = vsel %vm5065, %v8544, 0.0
      %8821 = vadd.xlane.f32.xlu0 %v8820
      %v8822 = vpop.xlane.xlu0 %8821
      %v8823 = vsel %vm5065, %v8545, 0.0
      %8824 = vadd.xlane.f32.xlu0 %v8823
      %v8825 = vpop.xlane.xlu0 %8824
      %v8826 = vsel %vm5065, %v8546, 0.0
      %8827 = vadd.xlane.f32.xlu0 %v8826
      %v8828 = vpop.xlane.xlu0 %8827
      %v8829 = vsel %vm5065, %v8547, 0.0
      %8830 = vadd.xlane.f32.xlu0 %v8829
      %v8831 = vpop.xlane.xlu0 %8830
      %v8832 = vsel %vm5065, %v8548, 0.0
      %8833 = vadd.xlane.f32.xlu0 %v8832
      %v8834 = vpop.xlane.xlu0 %8833
      %v8835 = vsel %vm5065, %v8549, 0.0
      %8836 = vadd.xlane.f32.xlu0 %v8835
      %v8837 = vpop.xlane.xlu0 %8836
      %v8838 = vsel %vm5065, %v8550, 0.0
      %8839 = vadd.xlane.f32.xlu0 %v8838
      %v8840 = vpop.xlane.xlu0 %8839
      %v8841 = vsel %vm5065, %v8551, 0.0
      %8842 = vadd.xlane.f32.xlu0 %v8841
      %v8843 = vpop.xlane.xlu0 %8842
      %v8844 = vsel %vm5065, %v8552, 0.0
      %8845 = vadd.xlane.f32.xlu0 %v8844
      %v8846 = vpop.xlane.xlu0 %8845
      %v8847 = vsel %vm5065, %v8553, 0.0
      %8848 = vadd.xlane.f32.xlu0 %v8847
      %v8849 = vpop.xlane.xlu0 %8848
      %v8850 = vsel %vm5065, %v8554, 0.0
      %8851 = vadd.xlane.f32.xlu0 %v8850
      %v8852 = vpop.xlane.xlu0 %8851
      %v8853 = vsel %vm5065, %v8555, 0.0
      %8854 = vadd.xlane.f32.xlu0 %v8853
      %v8855 = vpop.xlane.xlu0 %8854
      %v8856 = vsel %vm5065, %v8556, 0.0
      %8857 = vadd.xlane.f32.xlu0 %v8856
      %v8858 = vpop.xlane.xlu0 %8857
      %v8859 = vsel %vm5065, %v8557, 0.0
      %8860 = vadd.xlane.f32.xlu0 %v8859
      %v8861 = vpop.xlane.xlu0 %8860
      %v8862 = vsel %vm5065, %v8558, 0.0
      %8863 = vadd.xlane.f32.xlu0 %v8862
      %v8864 = vpop.xlane.xlu0 %8863
      %v8865 = vsel %vm5065, %v8559, 0.0
      %8866 = vadd.xlane.f32.xlu0 %v8865
      %v8867 = vpop.xlane.xlu0 %8866
      %v8868 = vsel %vm5065, %v8560, 0.0
      %8869 = vadd.xlane.f32.xlu0 %v8868
      %v8870 = vpop.xlane.xlu0 %8869
      %v8871 = vsel %vm5065, %v8561, 0.0
      %8872 = vadd.xlane.f32.xlu0 %v8871
      %v8873 = vpop.xlane.xlu0 %8872
      %v8874 = vsel %vm5065, %v8562, 0.0
      %8875 = vadd.xlane.f32.xlu0 %v8874
      %v8876 = vpop.xlane.xlu0 %8875
      %v8877 = vsel %vm5065, %v8563, 0.0
      %8878 = vadd.xlane.f32.xlu0 %v8877
      %v8879 = vpop.xlane.xlu0 %8878
      %v8880 = vsel %vm5065, %v8564, 0.0
      %8881 = vadd.xlane.f32.xlu0 %v8880
      %v8882 = vpop.xlane.xlu0 %8881
      %v8883 = vsel %vm5065, %v8565, 0.0
      %8884 = vadd.xlane.f32.xlu0 %v8883
      %v8885 = vpop.xlane.xlu0 %8884
      %v8886 = vsel %vm5065, %v8566, 0.0
      %8887 = vadd.xlane.f32.xlu0 %v8886
      %v8888 = vpop.xlane.xlu0 %8887
      %v8889 = vsel %vm5065, %v8567, 0.0
      %8890 = vadd.xlane.f32.xlu0 %v8889
      %v8891 = vpop.xlane.xlu0 %8890
      %v8892 = vsel %vm5065, %v8568, 0.0
      %8893 = vadd.xlane.f32.xlu0 %v8892
      %v8894 = vpop.xlane.xlu0 %8893
      %v8895 = vsel %vm5065, %v8569, 0.0
      %8896 = vadd.xlane.f32.xlu0 %v8895
      %v8897 = vpop.xlane.xlu0 %8896
      %v8898 = vsel %vm5065, %v8570, 0.0
      %8899 = vadd.xlane.f32.xlu0 %v8898
      %v8900 = vpop.xlane.xlu0 %8899
      %v8901 = vsel %vm5065, %v8571, 0.0
      %8902 = vadd.xlane.f32.xlu0 %v8901
      %v8903 = vpop.xlane.xlu0 %8902
      %v8904 = vsel %vm5065, %v8572, 0.0
      %8905 = vadd.xlane.f32.xlu0 %v8904
      %v8906 = vpop.xlane.xlu0 %8905
      %v8907 = vsel %vm5065, %v8573, 0.0
      %8908 = vadd.xlane.f32.xlu0 %v8907
      %v8909 = vpop.xlane.xlu0 %8908
      %v8910 = vsel %vm5065, %v8574, 0.0
      %8911 = vadd.xlane.f32.xlu0 %v8910
      %v8912 = vpop.xlane.xlu0 %8911
      %v8913 = vsel %vm5065, %v8575, 0.0
      %8914 = vadd.xlane.f32.xlu0 %v8913
      %v8915 = vpop.xlane.xlu0 %8914
      %v8916 = vsel %vm5065, %v8576, 0.0
      %8917 = vadd.xlane.f32.xlu0 %v8916
      %v8918 = vpop.xlane.xlu0 %8917
      %v8919 = vsel %vm5065, %v8577, 0.0
      %8920 = vadd.xlane.f32.xlu0 %v8919
      %v8921 = vpop.xlane.xlu0 %8920
      %v8922 = vsel %vm5065, %v8578, 0.0
      %8923 = vadd.xlane.f32.xlu0 %v8922
      %v8924 = vpop.xlane.xlu0 %8923
      %v8925 = vsel %vm5065, %v8579, 0.0
      %8926 = vadd.xlane.f32.xlu0 %v8925
      %v8927 = vpop.xlane.xlu0 %8926
      %v8928 = vsel %vm5065, %v8580, 0.0
      %8929 = vadd.xlane.f32.xlu0 %v8928
      %v8930 = vpop.xlane.xlu0 %8929
      %v8931 = vsel %vm5065, %v8581, 0.0
      %8932 = vadd.xlane.f32.xlu0 %v8931
      %v8933 = vpop.xlane.xlu0 %8932
      %v8934 = vsel %vm5065, %v8582, 0.0
      %8935 = vadd.xlane.f32.xlu0 %v8934
      %v8936 = vpop.xlane.xlu0 %8935
      %v8937 = vsel %vm5065, %v8583, 0.0
      %8938 = vadd.xlane.f32.xlu0 %v8937
      %v8939 = vpop.xlane.xlu0 %8938
      %v8940 = vsel %vm5065, %v8584, 0.0
      %8941 = vadd.xlane.f32.xlu0 %v8940
      %v8942 = vpop.xlane.xlu0 %8941
      %v8943 = vsel %vm5065, %v8585, 0.0
      %8944 = vadd.xlane.f32.xlu0 %v8943
      %v8945 = vpop.xlane.xlu0 %8944
      %v8946 = vsel %vm5065, %v8586, 0.0
      %8947 = vadd.xlane.f32.xlu0 %v8946
      %v8948 = vpop.xlane.xlu0 %8947
      %v8949 = vsel %vm5065, %v8587, 0.0
      %8950 = vadd.xlane.f32.xlu0 %v8949
      %v8951 = vpop.xlane.xlu0 %8950
      %v8952 = vsel %vm5065, %v8588, 0.0
      %8953 = vadd.xlane.f32.xlu0 %v8952
      %v8954 = vpop.xlane.xlu0 %8953
      %v8955 = vsel %vm5065, %v8589, 0.0
      %8956 = vadd.xlane.f32.xlu0 %v8955
      %v8957 = vpop.xlane.xlu0 %8956
      %v8958 = vsel %vm5065, %v8590, 0.0
      %8959 = vadd.xlane.f32.xlu0 %v8958
      %v8960 = vpop.xlane.xlu0 %8959
      %v8961 = vsel %vm5065, %v8591, 0.0
      %8962 = vadd.xlane.f32.xlu0 %v8961
      %v8963 = vpop.xlane.xlu0 %8962
      %v8964 = vsel %vm5065, %v8592, 0.0
      %8965 = vadd.xlane.f32.xlu0 %v8964
      %v8966 = vpop.xlane.xlu0 %8965
      %v8967 = vsel %vm5065, %v8593, 0.0
      %8968 = vadd.xlane.f32.xlu0 %v8967
      %v8969 = vpop.xlane.xlu0 %8968
      %v8970 = vsel %vm5065, %v8594, 0.0
      %8971 = vadd.xlane.f32.xlu0 %v8970
      %v8972 = vpop.xlane.xlu0 %8971
      %v8973 = vsel %vm5065, %v8595, 0.0
      %8974 = vadd.xlane.f32.xlu0 %v8973
      %v8975 = vpop.xlane.xlu0 %8974
      %v8976 = vsel %vm5065, %v8596, 0.0
      %8977 = vadd.xlane.f32.xlu0 %v8976
      %v8978 = vpop.xlane.xlu0 %8977
      %v8979 = vsel %vm5065, %v8597, 0.0
      %8980 = vadd.xlane.f32.xlu0 %v8979
      %v8981 = vpop.xlane.xlu0 %8980
      %v8982 = vlaneseq
      %v8983 = vshrl.u32 %v8982, 7
      %v8984 = vsub.s32 3, %v8983
      %v8985 = vrot.slane %v4488, %v8984
      %v8986 = vmul.f32 %v8600, %v8985
      %v8987 = vmul.f32 %v8603, %v8985
      %v8988 = vmul.f32 %v8606, %v8985
      %v8989 = vmul.f32 %v8609, %v8985
      %v8990 = vmul.f32 %v8612, %v8985
      %v8991 = vmul.f32 %v8615, %v8985
      %v8992 = vmul.f32 %v8618, %v8985
      %v8993 = vmul.f32 %v8621, %v8985
      %v8994 = vmul.f32 %v8624, %v8985
      %v8995 = vmul.f32 %v8627, %v8985
      %v8996 = vmul.f32 %v8630, %v8985
      %v8997 = vmul.f32 %v8633, %v8985
      %v8998 = vmul.f32 %v8636, %v8985
      %v8999 = vmul.f32 %v8639, %v8985
      %v9000 = vmul.f32 %v8642, %v8985
      %v9001 = vmul.f32 %v8645, %v8985
      %v9002 = vmul.f32 %v8648, %v8985
      %v9003 = vmul.f32 %v8651, %v8985
      %v9004 = vmul.f32 %v8654, %v8985
      %v9005 = vmul.f32 %v8657, %v8985
      %v9006 = vmul.f32 %v8660, %v8985
      %v9007 = vmul.f32 %v8663, %v8985
      %v9008 = vmul.f32 %v8666, %v8985
      %v9009 = vmul.f32 %v8669, %v8985
      %v9010 = vmul.f32 %v8672, %v8985
      %v9011 = vmul.f32 %v8675, %v8985
      %v9012 = vmul.f32 %v8678, %v8985
      %v9013 = vmul.f32 %v8681, %v8985
      %v9014 = vmul.f32 %v8684, %v8985
      %v9015 = vmul.f32 %v8687, %v8985
      %v9016 = vmul.f32 %v8690, %v8985
      %v9017 = vmul.f32 %v8693, %v8985
      %v9018 = vmul.f32 %v8696, %v8985
      %v9019 = vmul.f32 %v8699, %v8985
      %v9020 = vmul.f32 %v8702, %v8985
      %v9021 = vmul.f32 %v8705, %v8985
      %v9022 = vmul.f32 %v8708, %v8985
      %v9023 = vmul.f32 %v8711, %v8985
      %v9024 = vmul.f32 %v8714, %v8985
      %v9025 = vmul.f32 %v8717, %v8985
      %v9026 = vmul.f32 %v8720, %v8985
      %v9027 = vmul.f32 %v8723, %v8985
      %v9028 = vmul.f32 %v8726, %v8985
      %v9029 = vmul.f32 %v8729, %v8985
      %v9030 = vmul.f32 %v8732, %v8985
      %v9031 = vmul.f32 %v8735, %v8985
      %v9032 = vmul.f32 %v8738, %v8985
      %v9033 = vmul.f32 %v8741, %v8985
      %v9034 = vmul.f32 %v8744, %v8985
      %v9035 = vmul.f32 %v8747, %v8985
      %v9036 = vmul.f32 %v8750, %v8985
      %v9037 = vmul.f32 %v8753, %v8985
      %v9038 = vmul.f32 %v8756, %v8985
      %v9039 = vmul.f32 %v8759, %v8985
      %v9040 = vmul.f32 %v8762, %v8985
      %v9041 = vmul.f32 %v8765, %v8985
      %v9042 = vmul.f32 %v8768, %v8985
      %v9043 = vmul.f32 %v8771, %v8985
      %v9044 = vmul.f32 %v8774, %v8985
      %v9045 = vmul.f32 %v8777, %v8985
      %v9046 = vmul.f32 %v8780, %v8985
      %v9047 = vmul.f32 %v8783, %v8985
      %v9048 = vmul.f32 %v8786, %v8985
      %v9049 = vmul.f32 %v8789, %v8985
      %v9050 = vmul.f32 %v8792, %v8985
      %v9051 = vmul.f32 %v8795, %v8985
      %v9052 = vmul.f32 %v8798, %v8985
      %v9053 = vmul.f32 %v8801, %v8985
      %v9054 = vmul.f32 %v8804, %v8985
      %v9055 = vmul.f32 %v8807, %v8985
      %v9056 = vmul.f32 %v8810, %v8985
      %v9057 = vmul.f32 %v8813, %v8985
      %v9058 = vmul.f32 %v8816, %v8985
      %v9059 = vmul.f32 %v8819, %v8985
      %v9060 = vmul.f32 %v8822, %v8985
      %v9061 = vmul.f32 %v8825, %v8985
      %v9062 = vmul.f32 %v8828, %v8985
      %v9063 = vmul.f32 %v8831, %v8985
      %v9064 = vmul.f32 %v8834, %v8985
      %v9065 = vmul.f32 %v8837, %v8985
      %v9066 = vmul.f32 %v8840, %v8985
      %v9067 = vmul.f32 %v8843, %v8985
      %v9068 = vmul.f32 %v8846, %v8985
      %v9069 = vmul.f32 %v8849, %v8985
      %v9070 = vmul.f32 %v8852, %v8985
      %v9071 = vmul.f32 %v8855, %v8985
      %v9072 = vmul.f32 %v8858, %v8985
      %v9073 = vmul.f32 %v8861, %v8985
      %v9074 = vmul.f32 %v8864, %v8985
      %v9075 = vmul.f32 %v8867, %v8985
      %v9076 = vmul.f32 %v8870, %v8985
      %v9077 = vmul.f32 %v8873, %v8985
      %v9078 = vmul.f32 %v8876, %v8985
      %v9079 = vmul.f32 %v8879, %v8985
      %v9080 = vmul.f32 %v8882, %v8985
      %v9081 = vmul.f32 %v8885, %v8985
      %v9082 = vmul.f32 %v8888, %v8985
      %v9083 = vmul.f32 %v8891, %v8985
      %v9084 = vmul.f32 %v8894, %v8985
      %v9085 = vmul.f32 %v8897, %v8985
      %v9086 = vmul.f32 %v8900, %v8985
      %v9087 = vmul.f32 %v8903, %v8985
      %v9088 = vmul.f32 %v8906, %v8985
      %v9089 = vmul.f32 %v8909, %v8985
      %v9090 = vmul.f32 %v8912, %v8985
      %v9091 = vmul.f32 %v8915, %v8985
      %v9092 = vmul.f32 %v8918, %v8985
      %v9093 = vmul.f32 %v8921, %v8985
      %v9094 = vmul.f32 %v8924, %v8985
      %v9095 = vmul.f32 %v8927, %v8985
      %v9096 = vmul.f32 %v8930, %v8985
      %v9097 = vmul.f32 %v8933, %v8985
      %v9098 = vmul.f32 %v8936, %v8985
      %v9099 = vmul.f32 %v8939, %v8985
      %v9100 = vmul.f32 %v8942, %v8985
      %v9101 = vmul.f32 %v8945, %v8985
      %v9102 = vmul.f32 %v8948, %v8985
      %v9103 = vmul.f32 %v8951, %v8985
      %v9104 = vmul.f32 %v8954, %v8985
      %v9105 = vmul.f32 %v8957, %v8985
      %v9106 = vmul.f32 %v8960, %v8985
      %v9107 = vmul.f32 %v8963, %v8985
      %v9108 = vmul.f32 %v8966, %v8985
      %v9109 = vmul.f32 %v8969, %v8985
      %v9110 = vmul.f32 %v8972, %v8985
      %v9111 = vmul.f32 %v8975, %v8985
      %v9112 = vmul.f32 %v8978, %v8985
      %v9113 = vmul.f32 %v8981, %v8985
      %v9114 = vadd.f32 %v7894, %v8986
      %v9115 = vadd.f32 %v7895, %v8987
      %v9116 = vadd.f32 %v7896, %v8988
      %v9117 = vadd.f32 %v7897, %v8989
      %v9118 = vadd.f32 %v7898, %v8990
      %v9119 = vadd.f32 %v7899, %v8991
      %v9120 = vadd.f32 %v7900, %v8992
      %v9121 = vadd.f32 %v7901, %v8993
      %v9122 = vadd.f32 %v7902, %v8994
      %v9123 = vadd.f32 %v7903, %v8995
      %v9124 = vadd.f32 %v7904, %v8996
      %v9125 = vadd.f32 %v7905, %v8997
      %v9126 = vadd.f32 %v7906, %v8998
      %v9127 = vadd.f32 %v7907, %v8999
      %v9128 = vadd.f32 %v7908, %v9000
      %v9129 = vadd.f32 %v7909, %v9001
      %v9130 = vadd.f32 %v7910, %v9002
      %v9131 = vadd.f32 %v7911, %v9003
      %v9132 = vadd.f32 %v7912, %v9004
      %v9133 = vadd.f32 %v7913, %v9005
      %v9134 = vadd.f32 %v7914, %v9006
      %v9135 = vadd.f32 %v7915, %v9007
      %v9136 = vadd.f32 %v7916, %v9008
      %v9137 = vadd.f32 %v7917, %v9009
      %v9138 = vadd.f32 %v7918, %v9010
      %v9139 = vadd.f32 %v7919, %v9011
      %v9140 = vadd.f32 %v7920, %v9012
      %v9141 = vadd.f32 %v7921, %v9013
      %v9142 = vadd.f32 %v7922, %v9014
      %v9143 = vadd.f32 %v7923, %v9015
      %v9144 = vadd.f32 %v7924, %v9016
      %v9145 = vadd.f32 %v7925, %v9017
      %v9146 = vadd.f32 %v7926, %v9018
      %v9147 = vadd.f32 %v7927, %v9019
      %v9148 = vadd.f32 %v7928, %v9020
      %v9149 = vadd.f32 %v7929, %v9021
      %v9150 = vadd.f32 %v7930, %v9022
      %v9151 = vadd.f32 %v7931, %v9023
      %v9152 = vadd.f32 %v7932, %v9024
      %v9153 = vadd.f32 %v7933, %v9025
      %v9154 = vadd.f32 %v7934, %v9026
      %v9155 = vadd.f32 %v7935, %v9027
      %v9156 = vadd.f32 %v7936, %v9028
      %v9157 = vadd.f32 %v7937, %v9029
      %v9158 = vadd.f32 %v7938, %v9030
      %v9159 = vadd.f32 %v7939, %v9031
      %v9160 = vadd.f32 %v7940, %v9032
      %v9161 = vadd.f32 %v7941, %v9033
      %v9162 = vadd.f32 %v7942, %v9034
      %v9163 = vadd.f32 %v7943, %v9035
      %v9164 = vadd.f32 %v7944, %v9036
      %v9165 = vadd.f32 %v7945, %v9037
      %v9166 = vadd.f32 %v7946, %v9038
      %v9167 = vadd.f32 %v7947, %v9039
      %v9168 = vadd.f32 %v7948, %v9040
      %v9169 = vadd.f32 %v7949, %v9041
      %v9170 = vadd.f32 %v7950, %v9042
      %v9171 = vadd.f32 %v7951, %v9043
      %v9172 = vadd.f32 %v7952, %v9044
      %v9173 = vadd.f32 %v7953, %v9045
      %v9174 = vadd.f32 %v7954, %v9046
      %v9175 = vadd.f32 %v7955, %v9047
      %v9176 = vadd.f32 %v7956, %v9048
      %v9177 = vadd.f32 %v7957, %v9049
      %v9178 = vadd.f32 %v7958, %v9050
      %v9179 = vadd.f32 %v7959, %v9051
      %v9180 = vadd.f32 %v7960, %v9052
      %v9181 = vadd.f32 %v7961, %v9053
      %v9182 = vadd.f32 %v7962, %v9054
      %v9183 = vadd.f32 %v7963, %v9055
      %v9184 = vadd.f32 %v7964, %v9056
      %v9185 = vadd.f32 %v7965, %v9057
      %v9186 = vadd.f32 %v7966, %v9058
      %v9187 = vadd.f32 %v7967, %v9059
      %v9188 = vadd.f32 %v7968, %v9060
      %v9189 = vadd.f32 %v7969, %v9061
      %v9190 = vadd.f32 %v7970, %v9062
      %v9191 = vadd.f32 %v7971, %v9063
      %v9192 = vadd.f32 %v7972, %v9064
      %v9193 = vadd.f32 %v7973, %v9065
      %v9194 = vadd.f32 %v7974, %v9066
      %v9195 = vadd.f32 %v7975, %v9067
      %v9196 = vadd.f32 %v7976, %v9068
      %v9197 = vadd.f32 %v7977, %v9069
      %v9198 = vadd.f32 %v7978, %v9070
      %v9199 = vadd.f32 %v7979, %v9071
      %v9200 = vadd.f32 %v7980, %v9072
      %v9201 = vadd.f32 %v7981, %v9073
      %v9202 = vadd.f32 %v7982, %v9074
      %v9203 = vadd.f32 %v7983, %v9075
      %v9204 = vadd.f32 %v7984, %v9076
      %v9205 = vadd.f32 %v7985, %v9077
      %v9206 = vadd.f32 %v7986, %v9078
      %v9207 = vadd.f32 %v7987, %v9079
      %v9208 = vadd.f32 %v7988, %v9080
      %v9209 = vadd.f32 %v7989, %v9081
      %v9210 = vadd.f32 %v7990, %v9082
      %v9211 = vadd.f32 %v7991, %v9083
      %v9212 = vadd.f32 %v7992, %v9084
      %v9213 = vadd.f32 %v7993, %v9085
      %v9214 = vadd.f32 %v7994, %v9086
      %v9215 = vadd.f32 %v7995, %v9087
      %v9216 = vadd.f32 %v7996, %v9088
      %v9217 = vadd.f32 %v7997, %v9089
      %v9218 = vadd.f32 %v7998, %v9090
      %v9219 = vadd.f32 %v7999, %v9091
      %v9220 = vadd.f32 %v8000, %v9092
      %v9221 = vadd.f32 %v8001, %v9093
      %v9222 = vadd.f32 %v8002, %v9094
      %v9223 = vadd.f32 %v8003, %v9095
      %v9224 = vadd.f32 %v8004, %v9096
      %v9225 = vadd.f32 %v8005, %v9097
      %v9226 = vadd.f32 %v8006, %v9098
      %v9227 = vadd.f32 %v8007, %v9099
      %v9228 = vadd.f32 %v8008, %v9100
      %v9229 = vadd.f32 %v8009, %v9101
      %v9230 = vadd.f32 %v8010, %v9102
      %v9231 = vadd.f32 %v8011, %v9103
      %v9232 = vadd.f32 %v8012, %v9104
      %v9233 = vadd.f32 %v8013, %v9105
      %v9234 = vadd.f32 %v8014, %v9106
      %v9235 = vadd.f32 %v8015, %v9107
      %v9236 = vadd.f32 %v8016, %v9108
      %v9237 = vadd.f32 %v8017, %v9109
      %v9238 = vadd.f32 %v8018, %v9110
      %v9239 = vadd.f32 %v8019, %v9111
      %v9240 = vadd.f32 %v8020, %v9112
      %v9241 = vadd.f32 %v8021, %v9113
      %v9242 = vld [vmem:[%s4] sm:$0x1]
      %v9244 = vlaneseq
      %v9245 = vshrl.u32 %v9244, 7
      %v9246 = vsub.s32 0, %v9245
      %v9247 = vrot.slane %v9242, %v9246
      %v9249 = vadd.f32 %v9114, %v9247
      %v9250 = vadd.f32 %v9115, %v9247
      %v9251 = vadd.f32 %v9116, %v9247
      %v9252 = vadd.f32 %v9117, %v9247
      %v9253 = vadd.f32 %v9118, %v9247
      %v9254 = vadd.f32 %v9119, %v9247
      %v9255 = vadd.f32 %v9120, %v9247
      %v9256 = vadd.f32 %v9121, %v9247
      %v9257 = vadd.f32 %v9122, %v9247
      %v9258 = vadd.f32 %v9123, %v9247
      %v9259 = vadd.f32 %v9124, %v9247
      %v9260 = vadd.f32 %v9125, %v9247
      %v9261 = vadd.f32 %v9126, %v9247
      %v9262 = vadd.f32 %v9127, %v9247
      %v9263 = vadd.f32 %v9128, %v9247
      %v9264 = vadd.f32 %v9129, %v9247
      %v9265 = vadd.f32 %v9130, %v9247
      %v9266 = vadd.f32 %v9131, %v9247
      %v9267 = vadd.f32 %v9132, %v9247
      %v9268 = vadd.f32 %v9133, %v9247
      %v9269 = vadd.f32 %v9134, %v9247
      %v9270 = vadd.f32 %v9135, %v9247
      %v9271 = vadd.f32 %v9136, %v9247
      %v9272 = vadd.f32 %v9137, %v9247
      %v9273 = vadd.f32 %v9138, %v9247
      %v9274 = vadd.f32 %v9139, %v9247
      %v9275 = vadd.f32 %v9140, %v9247
      %v9276 = vadd.f32 %v9141, %v9247
      %v9277 = vadd.f32 %v9142, %v9247
      %v9278 = vadd.f32 %v9143, %v9247
      %v9279 = vadd.f32 %v9144, %v9247
      %v9280 = vadd.f32 %v9145, %v9247
      %v9281 = vadd.f32 %v9146, %v9247
      %v9282 = vadd.f32 %v9147, %v9247
      %v9283 = vadd.f32 %v9148, %v9247
      %v9284 = vadd.f32 %v9149, %v9247
      %v9285 = vadd.f32 %v9150, %v9247
      %v9286 = vadd.f32 %v9151, %v9247
      %v9287 = vadd.f32 %v9152, %v9247
      %v9288 = vadd.f32 %v9153, %v9247
      %v9289 = vadd.f32 %v9154, %v9247
      %v9290 = vadd.f32 %v9155, %v9247
      %v9291 = vadd.f32 %v9156, %v9247
      %v9292 = vadd.f32 %v9157, %v9247
      %v9293 = vadd.f32 %v9158, %v9247
      %v9294 = vadd.f32 %v9159, %v9247
      %v9295 = vadd.f32 %v9160, %v9247
      %v9296 = vadd.f32 %v9161, %v9247
      %v9297 = vadd.f32 %v9162, %v9247
      %v9298 = vadd.f32 %v9163, %v9247
      %v9299 = vadd.f32 %v9164, %v9247
      %v9300 = vadd.f32 %v9165, %v9247
      %v9301 = vadd.f32 %v9166, %v9247
      %v9302 = vadd.f32 %v9167, %v9247
      %v9303 = vadd.f32 %v9168, %v9247
      %v9304 = vadd.f32 %v9169, %v9247
      %v9305 = vadd.f32 %v9170, %v9247
      %v9306 = vadd.f32 %v9171, %v9247
      %v9307 = vadd.f32 %v9172, %v9247
      %v9308 = vadd.f32 %v9173, %v9247
      %v9309 = vadd.f32 %v9174, %v9247
      %v9310 = vadd.f32 %v9175, %v9247
      %v9311 = vadd.f32 %v9176, %v9247
      %v9312 = vadd.f32 %v9177, %v9247
      %v9313 = vadd.f32 %v9178, %v9247
      %v9314 = vadd.f32 %v9179, %v9247
      %v9315 = vadd.f32 %v9180, %v9247
      %v9316 = vadd.f32 %v9181, %v9247
      %v9317 = vadd.f32 %v9182, %v9247
      %v9318 = vadd.f32 %v9183, %v9247
      %v9319 = vadd.f32 %v9184, %v9247
      %v9320 = vadd.f32 %v9185, %v9247
      %v9321 = vadd.f32 %v9186, %v9247
      %v9322 = vadd.f32 %v9187, %v9247
      %v9323 = vadd.f32 %v9188, %v9247
      %v9324 = vadd.f32 %v9189, %v9247
      %v9325 = vadd.f32 %v9190, %v9247
      %v9326 = vadd.f32 %v9191, %v9247
      %v9327 = vadd.f32 %v9192, %v9247
      %v9328 = vadd.f32 %v9193, %v9247
      %v9329 = vadd.f32 %v9194, %v9247
      %v9330 = vadd.f32 %v9195, %v9247
      %v9331 = vadd.f32 %v9196, %v9247
      %v9332 = vadd.f32 %v9197, %v9247
      %v9333 = vadd.f32 %v9198, %v9247
      %v9334 = vadd.f32 %v9199, %v9247
      %v9335 = vadd.f32 %v9200, %v9247
      %v9336 = vadd.f32 %v9201, %v9247
      %v9337 = vadd.f32 %v9202, %v9247
      %v9338 = vadd.f32 %v9203, %v9247
      %v9339 = vadd.f32 %v9204, %v9247
      %v9340 = vadd.f32 %v9205, %v9247
      %v9341 = vadd.f32 %v9206, %v9247
      %v9342 = vadd.f32 %v9207, %v9247
      %v9343 = vadd.f32 %v9208, %v9247
      %v9344 = vadd.f32 %v9209, %v9247
      %v9345 = vadd.f32 %v9210, %v9247
      %v9346 = vadd.f32 %v9211, %v9247
      %v9347 = vadd.f32 %v9212, %v9247
      %v9348 = vadd.f32 %v9213, %v9247
      %v9349 = vadd.f32 %v9214, %v9247
      %v9350 = vadd.f32 %v9215, %v9247
      %v9351 = vadd.f32 %v9216, %v9247
      %v9352 = vadd.f32 %v9217, %v9247
      %v9353 = vadd.f32 %v9218, %v9247
      %v9354 = vadd.f32 %v9219, %v9247
      %v9355 = vadd.f32 %v9220, %v9247
      %v9356 = vadd.f32 %v9221, %v9247
      %v9357 = vadd.f32 %v9222, %v9247
      %v9358 = vadd.f32 %v9223, %v9247
      %v9359 = vadd.f32 %v9224, %v9247
      %v9360 = vadd.f32 %v9225, %v9247
      %v9361 = vadd.f32 %v9226, %v9247
      %v9362 = vadd.f32 %v9227, %v9247
      %v9363 = vadd.f32 %v9228, %v9247
      %v9364 = vadd.f32 %v9229, %v9247
      %v9365 = vadd.f32 %v9230, %v9247
      %v9366 = vadd.f32 %v9231, %v9247
      %v9367 = vadd.f32 %v9232, %v9247
      %v9368 = vadd.f32 %v9233, %v9247
      %v9369 = vadd.f32 %v9234, %v9247
      %v9370 = vadd.f32 %v9235, %v9247
      %v9371 = vadd.f32 %v9236, %v9247
      %v9372 = vadd.f32 %v9237, %v9247
      %v9373 = vadd.f32 %v9238, %v9247
      %v9374 = vadd.f32 %v9239, %v9247
      %v9375 = vadd.f32 %v9240, %v9247
      %v9376 = vadd.f32 %v9241, %v9247
      %v9377 = vtanh.pop %v9249
      %v9378 = vtanh.pop %v9250
      %v9379 = vtanh.pop %v9251
      %v9380 = vtanh.pop %v9252
      %v9381 = vtanh.pop %v9253
      %v9382 = vtanh.pop %v9254
      %v9383 = vtanh.pop %v9255
      %v9384 = vtanh.pop %v9256
      %v9385 = vtanh.pop %v9257
      %v9386 = vtanh.pop %v9258
      %v9387 = vtanh.pop %v9259
      %v9388 = vtanh.pop %v9260
      %v9389 = vtanh.pop %v9261
      %v9390 = vtanh.pop %v9262
      %v9391 = vtanh.pop %v9263
      %v9392 = vtanh.pop %v9264
      %v9393 = vtanh.pop %v9265
      %v9394 = vtanh.pop %v9266
      %v9395 = vtanh.pop %v9267
      %v9396 = vtanh.pop %v9268
      %v9397 = vtanh.pop %v9269
      %v9398 = vtanh.pop %v9270
      %v9399 = vtanh.pop %v9271
      %v9400 = vtanh.pop %v9272
      %v9401 = vtanh.pop %v9273
      %v9402 = vtanh.pop %v9274
      %v9403 = vtanh.pop %v9275
      %v9404 = vtanh.pop %v9276
      %v9405 = vtanh.pop %v9277
      %v9406 = vtanh.pop %v9278
      %v9407 = vtanh.pop %v9279
      %v9408 = vtanh.pop %v9280
      %v9409 = vtanh.pop %v9281
      %v9410 = vtanh.pop %v9282
      %v9411 = vtanh.pop %v9283
      %v9412 = vtanh.pop %v9284
      %v9413 = vtanh.pop %v9285
      %v9414 = vtanh.pop %v9286
      %v9415 = vtanh.pop %v9287
      %v9416 = vtanh.pop %v9288
      %v9417 = vtanh.pop %v9289
      %v9418 = vtanh.pop %v9290
      %v9419 = vtanh.pop %v9291
      %v9420 = vtanh.pop %v9292
      %v9421 = vtanh.pop %v9293
      %v9422 = vtanh.pop %v9294
      %v9423 = vtanh.pop %v9295
      %v9424 = vtanh.pop %v9296
      %v9425 = vtanh.pop %v9297
      %v9426 = vtanh.pop %v9298
      %v9427 = vtanh.pop %v9299
      %v9428 = vtanh.pop %v9300
      %v9429 = vtanh.pop %v9301
      %v9430 = vtanh.pop %v9302
      %v9431 = vtanh.pop %v9303
      %v9432 = vtanh.pop %v9304
      %v9433 = vtanh.pop %v9305
      %v9434 = vtanh.pop %v9306
      %v9435 = vtanh.pop %v9307
      %v9436 = vtanh.pop %v9308
      %v9437 = vtanh.pop %v9309
      %v9438 = vtanh.pop %v9310
      %v9439 = vtanh.pop %v9311
      %v9440 = vtanh.pop %v9312
      %v9441 = vtanh.pop %v9313
      %v9442 = vtanh.pop %v9314
      %v9443 = vtanh.pop %v9315
      %v9444 = vtanh.pop %v9316
      %v9445 = vtanh.pop %v9317
      %v9446 = vtanh.pop %v9318
      %v9447 = vtanh.pop %v9319
      %v9448 = vtanh.pop %v9320
      %v9449 = vtanh.pop %v9321
      %v9450 = vtanh.pop %v9322
      %v9451 = vtanh.pop %v9323
      %v9452 = vtanh.pop %v9324
      %v9453 = vtanh.pop %v9325
      %v9454 = vtanh.pop %v9326
      %v9455 = vtanh.pop %v9327
      %v9456 = vtanh.pop %v9328
      %v9457 = vtanh.pop %v9329
      %v9458 = vtanh.pop %v9330
      %v9459 = vtanh.pop %v9331
      %v9460 = vtanh.pop %v9332
      %v9461 = vtanh.pop %v9333
      %v9462 = vtanh.pop %v9334
      %v9463 = vtanh.pop %v9335
      %v9464 = vtanh.pop %v9336
      %v9465 = vtanh.pop %v9337
      %v9466 = vtanh.pop %v9338
      %v9467 = vtanh.pop %v9339
      %v9468 = vtanh.pop %v9340
      %v9469 = vtanh.pop %v9341
      %v9470 = vtanh.pop %v9342
      %v9471 = vtanh.pop %v9343
      %v9472 = vtanh.pop %v9344
      %v9473 = vtanh.pop %v9345
      %v9474 = vtanh.pop %v9346
      %v9475 = vtanh.pop %v9347
      %v9476 = vtanh.pop %v9348
      %v9477 = vtanh.pop %v9349
      %v9478 = vtanh.pop %v9350
      %v9479 = vtanh.pop %v9351
      %v9480 = vtanh.pop %v9352
      %v9481 = vtanh.pop %v9353
      %v9482 = vtanh.pop %v9354
      %v9483 = vtanh.pop %v9355
      %v9484 = vtanh.pop %v9356
      %v9485 = vtanh.pop %v9357
      %v9486 = vtanh.pop %v9358
      %v9487 = vtanh.pop %v9359
      %v9488 = vtanh.pop %v9360
      %v9489 = vtanh.pop %v9361
      %v9490 = vtanh.pop %v9362
      %v9491 = vtanh.pop %v9363
      %v9492 = vtanh.pop %v9364
      %v9493 = vtanh.pop %v9365
      %v9494 = vtanh.pop %v9366
      %v9495 = vtanh.pop %v9367
      %v9496 = vtanh.pop %v9368
      %v9497 = vtanh.pop %v9369
      %v9498 = vtanh.pop %v9370
      %v9499 = vtanh.pop %v9371
      %v9500 = vtanh.pop %v9372
      %v9501 = vtanh.pop %v9373
      %v9502 = vtanh.pop %v9374
      %v9503 = vtanh.pop %v9375
      %v9504 = vtanh.pop %v9376
      %v9505 = vld [vmem:[%s5] sm:$0xff]
      %v9506 = vld [vmem:[%s5 + $0x8] sm:$0xff]
      %v9507 = vld [vmem:[%s5 + $0x10] sm:$0xff]
      %v9508 = vld [vmem:[%s5 + $0x18] sm:$0xff]
      %v9509 = vld [vmem:[%s6] sm:$0x1]
      %v9511 = vlaneseq
      %v9512 = vshrl.u32 %v9511, 7
      %v9513 = vsub.s32 0, %v9512
      %v9514 = vrot.slane %v9509, %v9513
      %vm9516 = vcmask 261120
      %v9518 = vsel %vm9516, %v9377, 0
      %v9521 = vsel %vm9516, %v9378, 0
      %v9524 = vsel %vm9516, %v9379, 0
      %v9527 = vsel %vm9516, %v9380, 0
      %v9530 = vsel %vm9516, %v9381, 0
      %v9533 = vsel %vm9516, %v9382, 0
      %v9536 = vsel %vm9516, %v9383, 0
      %v9539 = vsel %vm9516, %v9384, 0
      %v9542 = vsel %vm9516, %v9385, 0
      %v9545 = vsel %vm9516, %v9386, 0
      %v9548 = vsel %vm9516, %v9387, 0
      %v9551 = vsel %vm9516, %v9388, 0
      %v9554 = vsel %vm9516, %v9389, 0
      %v9557 = vsel %vm9516, %v9390, 0
      %v9560 = vsel %vm9516, %v9391, 0
      %v9563 = vsel %vm9516, %v9392, 0
      %v9566 = vsel %vm9516, %v9393, 0
      %v9569 = vsel %vm9516, %v9394, 0
      %v9572 = vsel %vm9516, %v9395, 0
      %v9575 = vsel %vm9516, %v9396, 0
      %v9578 = vsel %vm9516, %v9397, 0
      %v9581 = vsel %vm9516, %v9398, 0
      %v9584 = vsel %vm9516, %v9399, 0
      %v9587 = vsel %vm9516, %v9400, 0
      %v9590 = vsel %vm9516, %v9401, 0
      %v9593 = vsel %vm9516, %v9402, 0
      %v9596 = vsel %vm9516, %v9403, 0
      %v9599 = vsel %vm9516, %v9404, 0
      %v9602 = vsel %vm9516, %v9405, 0
      %v9605 = vsel %vm9516, %v9406, 0
      %v9608 = vsel %vm9516, %v9407, 0
      %v9611 = vsel %vm9516, %v9408, 0
      %v9614 = vsel %vm9516, %v9409, 0
      %v9617 = vsel %vm9516, %v9410, 0
      %v9620 = vsel %vm9516, %v9411, 0
      %v9623 = vsel %vm9516, %v9412, 0
      %v9626 = vsel %vm9516, %v9413, 0
      %v9629 = vsel %vm9516, %v9414, 0
      %v9632 = vsel %vm9516, %v9415, 0
      %v9635 = vsel %vm9516, %v9416, 0
      %v9638 = vsel %vm9516, %v9417, 0
      %v9641 = vsel %vm9516, %v9418, 0
      %v9644 = vsel %vm9516, %v9419, 0
      %v9647 = vsel %vm9516, %v9420, 0
      %v9650 = vsel %vm9516, %v9421, 0
      %v9653 = vsel %vm9516, %v9422, 0
      %v9656 = vsel %vm9516, %v9423, 0
      %v9659 = vsel %vm9516, %v9424, 0
      %v9662 = vsel %vm9516, %v9425, 0
      %v9665 = vsel %vm9516, %v9426, 0
      %v9668 = vsel %vm9516, %v9427, 0
      %v9671 = vsel %vm9516, %v9428, 0
      %v9674 = vsel %vm9516, %v9429, 0
      %v9677 = vsel %vm9516, %v9430, 0
      %v9680 = vsel %vm9516, %v9431, 0
      %v9683 = vsel %vm9516, %v9432, 0
      %v9686 = vsel %vm9516, %v9433, 0
      %v9689 = vsel %vm9516, %v9434, 0
      %v9692 = vsel %vm9516, %v9435, 0
      %v9695 = vsel %vm9516, %v9436, 0
      %v9698 = vsel %vm9516, %v9437, 0
      %v9701 = vsel %vm9516, %v9438, 0
      %v9704 = vsel %vm9516, %v9439, 0
      %v9707 = vsel %vm9516, %v9440, 0
      %v9710 = vsel %vm9516, %v9441, 0
      %v9713 = vsel %vm9516, %v9442, 0
      %v9716 = vsel %vm9516, %v9443, 0
      %v9719 = vsel %vm9516, %v9444, 0
      %v9722 = vsel %vm9516, %v9445, 0
      %v9725 = vsel %vm9516, %v9446, 0
      %v9728 = vsel %vm9516, %v9447, 0
      %v9731 = vsel %vm9516, %v9448, 0
      %v9734 = vsel %vm9516, %v9449, 0
      %v9737 = vsel %vm9516, %v9450, 0
      %v9740 = vsel %vm9516, %v9451, 0
      %v9743 = vsel %vm9516, %v9452, 0
      %v9746 = vsel %vm9516, %v9453, 0
      %v9749 = vsel %vm9516, %v9454, 0
      %v9752 = vsel %vm9516, %v9455, 0
      %v9755 = vsel %vm9516, %v9456, 0
      %v9758 = vsel %vm9516, %v9457, 0
      %v9761 = vsel %vm9516, %v9458, 0
      %v9764 = vsel %vm9516, %v9459, 0
      %v9767 = vsel %vm9516, %v9460, 0
      %v9770 = vsel %vm9516, %v9461, 0
      %v9773 = vsel %vm9516, %v9462, 0
      %v9776 = vsel %vm9516, %v9463, 0
      %v9779 = vsel %vm9516, %v9464, 0
      %v9782 = vsel %vm9516, %v9465, 0
      %v9785 = vsel %vm9516, %v9466, 0
      %v9788 = vsel %vm9516, %v9467, 0
      %v9791 = vsel %vm9516, %v9468, 0
      %v9794 = vsel %vm9516, %v9469, 0
      %v9797 = vsel %vm9516, %v9470, 0
      %v9800 = vsel %vm9516, %v9471, 0
      %v9803 = vsel %vm9516, %v9472, 0
      %v9806 = vsel %vm9516, %v9473, 0
      %v9809 = vsel %vm9516, %v9474, 0
      %v9812 = vsel %vm9516, %v9475, 0
      %v9815 = vsel %vm9516, %v9476, 0
      %v9818 = vsel %vm9516, %v9477, 0
      %v9821 = vsel %vm9516, %v9478, 0
      %v9824 = vsel %vm9516, %v9479, 0
      %v9827 = vsel %vm9516, %v9480, 0
      %v9830 = vsel %vm9516, %v9481, 0
      %v9833 = vsel %vm9516, %v9482, 0
      %v9836 = vsel %vm9516, %v9483, 0
      %v9839 = vsel %vm9516, %v9484, 0
      %v9842 = vsel %vm9516, %v9485, 0
      %v9845 = vsel %vm9516, %v9486, 0
      %v9848 = vsel %vm9516, %v9487, 0
      %v9851 = vsel %vm9516, %v9488, 0
      %v9854 = vsel %vm9516, %v9489, 0
      %v9857 = vsel %vm9516, %v9490, 0
      %v9860 = vsel %vm9516, %v9491, 0
      %v9863 = vsel %vm9516, %v9492, 0
      %v9866 = vsel %vm9516, %v9493, 0
      %v9869 = vsel %vm9516, %v9494, 0
      %v9872 = vsel %vm9516, %v9495, 0
      %v9875 = vsel %vm9516, %v9496, 0
      %v9878 = vsel %vm9516, %v9497, 0
      %v9881 = vsel %vm9516, %v9498, 0
      %v9884 = vsel %vm9516, %v9499, 0
      %v9887 = vsel %vm9516, %v9500, 0
      %v9890 = vsel %vm9516, %v9501, 0
      %v9893 = vsel %vm9516, %v9502, 0
      %v9896 = vsel %vm9516, %v9503, 0
      %v9899 = vsel %vm9516, %v9504, 0
      %9901 = vmatprep.subr.mxu0 0.0
      %9902 = vmatpush1.msra.mxu0 %v9505
      %9903 = vmatprep.subr.mxu0 0.0
      %9904 = vmatpush1.msra.mxu0 %v9506
      %9905 = vmatprep.subr.mxu0 0.0
      %9906 = vmatpush1.msra.mxu0 %v9507
      %9907 = vmatprep.subr.mxu0 0.0
      %9908 = vmatpush1.msra.mxu0 %v9508
      %9909 = vmatprep.subr.mxu0 0.0
      %9910 = vmatpush1.msra.mxu0 0.0
      %9911 = vmatprep.subr.mxu0 0.0
      %9912 = vmatpush1.msra.mxu0 0.0
      %9913 = vmatprep.subr.mxu0 0.0
      %9914 = vmatpush1.msra.mxu0 0.0
      %9915 = vmatprep.subr.mxu0 0.0
      %9916 = vmatpush1.msra.mxu0 0.0
      %9917 = vmatprep.subr.mxu0 0.0
      %9918 = vmatpush1.msra.mxu0 0.0
      %9919 = vmatprep.subr.mxu0 0.0
      %9920 = vmatpush1.msra.mxu0 0.0
      %9921 = vmatprep.subr.mxu0 0.0
      %9922 = vmatpush1.msra.mxu0 0.0
      %9923 = vmatprep.subr.mxu0 0.0
      %9924 = vmatpush1.msra.mxu0 0.0
      %9925 = vmatprep.subr.mxu0 0.0
      %9926 = vmatpush1.msra.mxu0 0.0
      %9927 = vmatprep.subr.mxu0 0.0
      %9928 = vmatpush1.msra.mxu0 0.0
      %9929 = vmatprep.subr.mxu0 0.0
      %9930 = vmatpush1.msra.mxu0 0.0
      %9931 = vmatprep.subr.mxu0 0.0
      %9932 = vmatpush1.msra.mxu0 0.0
      %9933 = vmatprep.subr.mxu0 0.0
      %9934 = vmatpush1.msra.mxu0 0.0
      %9935 = vmatprep.subr.mxu0 0.0
      %9936 = vmatpush1.msra.mxu0 0.0
      %9937 = vmatprep.subr.mxu0 0.0
      %9938 = vmatpush1.msra.mxu0 0.0
      %9939 = vmatprep.subr.mxu0 0.0
      %9940 = vmatpush1.msra.mxu0 0.0
      %9941 = vmatprep.subr.mxu0 0.0
      %9942 = vmatpush1.msra.mxu0 0.0
      %9943 = vmatprep.subr.mxu0 0.0
      %9944 = vmatpush1.msra.mxu0 0.0
      %9945 = vmatprep.subr.mxu0 0.0
      %9946 = vmatpush1.msra.mxu0 0.0
      %9947 = vmatprep.subr.mxu0 0.0
      %9948 = vmatpush1.msra.mxu0 0.0
      %9949 = vmatprep.subr.mxu0 0.0
      %9950 = vmatpush1.msra.mxu0 0.0
      %9951 = vmatprep.subr.mxu0 0.0
      %9952 = vmatpush1.msra.mxu0 0.0
      %9953 = vmatprep.subr.mxu0 0.0
      %9954 = vmatpush1.msra.mxu0 0.0
      %9955 = vmatprep.subr.mxu0 0.0
      %9956 = vmatpush1.msra.mxu0 0.0
      %9957 = vmatprep.subr.mxu0 0.0
      %9958 = vmatpush1.msra.mxu0 0.0
      %9959 = vmatprep.subr.mxu0 0.0
      %9960 = vmatpush1.msra.mxu0 0.0
      %9961 = vmatprep.subr.mxu0 0.0
      %9962 = vmatpush1.msra.mxu0 0.0
      %9963 = vmatprep.subr.mxu0 0.0
      %9964 = vmatpush1.msra.mxu0 0.0
      %9965 = vmatprep.mubr.f32.mxu0 0.0
      %9966 = vmatmul.mubr.f32.gmra.mrb[0].mxu0 %v9518
      %v9967 = vpop.f32.mrb[0].mxu0
      %v9968 = vadd.f32 %v9514, %v9967
      %v9969 = vpop.f32.mrb[0].mxu0
      %9970 = vmatprep.mubr.f32.mxu0 0.0
      %9971 = vmatmul.mubr.f32.gmra.mrb[0].mxu0 %v9521
      %v9972 = vpop.f32.mrb[0].mxu0
      %v9973 = vadd.f32 %v9514, %v9972
      %v9974 = vpop.f32.mrb[0].mxu0
      %9975 = vmatprep.mubr.f32.mxu0 0.0
      %9976 = vmatmul.mubr.f32.gmra.mrb[0].mxu0 %v9524
      %v9977 = vpop.f32.mrb[0].mxu0
      %v9978 = vadd.f32 %v9514, %v9977
      %v9979 = vpop.f32.mrb[0].mxu0
      %9980 = vmatprep.mubr.f32.mxu0 0.0
      %9981 = vmatmul.mubr.f32.gmra.mrb[0].mxu0 %v9527
      %v9982 = vpop.f32.mrb[0].mxu0
      %v9983 = vadd.f32 %v9514, %v9982
      %v9984 = vpop.f32.mrb[0].mxu0
      %9985 = vmatprep.mubr.f32.mxu0 0.0
      %9986 = vmatmul.mubr.f32.gmra.mrb[0].mxu0 %v9530
      %v9987 = vpop.f32.mrb[0].mxu0
      %v9988 = vadd.f32 %v9514, %v9987
      %v9989 = vpop.f32.mrb[0].mxu0
      %9990 = vmatprep.mubr.f32.mxu0 0.0
      %9991 = vmatmul.mubr.f32.gmra.mrb[0].mxu0 %v9533
      %v9992 = vpop.f32.mrb[0].mxu0
      %v9993 = vadd.f32 %v9514, %v9992
      %v9994 = vpop.f32.mrb[0].mxu0
      %9995 = vmatprep.mubr.f32.mxu0 0.0
      %9996 = vmatmul.mubr.f32.gmra.mrb[0].mxu0 %v9536
      %v9997 = vpop.f32.mrb[0].mxu0
      %v9998 = vadd.f32 %v9514, %v9997
      %v9999 = vpop.f32.mrb[0].mxu0
      %10000 = vmatprep.mubr.f32.mxu0 0.0
      %10001 = vmatmul.mubr.f32.gmra.mrb[0].mxu0 %v9539
      %v10002 = vpop.f32.mrb[0].mxu0
      %v10003 = vadd.f32 %v9514, %v10002
      %v10004 = vpop.f32.mrb[0].mxu0
      %10005 = vmatprep.mubr.f32.mxu0 0.0
      %10006 = vmatmul.mubr.f32.gmra.mrb[0].mxu0 %v9542
      %v10007 = vpop.f32.mrb[0].mxu0
      %v10008 = vadd.f32 %v9514, %v10007
      %v10009 = vpop.f32.mrb[0].mxu0
      %10010 = vmatprep.mubr.f32.mxu0 0.0
      %10011 = vmatmul.mubr.f32.gmra.mrb[0].mxu0 %v9545
      %v10012 = vpop.f32.mrb[0].mxu0
      %v10013 = vadd.f32 %v9514, %v10012
      %v10014 = vpop.f32.mrb[0].mxu0
      %10015 = vmatprep.mubr.f32.mxu0 0.0
      %10016 = vmatmul.mubr.f32.gmra.mrb[0].mxu0 %v9548
      %v10017 = vpop.f32.mrb[0].mxu0
      %v10018 = vadd.f32 %v9514, %v10017
      %v10019 = vpop.f32.mrb[0].mxu0
      %10020 = vmatprep.mubr.f32.mxu0 0.0
      %10021 = vmatmul.mubr.f32.gmra.mrb[0].mxu0 %v9551
      %v10022 = vpop.f32.mrb[0].mxu0
      %v10023 = vadd.f32 %v9514, %v10022
      %v10024 = vpop.f32.mrb[0].mxu0
      %10025 = vmatprep.mubr.f32.mxu0 0.0
      %10026 = vmatmul.mubr.f32.gmra.mrb[0].mxu0 %v9554
      %v10027 = vpop.f32.mrb[0].mxu0
      %v10028 = vadd.f32 %v9514, %v10027
      %v10029 = vpop.f32.mrb[0].mxu0
      %10030 = vmatprep.mubr.f32.mxu0 0.0
      %10031 = vmatmul.mubr.f32.gmra.mrb[0].mxu0 %v9557
      %v10032 = vpop.f32.mrb[0].mxu0
      %v10033 = vadd.f32 %v9514, %v10032
      %v10034 = vpop.f32.mrb[0].mxu0
      %10035 = vmatprep.mubr.f32.mxu0 0.0
      %10036 = vmatmul.mubr.f32.gmra.mrb[0].mxu0 %v9560
      %v10037 = vpop.f32.mrb[0].mxu0
      %v10038 = vadd.f32 %v9514, %v10037
      %v10039 = vpop.f32.mrb[0].mxu0
      %10040 = vmatprep.mubr.f32.mxu0 0.0
      %10041 = vmatmul.mubr.f32.gmra.mrb[0].mxu0 %v9563
      %v10042 = vpop.f32.mrb[0].mxu0
      %v10043 = vadd.f32 %v9514, %v10042
      %v10044 = vpop.f32.mrb[0].mxu0
      %10045 = vmatprep.mubr.f32.mxu0 0.0
      %10046 = vmatmul.mubr.f32.gmra.mrb[0].mxu0 %v9566
      %v10047 = vpop.f32.mrb[0].mxu0
      %v10048 = vadd.f32 %v9514, %v10047
      %v10049 = vpop.f32.mrb[0].mxu0
      %10050 = vmatprep.mubr.f32.mxu0 0.0
      %10051 = vmatmul.mubr.f32.gmra.mrb[0].mxu0 %v9569
      %v10052 = vpop.f32.mrb[0].mxu0
      %v10053 = vadd.f32 %v9514, %v10052
      %v10054 = vpop.f32.mrb[0].mxu0
      %10055 = vmatprep.mubr.f32.mxu0 0.0
      %10056 = vmatmul.mubr.f32.gmra.mrb[0].mxu0 %v9572
      %v10057 = vpop.f32.mrb[0].mxu0
      %v10058 = vadd.f32 %v9514, %v10057
      %v10059 = vpop.f32.mrb[0].mxu0
      %10060 = vmatprep.mubr.f32.mxu0 0.0
      %10061 = vmatmul.mubr.f32.gmra.mrb[0].mxu0 %v9575
      %v10062 = vpop.f32.mrb[0].mxu0
      %v10063 = vadd.f32 %v9514, %v10062
      %v10064 = vpop.f32.mrb[0].mxu0
      %10065 = vmatprep.mubr.f32.mxu0 0.0
      %10066 = vmatmul.mubr.f32.gmra.mrb[0].mxu0 %v9578
      %v10067 = vpop.f32.mrb[0].mxu0
      %v10068 = vadd.f32 %v9514, %v10067
      %v10069 = vpop.f32.mrb[0].mxu0
      %10070 = vmatprep.mubr.f32.mxu0 0.0
      %10071 = vmatmul.mubr.f32.gmra.mrb[0].mxu0 %v9581
      %v10072 = vpop.f32.mrb[0].mxu0
      %v10073 = vadd.f32 %v9514, %v10072
      %v10074 = vpop.f32.mrb[0].mxu0
      %10075 = vmatprep.mubr.f32.mxu0 0.0
      %10076 = vmatmul.mubr.f32.gmra.mrb[0].mxu0 %v9584
      %v10077 = vpop.f32.mrb[0].mxu0
      %v10078 = vadd.f32 %v9514, %v10077
      %v10079 = vpop.f32.mrb[0].mxu0
      %10080 = vmatprep.mubr.f32.mxu0 0.0
      %10081 = vmatmul.mubr.f32.gmra.mrb[0].mxu0 %v9587
      %v10082 = vpop.f32.mrb[0].mxu0
      %v10083 = vadd.f32 %v9514, %v10082
      %v10084 = vpop.f32.mrb[0].mxu0
      %10085 = vmatprep.mubr.f32.mxu0 0.0
      %10086 = vmatmul.mubr.f32.gmra.mrb[0].mxu0 %v9590
      %v10087 = vpop.f32.mrb[0].mxu0
      %v10088 = vadd.f32 %v9514, %v10087
      %v10089 = vpop.f32.mrb[0].mxu0
      %10090 = vmatprep.mubr.f32.mxu0 0.0
      %10091 = vmatmul.mubr.f32.gmra.mrb[0].mxu0 %v9593
      %v10092 = vpop.f32.mrb[0].mxu0
      %v10093 = vadd.f32 %v9514, %v10092
      %v10094 = vpop.f32.mrb[0].mxu0
      %10095 = vmatprep.mubr.f32.mxu0 0.0
      %10096 = vmatmul.mubr.f32.gmra.mrb[0].mxu0 %v9596
      %v10097 = vpop.f32.mrb[0].mxu0
      %v10098 = vadd.f32 %v9514, %v10097
      %v10099 = vpop.f32.mrb[0].mxu0
      %10100 = vmatprep.mubr.f32.mxu0 0.0
      %10101 = vmatmul.mubr.f32.gmra.mrb[0].mxu0 %v9599
      %v10102 = vpop.f32.mrb[0].mxu0
      %v10103 = vadd.f32 %v9514, %v10102
      %v10104 = vpop.f32.mrb[0].mxu0
      %10105 = vmatprep.mubr.f32.mxu0 0.0
      %10106 = vmatmul.mubr.f32.gmra.mrb[0].mxu0 %v9602
      %v10107 = vpop.f32.mrb[0].mxu0
      %v10108 = vadd.f32 %v9514, %v10107
      %v10109 = vpop.f32.mrb[0].mxu0
      %10110 = vmatprep.mubr.f32.mxu0 0.0
      %10111 = vmatmul.mubr.f32.gmra.mrb[0].mxu0 %v9605
      %v10112 = vpop.f32.mrb[0].mxu0
      %v10113 = vadd.f32 %v9514, %v10112
      %v10114 = vpop.f32.mrb[0].mxu0
      %10115 = vmatprep.mubr.f32.mxu0 0.0
      %10116 = vmatmul.mubr.f32.gmra.mrb[0].mxu0 %v9608
      %v10117 = vpop.f32.mrb[0].mxu0
      %v10118 = vadd.f32 %v9514, %v10117
      %v10119 = vpop.f32.mrb[0].mxu0
      %10120 = vmatprep.mubr.f32.mxu0 0.0
      %10121 = vmatmul.mubr.f32.gmra.mrb[0].mxu0 %v9611
      %v10122 = vpop.f32.mrb[0].mxu0
      %v10123 = vadd.f32 %v9514, %v10122
      %v10124 = vpop.f32.mrb[0].mxu0
      %10125 = vmatprep.mubr.f32.mxu0 0.0
      %10126 = vmatmul.mubr.f32.gmra.mrb[0].mxu0 %v9614
      %v10127 = vpop.f32.mrb[0].mxu0
      %v10128 = vadd.f32 %v9514, %v10127
      %v10129 = vpop.f32.mrb[0].mxu0
      %10130 = vmatprep.mubr.f32.mxu0 0.0
      %10131 = vmatmul.mubr.f32.gmra.mrb[0].mxu0 %v9617
      %v10132 = vpop.f32.mrb[0].mxu0
      %v10133 = vadd.f32 %v9514, %v10132
      %v10134 = vpop.f32.mrb[0].mxu0
      %10135 = vmatprep.mubr.f32.mxu0 0.0
      %10136 = vmatmul.mubr.f32.gmra.mrb[0].mxu0 %v9620
      %v10137 = vpop.f32.mrb[0].mxu0
      %v10138 = vadd.f32 %v9514, %v10137
      %v10139 = vpop.f32.mrb[0].mxu0
      %10140 = vmatprep.mubr.f32.mxu0 0.0
      %10141 = vmatmul.mubr.f32.gmra.mrb[0].mxu0 %v9623
      %v10142 = vpop.f32.mrb[0].mxu0
      %v10143 = vadd.f32 %v9514, %v10142
      %v10144 = vpop.f32.mrb[0].mxu0
      %10145 = vmatprep.mubr.f32.mxu0 0.0
      %10146 = vmatmul.mubr.f32.gmra.mrb[0].mxu0 %v9626
      %v10147 = vpop.f32.mrb[0].mxu0
      %v10148 = vadd.f32 %v9514, %v10147
      %v10149 = vpop.f32.mrb[0].mxu0
      %10150 = vmatprep.mubr.f32.mxu0 0.0
      %10151 = vmatmul.mubr.f32.gmra.mrb[0].mxu0 %v9629
      %v10152 = vpop.f32.mrb[0].mxu0
      %v10153 = vadd.f32 %v9514, %v10152
      %v10154 = vpop.f32.mrb[0].mxu0
      %10155 = vmatprep.mubr.f32.mxu0 0.0
      %10156 = vmatmul.mubr.f32.gmra.mrb[0].mxu0 %v9632
      %v10157 = vpop.f32.mrb[0].mxu0
      %v10158 = vadd.f32 %v9514, %v10157
      %v10159 = vpop.f32.mrb[0].mxu0
      %10160 = vmatprep.mubr.f32.mxu0 0.0
      %10161 = vmatmul.mubr.f32.gmra.mrb[0].mxu0 %v9635
      %v10162 = vpop.f32.mrb[0].mxu0
      %v10163 = vadd.f32 %v9514, %v10162
      %v10164 = vpop.f32.mrb[0].mxu0
      %10165 = vmatprep.mubr.f32.mxu0 0.0
      %10166 = vmatmul.mubr.f32.gmra.mrb[0].mxu0 %v9638
      %v10167 = vpop.f32.mrb[0].mxu0
      %v10168 = vadd.f32 %v9514, %v10167
      %v10169 = vpop.f32.mrb[0].mxu0
      %10170 = vmatprep.mubr.f32.mxu0 0.0
      %10171 = vmatmul.mubr.f32.gmra.mrb[0].mxu0 %v9641
      %v10172 = vpop.f32.mrb[0].mxu0
      %v10173 = vadd.f32 %v9514, %v10172
      %v10174 = vpop.f32.mrb[0].mxu0
      %10175 = vmatprep.mubr.f32.mxu0 0.0
      %10176 = vmatmul.mubr.f32.gmra.mrb[0].mxu0 %v9644
      %v10177 = vpop.f32.mrb[0].mxu0
      %v10178 = vadd.f32 %v9514, %v10177
      %v10179 = vpop.f32.mrb[0].mxu0
      %10180 = vmatprep.mubr.f32.mxu0 0.0
      %10181 = vmatmul.mubr.f32.gmra.mrb[0].mxu0 %v9647
      %v10182 = vpop.f32.mrb[0].mxu0
      %v10183 = vadd.f32 %v9514, %v10182
      %v10184 = vpop.f32.mrb[0].mxu0
      %10185 = vmatprep.mubr.f32.mxu0 0.0
      %10186 = vmatmul.mubr.f32.gmra.mrb[0].mxu0 %v9650
      %v10187 = vpop.f32.mrb[0].mxu0
      %v10188 = vadd.f32 %v9514, %v10187
      %v10189 = vpop.f32.mrb[0].mxu0
      %10190 = vmatprep.mubr.f32.mxu0 0.0
      %10191 = vmatmul.mubr.f32.gmra.mrb[0].mxu0 %v9653
      %v10192 = vpop.f32.mrb[0].mxu0
      %v10193 = vadd.f32 %v9514, %v10192
      %v10194 = vpop.f32.mrb[0].mxu0
      %10195 = vmatprep.mubr.f32.mxu0 0.0
      %10196 = vmatmul.mubr.f32.gmra.mrb[0].mxu0 %v9656
      %v10197 = vpop.f32.mrb[0].mxu0
      %v10198 = vadd.f32 %v9514, %v10197
      %v10199 = vpop.f32.mrb[0].mxu0
      %10200 = vmatprep.mubr.f32.mxu0 0.0
      %10201 = vmatmul.mubr.f32.gmra.mrb[0].mxu0 %v9659
      %v10202 = vpop.f32.mrb[0].mxu0
      %v10203 = vadd.f32 %v9514, %v10202
      %v10204 = vpop.f32.mrb[0].mxu0
      %10205 = vmatprep.mubr.f32.mxu0 0.0
      %10206 = vmatmul.mubr.f32.gmra.mrb[0].mxu0 %v9662
      %v10207 = vpop.f32.mrb[0].mxu0
      %v10208 = vadd.f32 %v9514, %v10207
      %v10209 = vpop.f32.mrb[0].mxu0
      %10210 = vmatprep.mubr.f32.mxu0 0.0
      %10211 = vmatmul.mubr.f32.gmra.mrb[0].mxu0 %v9665
      %v10212 = vpop.f32.mrb[0].mxu0
      %v10213 = vadd.f32 %v9514, %v10212
      %v10214 = vpop.f32.mrb[0].mxu0
      %10215 = vmatprep.mubr.f32.mxu0 0.0
      %10216 = vmatmul.mubr.f32.gmra.mrb[0].mxu0 %v9668
      %v10217 = vpop.f32.mrb[0].mxu0
      %v10218 = vadd.f32 %v9514, %v10217
      %v10219 = vpop.f32.mrb[0].mxu0
      %10220 = vmatprep.mubr.f32.mxu0 0.0
      %10221 = vmatmul.mubr.f32.gmra.mrb[0].mxu0 %v9671
      %v10222 = vpop.f32.mrb[0].mxu0
      %v10223 = vadd.f32 %v9514, %v10222
      %v10224 = vpop.f32.mrb[0].mxu0
      %10225 = vmatprep.mubr.f32.mxu0 0.0
      %10226 = vmatmul.mubr.f32.gmra.mrb[0].mxu0 %v9674
      %v10227 = vpop.f32.mrb[0].mxu0
      %v10228 = vadd.f32 %v9514, %v10227
      %v10229 = vpop.f32.mrb[0].mxu0
      %10230 = vmatprep.mubr.f32.mxu0 0.0
      %10231 = vmatmul.mubr.f32.gmra.mrb[0].mxu0 %v9677
      %v10232 = vpop.f32.mrb[0].mxu0
      %v10233 = vadd.f32 %v9514, %v10232
      %v10234 = vpop.f32.mrb[0].mxu0
      %10235 = vmatprep.mubr.f32.mxu0 0.0
      %10236 = vmatmul.mubr.f32.gmra.mrb[0].mxu0 %v9680
      %v10237 = vpop.f32.mrb[0].mxu0
      %v10238 = vadd.f32 %v9514, %v10237
      %v10239 = vpop.f32.mrb[0].mxu0
      %10240 = vmatprep.mubr.f32.mxu0 0.0
      %10241 = vmatmul.mubr.f32.gmra.mrb[0].mxu0 %v9683
      %v10242 = vpop.f32.mrb[0].mxu0
      %v10243 = vadd.f32 %v9514, %v10242
      %v10244 = vpop.f32.mrb[0].mxu0
      %10245 = vmatprep.mubr.f32.mxu0 0.0
      %10246 = vmatmul.mubr.f32.gmra.mrb[0].mxu0 %v9686
      %v10247 = vpop.f32.mrb[0].mxu0
      %v10248 = vadd.f32 %v9514, %v10247
      %v10249 = vpop.f32.mrb[0].mxu0
      %10250 = vmatprep.mubr.f32.mxu0 0.0
      %10251 = vmatmul.mubr.f32.gmra.mrb[0].mxu0 %v9689
      %v10252 = vpop.f32.mrb[0].mxu0
      %v10253 = vadd.f32 %v9514, %v10252
      %v10254 = vpop.f32.mrb[0].mxu0
      %10255 = vmatprep.mubr.f32.mxu0 0.0
      %10256 = vmatmul.mubr.f32.gmra.mrb[0].mxu0 %v9692
      %v10257 = vpop.f32.mrb[0].mxu0
      %v10258 = vadd.f32 %v9514, %v10257
      %v10259 = vpop.f32.mrb[0].mxu0
      %10260 = vmatprep.mubr.f32.mxu0 0.0
      %10261 = vmatmul.mubr.f32.gmra.mrb[0].mxu0 %v9695
      %v10262 = vpop.f32.mrb[0].mxu0
      %v10263 = vadd.f32 %v9514, %v10262
      %v10264 = vpop.f32.mrb[0].mxu0
      %10265 = vmatprep.mubr.f32.mxu0 0.0
      %10266 = vmatmul.mubr.f32.gmra.mrb[0].mxu0 %v9698
      %v10267 = vpop.f32.mrb[0].mxu0
      %v10268 = vadd.f32 %v9514, %v10267
      %v10269 = vpop.f32.mrb[0].mxu0
      %10270 = vmatprep.mubr.f32.mxu0 0.0
      %10271 = vmatmul.mubr.f32.gmra.mrb[0].mxu0 %v9701
      %v10272 = vpop.f32.mrb[0].mxu0
      %v10273 = vadd.f32 %v9514, %v10272
      %v10274 = vpop.f32.mrb[0].mxu0
      %10275 = vmatprep.mubr.f32.mxu0 0.0
      %10276 = vmatmul.mubr.f32.gmra.mrb[0].mxu0 %v9704
      %v10277 = vpop.f32.mrb[0].mxu0
      %v10278 = vadd.f32 %v9514, %v10277
      %v10279 = vpop.f32.mrb[0].mxu0
      %10280 = vmatprep.mubr.f32.mxu0 0.0
      %10281 = vmatmul.mubr.f32.gmra.mrb[0].mxu0 %v9707
      %v10282 = vpop.f32.mrb[0].mxu0
      %v10283 = vadd.f32 %v9514, %v10282
      %v10284 = vpop.f32.mrb[0].mxu0
      %10285 = vmatprep.mubr.f32.mxu0 0.0
      %10286 = vmatmul.mubr.f32.gmra.mrb[0].mxu0 %v9710
      %v10287 = vpop.f32.mrb[0].mxu0
      %v10288 = vadd.f32 %v9514, %v10287
      %v10289 = vpop.f32.mrb[0].mxu0
      %10290 = vmatprep.mubr.f32.mxu0 0.0
      %10291 = vmatmul.mubr.f32.gmra.mrb[0].mxu0 %v9713
      %v10292 = vpop.f32.mrb[0].mxu0
      %v10293 = vadd.f32 %v9514, %v10292
      %v10294 = vpop.f32.mrb[0].mxu0
      %10295 = vmatprep.mubr.f32.mxu0 0.0
      %10296 = vmatmul.mubr.f32.gmra.mrb[0].mxu0 %v9716
      %v10297 = vpop.f32.mrb[0].mxu0
      %v10298 = vadd.f32 %v9514, %v10297
      %v10299 = vpop.f32.mrb[0].mxu0
      %10300 = vmatprep.mubr.f32.mxu0 0.0
      %10301 = vmatmul.mubr.f32.gmra.mrb[0].mxu0 %v9719
      %v10302 = vpop.f32.mrb[0].mxu0
      %v10303 = vadd.f32 %v9514, %v10302
      %v10304 = vpop.f32.mrb[0].mxu0
      %10305 = vmatprep.mubr.f32.mxu0 0.0
      %10306 = vmatmul.mubr.f32.gmra.mrb[0].mxu0 %v9722
      %v10307 = vpop.f32.mrb[0].mxu0
      %v10308 = vadd.f32 %v9514, %v10307
      %v10309 = vpop.f32.mrb[0].mxu0
      %10310 = vmatprep.mubr.f32.mxu0 0.0
      %10311 = vmatmul.mubr.f32.gmra.mrb[0].mxu0 %v9725
      %v10312 = vpop.f32.mrb[0].mxu0
      %v10313 = vadd.f32 %v9514, %v10312
      %v10314 = vpop.f32.mrb[0].mxu0
      %10315 = vmatprep.mubr.f32.mxu0 0.0
      %10316 = vmatmul.mubr.f32.gmra.mrb[0].mxu0 %v9728
      %v10317 = vpop.f32.mrb[0].mxu0
      %v10318 = vadd.f32 %v9514, %v10317
      %v10319 = vpop.f32.mrb[0].mxu0
      %10320 = vmatprep.mubr.f32.mxu0 0.0
      %10321 = vmatmul.mubr.f32.gmra.mrb[0].mxu0 %v9731
      %v10322 = vpop.f32.mrb[0].mxu0
      %v10323 = vadd.f32 %v9514, %v10322
      %v10324 = vpop.f32.mrb[0].mxu0
      %10325 = vmatprep.mubr.f32.mxu0 0.0
      %10326 = vmatmul.mubr.f32.gmra.mrb[0].mxu0 %v9734
      %v10327 = vpop.f32.mrb[0].mxu0
      %v10328 = vadd.f32 %v9514, %v10327
      %v10329 = vpop.f32.mrb[0].mxu0
      %10330 = vmatprep.mubr.f32.mxu0 0.0
      %10331 = vmatmul.mubr.f32.gmra.mrb[0].mxu0 %v9737
      %v10332 = vpop.f32.mrb[0].mxu0
      %v10333 = vadd.f32 %v9514, %v10332
      %v10334 = vpop.f32.mrb[0].mxu0
      %10335 = vmatprep.mubr.f32.mxu0 0.0
      %10336 = vmatmul.mubr.f32.gmra.mrb[0].mxu0 %v9740
      %v10337 = vpop.f32.mrb[0].mxu0
      %v10338 = vadd.f32 %v9514, %v10337
      %v10339 = vpop.f32.mrb[0].mxu0
      %10340 = vmatprep.mubr.f32.mxu0 0.0
      %10341 = vmatmul.mubr.f32.gmra.mrb[0].mxu0 %v9743
      %v10342 = vpop.f32.mrb[0].mxu0
      %v10343 = vadd.f32 %v9514, %v10342
      %v10344 = vpop.f32.mrb[0].mxu0
      %10345 = vmatprep.mubr.f32.mxu0 0.0
      %10346 = vmatmul.mubr.f32.gmra.mrb[0].mxu0 %v9746
      %v10347 = vpop.f32.mrb[0].mxu0
      %v10348 = vadd.f32 %v9514, %v10347
      %v10349 = vpop.f32.mrb[0].mxu0
      %10350 = vmatprep.mubr.f32.mxu0 0.0
      %10351 = vmatmul.mubr.f32.gmra.mrb[0].mxu0 %v9749
      %v10352 = vpop.f32.mrb[0].mxu0
      %v10353 = vadd.f32 %v9514, %v10352
      %v10354 = vpop.f32.mrb[0].mxu0
      %10355 = vmatprep.mubr.f32.mxu0 0.0
      %10356 = vmatmul.mubr.f32.gmra.mrb[0].mxu0 %v9752
      %v10357 = vpop.f32.mrb[0].mxu0
      %v10358 = vadd.f32 %v9514, %v10357
      %v10359 = vpop.f32.mrb[0].mxu0
      %10360 = vmatprep.mubr.f32.mxu0 0.0
      %10361 = vmatmul.mubr.f32.gmra.mrb[0].mxu0 %v9755
      %v10362 = vpop.f32.mrb[0].mxu0
      %v10363 = vadd.f32 %v9514, %v10362
      %v10364 = vpop.f32.mrb[0].mxu0
      %10365 = vmatprep.mubr.f32.mxu0 0.0
      %10366 = vmatmul.mubr.f32.gmra.mrb[0].mxu0 %v9758
      %v10367 = vpop.f32.mrb[0].mxu0
      %v10368 = vadd.f32 %v9514, %v10367
      %v10369 = vpop.f32.mrb[0].mxu0
      %10370 = vmatprep.mubr.f32.mxu0 0.0
      %10371 = vmatmul.mubr.f32.gmra.mrb[0].mxu0 %v9761
      %v10372 = vpop.f32.mrb[0].mxu0
      %v10373 = vadd.f32 %v9514, %v10372
      %v10374 = vpop.f32.mrb[0].mxu0
      %10375 = vmatprep.mubr.f32.mxu0 0.0
      %10376 = vmatmul.mubr.f32.gmra.mrb[0].mxu0 %v9764
      %v10377 = vpop.f32.mrb[0].mxu0
      %v10378 = vadd.f32 %v9514, %v10377
      %v10379 = vpop.f32.mrb[0].mxu0
      %10380 = vmatprep.mubr.f32.mxu0 0.0
      %10381 = vmatmul.mubr.f32.gmra.mrb[0].mxu0 %v9767
      %v10382 = vpop.f32.mrb[0].mxu0
      %v10383 = vadd.f32 %v9514, %v10382
      %v10384 = vpop.f32.mrb[0].mxu0
      %10385 = vmatprep.mubr.f32.mxu0 0.0
      %10386 = vmatmul.mubr.f32.gmra.mrb[0].mxu0 %v9770
      %v10387 = vpop.f32.mrb[0].mxu0
      %v10388 = vadd.f32 %v9514, %v10387
      %v10389 = vpop.f32.mrb[0].mxu0
      %10390 = vmatprep.mubr.f32.mxu0 0.0
      %10391 = vmatmul.mubr.f32.gmra.mrb[0].mxu0 %v9773
      %v10392 = vpop.f32.mrb[0].mxu0
      %v10393 = vadd.f32 %v9514, %v10392
      %v10394 = vpop.f32.mrb[0].mxu0
      %10395 = vmatprep.mubr.f32.mxu0 0.0
      %10396 = vmatmul.mubr.f32.gmra.mrb[0].mxu0 %v9776
      %v10397 = vpop.f32.mrb[0].mxu0
      %v10398 = vadd.f32 %v9514, %v10397
      %v10399 = vpop.f32.mrb[0].mxu0
      %10400 = vmatprep.mubr.f32.mxu0 0.0
      %10401 = vmatmul.mubr.f32.gmra.mrb[0].mxu0 %v9779
      %v10402 = vpop.f32.mrb[0].mxu0
      %v10403 = vadd.f32 %v9514, %v10402
      %v10404 = vpop.f32.mrb[0].mxu0
      %10405 = vmatprep.mubr.f32.mxu0 0.0
      %10406 = vmatmul.mubr.f32.gmra.mrb[0].mxu0 %v9782
      %v10407 = vpop.f32.mrb[0].mxu0
      %v10408 = vadd.f32 %v9514, %v10407
      %v10409 = vpop.f32.mrb[0].mxu0
      %10410 = vmatprep.mubr.f32.mxu0 0.0
      %10411 = vmatmul.mubr.f32.gmra.mrb[0].mxu0 %v9785
      %v10412 = vpop.f32.mrb[0].mxu0
      %v10413 = vadd.f32 %v9514, %v10412
      %v10414 = vpop.f32.mrb[0].mxu0
      %10415 = vmatprep.mubr.f32.mxu0 0.0
      %10416 = vmatmul.mubr.f32.gmra.mrb[0].mxu0 %v9788
      %v10417 = vpop.f32.mrb[0].mxu0
      %v10418 = vadd.f32 %v9514, %v10417
      %v10419 = vpop.f32.mrb[0].mxu0
      %10420 = vmatprep.mubr.f32.mxu0 0.0
      %10421 = vmatmul.mubr.f32.gmra.mrb[0].mxu0 %v9791
      %v10422 = vpop.f32.mrb[0].mxu0
      %v10423 = vadd.f32 %v9514, %v10422
      %v10424 = vpop.f32.mrb[0].mxu0
      %10425 = vmatprep.mubr.f32.mxu0 0.0
      %10426 = vmatmul.mubr.f32.gmra.mrb[0].mxu0 %v9794
      %v10427 = vpop.f32.mrb[0].mxu0
      %v10428 = vadd.f32 %v9514, %v10427
      %v10429 = vpop.f32.mrb[0].mxu0
      %10430 = vmatprep.mubr.f32.mxu0 0.0
      %10431 = vmatmul.mubr.f32.gmra.mrb[0].mxu0 %v9797
      %v10432 = vpop.f32.mrb[0].mxu0
      %v10433 = vadd.f32 %v9514, %v10432
      %v10434 = vpop.f32.mrb[0].mxu0
      %10435 = vmatprep.mubr.f32.mxu0 0.0
      %10436 = vmatmul.mubr.f32.gmra.mrb[0].mxu0 %v9800
      %v10437 = vpop.f32.mrb[0].mxu0
      %v10438 = vadd.f32 %v9514, %v10437
      %v10439 = vpop.f32.mrb[0].mxu0
      %10440 = vmatprep.mubr.f32.mxu0 0.0
      %10441 = vmatmul.mubr.f32.gmra.mrb[0].mxu0 %v9803
      %v10442 = vpop.f32.mrb[0].mxu0
      %v10443 = vadd.f32 %v9514, %v10442
      %v10444 = vpop.f32.mrb[0].mxu0
      %10445 = vmatprep.mubr.f32.mxu0 0.0
      %10446 = vmatmul.mubr.f32.gmra.mrb[0].mxu0 %v9806
      %v10447 = vpop.f32.mrb[0].mxu0
      %v10448 = vadd.f32 %v9514, %v10447
      %v10449 = vpop.f32.mrb[0].mxu0
      %10450 = vmatprep.mubr.f32.mxu0 0.0
      %10451 = vmatmul.mubr.f32.gmra.mrb[0].mxu0 %v9809
      %v10452 = vpop.f32.mrb[0].mxu0
      %v10453 = vadd.f32 %v9514, %v10452
      %v10454 = vpop.f32.mrb[0].mxu0
      %10455 = vmatprep.mubr.f32.mxu0 0.0
      %10456 = vmatmul.mubr.f32.gmra.mrb[0].mxu0 %v9812
      %v10457 = vpop.f32.mrb[0].mxu0
      %v10458 = vadd.f32 %v9514, %v10457
      %v10459 = vpop.f32.mrb[0].mxu0
      %10460 = vmatprep.mubr.f32.mxu0 0.0
      %10461 = vmatmul.mubr.f32.gmra.mrb[0].mxu0 %v9815
      %v10462 = vpop.f32.mrb[0].mxu0
      %v10463 = vadd.f32 %v9514, %v10462
      %v10464 = vpop.f32.mrb[0].mxu0
      %10465 = vmatprep.mubr.f32.mxu0 0.0
      %10466 = vmatmul.mubr.f32.gmra.mrb[0].mxu0 %v9818
      %v10467 = vpop.f32.mrb[0].mxu0
      %v10468 = vadd.f32 %v9514, %v10467
      %v10469 = vpop.f32.mrb[0].mxu0
      %10470 = vmatprep.mubr.f32.mxu0 0.0
      %10471 = vmatmul.mubr.f32.gmra.mrb[0].mxu0 %v9821
      %v10472 = vpop.f32.mrb[0].mxu0
      %v10473 = vadd.f32 %v9514, %v10472
      %v10474 = vpop.f32.mrb[0].mxu0
      %10475 = vmatprep.mubr.f32.mxu0 0.0
      %10476 = vmatmul.mubr.f32.gmra.mrb[0].mxu0 %v9824
      %v10477 = vpop.f32.mrb[0].mxu0
      %v10478 = vadd.f32 %v9514, %v10477
      %v10479 = vpop.f32.mrb[0].mxu0
      %10480 = vmatprep.mubr.f32.mxu0 0.0
      %10481 = vmatmul.mubr.f32.gmra.mrb[0].mxu0 %v9827
      %v10482 = vpop.f32.mrb[0].mxu0
      %v10483 = vadd.f32 %v9514, %v10482
      %v10484 = vpop.f32.mrb[0].mxu0
      %10485 = vmatprep.mubr.f32.mxu0 0.0
      %10486 = vmatmul.mubr.f32.gmra.mrb[0].mxu0 %v9830
      %v10487 = vpop.f32.mrb[0].mxu0
      %v10488 = vadd.f32 %v9514, %v10487
      %v10489 = vpop.f32.mrb[0].mxu0
      %10490 = vmatprep.mubr.f32.mxu0 0.0
      %10491 = vmatmul.mubr.f32.gmra.mrb[0].mxu0 %v9833
      %v10492 = vpop.f32.mrb[0].mxu0
      %v10493 = vadd.f32 %v9514, %v10492
      %v10494 = vpop.f32.mrb[0].mxu0
      %10495 = vmatprep.mubr.f32.mxu0 0.0
      %10496 = vmatmul.mubr.f32.gmra.mrb[0].mxu0 %v9836
      %v10497 = vpop.f32.mrb[0].mxu0
      %v10498 = vadd.f32 %v9514, %v10497
      %v10499 = vpop.f32.mrb[0].mxu0
      %10500 = vmatprep.mubr.f32.mxu0 0.0
      %10501 = vmatmul.mubr.f32.gmra.mrb[0].mxu0 %v9839
      %v10502 = vpop.f32.mrb[0].mxu0
      %v10503 = vadd.f32 %v9514, %v10502
      %v10504 = vpop.f32.mrb[0].mxu0
      %10505 = vmatprep.mubr.f32.mxu0 0.0
      %10506 = vmatmul.mubr.f32.gmra.mrb[0].mxu0 %v9842
      %v10507 = vpop.f32.mrb[0].mxu0
      %v10508 = vadd.f32 %v9514, %v10507
      %v10509 = vpop.f32.mrb[0].mxu0
      %10510 = vmatprep.mubr.f32.mxu0 0.0
      %10511 = vmatmul.mubr.f32.gmra.mrb[0].mxu0 %v9845
      %v10512 = vpop.f32.mrb[0].mxu0
      %v10513 = vadd.f32 %v9514, %v10512
      %v10514 = vpop.f32.mrb[0].mxu0
      %10515 = vmatprep.mubr.f32.mxu0 0.0
      %10516 = vmatmul.mubr.f32.gmra.mrb[0].mxu0 %v9848
      %v10517 = vpop.f32.mrb[0].mxu0
      %v10518 = vadd.f32 %v9514, %v10517
      %v10519 = vpop.f32.mrb[0].mxu0
      %10520 = vmatprep.mubr.f32.mxu0 0.0
      %10521 = vmatmul.mubr.f32.gmra.mrb[0].mxu0 %v9851
      %v10522 = vpop.f32.mrb[0].mxu0
      %v10523 = vadd.f32 %v9514, %v10522
      %v10524 = vpop.f32.mrb[0].mxu0
      %10525 = vmatprep.mubr.f32.mxu0 0.0
      %10526 = vmatmul.mubr.f32.gmra.mrb[0].mxu0 %v9854
      %v10527 = vpop.f32.mrb[0].mxu0
      %v10528 = vadd.f32 %v9514, %v10527
      %v10529 = vpop.f32.mrb[0].mxu0
      %10530 = vmatprep.mubr.f32.mxu0 0.0
      %10531 = vmatmul.mubr.f32.gmra.mrb[0].mxu0 %v9857
      %v10532 = vpop.f32.mrb[0].mxu0
      %v10533 = vadd.f32 %v9514, %v10532
      %v10534 = vpop.f32.mrb[0].mxu0
      %10535 = vmatprep.mubr.f32.mxu0 0.0
      %10536 = vmatmul.mubr.f32.gmra.mrb[0].mxu0 %v9860
      %v10537 = vpop.f32.mrb[0].mxu0
      %v10538 = vadd.f32 %v9514, %v10537
      %v10539 = vpop.f32.mrb[0].mxu0
      %10540 = vmatprep.mubr.f32.mxu0 0.0
      %10541 = vmatmul.mubr.f32.gmra.mrb[0].mxu0 %v9863
      %v10542 = vpop.f32.mrb[0].mxu0
      %v10543 = vadd.f32 %v9514, %v10542
      %v10544 = vpop.f32.mrb[0].mxu0
      %10545 = vmatprep.mubr.f32.mxu0 0.0
      %10546 = vmatmul.mubr.f32.gmra.mrb[0].mxu0 %v9866
      %v10547 = vpop.f32.mrb[0].mxu0
      %v10548 = vadd.f32 %v9514, %v10547
      %v10549 = vpop.f32.mrb[0].mxu0
      %10550 = vmatprep.mubr.f32.mxu0 0.0
      %10551 = vmatmul.mubr.f32.gmra.mrb[0].mxu0 %v9869
      %v10552 = vpop.f32.mrb[0].mxu0
      %v10553 = vadd.f32 %v9514, %v10552
      %v10554 = vpop.f32.mrb[0].mxu0
      %10555 = vmatprep.mubr.f32.mxu0 0.0
      %10556 = vmatmul.mubr.f32.gmra.mrb[0].mxu0 %v9872
      %v10557 = vpop.f32.mrb[0].mxu0
      %v10558 = vadd.f32 %v9514, %v10557
      %v10559 = vpop.f32.mrb[0].mxu0
      %10560 = vmatprep.mubr.f32.mxu0 0.0
      %10561 = vmatmul.mubr.f32.gmra.mrb[0].mxu0 %v9875
      %v10562 = vpop.f32.mrb[0].mxu0
      %v10563 = vadd.f32 %v9514, %v10562
      %v10564 = vpop.f32.mrb[0].mxu0
      %10565 = vmatprep.mubr.f32.mxu0 0.0
      %10566 = vmatmul.mubr.f32.gmra.mrb[0].mxu0 %v9878
      %v10567 = vpop.f32.mrb[0].mxu0
      %v10568 = vadd.f32 %v9514, %v10567
      %v10569 = vpop.f32.mrb[0].mxu0
      %10570 = vmatprep.mubr.f32.mxu0 0.0
      %10571 = vmatmul.mubr.f32.gmra.mrb[0].mxu0 %v9881
      %v10572 = vpop.f32.mrb[0].mxu0
      %v10573 = vadd.f32 %v9514, %v10572
      %v10574 = vpop.f32.mrb[0].mxu0
      %10575 = vmatprep.mubr.f32.mxu0 0.0
      %10576 = vmatmul.mubr.f32.gmra.mrb[0].mxu0 %v9884
      %v10577 = vpop.f32.mrb[0].mxu0
      %v10578 = vadd.f32 %v9514, %v10577
      %v10579 = vpop.f32.mrb[0].mxu0
      %10580 = vmatprep.mubr.f32.mxu0 0.0
      %10581 = vmatmul.mubr.f32.gmra.mrb[0].mxu0 %v9887
      %v10582 = vpop.f32.mrb[0].mxu0
      %v10583 = vadd.f32 %v9514, %v10582
      %v10584 = vpop.f32.mrb[0].mxu0
      %10585 = vmatprep.mubr.f32.mxu0 0.0
      %10586 = vmatmul.mubr.f32.gmra.mrb[0].mxu0 %v9890
      %v10587 = vpop.f32.mrb[0].mxu0
      %v10588 = vadd.f32 %v9514, %v10587
      %v10589 = vpop.f32.mrb[0].mxu0
      %10590 = vmatprep.mubr.f32.mxu0 0.0
      %10591 = vmatmul.mubr.f32.gmra.mrb[0].mxu0 %v9893
      %v10592 = vpop.f32.mrb[0].mxu0
      %v10593 = vadd.f32 %v9514, %v10592
      %v10594 = vpop.f32.mrb[0].mxu0
      %10595 = vmatprep.mubr.f32.mxu0 0.0
      %10596 = vmatmul.mubr.f32.gmra.mrb[0].mxu0 %v9896
      %v10597 = vpop.f32.mrb[0].mxu0
      %v10598 = vadd.f32 %v9514, %v10597
      %v10599 = vpop.f32.mrb[0].mxu0
      %10600 = vmatprep.mubr.f32.mxu0 0.0
      %10601 = vmatmul.mubr.f32.gmra.mrb[0].mxu0 %v9899
      %v10602 = vpop.f32.mrb[0].mxu0
      %v10603 = vadd.f32 %v9514, %v10602
      %v10604 = vpop.f32.mrb[0].mxu0
      %10605 = vdwg.mxu0
      %v10606 = vtanh.pop %v9968
      %v10607 = vtanh.pop %v9973
      %v10608 = vtanh.pop %v9978
      %v10609 = vtanh.pop %v9983
      %v10610 = vtanh.pop %v9988
      %v10611 = vtanh.pop %v9993
      %v10612 = vtanh.pop %v9998
      %v10613 = vtanh.pop %v10003
      %v10614 = vtanh.pop %v10008
      %v10615 = vtanh.pop %v10013
      %v10616 = vtanh.pop %v10018
      %v10617 = vtanh.pop %v10023
      %v10618 = vtanh.pop %v10028
      %v10619 = vtanh.pop %v10033
      %v10620 = vtanh.pop %v10038
      %v10621 = vtanh.pop %v10043
      %v10622 = vtanh.pop %v10048
      %v10623 = vtanh.pop %v10053
      %v10624 = vtanh.pop %v10058
      %v10625 = vtanh.pop %v10063
      %v10626 = vtanh.pop %v10068
      %v10627 = vtanh.pop %v10073
      %v10628 = vtanh.pop %v10078
      %v10629 = vtanh.pop %v10083
      %v10630 = vtanh.pop %v10088
      %v10631 = vtanh.pop %v10093
      %v10632 = vtanh.pop %v10098
      %v10633 = vtanh.pop %v10103
      %v10634 = vtanh.pop %v10108
      %v10635 = vtanh.pop %v10113
      %v10636 = vtanh.pop %v10118
      %v10637 = vtanh.pop %v10123
      %v10638 = vtanh.pop %v10128
      %v10639 = vtanh.pop %v10133
      %v10640 = vtanh.pop %v10138
      %v10641 = vtanh.pop %v10143
      %v10642 = vtanh.pop %v10148
      %v10643 = vtanh.pop %v10153
      %v10644 = vtanh.pop %v10158
      %v10645 = vtanh.pop %v10163
      %v10646 = vtanh.pop %v10168
      %v10647 = vtanh.pop %v10173
      %v10648 = vtanh.pop %v10178
      %v10649 = vtanh.pop %v10183
      %v10650 = vtanh.pop %v10188
      %v10651 = vtanh.pop %v10193
      %v10652 = vtanh.pop %v10198
      %v10653 = vtanh.pop %v10203
      %v10654 = vtanh.pop %v10208
      %v10655 = vtanh.pop %v10213
      %v10656 = vtanh.pop %v10218
      %v10657 = vtanh.pop %v10223
      %v10658 = vtanh.pop %v10228
      %v10659 = vtanh.pop %v10233
      %v10660 = vtanh.pop %v10238
      %v10661 = vtanh.pop %v10243
      %v10662 = vtanh.pop %v10248
      %v10663 = vtanh.pop %v10253
      %v10664 = vtanh.pop %v10258
      %v10665 = vtanh.pop %v10263
      %v10666 = vtanh.pop %v10268
      %v10667 = vtanh.pop %v10273
      %v10668 = vtanh.pop %v10278
      %v10669 = vtanh.pop %v10283
      %v10670 = vtanh.pop %v10288
      %v10671 = vtanh.pop %v10293
      %v10672 = vtanh.pop %v10298
      %v10673 = vtanh.pop %v10303
      %v10674 = vtanh.pop %v10308
      %v10675 = vtanh.pop %v10313
      %v10676 = vtanh.pop %v10318
      %v10677 = vtanh.pop %v10323
      %v10678 = vtanh.pop %v10328
      %v10679 = vtanh.pop %v10333
      %v10680 = vtanh.pop %v10338
      %v10681 = vtanh.pop %v10343
      %v10682 = vtanh.pop %v10348
      %v10683 = vtanh.pop %v10353
      %v10684 = vtanh.pop %v10358
      %v10685 = vtanh.pop %v10363
      %v10686 = vtanh.pop %v10368
      %v10687 = vtanh.pop %v10373
      %v10688 = vtanh.pop %v10378
      %v10689 = vtanh.pop %v10383
      %v10690 = vtanh.pop %v10388
      %v10691 = vtanh.pop %v10393
      %v10692 = vtanh.pop %v10398
      %v10693 = vtanh.pop %v10403
      %v10694 = vtanh.pop %v10408
      %v10695 = vtanh.pop %v10413
      %v10696 = vtanh.pop %v10418
      %v10697 = vtanh.pop %v10423
      %v10698 = vtanh.pop %v10428
      %v10699 = vtanh.pop %v10433
      %v10700 = vtanh.pop %v10438
      %v10701 = vtanh.pop %v10443
      %v10702 = vtanh.pop %v10448
      %v10703 = vtanh.pop %v10453
      %v10704 = vtanh.pop %v10458
      %v10705 = vtanh.pop %v10463
      %v10706 = vtanh.pop %v10468
      %v10707 = vtanh.pop %v10473
      %v10708 = vtanh.pop %v10478
      %v10709 = vtanh.pop %v10483
      %v10710 = vtanh.pop %v10488
      %v10711 = vtanh.pop %v10493
      %v10712 = vtanh.pop %v10498
      %v10713 = vtanh.pop %v10503
      %v10714 = vtanh.pop %v10508
      %v10715 = vtanh.pop %v10513
      %v10716 = vtanh.pop %v10518
      %v10717 = vtanh.pop %v10523
      %v10718 = vtanh.pop %v10528
      %v10719 = vtanh.pop %v10533
      %v10720 = vtanh.pop %v10538
      %v10721 = vtanh.pop %v10543
      %v10722 = vtanh.pop %v10548
      %v10723 = vtanh.pop %v10553
      %v10724 = vtanh.pop %v10558
      %v10725 = vtanh.pop %v10563
      %v10726 = vtanh.pop %v10568
      %v10727 = vtanh.pop %v10573
      %v10728 = vtanh.pop %v10578
      %v10729 = vtanh.pop %v10583
      %v10730 = vtanh.pop %v10588
      %v10731 = vtanh.pop %v10593
      %v10732 = vtanh.pop %v10598
      %v10733 = vtanh.pop %v10603
      %v10734 = vld [vmem:[%s7] sm:$0x1]
      %v10736 = vlaneseq
      %v10737 = vshrl.u32 %v10736, 7
      %v10738 = vsub.s32 0, %v10737
      %v10739 = vrot.slane %v10734, %v10738
      %v10741 = vmul.f32 %v10606, %v10739
      %v10742 = vmul.f32 %v10607, %v10739
      %v10743 = vmul.f32 %v10608, %v10739
      %v10744 = vmul.f32 %v10609, %v10739
      %v10745 = vmul.f32 %v10610, %v10739
      %v10746 = vmul.f32 %v10611, %v10739
      %v10747 = vmul.f32 %v10612, %v10739
      %v10748 = vmul.f32 %v10613, %v10739
      %v10749 = vmul.f32 %v10614, %v10739
      %v10750 = vmul.f32 %v10615, %v10739
      %v10751 = vmul.f32 %v10616, %v10739
      %v10752 = vmul.f32 %v10617, %v10739
      %v10753 = vmul.f32 %v10618, %v10739
      %v10754 = vmul.f32 %v10619, %v10739
      %v10755 = vmul.f32 %v10620, %v10739
      %v10756 = vmul.f32 %v10621, %v10739
      %v10757 = vmul.f32 %v10622, %v10739
      %v10758 = vmul.f32 %v10623, %v10739
      %v10759 = vmul.f32 %v10624, %v10739
      %v10760 = vmul.f32 %v10625, %v10739
      %v10761 = vmul.f32 %v10626, %v10739
      %v10762 = vmul.f32 %v10627, %v10739
      %v10763 = vmul.f32 %v10628, %v10739
      %v10764 = vmul.f32 %v10629, %v10739
      %v10765 = vmul.f32 %v10630, %v10739
      %v10766 = vmul.f32 %v10631, %v10739
      %v10767 = vmul.f32 %v10632, %v10739
      %v10768 = vmul.f32 %v10633, %v10739
      %v10769 = vmul.f32 %v10634, %v10739
      %v10770 = vmul.f32 %v10635, %v10739
      %v10771 = vmul.f32 %v10636, %v10739
      %v10772 = vmul.f32 %v10637, %v10739
      %v10773 = vmul.f32 %v10638, %v10739
      %v10774 = vmul.f32 %v10639, %v10739
      %v10775 = vmul.f32 %v10640, %v10739
      %v10776 = vmul.f32 %v10641, %v10739
      %v10777 = vmul.f32 %v10642, %v10739
      %v10778 = vmul.f32 %v10643, %v10739
      %v10779 = vmul.f32 %v10644, %v10739
      %v10780 = vmul.f32 %v10645, %v10739
      %v10781 = vmul.f32 %v10646, %v10739
      %v10782 = vmul.f32 %v10647, %v10739
      %v10783 = vmul.f32 %v10648, %v10739
      %v10784 = vmul.f32 %v10649, %v10739
      %v10785 = vmul.f32 %v10650, %v10739
      %v10786 = vmul.f32 %v10651, %v10739
      %v10787 = vmul.f32 %v10652, %v10739
      %v10788 = vmul.f32 %v10653, %v10739
      %v10789 = vmul.f32 %v10654, %v10739
      %v10790 = vmul.f32 %v10655, %v10739
      %v10791 = vmul.f32 %v10656, %v10739
      %v10792 = vmul.f32 %v10657, %v10739
      %v10793 = vmul.f32 %v10658, %v10739
      %v10794 = vmul.f32 %v10659, %v10739
      %v10795 = vmul.f32 %v10660, %v10739
      %v10796 = vmul.f32 %v10661, %v10739
      %v10797 = vmul.f32 %v10662, %v10739
      %v10798 = vmul.f32 %v10663, %v10739
      %v10799 = vmul.f32 %v10664, %v10739
      %v10800 = vmul.f32 %v10665, %v10739
      %v10801 = vmul.f32 %v10666, %v10739
      %v10802 = vmul.f32 %v10667, %v10739
      %v10803 = vmul.f32 %v10668, %v10739
      %v10804 = vmul.f32 %v10669, %v10739
      %v10805 = vmul.f32 %v10670, %v10739
      %v10806 = vmul.f32 %v10671, %v10739
      %v10807 = vmul.f32 %v10672, %v10739
      %v10808 = vmul.f32 %v10673, %v10739
      %v10809 = vmul.f32 %v10674, %v10739
      %v10810 = vmul.f32 %v10675, %v10739
      %v10811 = vmul.f32 %v10676, %v10739
      %v10812 = vmul.f32 %v10677, %v10739
      %v10813 = vmul.f32 %v10678, %v10739
      %v10814 = vmul.f32 %v10679, %v10739
      %v10815 = vmul.f32 %v10680, %v10739
      %v10816 = vmul.f32 %v10681, %v10739
      %v10817 = vmul.f32 %v10682, %v10739
      %v10818 = vmul.f32 %v10683, %v10739
      %v10819 = vmul.f32 %v10684, %v10739
      %v10820 = vmul.f32 %v10685, %v10739
      %v10821 = vmul.f32 %v10686, %v10739
      %v10822 = vmul.f32 %v10687, %v10739
      %v10823 = vmul.f32 %v10688, %v10739
      %v10824 = vmul.f32 %v10689, %v10739
      %v10825 = vmul.f32 %v10690, %v10739
      %v10826 = vmul.f32 %v10691, %v10739
      %v10827 = vmul.f32 %v10692, %v10739
      %v10828 = vmul.f32 %v10693, %v10739
      %v10829 = vmul.f32 %v10694, %v10739
      %v10830 = vmul.f32 %v10695, %v10739
      %v10831 = vmul.f32 %v10696, %v10739
      %v10832 = vmul.f32 %v10697, %v10739
      %v10833 = vmul.f32 %v10698, %v10739
      %v10834 = vmul.f32 %v10699, %v10739
      %v10835 = vmul.f32 %v10700, %v10739
      %v10836 = vmul.f32 %v10701, %v10739
      %v10837 = vmul.f32 %v10702, %v10739
      %v10838 = vmul.f32 %v10703, %v10739
      %v10839 = vmul.f32 %v10704, %v10739
      %v10840 = vmul.f32 %v10705, %v10739
      %v10841 = vmul.f32 %v10706, %v10739
      %v10842 = vmul.f32 %v10707, %v10739
      %v10843 = vmul.f32 %v10708, %v10739
      %v10844 = vmul.f32 %v10709, %v10739
      %v10845 = vmul.f32 %v10710, %v10739
      %v10846 = vmul.f32 %v10711, %v10739
      %v10847 = vmul.f32 %v10712, %v10739
      %v10848 = vmul.f32 %v10713, %v10739
      %v10849 = vmul.f32 %v10714, %v10739
      %v10850 = vmul.f32 %v10715, %v10739
      %v10851 = vmul.f32 %v10716, %v10739
      %v10852 = vmul.f32 %v10717, %v10739
      %v10853 = vmul.f32 %v10718, %v10739
      %v10854 = vmul.f32 %v10719, %v10739
      %v10855 = vmul.f32 %v10720, %v10739
      %v10856 = vmul.f32 %v10721, %v10739
      %v10857 = vmul.f32 %v10722, %v10739
      %v10858 = vmul.f32 %v10723, %v10739
      %v10859 = vmul.f32 %v10724, %v10739
      %v10860 = vmul.f32 %v10725, %v10739
      %v10861 = vmul.f32 %v10726, %v10739
      %v10862 = vmul.f32 %v10727, %v10739
      %v10863 = vmul.f32 %v10728, %v10739
      %v10864 = vmul.f32 %v10729, %v10739
      %v10865 = vmul.f32 %v10730, %v10739
      %v10866 = vmul.f32 %v10731, %v10739
      %v10867 = vmul.f32 %v10732, %v10739
      %v10868 = vmul.f32 %v10733, %v10739
      %v10869 = vsel %vm9516, %v10741, 0.0
      %10870 = vadd.xlane.f32.xlu0 %v10869
      %v10871 = vpop.xlane.xlu0 %10870
      %v10872 = vsel %vm9516, %v10742, 0.0
      %10873 = vadd.xlane.f32.xlu0 %v10872
      %v10874 = vpop.xlane.xlu0 %10873
      %v10875 = vsel %vm9516, %v10743, 0.0
      %10876 = vadd.xlane.f32.xlu0 %v10875
      %v10877 = vpop.xlane.xlu0 %10876
      %v10878 = vsel %vm9516, %v10744, 0.0
      %10879 = vadd.xlane.f32.xlu0 %v10878
      %v10880 = vpop.xlane.xlu0 %10879
      %v10881 = vsel %vm9516, %v10745, 0.0
      %10882 = vadd.xlane.f32.xlu0 %v10881
      %v10883 = vpop.xlane.xlu0 %10882
      %v10884 = vsel %vm9516, %v10746, 0.0
      %10885 = vadd.xlane.f32.xlu0 %v10884
      %v10886 = vpop.xlane.xlu0 %10885
      %v10887 = vsel %vm9516, %v10747, 0.0
      %10888 = vadd.xlane.f32.xlu0 %v10887
      %v10889 = vpop.xlane.xlu0 %10888
      %v10890 = vsel %vm9516, %v10748, 0.0
      %10891 = vadd.xlane.f32.xlu0 %v10890
      %v10892 = vpop.xlane.xlu0 %10891
      %v10893 = vsel %vm9516, %v10749, 0.0
      %10894 = vadd.xlane.f32.xlu0 %v10893
      %v10895 = vpop.xlane.xlu0 %10894
      %v10896 = vsel %vm9516, %v10750, 0.0
      %10897 = vadd.xlane.f32.xlu0 %v10896
      %v10898 = vpop.xlane.xlu0 %10897
      %v10899 = vsel %vm9516, %v10751, 0.0
      %10900 = vadd.xlane.f32.xlu0 %v10899
      %v10901 = vpop.xlane.xlu0 %10900
      %v10902 = vsel %vm9516, %v10752, 0.0
      %10903 = vadd.xlane.f32.xlu0 %v10902
      %v10904 = vpop.xlane.xlu0 %10903
      %v10905 = vsel %vm9516, %v10753, 0.0
      %10906 = vadd.xlane.f32.xlu0 %v10905
      %v10907 = vpop.xlane.xlu0 %10906
      %v10908 = vsel %vm9516, %v10754, 0.0
      %10909 = vadd.xlane.f32.xlu0 %v10908
      %v10910 = vpop.xlane.xlu0 %10909
      %v10911 = vsel %vm9516, %v10755, 0.0
      %10912 = vadd.xlane.f32.xlu0 %v10911
      %v10913 = vpop.xlane.xlu0 %10912
      %v10914 = vsel %vm9516, %v10756, 0.0
      %10915 = vadd.xlane.f32.xlu0 %v10914
      %v10916 = vpop.xlane.xlu0 %10915
      %v10917 = vsel %vm9516, %v10757, 0.0
      %10918 = vadd.xlane.f32.xlu0 %v10917
      %v10919 = vpop.xlane.xlu0 %10918
      %v10920 = vsel %vm9516, %v10758, 0.0
      %10921 = vadd.xlane.f32.xlu0 %v10920
      %v10922 = vpop.xlane.xlu0 %10921
      %v10923 = vsel %vm9516, %v10759, 0.0
      %10924 = vadd.xlane.f32.xlu0 %v10923
      %v10925 = vpop.xlane.xlu0 %10924
      %v10926 = vsel %vm9516, %v10760, 0.0
      %10927 = vadd.xlane.f32.xlu0 %v10926
      %v10928 = vpop.xlane.xlu0 %10927
      %v10929 = vsel %vm9516, %v10761, 0.0
      %10930 = vadd.xlane.f32.xlu0 %v10929
      %v10931 = vpop.xlane.xlu0 %10930
      %v10932 = vsel %vm9516, %v10762, 0.0
      %10933 = vadd.xlane.f32.xlu0 %v10932
      %v10934 = vpop.xlane.xlu0 %10933
      %v10935 = vsel %vm9516, %v10763, 0.0
      %10936 = vadd.xlane.f32.xlu0 %v10935
      %v10937 = vpop.xlane.xlu0 %10936
      %v10938 = vsel %vm9516, %v10764, 0.0
      %10939 = vadd.xlane.f32.xlu0 %v10938
      %v10940 = vpop.xlane.xlu0 %10939
      %v10941 = vsel %vm9516, %v10765, 0.0
      %10942 = vadd.xlane.f32.xlu0 %v10941
      %v10943 = vpop.xlane.xlu0 %10942
      %v10944 = vsel %vm9516, %v10766, 0.0
      %10945 = vadd.xlane.f32.xlu0 %v10944
      %v10946 = vpop.xlane.xlu0 %10945
      %v10947 = vsel %vm9516, %v10767, 0.0
      %10948 = vadd.xlane.f32.xlu0 %v10947
      %v10949 = vpop.xlane.xlu0 %10948
      %v10950 = vsel %vm9516, %v10768, 0.0
      %10951 = vadd.xlane.f32.xlu0 %v10950
      %v10952 = vpop.xlane.xlu0 %10951
      %v10953 = vsel %vm9516, %v10769, 0.0
      %10954 = vadd.xlane.f32.xlu0 %v10953
      %v10955 = vpop.xlane.xlu0 %10954
      %v10956 = vsel %vm9516, %v10770, 0.0
      %10957 = vadd.xlane.f32.xlu0 %v10956
      %v10958 = vpop.xlane.xlu0 %10957
      %v10959 = vsel %vm9516, %v10771, 0.0
      %10960 = vadd.xlane.f32.xlu0 %v10959
      %v10961 = vpop.xlane.xlu0 %10960
      %v10962 = vsel %vm9516, %v10772, 0.0
      %10963 = vadd.xlane.f32.xlu0 %v10962
      %v10964 = vpop.xlane.xlu0 %10963
      %v10965 = vsel %vm9516, %v10773, 0.0
      %10966 = vadd.xlane.f32.xlu0 %v10965
      %v10967 = vpop.xlane.xlu0 %10966
      %v10968 = vsel %vm9516, %v10774, 0.0
      %10969 = vadd.xlane.f32.xlu0 %v10968
      %v10970 = vpop.xlane.xlu0 %10969
      %v10971 = vsel %vm9516, %v10775, 0.0
      %10972 = vadd.xlane.f32.xlu0 %v10971
      %v10973 = vpop.xlane.xlu0 %10972
      %v10974 = vsel %vm9516, %v10776, 0.0
      %10975 = vadd.xlane.f32.xlu0 %v10974
      %v10976 = vpop.xlane.xlu0 %10975
      %v10977 = vsel %vm9516, %v10777, 0.0
      %10978 = vadd.xlane.f32.xlu0 %v10977
      %v10979 = vpop.xlane.xlu0 %10978
      %v10980 = vsel %vm9516, %v10778, 0.0
      %10981 = vadd.xlane.f32.xlu0 %v10980
      %v10982 = vpop.xlane.xlu0 %10981
      %v10983 = vsel %vm9516, %v10779, 0.0
      %10984 = vadd.xlane.f32.xlu0 %v10983
      %v10985 = vpop.xlane.xlu0 %10984
      %v10986 = vsel %vm9516, %v10780, 0.0
      %10987 = vadd.xlane.f32.xlu0 %v10986
      %v10988 = vpop.xlane.xlu0 %10987
      %v10989 = vsel %vm9516, %v10781, 0.0
      %10990 = vadd.xlane.f32.xlu0 %v10989
      %v10991 = vpop.xlane.xlu0 %10990
      %v10992 = vsel %vm9516, %v10782, 0.0
      %10993 = vadd.xlane.f32.xlu0 %v10992
      %v10994 = vpop.xlane.xlu0 %10993
      %v10995 = vsel %vm9516, %v10783, 0.0
      %10996 = vadd.xlane.f32.xlu0 %v10995
      %v10997 = vpop.xlane.xlu0 %10996
      %v10998 = vsel %vm9516, %v10784, 0.0
      %10999 = vadd.xlane.f32.xlu0 %v10998
      %v11000 = vpop.xlane.xlu0 %10999
      %v11001 = vsel %vm9516, %v10785, 0.0
      %11002 = vadd.xlane.f32.xlu0 %v11001
      %v11003 = vpop.xlane.xlu0 %11002
      %v11004 = vsel %vm9516, %v10786, 0.0
      %11005 = vadd.xlane.f32.xlu0 %v11004
      %v11006 = vpop.xlane.xlu0 %11005
      %v11007 = vsel %vm9516, %v10787, 0.0
      %11008 = vadd.xlane.f32.xlu0 %v11007
      %v11009 = vpop.xlane.xlu0 %11008
      %v11010 = vsel %vm9516, %v10788, 0.0
      %11011 = vadd.xlane.f32.xlu0 %v11010
      %v11012 = vpop.xlane.xlu0 %11011
      %v11013 = vsel %vm9516, %v10789, 0.0
      %11014 = vadd.xlane.f32.xlu0 %v11013
      %v11015 = vpop.xlane.xlu0 %11014
      %v11016 = vsel %vm9516, %v10790, 0.0
      %11017 = vadd.xlane.f32.xlu0 %v11016
      %v11018 = vpop.xlane.xlu0 %11017
      %v11019 = vsel %vm9516, %v10791, 0.0
      %11020 = vadd.xlane.f32.xlu0 %v11019
      %v11021 = vpop.xlane.xlu0 %11020
      %v11022 = vsel %vm9516, %v10792, 0.0
      %11023 = vadd.xlane.f32.xlu0 %v11022
      %v11024 = vpop.xlane.xlu0 %11023
      %v11025 = vsel %vm9516, %v10793, 0.0
      %11026 = vadd.xlane.f32.xlu0 %v11025
      %v11027 = vpop.xlane.xlu0 %11026
      %v11028 = vsel %vm9516, %v10794, 0.0
      %11029 = vadd.xlane.f32.xlu0 %v11028
      %v11030 = vpop.xlane.xlu0 %11029
      %v11031 = vsel %vm9516, %v10795, 0.0
      %11032 = vadd.xlane.f32.xlu0 %v11031
      %v11033 = vpop.xlane.xlu0 %11032
      %v11034 = vsel %vm9516, %v10796, 0.0
      %11035 = vadd.xlane.f32.xlu0 %v11034
      %v11036 = vpop.xlane.xlu0 %11035
      %v11037 = vsel %vm9516, %v10797, 0.0
      %11038 = vadd.xlane.f32.xlu0 %v11037
      %v11039 = vpop.xlane.xlu0 %11038
      %v11040 = vsel %vm9516, %v10798, 0.0
      %11041 = vadd.xlane.f32.xlu0 %v11040
      %v11042 = vpop.xlane.xlu0 %11041
      %v11043 = vsel %vm9516, %v10799, 0.0
      %11044 = vadd.xlane.f32.xlu0 %v11043
      %v11045 = vpop.xlane.xlu0 %11044
      %v11046 = vsel %vm9516, %v10800, 0.0
      %11047 = vadd.xlane.f32.xlu0 %v11046
      %v11048 = vpop.xlane.xlu0 %11047
      %v11049 = vsel %vm9516, %v10801, 0.0
      %11050 = vadd.xlane.f32.xlu0 %v11049
      %v11051 = vpop.xlane.xlu0 %11050
      %v11052 = vsel %vm9516, %v10802, 0.0
      %11053 = vadd.xlane.f32.xlu0 %v11052
      %v11054 = vpop.xlane.xlu0 %11053
      %v11055 = vsel %vm9516, %v10803, 0.0
      %11056 = vadd.xlane.f32.xlu0 %v11055
      %v11057 = vpop.xlane.xlu0 %11056
      %v11058 = vsel %vm9516, %v10804, 0.0
      %11059 = vadd.xlane.f32.xlu0 %v11058
      %v11060 = vpop.xlane.xlu0 %11059
      %v11061 = vsel %vm9516, %v10805, 0.0
      %11062 = vadd.xlane.f32.xlu0 %v11061
      %v11063 = vpop.xlane.xlu0 %11062
      %v11064 = vsel %vm9516, %v10806, 0.0
      %11065 = vadd.xlane.f32.xlu0 %v11064
      %v11066 = vpop.xlane.xlu0 %11065
      %v11067 = vsel %vm9516, %v10807, 0.0
      %11068 = vadd.xlane.f32.xlu0 %v11067
      %v11069 = vpop.xlane.xlu0 %11068
      %v11070 = vsel %vm9516, %v10808, 0.0
      %11071 = vadd.xlane.f32.xlu0 %v11070
      %v11072 = vpop.xlane.xlu0 %11071
      %v11073 = vsel %vm9516, %v10809, 0.0
      %11074 = vadd.xlane.f32.xlu0 %v11073
      %v11075 = vpop.xlane.xlu0 %11074
      %v11076 = vsel %vm9516, %v10810, 0.0
      %11077 = vadd.xlane.f32.xlu0 %v11076
      %v11078 = vpop.xlane.xlu0 %11077
      %v11079 = vsel %vm9516, %v10811, 0.0
      %11080 = vadd.xlane.f32.xlu0 %v11079
      %v11081 = vpop.xlane.xlu0 %11080
      %v11082 = vsel %vm9516, %v10812, 0.0
      %11083 = vadd.xlane.f32.xlu0 %v11082
      %v11084 = vpop.xlane.xlu0 %11083
      %v11085 = vsel %vm9516, %v10813, 0.0
      %11086 = vadd.xlane.f32.xlu0 %v11085
      %v11087 = vpop.xlane.xlu0 %11086
      %v11088 = vsel %vm9516, %v10814, 0.0
      %11089 = vadd.xlane.f32.xlu0 %v11088
      %v11090 = vpop.xlane.xlu0 %11089
      %v11091 = vsel %vm9516, %v10815, 0.0
      %11092 = vadd.xlane.f32.xlu0 %v11091
      %v11093 = vpop.xlane.xlu0 %11092
      %v11094 = vsel %vm9516, %v10816, 0.0
      %11095 = vadd.xlane.f32.xlu0 %v11094
      %v11096 = vpop.xlane.xlu0 %11095
      %v11097 = vsel %vm9516, %v10817, 0.0
      %11098 = vadd.xlane.f32.xlu0 %v11097
      %v11099 = vpop.xlane.xlu0 %11098
      %v11100 = vsel %vm9516, %v10818, 0.0
      %11101 = vadd.xlane.f32.xlu0 %v11100
      %v11102 = vpop.xlane.xlu0 %11101
      %v11103 = vsel %vm9516, %v10819, 0.0
      %11104 = vadd.xlane.f32.xlu0 %v11103
      %v11105 = vpop.xlane.xlu0 %11104
      %v11106 = vsel %vm9516, %v10820, 0.0
      %11107 = vadd.xlane.f32.xlu0 %v11106
      %v11108 = vpop.xlane.xlu0 %11107
      %v11109 = vsel %vm9516, %v10821, 0.0
      %11110 = vadd.xlane.f32.xlu0 %v11109
      %v11111 = vpop.xlane.xlu0 %11110
      %v11112 = vsel %vm9516, %v10822, 0.0
      %11113 = vadd.xlane.f32.xlu0 %v11112
      %v11114 = vpop.xlane.xlu0 %11113
      %v11115 = vsel %vm9516, %v10823, 0.0
      %11116 = vadd.xlane.f32.xlu0 %v11115
      %v11117 = vpop.xlane.xlu0 %11116
      %v11118 = vsel %vm9516, %v10824, 0.0
      %11119 = vadd.xlane.f32.xlu0 %v11118
      %v11120 = vpop.xlane.xlu0 %11119
      %v11121 = vsel %vm9516, %v10825, 0.0
      %11122 = vadd.xlane.f32.xlu0 %v11121
      %v11123 = vpop.xlane.xlu0 %11122
      %v11124 = vsel %vm9516, %v10826, 0.0
      %11125 = vadd.xlane.f32.xlu0 %v11124
      %v11126 = vpop.xlane.xlu0 %11125
      %v11127 = vsel %vm9516, %v10827, 0.0
      %11128 = vadd.xlane.f32.xlu0 %v11127
      %v11129 = vpop.xlane.xlu0 %11128
      %v11130 = vsel %vm9516, %v10828, 0.0
      %11131 = vadd.xlane.f32.xlu0 %v11130
      %v11132 = vpop.xlane.xlu0 %11131
      %v11133 = vsel %vm9516, %v10829, 0.0
      %11134 = vadd.xlane.f32.xlu0 %v11133
      %v11135 = vpop.xlane.xlu0 %11134
      %v11136 = vsel %vm9516, %v10830, 0.0
      %11137 = vadd.xlane.f32.xlu0 %v11136
      %v11138 = vpop.xlane.xlu0 %11137
      %v11139 = vsel %vm9516, %v10831, 0.0
      %11140 = vadd.xlane.f32.xlu0 %v11139
      %v11141 = vpop.xlane.xlu0 %11140
      %v11142 = vsel %vm9516, %v10832, 0.0
      %11143 = vadd.xlane.f32.xlu0 %v11142
      %v11144 = vpop.xlane.xlu0 %11143
      %v11145 = vsel %vm9516, %v10833, 0.0
      %11146 = vadd.xlane.f32.xlu0 %v11145
      %v11147 = vpop.xlane.xlu0 %11146
      %v11148 = vsel %vm9516, %v10834, 0.0
      %11149 = vadd.xlane.f32.xlu0 %v11148
      %v11150 = vpop.xlane.xlu0 %11149
      %v11151 = vsel %vm9516, %v10835, 0.0
      %11152 = vadd.xlane.f32.xlu0 %v11151
      %v11153 = vpop.xlane.xlu0 %11152
      %v11154 = vsel %vm9516, %v10836, 0.0
      %11155 = vadd.xlane.f32.xlu0 %v11154
      %v11156 = vpop.xlane.xlu0 %11155
      %v11157 = vsel %vm9516, %v10837, 0.0
      %11158 = vadd.xlane.f32.xlu0 %v11157
      %v11159 = vpop.xlane.xlu0 %11158
      %v11160 = vsel %vm9516, %v10838, 0.0
      %11161 = vadd.xlane.f32.xlu0 %v11160
      %v11162 = vpop.xlane.xlu0 %11161
      %v11163 = vsel %vm9516, %v10839, 0.0
      %11164 = vadd.xlane.f32.xlu0 %v11163
      %v11165 = vpop.xlane.xlu0 %11164
      %v11166 = vsel %vm9516, %v10840, 0.0
      %11167 = vadd.xlane.f32.xlu0 %v11166
      %v11168 = vpop.xlane.xlu0 %11167
      %v11169 = vsel %vm9516, %v10841, 0.0
      %11170 = vadd.xlane.f32.xlu0 %v11169
      %v11171 = vpop.xlane.xlu0 %11170
      %v11172 = vsel %vm9516, %v10842, 0.0
      %11173 = vadd.xlane.f32.xlu0 %v11172
      %v11174 = vpop.xlane.xlu0 %11173
      %v11175 = vsel %vm9516, %v10843, 0.0
      %11176 = vadd.xlane.f32.xlu0 %v11175
      %v11177 = vpop.xlane.xlu0 %11176
      %v11178 = vsel %vm9516, %v10844, 0.0
      %11179 = vadd.xlane.f32.xlu0 %v11178
      %v11180 = vpop.xlane.xlu0 %11179
      %v11181 = vsel %vm9516, %v10845, 0.0
      %11182 = vadd.xlane.f32.xlu0 %v11181
      %v11183 = vpop.xlane.xlu0 %11182
      %v11184 = vsel %vm9516, %v10846, 0.0
      %11185 = vadd.xlane.f32.xlu0 %v11184
      %v11186 = vpop.xlane.xlu0 %11185
      %v11187 = vsel %vm9516, %v10847, 0.0
      %11188 = vadd.xlane.f32.xlu0 %v11187
      %v11189 = vpop.xlane.xlu0 %11188
      %v11190 = vsel %vm9516, %v10848, 0.0
      %11191 = vadd.xlane.f32.xlu0 %v11190
      %v11192 = vpop.xlane.xlu0 %11191
      %v11193 = vsel %vm9516, %v10849, 0.0
      %11194 = vadd.xlane.f32.xlu0 %v11193
      %v11195 = vpop.xlane.xlu0 %11194
      %v11196 = vsel %vm9516, %v10850, 0.0
      %11197 = vadd.xlane.f32.xlu0 %v11196
      %v11198 = vpop.xlane.xlu0 %11197
      %v11199 = vsel %vm9516, %v10851, 0.0
      %11200 = vadd.xlane.f32.xlu0 %v11199
      %v11201 = vpop.xlane.xlu0 %11200
      %v11202 = vsel %vm9516, %v10852, 0.0
      %11203 = vadd.xlane.f32.xlu0 %v11202
      %v11204 = vpop.xlane.xlu0 %11203
      %v11205 = vsel %vm9516, %v10853, 0.0
      %11206 = vadd.xlane.f32.xlu0 %v11205
      %v11207 = vpop.xlane.xlu0 %11206
      %v11208 = vsel %vm9516, %v10854, 0.0
      %11209 = vadd.xlane.f32.xlu0 %v11208
      %v11210 = vpop.xlane.xlu0 %11209
      %v11211 = vsel %vm9516, %v10855, 0.0
      %11212 = vadd.xlane.f32.xlu0 %v11211
      %v11213 = vpop.xlane.xlu0 %11212
      %v11214 = vsel %vm9516, %v10856, 0.0
      %11215 = vadd.xlane.f32.xlu0 %v11214
      %v11216 = vpop.xlane.xlu0 %11215
      %v11217 = vsel %vm9516, %v10857, 0.0
      %11218 = vadd.xlane.f32.xlu0 %v11217
      %v11219 = vpop.xlane.xlu0 %11218
      %v11220 = vsel %vm9516, %v10858, 0.0
      %11221 = vadd.xlane.f32.xlu0 %v11220
      %v11222 = vpop.xlane.xlu0 %11221
      %v11223 = vsel %vm9516, %v10859, 0.0
      %11224 = vadd.xlane.f32.xlu0 %v11223
      %v11225 = vpop.xlane.xlu0 %11224
      %v11226 = vsel %vm9516, %v10860, 0.0
      %11227 = vadd.xlane.f32.xlu0 %v11226
      %v11228 = vpop.xlane.xlu0 %11227
      %v11229 = vsel %vm9516, %v10861, 0.0
      %11230 = vadd.xlane.f32.xlu0 %v11229
      %v11231 = vpop.xlane.xlu0 %11230
      %v11232 = vsel %vm9516, %v10862, 0.0
      %11233 = vadd.xlane.f32.xlu0 %v11232
      %v11234 = vpop.xlane.xlu0 %11233
      %v11235 = vsel %vm9516, %v10863, 0.0
      %11236 = vadd.xlane.f32.xlu0 %v11235
      %v11237 = vpop.xlane.xlu0 %11236
      %v11238 = vsel %vm9516, %v10864, 0.0
      %11239 = vadd.xlane.f32.xlu0 %v11238
      %v11240 = vpop.xlane.xlu0 %11239
      %v11241 = vsel %vm9516, %v10865, 0.0
      %11242 = vadd.xlane.f32.xlu0 %v11241
      %v11243 = vpop.xlane.xlu0 %11242
      %v11244 = vsel %vm9516, %v10866, 0.0
      %11245 = vadd.xlane.f32.xlu0 %v11244
      %v11246 = vpop.xlane.xlu0 %11245
      %v11247 = vsel %vm9516, %v10867, 0.0
      %11248 = vadd.xlane.f32.xlu0 %v11247
      %v11249 = vpop.xlane.xlu0 %11248
      %v11250 = vsel %vm9516, %v10868, 0.0
      %11251 = vadd.xlane.f32.xlu0 %v11250
      %v11252 = vpop.xlane.xlu0 %11251
      %s11253 = sld [smem:[#allocation2]]
      %v11254 = vstv %s11253
      %v11255 = vadd.f32 %v10871, %v11254
      %v11256 = vadd.f32 %v10874, %v11254
      %v11257 = vadd.f32 %v10877, %v11254
      %v11258 = vadd.f32 %v10880, %v11254
      %v11259 = vadd.f32 %v10883, %v11254
      %v11260 = vadd.f32 %v10886, %v11254
      %v11261 = vadd.f32 %v10889, %v11254
      %v11262 = vadd.f32 %v10892, %v11254
      %v11263 = vadd.f32 %v10895, %v11254
      %v11264 = vadd.f32 %v10898, %v11254
      %v11265 = vadd.f32 %v10901, %v11254
      %v11266 = vadd.f32 %v10904, %v11254
      %v11267 = vadd.f32 %v10907, %v11254
      %v11268 = vadd.f32 %v10910, %v11254
      %v11269 = vadd.f32 %v10913, %v11254
      %v11270 = vadd.f32 %v10916, %v11254
      %v11271 = vadd.f32 %v10919, %v11254
      %v11272 = vadd.f32 %v10922, %v11254
      %v11273 = vadd.f32 %v10925, %v11254
      %v11274 = vadd.f32 %v10928, %v11254
      %v11275 = vadd.f32 %v10931, %v11254
      %v11276 = vadd.f32 %v10934, %v11254
      %v11277 = vadd.f32 %v10937, %v11254
      %v11278 = vadd.f32 %v10940, %v11254
      %v11279 = vadd.f32 %v10943, %v11254
      %v11280 = vadd.f32 %v10946, %v11254
      %v11281 = vadd.f32 %v10949, %v11254
      %v11282 = vadd.f32 %v10952, %v11254
      %v11283 = vadd.f32 %v10955, %v11254
      %v11284 = vadd.f32 %v10958, %v11254
      %v11285 = vadd.f32 %v10961, %v11254
      %v11286 = vadd.f32 %v10964, %v11254
      %v11287 = vadd.f32 %v10967, %v11254
      %v11288 = vadd.f32 %v10970, %v11254
      %v11289 = vadd.f32 %v10973, %v11254
      %v11290 = vadd.f32 %v10976, %v11254
      %v11291 = vadd.f32 %v10979, %v11254
      %v11292 = vadd.f32 %v10982, %v11254
      %v11293 = vadd.f32 %v10985, %v11254
      %v11294 = vadd.f32 %v10988, %v11254
      %v11295 = vadd.f32 %v10991, %v11254
      %v11296 = vadd.f32 %v10994, %v11254
      %v11297 = vadd.f32 %v10997, %v11254
      %v11298 = vadd.f32 %v11000, %v11254
      %v11299 = vadd.f32 %v11003, %v11254
      %v11300 = vadd.f32 %v11006, %v11254
      %v11301 = vadd.f32 %v11009, %v11254
      %v11302 = vadd.f32 %v11012, %v11254
      %v11303 = vadd.f32 %v11015, %v11254
      %v11304 = vadd.f32 %v11018, %v11254
      %v11305 = vadd.f32 %v11021, %v11254
      %v11306 = vadd.f32 %v11024, %v11254
      %v11307 = vadd.f32 %v11027, %v11254
      %v11308 = vadd.f32 %v11030, %v11254
      %v11309 = vadd.f32 %v11033, %v11254
      %v11310 = vadd.f32 %v11036, %v11254
      %v11311 = vadd.f32 %v11039, %v11254
      %v11312 = vadd.f32 %v11042, %v11254
      %v11313 = vadd.f32 %v11045, %v11254
      %v11314 = vadd.f32 %v11048, %v11254
      %v11315 = vadd.f32 %v11051, %v11254
      %v11316 = vadd.f32 %v11054, %v11254
      %v11317 = vadd.f32 %v11057, %v11254
      %v11318 = vadd.f32 %v11060, %v11254
      %v11319 = vadd.f32 %v11063, %v11254
      %v11320 = vadd.f32 %v11066, %v11254
      %v11321 = vadd.f32 %v11069, %v11254
      %v11322 = vadd.f32 %v11072, %v11254
      %v11323 = vadd.f32 %v11075, %v11254
      %v11324 = vadd.f32 %v11078, %v11254
      %v11325 = vadd.f32 %v11081, %v11254
      %v11326 = vadd.f32 %v11084, %v11254
      %v11327 = vadd.f32 %v11087, %v11254
      %v11328 = vadd.f32 %v11090, %v11254
      %v11329 = vadd.f32 %v11093, %v11254
      %v11330 = vadd.f32 %v11096, %v11254
      %v11331 = vadd.f32 %v11099, %v11254
      %v11332 = vadd.f32 %v11102, %v11254
      %v11333 = vadd.f32 %v11105, %v11254
      %v11334 = vadd.f32 %v11108, %v11254
      %v11335 = vadd.f32 %v11111, %v11254
      %v11336 = vadd.f32 %v11114, %v11254
      %v11337 = vadd.f32 %v11117, %v11254
      %v11338 = vadd.f32 %v11120, %v11254
      %v11339 = vadd.f32 %v11123, %v11254
      %v11340 = vadd.f32 %v11126, %v11254
      %v11341 = vadd.f32 %v11129, %v11254
      %v11342 = vadd.f32 %v11132, %v11254
      %v11343 = vadd.f32 %v11135, %v11254
      %v11344 = vadd.f32 %v11138, %v11254
      %v11345 = vadd.f32 %v11141, %v11254
      %v11346 = vadd.f32 %v11144, %v11254
      %v11347 = vadd.f32 %v11147, %v11254
      %v11348 = vadd.f32 %v11150, %v11254
      %v11349 = vadd.f32 %v11153, %v11254
      %v11350 = vadd.f32 %v11156, %v11254
      %v11351 = vadd.f32 %v11159, %v11254
      %v11352 = vadd.f32 %v11162, %v11254
      %v11353 = vadd.f32 %v11165, %v11254
      %v11354 = vadd.f32 %v11168, %v11254
      %v11355 = vadd.f32 %v11171, %v11254
      %v11356 = vadd.f32 %v11174, %v11254
      %v11357 = vadd.f32 %v11177, %v11254
      %v11358 = vadd.f32 %v11180, %v11254
      %v11359 = vadd.f32 %v11183, %v11254
      %v11360 = vadd.f32 %v11186, %v11254
      %v11361 = vadd.f32 %v11189, %v11254
      %v11362 = vadd.f32 %v11192, %v11254
      %v11363 = vadd.f32 %v11195, %v11254
      %v11364 = vadd.f32 %v11198, %v11254
      %v11365 = vadd.f32 %v11201, %v11254
      %v11366 = vadd.f32 %v11204, %v11254
      %v11367 = vadd.f32 %v11207, %v11254
      %v11368 = vadd.f32 %v11210, %v11254
      %v11369 = vadd.f32 %v11213, %v11254
      %v11370 = vadd.f32 %v11216, %v11254
      %v11371 = vadd.f32 %v11219, %v11254
      %v11372 = vadd.f32 %v11222, %v11254
      %v11373 = vadd.f32 %v11225, %v11254
      %v11374 = vadd.f32 %v11228, %v11254
      %v11375 = vadd.f32 %v11231, %v11254
      %v11376 = vadd.f32 %v11234, %v11254
      %v11377 = vadd.f32 %v11237, %v11254
      %v11378 = vadd.f32 %v11240, %v11254
      %v11379 = vadd.f32 %v11243, %v11254
      %v11380 = vadd.f32 %v11246, %v11254
      %v11381 = vadd.f32 %v11249, %v11254
      %v11382 = vadd.f32 %v11252, %v11254
      %v11511 = vlaneseq
      %v11512 = vshrl.u32 %v11511, 7
      %v11513 = vsub.s32 %v4097, %v11512
      %v11514 = vrot.slane %v11255, %v11513
      %v11515 = vadd.s32 %v4097, 4294967288
      %v11516 = vlaneseq
      %v11517 = vshrl.u32 %v11516, 7
      %v11518 = vsub.s32 %v11515, %v11517
      %v11519 = vrot.slane %v11256, %v11518
      %vm11520 = vcmask 130112
      %v11521 = vsel %vm11520, %v11519, %v11514
      %v11522 = vlaneseq
      %v11523 = vshrl.u32 %v11522, 7
      %v11524 = vsub.s32 %v4097, %v11523
      %v11525 = vrot.slane %v11257, %v11524
      %v11526 = vlaneseq
      %v11527 = vshrl.u32 %v11526, 7
      %v11528 = vsub.s32 %v11515, %v11527
      %v11529 = vrot.slane %v11258, %v11528
      %v11530 = vsel %vm11520, %v11529, %v11525
      %v11531 = vlaneseq
      %v11532 = vshrl.u32 %v11531, 7
      %v11533 = vsub.s32 %v4097, %v11532
      %v11534 = vrot.slane %v11259, %v11533
      %v11535 = vlaneseq
      %v11536 = vshrl.u32 %v11535, 7
      %v11537 = vsub.s32 %v11515, %v11536
      %v11538 = vrot.slane %v11260, %v11537
      %v11539 = vsel %vm11520, %v11538, %v11534
      %v11540 = vlaneseq
      %v11541 = vshrl.u32 %v11540, 7
      %v11542 = vsub.s32 %v4097, %v11541
      %v11543 = vrot.slane %v11261, %v11542
      %v11544 = vlaneseq
      %v11545 = vshrl.u32 %v11544, 7
      %v11546 = vsub.s32 %v11515, %v11545
      %v11547 = vrot.slane %v11262, %v11546
      %v11548 = vsel %vm11520, %v11547, %v11543
      %v11549 = vlaneseq
      %v11550 = vshrl.u32 %v11549, 7
      %v11551 = vsub.s32 %v4097, %v11550
      %v11552 = vrot.slane %v11263, %v11551
      %v11553 = vlaneseq
      %v11554 = vshrl.u32 %v11553, 7
      %v11555 = vsub.s32 %v11515, %v11554
      %v11556 = vrot.slane %v11264, %v11555
      %v11557 = vsel %vm11520, %v11556, %v11552
      %v11558 = vlaneseq
      %v11559 = vshrl.u32 %v11558, 7
      %v11560 = vsub.s32 %v4097, %v11559
      %v11561 = vrot.slane %v11265, %v11560
      %v11562 = vlaneseq
      %v11563 = vshrl.u32 %v11562, 7
      %v11564 = vsub.s32 %v11515, %v11563
      %v11565 = vrot.slane %v11266, %v11564
      %v11566 = vsel %vm11520, %v11565, %v11561
      %v11567 = vlaneseq
      %v11568 = vshrl.u32 %v11567, 7
      %v11569 = vsub.s32 %v4097, %v11568
      %v11570 = vrot.slane %v11267, %v11569
      %v11571 = vlaneseq
      %v11572 = vshrl.u32 %v11571, 7
      %v11573 = vsub.s32 %v11515, %v11572
      %v11574 = vrot.slane %v11268, %v11573
      %v11575 = vsel %vm11520, %v11574, %v11570
      %v11576 = vlaneseq
      %v11577 = vshrl.u32 %v11576, 7
      %v11578 = vsub.s32 %v4097, %v11577
      %v11579 = vrot.slane %v11269, %v11578
      %v11580 = vlaneseq
      %v11581 = vshrl.u32 %v11580, 7
      %v11582 = vsub.s32 %v11515, %v11581
      %v11583 = vrot.slane %v11270, %v11582
      %v11584 = vsel %vm11520, %v11583, %v11579
      %v11585 = vlaneseq
      %v11586 = vshrl.u32 %v11585, 7
      %v11587 = vsub.s32 %v4097, %v11586
      %v11588 = vrot.slane %v11271, %v11587
      %v11589 = vlaneseq
      %v11590 = vshrl.u32 %v11589, 7
      %v11591 = vsub.s32 %v11515, %v11590
      %v11592 = vrot.slane %v11272, %v11591
      %v11593 = vsel %vm11520, %v11592, %v11588
      %v11594 = vlaneseq
      %v11595 = vshrl.u32 %v11594, 7
      %v11596 = vsub.s32 %v4097, %v11595
      %v11597 = vrot.slane %v11273, %v11596
      %v11598 = vlaneseq
      %v11599 = vshrl.u32 %v11598, 7
      %v11600 = vsub.s32 %v11515, %v11599
      %v11601 = vrot.slane %v11274, %v11600
      %v11602 = vsel %vm11520, %v11601, %v11597
      %v11603 = vlaneseq
      %v11604 = vshrl.u32 %v11603, 7
      %v11605 = vsub.s32 %v4097, %v11604
      %v11606 = vrot.slane %v11275, %v11605
      %v11607 = vlaneseq
      %v11608 = vshrl.u32 %v11607, 7
      %v11609 = vsub.s32 %v11515, %v11608
      %v11610 = vrot.slane %v11276, %v11609
      %v11611 = vsel %vm11520, %v11610, %v11606
      %v11612 = vlaneseq
      %v11613 = vshrl.u32 %v11612, 7
      %v11614 = vsub.s32 %v4097, %v11613
      %v11615 = vrot.slane %v11277, %v11614
      %v11616 = vlaneseq
      %v11617 = vshrl.u32 %v11616, 7
      %v11618 = vsub.s32 %v11515, %v11617
      %v11619 = vrot.slane %v11278, %v11618
      %v11620 = vsel %vm11520, %v11619, %v11615
      %v11621 = vlaneseq
      %v11622 = vshrl.u32 %v11621, 7
      %v11623 = vsub.s32 %v4097, %v11622
      %v11624 = vrot.slane %v11279, %v11623
      %v11625 = vlaneseq
      %v11626 = vshrl.u32 %v11625, 7
      %v11627 = vsub.s32 %v11515, %v11626
      %v11628 = vrot.slane %v11280, %v11627
      %v11629 = vsel %vm11520, %v11628, %v11624
      %v11630 = vlaneseq
      %v11631 = vshrl.u32 %v11630, 7
      %v11632 = vsub.s32 %v4097, %v11631
      %v11633 = vrot.slane %v11281, %v11632
      %v11634 = vlaneseq
      %v11635 = vshrl.u32 %v11634, 7
      %v11636 = vsub.s32 %v11515, %v11635
      %v11637 = vrot.slane %v11282, %v11636
      %v11638 = vsel %vm11520, %v11637, %v11633
      %v11639 = vlaneseq
      %v11640 = vshrl.u32 %v11639, 7
      %v11641 = vsub.s32 %v4097, %v11640
      %v11642 = vrot.slane %v11283, %v11641
      %v11643 = vlaneseq
      %v11644 = vshrl.u32 %v11643, 7
      %v11645 = vsub.s32 %v11515, %v11644
      %v11646 = vrot.slane %v11284, %v11645
      %v11647 = vsel %vm11520, %v11646, %v11642
      %v11648 = vlaneseq
      %v11649 = vshrl.u32 %v11648, 7
      %v11650 = vsub.s32 %v4097, %v11649
      %v11651 = vrot.slane %v11285, %v11650
      %v11652 = vlaneseq
      %v11653 = vshrl.u32 %v11652, 7
      %v11654 = vsub.s32 %v11515, %v11653
      %v11655 = vrot.slane %v11286, %v11654
      %v11656 = vsel %vm11520, %v11655, %v11651
      %v11657 = vlaneseq
      %v11658 = vshrl.u32 %v11657, 7
      %v11659 = vsub.s32 %v4097, %v11658
      %v11660 = vrot.slane %v11287, %v11659
      %v11661 = vlaneseq
      %v11662 = vshrl.u32 %v11661, 7
      %v11663 = vsub.s32 %v11515, %v11662
      %v11664 = vrot.slane %v11288, %v11663
      %v11665 = vsel %vm11520, %v11664, %v11660
      %v11666 = vlaneseq
      %v11667 = vshrl.u32 %v11666, 7
      %v11668 = vsub.s32 %v4097, %v11667
      %v11669 = vrot.slane %v11289, %v11668
      %v11670 = vlaneseq
      %v11671 = vshrl.u32 %v11670, 7
      %v11672 = vsub.s32 %v11515, %v11671
      %v11673 = vrot.slane %v11290, %v11672
      %v11674 = vsel %vm11520, %v11673, %v11669
      %v11675 = vlaneseq
      %v11676 = vshrl.u32 %v11675, 7
      %v11677 = vsub.s32 %v4097, %v11676
      %v11678 = vrot.slane %v11291, %v11677
      %v11679 = vlaneseq
      %v11680 = vshrl.u32 %v11679, 7
      %v11681 = vsub.s32 %v11515, %v11680
      %v11682 = vrot.slane %v11292, %v11681
      %v11683 = vsel %vm11520, %v11682, %v11678
      %v11684 = vlaneseq
      %v11685 = vshrl.u32 %v11684, 7
      %v11686 = vsub.s32 %v4097, %v11685
      %v11687 = vrot.slane %v11293, %v11686
      %v11688 = vlaneseq
      %v11689 = vshrl.u32 %v11688, 7
      %v11690 = vsub.s32 %v11515, %v11689
      %v11691 = vrot.slane %v11294, %v11690
      %v11692 = vsel %vm11520, %v11691, %v11687
      %v11693 = vlaneseq
      %v11694 = vshrl.u32 %v11693, 7
      %v11695 = vsub.s32 %v4097, %v11694
      %v11696 = vrot.slane %v11295, %v11695
      %v11697 = vlaneseq
      %v11698 = vshrl.u32 %v11697, 7
      %v11699 = vsub.s32 %v11515, %v11698
      %v11700 = vrot.slane %v11296, %v11699
      %v11701 = vsel %vm11520, %v11700, %v11696
      %v11702 = vlaneseq
      %v11703 = vshrl.u32 %v11702, 7
      %v11704 = vsub.s32 %v4097, %v11703
      %v11705 = vrot.slane %v11297, %v11704
      %v11706 = vlaneseq
      %v11707 = vshrl.u32 %v11706, 7
      %v11708 = vsub.s32 %v11515, %v11707
      %v11709 = vrot.slane %v11298, %v11708
      %v11710 = vsel %vm11520, %v11709, %v11705
      %v11711 = vlaneseq
      %v11712 = vshrl.u32 %v11711, 7
      %v11713 = vsub.s32 %v4097, %v11712
      %v11714 = vrot.slane %v11299, %v11713
      %v11715 = vlaneseq
      %v11716 = vshrl.u32 %v11715, 7
      %v11717 = vsub.s32 %v11515, %v11716
      %v11718 = vrot.slane %v11300, %v11717
      %v11719 = vsel %vm11520, %v11718, %v11714
      %v11720 = vlaneseq
      %v11721 = vshrl.u32 %v11720, 7
      %v11722 = vsub.s32 %v4097, %v11721
      %v11723 = vrot.slane %v11301, %v11722
      %v11724 = vlaneseq
      %v11725 = vshrl.u32 %v11724, 7
      %v11726 = vsub.s32 %v11515, %v11725
      %v11727 = vrot.slane %v11302, %v11726
      %v11728 = vsel %vm11520, %v11727, %v11723
      %v11729 = vlaneseq
      %v11730 = vshrl.u32 %v11729, 7
      %v11731 = vsub.s32 %v4097, %v11730
      %v11732 = vrot.slane %v11303, %v11731
      %v11733 = vlaneseq
      %v11734 = vshrl.u32 %v11733, 7
      %v11735 = vsub.s32 %v11515, %v11734
      %v11736 = vrot.slane %v11304, %v11735
      %v11737 = vsel %vm11520, %v11736, %v11732
      %v11738 = vlaneseq
      %v11739 = vshrl.u32 %v11738, 7
      %v11740 = vsub.s32 %v4097, %v11739
      %v11741 = vrot.slane %v11305, %v11740
      %v11742 = vlaneseq
      %v11743 = vshrl.u32 %v11742, 7
      %v11744 = vsub.s32 %v11515, %v11743
      %v11745 = vrot.slane %v11306, %v11744
      %v11746 = vsel %vm11520, %v11745, %v11741
      %v11747 = vlaneseq
      %v11748 = vshrl.u32 %v11747, 7
      %v11749 = vsub.s32 %v4097, %v11748
      %v11750 = vrot.slane %v11307, %v11749
      %v11751 = vlaneseq
      %v11752 = vshrl.u32 %v11751, 7
      %v11753 = vsub.s32 %v11515, %v11752
      %v11754 = vrot.slane %v11308, %v11753
      %v11755 = vsel %vm11520, %v11754, %v11750
      %v11756 = vlaneseq
      %v11757 = vshrl.u32 %v11756, 7
      %v11758 = vsub.s32 %v4097, %v11757
      %v11759 = vrot.slane %v11309, %v11758
      %v11760 = vlaneseq
      %v11761 = vshrl.u32 %v11760, 7
      %v11762 = vsub.s32 %v11515, %v11761
      %v11763 = vrot.slane %v11310, %v11762
      %v11764 = vsel %vm11520, %v11763, %v11759
      %v11765 = vlaneseq
      %v11766 = vshrl.u32 %v11765, 7
      %v11767 = vsub.s32 %v4097, %v11766
      %v11768 = vrot.slane %v11311, %v11767
      %v11769 = vlaneseq
      %v11770 = vshrl.u32 %v11769, 7
      %v11771 = vsub.s32 %v11515, %v11770
      %v11772 = vrot.slane %v11312, %v11771
      %v11773 = vsel %vm11520, %v11772, %v11768
      %v11774 = vlaneseq
      %v11775 = vshrl.u32 %v11774, 7
      %v11776 = vsub.s32 %v4097, %v11775
      %v11777 = vrot.slane %v11313, %v11776
      %v11778 = vlaneseq
      %v11779 = vshrl.u32 %v11778, 7
      %v11780 = vsub.s32 %v11515, %v11779
      %v11781 = vrot.slane %v11314, %v11780
      %v11782 = vsel %vm11520, %v11781, %v11777
      %v11783 = vlaneseq
      %v11784 = vshrl.u32 %v11783, 7
      %v11785 = vsub.s32 %v4097, %v11784
      %v11786 = vrot.slane %v11315, %v11785
      %v11787 = vlaneseq
      %v11788 = vshrl.u32 %v11787, 7
      %v11789 = vsub.s32 %v11515, %v11788
      %v11790 = vrot.slane %v11316, %v11789
      %v11791 = vsel %vm11520, %v11790, %v11786
      %v11792 = vlaneseq
      %v11793 = vshrl.u32 %v11792, 7
      %v11794 = vsub.s32 %v4097, %v11793
      %v11795 = vrot.slane %v11317, %v11794
      %v11796 = vlaneseq
      %v11797 = vshrl.u32 %v11796, 7
      %v11798 = vsub.s32 %v11515, %v11797
      %v11799 = vrot.slane %v11318, %v11798
      %v11800 = vsel %vm11520, %v11799, %v11795
      %v11801 = vlaneseq
      %v11802 = vshrl.u32 %v11801, 7
      %v11803 = vsub.s32 %v4097, %v11802
      %v11804 = vrot.slane %v11319, %v11803
      %v11805 = vlaneseq
      %v11806 = vshrl.u32 %v11805, 7
      %v11807 = vsub.s32 %v11515, %v11806
      %v11808 = vrot.slane %v11320, %v11807
      %v11809 = vsel %vm11520, %v11808, %v11804
      %v11810 = vlaneseq
      %v11811 = vshrl.u32 %v11810, 7
      %v11812 = vsub.s32 %v4097, %v11811
      %v11813 = vrot.slane %v11321, %v11812
      %v11814 = vlaneseq
      %v11815 = vshrl.u32 %v11814, 7
      %v11816 = vsub.s32 %v11515, %v11815
      %v11817 = vrot.slane %v11322, %v11816
      %v11818 = vsel %vm11520, %v11817, %v11813
      %v11819 = vlaneseq
      %v11820 = vshrl.u32 %v11819, 7
      %v11821 = vsub.s32 %v4097, %v11820
      %v11822 = vrot.slane %v11323, %v11821
      %v11823 = vlaneseq
      %v11824 = vshrl.u32 %v11823, 7
      %v11825 = vsub.s32 %v11515, %v11824
      %v11826 = vrot.slane %v11324, %v11825
      %v11827 = vsel %vm11520, %v11826, %v11822
      %v11828 = vlaneseq
      %v11829 = vshrl.u32 %v11828, 7
      %v11830 = vsub.s32 %v4097, %v11829
      %v11831 = vrot.slane %v11325, %v11830
      %v11832 = vlaneseq
      %v11833 = vshrl.u32 %v11832, 7
      %v11834 = vsub.s32 %v11515, %v11833
      %v11835 = vrot.slane %v11326, %v11834
      %v11836 = vsel %vm11520, %v11835, %v11831
      %v11837 = vlaneseq
      %v11838 = vshrl.u32 %v11837, 7
      %v11839 = vsub.s32 %v4097, %v11838
      %v11840 = vrot.slane %v11327, %v11839
      %v11841 = vlaneseq
      %v11842 = vshrl.u32 %v11841, 7
      %v11843 = vsub.s32 %v11515, %v11842
      %v11844 = vrot.slane %v11328, %v11843
      %v11845 = vsel %vm11520, %v11844, %v11840
      %v11846 = vlaneseq
      %v11847 = vshrl.u32 %v11846, 7
      %v11848 = vsub.s32 %v4097, %v11847
      %v11849 = vrot.slane %v11329, %v11848
      %v11850 = vlaneseq
      %v11851 = vshrl.u32 %v11850, 7
      %v11852 = vsub.s32 %v11515, %v11851
      %v11853 = vrot.slane %v11330, %v11852
      %v11854 = vsel %vm11520, %v11853, %v11849
      %v11855 = vlaneseq
      %v11856 = vshrl.u32 %v11855, 7
      %v11857 = vsub.s32 %v4097, %v11856
      %v11858 = vrot.slane %v11331, %v11857
      %v11859 = vlaneseq
      %v11860 = vshrl.u32 %v11859, 7
      %v11861 = vsub.s32 %v11515, %v11860
      %v11862 = vrot.slane %v11332, %v11861
      %v11863 = vsel %vm11520, %v11862, %v11858
      %v11864 = vlaneseq
      %v11865 = vshrl.u32 %v11864, 7
      %v11866 = vsub.s32 %v4097, %v11865
      %v11867 = vrot.slane %v11333, %v11866
      %v11868 = vlaneseq
      %v11869 = vshrl.u32 %v11868, 7
      %v11870 = vsub.s32 %v11515, %v11869
      %v11871 = vrot.slane %v11334, %v11870
      %v11872 = vsel %vm11520, %v11871, %v11867
      %v11873 = vlaneseq
      %v11874 = vshrl.u32 %v11873, 7
      %v11875 = vsub.s32 %v4097, %v11874
      %v11876 = vrot.slane %v11335, %v11875
      %v11877 = vlaneseq
      %v11878 = vshrl.u32 %v11877, 7
      %v11879 = vsub.s32 %v11515, %v11878
      %v11880 = vrot.slane %v11336, %v11879
      %v11881 = vsel %vm11520, %v11880, %v11876
      %v11882 = vlaneseq
      %v11883 = vshrl.u32 %v11882, 7
      %v11884 = vsub.s32 %v4097, %v11883
      %v11885 = vrot.slane %v11337, %v11884
      %v11886 = vlaneseq
      %v11887 = vshrl.u32 %v11886, 7
      %v11888 = vsub.s32 %v11515, %v11887
      %v11889 = vrot.slane %v11338, %v11888
      %v11890 = vsel %vm11520, %v11889, %v11885
      %v11891 = vlaneseq
      %v11892 = vshrl.u32 %v11891, 7
      %v11893 = vsub.s32 %v4097, %v11892
      %v11894 = vrot.slane %v11339, %v11893
      %v11895 = vlaneseq
      %v11896 = vshrl.u32 %v11895, 7
      %v11897 = vsub.s32 %v11515, %v11896
      %v11898 = vrot.slane %v11340, %v11897
      %v11899 = vsel %vm11520, %v11898, %v11894
      %v11900 = vlaneseq
      %v11901 = vshrl.u32 %v11900, 7
      %v11902 = vsub.s32 %v4097, %v11901
      %v11903 = vrot.slane %v11341, %v11902
      %v11904 = vlaneseq
      %v11905 = vshrl.u32 %v11904, 7
      %v11906 = vsub.s32 %v11515, %v11905
      %v11907 = vrot.slane %v11342, %v11906
      %v11908 = vsel %vm11520, %v11907, %v11903
      %v11909 = vlaneseq
      %v11910 = vshrl.u32 %v11909, 7
      %v11911 = vsub.s32 %v4097, %v11910
      %v11912 = vrot.slane %v11343, %v11911
      %v11913 = vlaneseq
      %v11914 = vshrl.u32 %v11913, 7
      %v11915 = vsub.s32 %v11515, %v11914
      %v11916 = vrot.slane %v11344, %v11915
      %v11917 = vsel %vm11520, %v11916, %v11912
      %v11918 = vlaneseq
      %v11919 = vshrl.u32 %v11918, 7
      %v11920 = vsub.s32 %v4097, %v11919
      %v11921 = vrot.slane %v11345, %v11920
      %v11922 = vlaneseq
      %v11923 = vshrl.u32 %v11922, 7
      %v11924 = vsub.s32 %v11515, %v11923
      %v11925 = vrot.slane %v11346, %v11924
      %v11926 = vsel %vm11520, %v11925, %v11921
      %v11927 = vlaneseq
      %v11928 = vshrl.u32 %v11927, 7
      %v11929 = vsub.s32 %v4097, %v11928
      %v11930 = vrot.slane %v11347, %v11929
      %v11931 = vlaneseq
      %v11932 = vshrl.u32 %v11931, 7
      %v11933 = vsub.s32 %v11515, %v11932
      %v11934 = vrot.slane %v11348, %v11933
      %v11935 = vsel %vm11520, %v11934, %v11930
      %v11936 = vlaneseq
      %v11937 = vshrl.u32 %v11936, 7
      %v11938 = vsub.s32 %v4097, %v11937
      %v11939 = vrot.slane %v11349, %v11938
      %v11940 = vlaneseq
      %v11941 = vshrl.u32 %v11940, 7
      %v11942 = vsub.s32 %v11515, %v11941
      %v11943 = vrot.slane %v11350, %v11942
      %v11944 = vsel %vm11520, %v11943, %v11939
      %v11945 = vlaneseq
      %v11946 = vshrl.u32 %v11945, 7
      %v11947 = vsub.s32 %v4097, %v11946
      %v11948 = vrot.slane %v11351, %v11947
      %v11949 = vlaneseq
      %v11950 = vshrl.u32 %v11949, 7
      %v11951 = vsub.s32 %v11515, %v11950
      %v11952 = vrot.slane %v11352, %v11951
      %v11953 = vsel %vm11520, %v11952, %v11948
      %v11954 = vlaneseq
      %v11955 = vshrl.u32 %v11954, 7
      %v11956 = vsub.s32 %v4097, %v11955
      %v11957 = vrot.slane %v11353, %v11956
      %v11958 = vlaneseq
      %v11959 = vshrl.u32 %v11958, 7
      %v11960 = vsub.s32 %v11515, %v11959
      %v11961 = vrot.slane %v11354, %v11960
      %v11962 = vsel %vm11520, %v11961, %v11957
      %v11963 = vlaneseq
      %v11964 = vshrl.u32 %v11963, 7
      %v11965 = vsub.s32 %v4097, %v11964
      %v11966 = vrot.slane %v11355, %v11965
      %v11967 = vlaneseq
      %v11968 = vshrl.u32 %v11967, 7
      %v11969 = vsub.s32 %v11515, %v11968
      %v11970 = vrot.slane %v11356, %v11969
      %v11971 = vsel %vm11520, %v11970, %v11966
      %v11972 = vlaneseq
      %v11973 = vshrl.u32 %v11972, 7
      %v11974 = vsub.s32 %v4097, %v11973
      %v11975 = vrot.slane %v11357, %v11974
      %v11976 = vlaneseq
      %v11977 = vshrl.u32 %v11976, 7
      %v11978 = vsub.s32 %v11515, %v11977
      %v11979 = vrot.slane %v11358, %v11978
      %v11980 = vsel %vm11520, %v11979, %v11975
      %v11981 = vlaneseq
      %v11982 = vshrl.u32 %v11981, 7
      %v11983 = vsub.s32 %v4097, %v11982
      %v11984 = vrot.slane %v11359, %v11983
      %v11985 = vlaneseq
      %v11986 = vshrl.u32 %v11985, 7
      %v11987 = vsub.s32 %v11515, %v11986
      %v11988 = vrot.slane %v11360, %v11987
      %v11989 = vsel %vm11520, %v11988, %v11984
      %v11990 = vlaneseq
      %v11991 = vshrl.u32 %v11990, 7
      %v11992 = vsub.s32 %v4097, %v11991
      %v11993 = vrot.slane %v11361, %v11992
      %v11994 = vlaneseq
      %v11995 = vshrl.u32 %v11994, 7
      %v11996 = vsub.s32 %v11515, %v11995
      %v11997 = vrot.slane %v11362, %v11996
      %v11998 = vsel %vm11520, %v11997, %v11993
      %v11999 = vlaneseq
      %v12000 = vshrl.u32 %v11999, 7
      %v12001 = vsub.s32 %v4097, %v12000
      %v12002 = vrot.slane %v11363, %v12001
      %v12003 = vlaneseq
      %v12004 = vshrl.u32 %v12003, 7
      %v12005 = vsub.s32 %v11515, %v12004
      %v12006 = vrot.slane %v11364, %v12005
      %v12007 = vsel %vm11520, %v12006, %v12002
      %v12008 = vlaneseq
      %v12009 = vshrl.u32 %v12008, 7
      %v12010 = vsub.s32 %v4097, %v12009
      %v12011 = vrot.slane %v11365, %v12010
      %v12012 = vlaneseq
      %v12013 = vshrl.u32 %v12012, 7
      %v12014 = vsub.s32 %v11515, %v12013
      %v12015 = vrot.slane %v11366, %v12014
      %v12016 = vsel %vm11520, %v12015, %v12011
      %v12017 = vlaneseq
      %v12018 = vshrl.u32 %v12017, 7
      %v12019 = vsub.s32 %v4097, %v12018
      %v12020 = vrot.slane %v11367, %v12019
      %v12021 = vlaneseq
      %v12022 = vshrl.u32 %v12021, 7
      %v12023 = vsub.s32 %v11515, %v12022
      %v12024 = vrot.slane %v11368, %v12023
      %v12025 = vsel %vm11520, %v12024, %v12020
      %v12026 = vlaneseq
      %v12027 = vshrl.u32 %v12026, 7
      %v12028 = vsub.s32 %v4097, %v12027
      %v12029 = vrot.slane %v11369, %v12028
      %v12030 = vlaneseq
      %v12031 = vshrl.u32 %v12030, 7
      %v12032 = vsub.s32 %v11515, %v12031
      %v12033 = vrot.slane %v11370, %v12032
      %v12034 = vsel %vm11520, %v12033, %v12029
      %v12035 = vlaneseq
      %v12036 = vshrl.u32 %v12035, 7
      %v12037 = vsub.s32 %v4097, %v12036
      %v12038 = vrot.slane %v11371, %v12037
      %v12039 = vlaneseq
      %v12040 = vshrl.u32 %v12039, 7
      %v12041 = vsub.s32 %v11515, %v12040
      %v12042 = vrot.slane %v11372, %v12041
      %v12043 = vsel %vm11520, %v12042, %v12038
      %v12044 = vlaneseq
      %v12045 = vshrl.u32 %v12044, 7
      %v12046 = vsub.s32 %v4097, %v12045
      %v12047 = vrot.slane %v11373, %v12046
      %v12048 = vlaneseq
      %v12049 = vshrl.u32 %v12048, 7
      %v12050 = vsub.s32 %v11515, %v12049
      %v12051 = vrot.slane %v11374, %v12050
      %v12052 = vsel %vm11520, %v12051, %v12047
      %v12053 = vlaneseq
      %v12054 = vshrl.u32 %v12053, 7
      %v12055 = vsub.s32 %v4097, %v12054
      %v12056 = vrot.slane %v11375, %v12055
      %v12057 = vlaneseq
      %v12058 = vshrl.u32 %v12057, 7
      %v12059 = vsub.s32 %v11515, %v12058
      %v12060 = vrot.slane %v11376, %v12059
      %v12061 = vsel %vm11520, %v12060, %v12056
      %v12062 = vlaneseq
      %v12063 = vshrl.u32 %v12062, 7
      %v12064 = vsub.s32 %v4097, %v12063
      %v12065 = vrot.slane %v11377, %v12064
      %v12066 = vlaneseq
      %v12067 = vshrl.u32 %v12066, 7
      %v12068 = vsub.s32 %v11515, %v12067
      %v12069 = vrot.slane %v11378, %v12068
      %v12070 = vsel %vm11520, %v12069, %v12065
      %v12071 = vlaneseq
      %v12072 = vshrl.u32 %v12071, 7
      %v12073 = vsub.s32 %v4097, %v12072
      %v12074 = vrot.slane %v11379, %v12073
      %v12075 = vlaneseq
      %v12076 = vshrl.u32 %v12075, 7
      %v12077 = vsub.s32 %v11515, %v12076
      %v12078 = vrot.slane %v11380, %v12077
      %v12079 = vsel %vm11520, %v12078, %v12074
      %v12080 = vlaneseq
      %v12081 = vshrl.u32 %v12080, 7
      %v12082 = vsub.s32 %v4097, %v12081
      %v12083 = vrot.slane %v11381, %v12082
      %v12084 = vlaneseq
      %v12085 = vshrl.u32 %v12084, 7
      %v12086 = vsub.s32 %v11515, %v12085
      %v12087 = vrot.slane %v11382, %v12086
      %v12088 = vsel %vm11520, %v12087, %v12083
      %vm12089 = vcmask 1041409
      %v12090 = vsel %vm12089, %v11530, %v11521
      %vm12091 = vcmask 1042434
      %v12092 = vsel %vm12091, %v11539, %v12090
      %vm12093 = vcmask 1043459
      %v12094 = vsel %vm12093, %v11548, %v12092
      %vm12095 = vcmask 1044484
      %v12096 = vsel %vm12095, %v11557, %v12094
      %vm12097 = vcmask 1045509
      %v12098 = vsel %vm12097, %v11566, %v12096
      %vm12099 = vcmask 1046534
      %v12100 = vsel %vm12099, %v11575, %v12098
      %vm12101 = vcmask 1047559
      %v12102 = vsel %vm12101, %v11584, %v12100
      %v12103 = vsel %vm12089, %v11602, %v11593
      %v12104 = vsel %vm12091, %v11611, %v12103
      %v12105 = vsel %vm12093, %v11620, %v12104
      %v12106 = vsel %vm12095, %v11629, %v12105
      %v12107 = vsel %vm12097, %v11638, %v12106
      %v12108 = vsel %vm12099, %v11647, %v12107
      %v12109 = vsel %vm12101, %v11656, %v12108
      %v12110 = vsel %vm12089, %v11674, %v11665
      %v12111 = vsel %vm12091, %v11683, %v12110
      %v12112 = vsel %vm12093, %v11692, %v12111
      %v12113 = vsel %vm12095, %v11701, %v12112
      %v12114 = vsel %vm12097, %v11710, %v12113
      %v12115 = vsel %vm12099, %v11719, %v12114
      %v12116 = vsel %vm12101, %v11728, %v12115
      %v12117 = vsel %vm12089, %v11746, %v11737
      %v12118 = vsel %vm12091, %v11755, %v12117
      %v12119 = vsel %vm12093, %v11764, %v12118
      %v12120 = vsel %vm12095, %v11773, %v12119
      %v12121 = vsel %vm12097, %v11782, %v12120
      %v12122 = vsel %vm12099, %v11791, %v12121
      %v12123 = vsel %vm12101, %v11800, %v12122
      %v12124 = vsel %vm12089, %v11818, %v11809
      %v12125 = vsel %vm12091, %v11827, %v12124
      %v12126 = vsel %vm12093, %v11836, %v12125
      %v12127 = vsel %vm12095, %v11845, %v12126
      %v12128 = vsel %vm12097, %v11854, %v12127
      %v12129 = vsel %vm12099, %v11863, %v12128
      %v12130 = vsel %vm12101, %v11872, %v12129
      %v12131 = vsel %vm12089, %v11890, %v11881
      %v12132 = vsel %vm12091, %v11899, %v12131
      %v12133 = vsel %vm12093, %v11908, %v12132
      %v12134 = vsel %vm12095, %v11917, %v12133
      %v12135 = vsel %vm12097, %v11926, %v12134
      %v12136 = vsel %vm12099, %v11935, %v12135
      %v12137 = vsel %vm12101, %v11944, %v12136
      %v12138 = vsel %vm12089, %v11962, %v11953
      %v12139 = vsel %vm12091, %v11971, %v12138
      %v12140 = vsel %vm12093, %v11980, %v12139
      %v12141 = vsel %vm12095, %v11989, %v12140
      %v12142 = vsel %vm12097, %v11998, %v12141
      %v12143 = vsel %vm12099, %v12007, %v12142
      %v12144 = vsel %vm12101, %v12016, %v12143
      %v12145 = vsel %vm12089, %v12034, %v12025
      %v12146 = vsel %vm12091, %v12043, %v12145
      %v12147 = vsel %vm12093, %v12052, %v12146
      %v12148 = vsel %vm12095, %v12061, %v12147
      %v12149 = vsel %vm12097, %v12070, %v12148
      %v12150 = vsel %vm12099, %v12079, %v12149
      %v12151 = vsel %vm12101, %v12088, %v12150
      %12160 = vst.msk [vmem:[%s379] sm:$0xff] %vm5065, %v12102
      %12161 = vst.msk [vmem:[%s379 + $0x8] sm:$0xff] %vm5065, %v12109
      %12162 = vst.msk [vmem:[%s379 + $0x10] sm:$0xff] %vm5065, %v12116
      %12163 = vst.msk [vmem:[%s379 + $0x18] sm:$0xff] %vm5065, %v12123
      %12164 = vst.msk [vmem:[%s379 + $0x20] sm:$0xff] %vm5065, %v12130
      %12165 = vst.msk [vmem:[%s379 + $0x28] sm:$0xff] %vm5065, %v12137
      %12166 = vst.msk [vmem:[%s379 + $0x30] sm:$0xff] %vm5065, %v12144
      %12167 = vst.msk [vmem:[%s379 + $0x38] sm:$0xff] %vm5065, %v12151
      %s12168 = smul.u32 8, %s21
      %p12169 = scmp.lt.s32.totalorder %s12168, 15
      %s12170 = scalar_select %p12169, %s12168, 15
      %s12171 = smul.addr %s12170, 8
      %s12172 = scalar_lea.vmem %s9, %s12171
      // Predicated region
      $region57: #{tpu_custom_call.1} parent=55 // pred_check
        %p12173 = pneg %p243
      $region58: #{tpu_custom_call.1} parent=55 // pred_check_branch
        %12175 = sbr.rel (%p12173) target = $region60
      $region59: #{tpu_custom_call.1} parent=55 // pred_region
        %s12176 = smul.u32 8, %s21
      $region60: #{tpu_custom_call.1} parent=55 // pred_fallthru
        _
    $region56: #{tpu_custom_call.1} parent=5 // pred_fallthru
      _
    %p12177 = scmp.le.s32.totalorder 2, %s16
    // Predicated region
    $region61: #{tpu_custom_call.1} parent=5 // pred_check
      %p12178 = pneg %p12177
    $region62: #{tpu_custom_call.1} parent=5 // pred_check_branch
      %12180 = sbr.rel (%p12178) target = $region64
    $region63: #{tpu_custom_call.1} parent=5 // pred_region
      %s12181 = ssub.s32 %s16, 2
      // Predicated region
      $region65: #{tpu_custom_call.1} parent=63 // pred_check
        %p12182 = pneg %p249
      $region66: #{tpu_custom_call.1} parent=63 // pred_check_branch
        %12184 = sbr.rel (%p12182) target = $region68
      $region67: #{tpu_custom_call.1} parent=63 // pred_region
        %s12185 = smul.u32 8, %s22
        %p12186 = scmp.lt.s32.totalorder %s12185, 15
        %s12187 = scalar_select %p12186, %s12185, 15
        %s12188 = smul.addr %s12187, 8
        %s12189 = scalar_lea.vmem %s9, %s12188
      $region68: #{tpu_custom_call.1} parent=63 // pred_fallthru
        _
    $region64: #{tpu_custom_call.1} parent=5 // pred_fallthru
      _
  $region6: #{tpu_custom_call.1} parent=0 // loop_footer
    %s20 = sadd.s32 1, %s16
  $region7: #{tpu_custom_call.1} parent=0 // loop_footer_branch
    %15 = sbr.rel target = $region3
  $region8: #{tpu_custom_call.1} parent=0 // loop_exit
    _

</llo_original>
